<compile_context>
chip_gen: v7x
topology: tpu7x:2x2x1
jax: 0.10.0
libtpu: 0.0.40
codegen_flags: <defaults>
</compile_context>

<pallas_src>
import functools
import math

import jax
import jax.numpy as jnp
from jax.experimental import pallas as pl
from jax.experimental.pallas import tpu as pltpu

_LANE = 128
_VMEM_LIMIT = 48 * 1024 * 1024  # fits v7x's 64 MiB physical VMEM with headroom


def _round_up(x, m):
    return (x + m - 1) // m * m


# ----------------------------------------------------------------------------
# Fused Conv3d + BatchNorm(affine, inference) + ReLU
# ----------------------------------------------------------------------------
def _conv_tap_kernel(offs_ref, x_ref, w_ref, scale_ref, bias_ref, o_ref,
                     acc_ref, *, m_rows, relu):
    t = pl.program_id(1)

    @pl.when(t == 0)
    def _init():
        acc_ref[...] = jnp.zeros_like(acc_ref)

    off = offs_ref[t]                               # scalar-prefetched tap offset
    a = x_ref[pl.ds(off, m_rows), :]                # (m_rows, Cp)  f32, from VMEM
    acc_ref[...] += jnp.dot(a.astype(jnp.bfloat16), w_ref[...],
                            preferred_element_type=jnp.float32)

    @pl.when(t == pl.num_programs(1) - 1)
    def _finalize():
        y = acc_ref[...] * scale_ref[...] + bias_ref[...]
        if relu:
            y = jnp.maximum(y, 0.0)
        o_ref[...] = y.astype(o_ref.dtype)


def conv3d_bn_relu(x, weight, bn_scale, bn_bias, *, stride, padding, relu=True):
    """x: (B, D, H, W, Cin) NDHWC; weight: (Cout, Cin, k, k, k) (PyTorch)."""
    B, D, H, W, Cin = x.shape
    Cout, Cin_w, kd, kh, kw = weight.shape
    assert Cin_w == Cin and kd == kh == kw
    k, s, p = kd, stride, padding

    Do = (D + 2 * p - k) // s + 1
    Ho = (H + 2 * p - k) // s + 1
    Wo = (W + 2 * p - k) // s + 1
    k2 = -(-k // s)                                  # taps per axis after phase fold
    D2 = max(-(-(D + 2 * p) // s), Do + k2 - 1)      # phase-folded extents
    H2 = max(-(-(H + 2 * p) // s), Ho + k2 - 1)
    W2 = max(-(-(W + 2 * p) // s), Wo + k2 - 1)

    xp = jnp.pad(x.astype(jnp.float32),
                 ((0, 0),
                  (p, s * D2 - D - p),
                  (p, s * H2 - H - p),
                  (p, s * W2 - W - p),
                  (0, 0)))
    if s > 1:
        # Fold the stride phases into the channel dim -> stride-1 form.
        xp = xp.reshape(B, D2, s, H2, s, W2, s, Cin)
        xp = jnp.transpose(xp, (0, 1, 3, 5, 2, 4, 6, 7))
    Cp = (s ** 3) * Cin
    R = D2 * H2 * W2
    xf = xp.reshape(B, R, Cp)

    # Per-tap row offsets into the flattened (R, Cp) slab.  Output row of a
    # valid position (z, y, x) is (z*H2 + y)*W2 + x; tap (dz,dy,dx) adds
    # (dz*H2 + dy)*W2 + dx.  Rows with y >= Ho or x >= Wo are garbage and get
    # sliced away afterwards (a few wasted MACs instead of 27x-343x im2col HBM
    # traffic).
    ktaps = k2 ** 3
    offs_list = [(dz * H2 + dy) * W2 + dx
                 for dz in range(k2) for dy in range(k2) for dx in range(k2)]
    offs = jnp.asarray(offs_list, jnp.int32)
    m_rows = Do * H2 * W2
    Rp = max(R, max(offs_list) + m_rows)             # guard rows: no OOB reads
    if Rp != R:
        xf = jnp.pad(xf, ((0, 0), (0, Rp - R), (0, 0)))

    # Weight -> (ktaps, Cp, Coutp), bf16, lane-dense (128-padded) Cout.
    Coutp = _round_up(Cout, _LANE)
    kpad = k2 * s - k
    wp = jnp.pad(weight.astype(jnp.float32),
                 ((0, 0), (0, 0), (0, kpad), (0, kpad), (0, kpad)))
    wp = wp.reshape(Cout, Cin, k2, s, k2, s, k2, s)
    wp = jnp.transpose(wp, (2, 4, 6, 3, 5, 7, 1, 0))  # (dz,dy,dx, pd,ph,pw, ci, co)
    wp = wp.reshape(ktaps, Cp, Cout)
    wp = jnp.pad(wp, ((0, 0), (0, 0), (0, Coutp - Cout))).astype(jnp.bfloat16)

    scale2 = jnp.pad(bn_scale.astype(jnp.float32), (0, Coutp - Cout)).reshape(1, Coutp)
    bias2 = jnp.pad(bn_bias.astype(jnp.float32), (0, Coutp - Cout)).reshape(1, Coutp)

    out = pl.pallas_call(
        functools.partial(_conv_tap_kernel, m_rows=m_rows, relu=relu),
        out_shape=jax.ShapeDtypeStruct((B, m_rows, Coutp), jnp.float32),
        grid_spec=pltpu.PrefetchScalarGridSpec(
            num_scalar_prefetch=1,
            grid=(B, ktaps),
            in_specs=[
                # whole per-batch slab; index_map independent of the tap axis,
                # so the DMA is not re-issued across taps.
                pl.BlockSpec((None, Rp, Cp), lambda b, t, o: (b, 0, 0)),
                pl.BlockSpec((None, Cp, Coutp), lambda b, t, o: (t, 0, 0)),
                pl.BlockSpec((1, Coutp), lambda b, t, o: (0, 0)),
                pl.BlockSpec((1, Coutp), lambda b, t, o: (0, 0)),
            ],
            out_specs=pl.BlockSpec((None, m_rows, Coutp), lambda b, t, o: (b, 0, 0)),
            scratch_shapes=[pltpu.VMEM((m_rows, Coutp), jnp.float32)],
        ),
        compiler_params=pltpu.CompilerParams(
            dimension_semantics=("parallel", "arbitrary"),
            vmem_limit_bytes=_VMEM_LIMIT),
    )(offs, xf, wp, scale2, bias2)

    # Drop padded pitch rows / padded output channels.
    out = out.reshape(B, Do, H2, W2, Coutp)[:, :, :Ho, :Wo, :Cout]
    return out


# ----------------------------------------------------------------------------
# 2x2x2 pooling kernels (pure VPU element-wise reduction, tiled over rows)
# ----------------------------------------------------------------------------
def _maxpool8_kernel(x_ref, o_ref):
    r = x_ref[0]
    for t in range(1, 8):
        r = jnp.maximum(r, x_ref[t])
    o_ref[...] = r


def _avgpool8_affine_kernel(x_ref, scale_ref, bias_ref, o_ref):
    r = x_ref[0]
    for t in range(1, 8):
        r = r + x_ref[t]
    o_ref[...] = r * scale_ref[...] + bias_ref[...]   # 1/8 folded into scale


def _window_taps_2x2x2(x):
    B, D, H, W, C = x.shape
    assert D % 2 == 0 and H % 2 == 0 and W % 2 == 0, "pool expects even spatial dims"
    Do, Ho, Wo = D // 2, H // 2, W // 2
    t = x.reshape(B, Do, 2, Ho, 2, Wo, 2, C)
    t = jnp.transpose(t, (2, 4, 6, 0, 1, 3, 5, 7))    # (2,2,2, B, Do, Ho, Wo, C)
    return t.reshape(8, B * Do * Ho * Wo, C), (B, Do, Ho, Wo, C)


def _pool_call(kernel, taps, extra_inputs, M, C, tile_m):
    tm = min(tile_m, _round_up(M, 8))
    Mp = _round_up(M, tm)
    if Mp != M:
        taps = jnp.pad(taps, ((0, 0), (0, Mp - M), (0, 0)))
    in_specs = [pl.BlockSpec((8, tm, C), lambda i: (0, i, 0))]
    in_specs += [pl.BlockSpec((1, C), lambda i: (0, 0)) for _ in extra_inputs]
    out = pl.pallas_call(
        kernel,
        out_shape=jax.ShapeDtypeStruct((Mp, C), jnp.float32),
        grid=(Mp // tm,),
        in_specs=in_specs,
        out_specs=pl.BlockSpec((tm, C), lambda i: (i, 0)),
        compiler_params=pltpu.CompilerParams(
            dimension_semantics=("parallel",),
            vmem_limit_bytes=_VMEM_LIMIT),
    )(taps, *extra_inputs)
    return out[:M]


def maxpool2(x, *, tile_m=512):
    taps, out_shape = _window_taps_2x2x2(x.astype(jnp.float32))
    _, M, C = taps.shape
    return _pool_call(_maxpool8_kernel, taps, (), M, C, tile_m).reshape(out_shape)


def avgpool2_affine(x, scale, bias, *, tile_m=512):
    taps, out_shape = _window_taps_2x2x2(x.astype(jnp.float32))
    _, M, C = taps.shape
    scale2 = (scale.astype(jnp.float32) / 8.0).reshape(1, C)
    bias2 = bias.astype(jnp.float32).reshape(1, C)
    return _pool_call(_avgpool8_affine_kernel, taps, (scale2, bias2),
                      M, C, tile_m).reshape(out_shape)


# ----------------------------------------------------------------------------
# Deterministic parameter initialization (mirrors the PyTorch module shapes)
# ----------------------------------------------------------------------------
class KeyGen:
    def __init__(self, key):
        self.key = key

    def __call__(self):
        self.key, sub = jax.random.split(self.key)
        return sub


def _bn_fold(kg, c):
    gamma = 1.0 + 0.1 * jax.random.normal(kg(), (c,), jnp.float32)
    beta = 0.1 * jax.random.normal(kg(), (c,), jnp.float32)
    mean = 0.1 * jax.random.normal(kg(), (c,), jnp.float32)
    var = 0.5 + jax.random.uniform(kg(), (c,), jnp.float32)
    scale = gamma / jnp.sqrt(var + 1e-5)
    bias = beta - mean * scale
    return scale, bias


def conv_params(kg, cin, cout, ksize):
    fan_in = cin * ksize ** 3
    w = jax.random.normal(kg(), (cout, cin, ksize, ksize, ksize), jnp.float32)
    w = w / math.sqrt(fan_in)
    scale, bias = _bn_fold(kg, cout)
    return {"w": w, "scale": scale, "bias": bias}


def dense_unit_params(kg, cin, growth_rate):
    return {
        "bottleneck": conv_params(kg, cin, 4 * growth_rate, 1),
        "conv2": conv_params(kg, 4 * growth_rate, growth_rate, 3),
    }


def dense_block_params(kg, in_features, num_layers, growth_rate):
    units = [dense_unit_params(kg, in_features, growth_rate)]
    for i in range(1, num_layers):
        units.append(dense_unit_params(kg, in_features + i * growth_rate, growth_rate))
    return units


def transition_params(kg, in_features, theta):
    cout = int(in_features * theta)
    norm_scale, norm_bias = _bn_fold(kg, cout)
    return {
        "conv": conv_params(kg, in_features, cout, 1),
        "norm_scale": norm_scale,
        "norm_bias": norm_bias,
    }


def init_densenet(key, mri_shape, out_shape, channels, growth_rate, theta):
    kg = KeyGen(key)
    compressed = int(growth_rate * theta)
    params = {"mri_shape": mri_shape}
    params["stem_conv"] = conv_params(kg, 1, 2 * growth_rate, 7)
    blocks = [("dense", dense_block_params(kg, 2 * growth_rate, channels[0], growth_rate))]
    for channel in channels[1:]:
        blocks.append(("trans", transition_params(kg, growth_rate, theta)))
        blocks.append(("dense", dense_block_params(kg, compressed, channel, growth_rate)))
    params["blocks"] = blocks
    fc_out = out_shape[0]
    params["fc_w"] = jax.random.normal(kg(), (fc_out, growth_rate), jnp.float32) / math.sqrt(growth_rate)
    params["fc_b"] = 0.1 * jax.random.normal(kg(), (fc_out,), jnp.float32)
    return params


# ----------------------------------------------------------------------------
# Forward pass (matches DenseNet.forward; Dropout3d is identity in inference)
# ----------------------------------------------------------------------------
def dense_unit_forward(x, u):
    x = conv3d_bn_relu(x, u["bottleneck"]["w"], u["bottleneck"]["scale"],
                       u["bottleneck"]["bias"], stride=1, padding=0)
    x = conv3d_bn_relu(x, u["conv2"]["w"], u["conv2"]["scale"],
                       u["conv2"]["bias"], stride=1, padding=1)
    return x  # Dropout3d -> identity (inference)


def dense_block_forward(x, units):
    for idx, u in enumerate(units):
        new_x = dense_unit_forward(x, u)
        if idx < len(units) - 1:
            # TODO(synk): avoid this HBM concat by splitting the next
            # bottleneck 1x1 weight into two K-slices and accumulating two
            # matmuls inside the kernel (review item 7).
            x = jnp.concatenate([new_x, x], axis=-1)   # torch.cat dim=1 == NDHWC channel
        else:
            x = new_x
    return x


def transition_forward(x, t):
    x = conv3d_bn_relu(x, t["conv"]["w"], t["conv"]["scale"], t["conv"]["bias"],
                       stride=1, padding=0)
    # BatchNorm (affine, inference) commutes with mean pooling -> fused.
    return avgpool2_affine(x, t["norm_scale"], t["norm_bias"])


def densenet_forward(params, x, clin_vars):
    # clin_vars accepted but unused (matches the reference forward()).
    D, H, W = params["mri_shape"]
    B = x.size // (D * H * W)
    x = x.reshape(B, 1, D, H, W)                  # x.view(-1, 1, *dims) (NCDHW)
    x = jnp.transpose(x, (0, 2, 3, 4, 1))         # -> NDHWC
    sc = params["stem_conv"]
    x = conv3d_bn_relu(x, sc["w"], sc["scale"], sc["bias"], stride=2, padding=3)
    x = maxpool2(x)
    for kind, bp in params["blocks"]:
        if kind == "dense":
            x = dense_block_forward(x, bp)
        else:
            x = transition_forward(x, bp)
    # AdaptiveAvgPool3d((1,1,1)) + flatten + Linear(growth_rate, out): tiny
    # (B x 8 -> B x 3); plain XLA is faster than a pallas_call here (review).
    feat = jnp.mean(x, axis=(1, 2, 3))
    return feat @ params["fc_w"].T + params["fc_b"]


# ----------------------------------------------------------------------------
if __name__ == "__main__":
    mri_shape = (16, 16, 16)
    out_shape = (3,)
    channels = [2, 2]
    growth_rate = 8
    theta = 0.5

    key = jax.random.PRNGKey(0)
    k_param, k_x, k_clin = jax.random.split(key, 3)
    params = init_densenet(k_param, mri_shape, out_shape, channels, growth_rate, theta)

    x = jax.random.normal(k_x, (2, *mri_shape), jnp.float32)
    clin_vars = jax.random.normal(k_clin, (2, 5), jnp.float32)  # unused by forward

    fwd = jax.jit(functools.partial(densenet_forward, params))
    out = jax.block_until_ready(fwd(x, clin_vars))
    assert out.shape == (2, out_shape[0]), out.shape
    assert bool(jnp.all(jnp.isfinite(out)))
    print("KERNEL_OK")
</pallas_src>

<mosaic_0001>
module attributes {stable_mosaic.version = 11 : i64} {
  func.func @_conv_tap_kernel(%arg0: i32, %arg1: i32, %arg2: memref<64xi32, #tpu.memory_space<smem>>, %arg3: memref<1x1367x8xf32, #tpu.memory_space<vmem>>, %arg4: memref<1x8x128xbf16, #tpu.memory_space<vmem>>, %arg5: memref<1x128xf32, #tpu.memory_space<vmem>>, %arg6: memref<1x128xf32, #tpu.memory_space<vmem>>, %arg7: memref<1x968x128xf32, #tpu.memory_space<vmem>>, %arg8: memref<968x128xf32, #tpu.memory_space<vmem>>) attributes {dimension_semantics = [#tpu.dimension_semantics<parallel>, #tpu.dimension_semantics<arbitrary>], iteration_bounds = array<i64: 2, 64>, scalar_prefetch = 1 : i64, scratch_operands = 1 : i64, tpu.core_type = #tpu.core_type<tc>, window_params = [{transform_indices = @transform_0, window_bounds = array<i64: 1, 1367, 8>}, {transform_indices = @transform_1, window_bounds = array<i64: 1, 8, 128>}, {pipeline_mode = #tpu.pipeline_mode<synchronous>, transform_indices = @transform_2, window_bounds = array<i64: 1, 128>}, {pipeline_mode = #tpu.pipeline_mode<synchronous>, transform_indices = @transform_3, window_bounds = array<i64: 1, 128>}, {transform_indices = @transform_4, window_bounds = array<i64: 1, 968, 128>}]} {
    %c0_i32 = arith.constant 0 : i32
    %0 = arith.cmpi eq, %arg1, %c0_i32 : i32
    %1 = arith.extui %0 : i1 to i32
    %c0_i32_0 = arith.constant 0 : i32
    %2 = arith.cmpi ne, %1, %c0_i32_0 : i32
    scf.if %2 {
      %cst_10 = arith.constant 0.000000e+00 : f32
      %18 = vector.broadcast %cst_10 : f32 to vector<968x128xf32>
      %c0_11 = arith.constant 0 : index
      %c0_12 = arith.constant 0 : index
      %19 = vector.load %arg8[%c0_11, %c0_12] : memref<968x128xf32, #tpu.memory_space<vmem>>, vector<968x128xf32>
      tpu.vector_store %arg8[%c0_11, %c0_12], %18 {strides = array<i32>} : memref<968x128xf32, #tpu.memory_space<vmem>>, vector<968x128xf32>,
    } else {
    }
    %3 = arith.index_cast %arg1 : i32 to index
    %4 = memref.load %arg2[%3] : memref<64xi32, #tpu.memory_space<smem>>
    %c0 = arith.constant 0 : index
    %5 = arith.index_cast %4 : i32 to index
    %c0_1 = arith.constant 0 : index
    %6 = vector.load %arg3[%c0, %5, %c0_1] : memref<1x1367x8xf32, #tpu.memory_space<vmem>>, vector<1x968x8xf32>
    %7 = vector.shape_cast %6 : vector<1x968x8xf32> to vector<968x8xf32>
    %c0_2 = arith.constant 0 : index
    %c0_3 = arith.constant 0 : index
    %8 = vector.load %arg8[%c0_2, %c0_3] : memref<968x128xf32, #tpu.memory_space<vmem>>, vector<968x128xf32>
    %9 = arith.truncf %7 : vector<968x8xf32> to vector<968x8xbf16>
    %c0_4 = arith.constant 0 : index
    %c0_5 = arith.constant 0 : index
    %c0_6 = arith.constant 0 : index
    %10 = vector.load %arg4[%c0_4, %c0_5, %c0_6] : memref<1x8x128xbf16, #tpu.memory_space<vmem>>, vector<1x8x128xbf16>
    %11 = vector.shape_cast %10 : vector<1x8x128xbf16> to vector<8x128xbf16>
    %cst = arith.constant dense<0.000000e+00> : vector<968x128xf32>
    %12 = tpu.matmul %9, %11, %cst {dimension_numbers = #tpu.dot_dimension_numbers<[1], [0], [0], [1], [0, 0, 1, 1], [], []>} : vector<968x8xbf16>, vector<8x128xbf16>, vector<968x128xf32> -> vector<968x128xf32>
    %13 = arith.addf %8, %12 : vector<968x128xf32>
    %c0_7 = arith.constant 0 : index
    %c0_8 = arith.constant 0 : index
    %14 = vector.load %arg8[%c0_7, %c0_8] : memref<968x128xf32, #tpu.memory_space<vmem>>, vector<968x128xf32>
    tpu.vector_store %arg8[%c0_7, %c0_8], %13 {strides = array<i32>} : memref<968x128xf32, #tpu.memory_space<vmem>>, vector<968x128xf32>,
    %c63_i32 = arith.constant 63 : i32
    %15 = arith.cmpi eq, %arg1, %c63_i32 : i32
    %16 = arith.extui %15 : i1 to i32
    %c0_i32_9 = arith.constant 0 : i32
    %17 = arith.cmpi ne, %16, %c0_i32_9 : i32
    scf.if %17 {
      %c0_10 = arith.constant 0 : index
      %c0_11 = arith.constant 0 : index
      %18 = vector.load %arg8[%c0_10, %c0_11] : memref<968x128xf32, #tpu.memory_space<vmem>>, vector<968x128xf32>
      %c0_12 = arith.constant 0 : index
      %c0_13 = arith.constant 0 : index
      %19 = vector.load %arg5[%c0_12, %c0_13] : memref<1x128xf32, #tpu.memory_space<vmem>>, vector<1x128xf32>
      %20 = vector.broadcast %19 : vector<1x128xf32> to vector<968x128xf32>
      %21 = arith.mulf %18, %20 : vector<968x128xf32>
      %c0_14 = arith.constant 0 : index
      %c0_15 = arith.constant 0 : index
      %22 = vector.load %arg6[%c0_14, %c0_15] : memref<1x128xf32, #tpu.memory_space<vmem>>, vector<1x128xf32>
      %23 = vector.broadcast %22 : vector<1x128xf32> to vector<968x128xf32>
      %24 = arith.addf %21, %23 : vector<968x128xf32>
      %cst_16 = arith.constant 0.000000e+00 : f32
      %25 = vector.broadcast %cst_16 : f32 to vector<968x128xf32>
      %26 = arith.maximumf %24, %25 : vector<968x128xf32>
      %c0_17 = arith.constant 0 : index
      %c0_18 = arith.constant 0 : index
      %c0_19 = arith.constant 0 : index
      %27 = vector.load %arg7[%c0_17, %c0_18, %c0_19] : memref<1x968x128xf32, #tpu.memory_space<vmem>>, vector<1x968x128xf32>
      %28 = vector.shape_cast %27 : vector<1x968x128xf32> to vector<968x128xf32>
      %29 = vector.shape_cast %26 : vector<968x128xf32> to vector<1x968x128xf32>
      tpu.vector_store %arg7[%c0_17, %c0_18, %c0_19], %29 {strides = array<i32>} : memref<1x968x128xf32, #tpu.memory_space<vmem>>, vector<1x968x128xf32>,
    } else {
    }
    return
  }
  func.func @transform_0(%arg0: i32, %arg1: i32, %arg2: memref<64xi32, #tpu.memory_space<smem>>) -> (i32, i32, i32) {
    %c0_i32 = arith.constant 0 : i32
    %c0_i32_0 = arith.constant 0 : i32
    %c0_i32_1 = arith.constant 0 : i32
    return %arg0, %c0_i32, %c0_i32_0 : i32, i32, i32
  }
  func.func @transform_1(%arg0: i32, %arg1: i32, %arg2: memref<64xi32, #tpu.memory_space<smem>>) -> (i32, i32, i32) {
    %c0_i32 = arith.constant 0 : i32
    %c0_i32_0 = arith.constant 0 : i32
    %c0_i32_1 = arith.constant 0 : i32
    return %arg1, %c0_i32, %c0_i32_0 : i32, i32, i32
  }
  func.func @transform_2(%arg0: i32, %arg1: i32, %arg2: memref<64xi32, #tpu.memory_space<smem>>) -> (i32, i32) {
    %c0_i32 = arith.constant 0 : i32
    %c0_i32_0 = arith.constant 0 : i32
    %c0_i32_1 = arith.constant 0 : i32
    return %c0_i32, %c0_i32_0 : i32, i32
  }
  func.func @transform_3(%arg0: i32, %arg1: i32, %arg2: memref<64xi32, #tpu.memory_space<smem>>) -> (i32, i32) {
    %c0_i32 = arith.constant 0 : i32
    %c0_i32_0 = arith.constant 0 : i32
    %c0_i32_1 = arith.constant 0 : i32
    return %c0_i32, %c0_i32_0 : i32, i32
  }
  func.func @transform_4(%arg0: i32, %arg1: i32, %arg2: memref<64xi32, #tpu.memory_space<smem>>) -> (i32, i32, i32) {
    %c0_i32 = arith.constant 0 : i32
    %c0_i32_0 = arith.constant 0 : i32
    %c0_i32_1 = arith.constant 0 : i32
    return %arg0, %c0_i32, %c0_i32_0 : i32, i32, i32
  }
}

module attributes {stable_mosaic.version = 11 : i64} {
  func.func @_maxpool8_kernel(%arg0: i32, %arg1: memref<8x128x16xf32, #tpu.memory_space<vmem>>, %arg2: memref<128x16xf32, #tpu.memory_space<vmem>>) attributes {dimension_semantics = [#tpu.dimension_semantics<parallel>], iteration_bounds = array<i64: 1>, scalar_prefetch = 0 : i64, scratch_operands = 0 : i64, tpu.core_type = #tpu.core_type<tc>, window_params = [{transform_indices = @transform_0, window_bounds = array<i64: 8, 128, 16>}, {transform_indices = @transform_1, window_bounds = array<i64: 128, 16>}]} {
    %c0 = arith.constant 0 : index
    %c0_0 = arith.constant 0 : index
    %c0_1 = arith.constant 0 : index
    %0 = vector.load %arg1[%c0, %c0_0, %c0_1] : memref<8x128x16xf32, #tpu.memory_space<vmem>>, vector<1x128x16xf32>
    %1 = vector.shape_cast %0 : vector<1x128x16xf32> to vector<128x16xf32>
    %c1 = arith.constant 1 : index
    %c0_2 = arith.constant 0 : index
    %c0_3 = arith.constant 0 : index
    %2 = vector.load %arg1[%c1, %c0_2, %c0_3] : memref<8x128x16xf32, #tpu.memory_space<vmem>>, vector<1x128x16xf32>
    %3 = vector.shape_cast %2 : vector<1x128x16xf32> to vector<128x16xf32>
    %4 = arith.maximumf %1, %3 : vector<128x16xf32>
    %c2 = arith.constant 2 : index
    %c0_4 = arith.constant 0 : index
    %c0_5 = arith.constant 0 : index
    %5 = vector.load %arg1[%c2, %c0_4, %c0_5] : memref<8x128x16xf32, #tpu.memory_space<vmem>>, vector<1x128x16xf32>
    %6 = vector.shape_cast %5 : vector<1x128x16xf32> to vector<128x16xf32>
    %7 = arith.maximumf %4, %6 : vector<128x16xf32>
    %c3 = arith.constant 3 : index
    %c0_6 = arith.constant 0 : index
    %c0_7 = arith.constant 0 : index
    %8 = vector.load %arg1[%c3, %c0_6, %c0_7] : memref<8x128x16xf32, #tpu.memory_space<vmem>>, vector<1x128x16xf32>
    %9 = vector.shape_cast %8 : vector<1x128x16xf32> to vector<128x16xf32>
    %10 = arith.maximumf %7, %9 : vector<128x16xf32>
    %c4 = arith.constant 4 : index
    %c0_8 = arith.constant 0 : index
    %c0_9 = arith.constant 0 : index
    %11 = vector.load %arg1[%c4, %c0_8, %c0_9] : memref<8x128x16xf32, #tpu.memory_space<vmem>>, vector<1x128x16xf32>
    %12 = vector.shape_cast %11 : vector<1x128x16xf32> to vector<128x16xf32>
    %13 = arith.maximumf %10, %12 : vector<128x16xf32>
    %c5 = arith.constant 5 : index
    %c0_10 = arith.constant 0 : index
    %c0_11 = arith.constant 0 : index
    %14 = vector.load %arg1[%c5, %c0_10, %c0_11] : memref<8x128x16xf32, #tpu.memory_space<vmem>>, vector<1x128x16xf32>
    %15 = vector.shape_cast %14 : vector<1x128x16xf32> to vector<128x16xf32>
    %16 = arith.maximumf %13, %15 : vector<128x16xf32>
    %c6 = arith.constant 6 : index
    %c0_12 = arith.constant 0 : index
    %c0_13 = arith.constant 0 : index
    %17 = vector.load %arg1[%c6, %c0_12, %c0_13] : memref<8x128x16xf32, #tpu.memory_space<vmem>>, vector<1x128x16xf32>
    %18 = vector.shape_cast %17 : vector<1x128x16xf32> to vector<128x16xf32>
    %19 = arith.maximumf %16, %18 : vector<128x16xf32>
    %c7 = arith.constant 7 : index
    %c0_14 = arith.constant 0 : index
    %c0_15 = arith.constant 0 : index
    %20 = vector.load %arg1[%c7, %c0_14, %c0_15] : memref<8x128x16xf32, #tpu.memory_space<vmem>>, vector<1x128x16xf32>
    %21 = vector.shape_cast %20 : vector<1x128x16xf32> to vector<128x16xf32>
    %22 = arith.maximumf %19, %21 : vector<128x16xf32>
    %c0_16 = arith.constant 0 : index
    %c0_17 = arith.constant 0 : index
    %23 = vector.load %arg2[%c0_16, %c0_17] : memref<128x16xf32, #tpu.memory_space<vmem>>, vector<128x16xf32>
    tpu.vector_store %arg2[%c0_16, %c0_17], %22 {strides = array<i32>} : memref<128x16xf32, #tpu.memory_space<vmem>>, vector<128x16xf32>,
    return
  }
  func.func @transform_0(%arg0: i32) -> (i32, i32, i32) {
    %c0_i32 = arith.constant 0 : i32
    %c0_i32_0 = arith.constant 0 : i32
    %c0_i32_1 = arith.constant 0 : i32
    return %c0_i32, %arg0, %c0_i32_0 : i32, i32, i32
  }
  func.func @transform_1(%arg0: i32) -> (i32, i32) {
    %c0_i32 = arith.constant 0 : i32
    %c0_i32_0 = arith.constant 0 : i32
    return %arg0, %c0_i32 : i32, i32
  }
}

module attributes {stable_mosaic.version = 11 : i64} {
  func.func @_conv_tap_kernel(%arg0: i32, %arg1: i32, %arg2: memref<1xi32, #tpu.memory_space<smem>>, %arg3: memref<1x64x16xf32, #tpu.memory_space<vmem>>, %arg4: memref<1x16x128xbf16, #tpu.memory_space<vmem>>, %arg5: memref<1x128xf32, #tpu.memory_space<vmem>>, %arg6: memref<1x128xf32, #tpu.memory_space<vmem>>, %arg7: memref<1x64x128xf32, #tpu.memory_space<vmem>>, %arg8: memref<64x128xf32, #tpu.memory_space<vmem>>) attributes {dimension_semantics = [#tpu.dimension_semantics<parallel>, #tpu.dimension_semantics<arbitrary>], iteration_bounds = array<i64: 2, 1>, scalar_prefetch = 1 : i64, scratch_operands = 1 : i64, tpu.core_type = #tpu.core_type<tc>, window_params = [{transform_indices = @transform_0, window_bounds = array<i64: 1, 64, 16>}, {transform_indices = @transform_1, window_bounds = array<i64: 1, 16, 128>}, {pipeline_mode = #tpu.pipeline_mode<synchronous>, transform_indices = @transform_2, window_bounds = array<i64: 1, 128>}, {pipeline_mode = #tpu.pipeline_mode<synchronous>, transform_indices = @transform_3, window_bounds = array<i64: 1, 128>}, {transform_indices = @transform_4, window_bounds = array<i64: 1, 64, 128>}]} {
    %c0_i32 = arith.constant 0 : i32
    %0 = arith.cmpi eq, %arg1, %c0_i32 : i32
    %1 = arith.extui %0 : i1 to i32
    %c0_i32_0 = arith.constant 0 : i32
    %2 = arith.cmpi ne, %1, %c0_i32_0 : i32
    scf.if %2 {
      %cst_11 = arith.constant 0.000000e+00 : f32
      %18 = vector.broadcast %cst_11 : f32 to vector<64x128xf32>
      %c0_12 = arith.constant 0 : index
      %c0_13 = arith.constant 0 : index
      %19 = vector.load %arg8[%c0_12, %c0_13] : memref<64x128xf32, #tpu.memory_space<vmem>>, vector<64x128xf32>
      tpu.vector_store %arg8[%c0_12, %c0_13], %18 {strides = array<i32>} : memref<64x128xf32, #tpu.memory_space<vmem>>, vector<64x128xf32>,
    } else {
    }
    %3 = arith.index_cast %arg1 : i32 to index
    %4 = memref.load %arg2[%3] : memref<1xi32, #tpu.memory_space<smem>>
    %c0 = arith.constant 0 : index
    %5 = arith.index_cast %4 : i32 to index
    %c0_1 = arith.constant 0 : index
    %6 = vector.load %arg3[%c0, %5, %c0_1] : memref<1x64x16xf32, #tpu.memory_space<vmem>>, vector<1x64x16xf32>
    %7 = vector.shape_cast %6 : vector<1x64x16xf32> to vector<64x16xf32>
    %c0_2 = arith.constant 0 : index
    %c0_3 = arith.constant 0 : index
    %8 = vector.load %arg8[%c0_2, %c0_3] : memref<64x128xf32, #tpu.memory_space<vmem>>, vector<64x128xf32>
    %9 = arith.truncf %7 : vector<64x16xf32> to vector<64x16xbf16>
    %c0_4 = arith.constant 0 : index
    %c0_5 = arith.constant 0 : index
    %c0_6 = arith.constant 0 : index
    %10 = vector.load %arg4[%c0_4, %c0_5, %c0_6] : memref<1x16x128xbf16, #tpu.memory_space<vmem>>, vector<1x16x128xbf16>
    %11 = vector.shape_cast %10 : vector<1x16x128xbf16> to vector<16x128xbf16>
    %cst = arith.constant dense<0.000000e+00> : vector<64x128xf32>
    %12 = tpu.matmul %9, %11, %cst {dimension_numbers = #tpu.dot_dimension_numbers<[1], [0], [0], [1], [0, 0, 1, 1], [], []>} : vector<64x16xbf16>, vector<16x128xbf16>, vector<64x128xf32> -> vector<64x128xf32>
    %13 = arith.addf %8, %12 : vector<64x128xf32>
    %c0_7 = arith.constant 0 : index
    %c0_8 = arith.constant 0 : index
    %14 = vector.load %arg8[%c0_7, %c0_8] : memref<64x128xf32, #tpu.memory_space<vmem>>, vector<64x128xf32>
    tpu.vector_store %arg8[%c0_7, %c0_8], %13 {strides = array<i32>} : memref<64x128xf32, #tpu.memory_space<vmem>>, vector<64x128xf32>,
    %c0_i32_9 = arith.constant 0 : i32
    %15 = arith.cmpi eq, %arg1, %c0_i32_9 : i32
    %16 = arith.extui %15 : i1 to i32
    %c0_i32_10 = arith.constant 0 : i32
    %17 = arith.cmpi ne, %16, %c0_i32_10 : i32
    scf.if %17 {
      %c0_11 = arith.constant 0 : index
      %c0_12 = arith.constant 0 : index
      %18 = vector.load %arg8[%c0_11, %c0_12] : memref<64x128xf32, #tpu.memory_space<vmem>>, vector<64x128xf32>
      %c0_13 = arith.constant 0 : index
      %c0_14 = arith.constant 0 : index
      %19 = vector.load %arg5[%c0_13, %c0_14] : memref<1x128xf32, #tpu.memory_space<vmem>>, vector<1x128xf32>
      %20 = vector.broadcast %19 : vector<1x128xf32> to vector<64x128xf32>
      %21 = arith.mulf %18, %20 : vector<64x128xf32>
      %c0_15 = arith.constant 0 : index
      %c0_16 = arith.constant 0 : index
      %22 = vector.load %arg6[%c0_15, %c0_16] : memref<1x128xf32, #tpu.memory_space<vmem>>, vector<1x128xf32>
      %23 = vector.broadcast %22 : vector<1x128xf32> to vector<64x128xf32>
      %24 = arith.addf %21, %23 : vector<64x128xf32>
      %cst_17 = arith.constant 0.000000e+00 : f32
      %25 = vector.broadcast %cst_17 : f32 to vector<64x128xf32>
      %26 = arith.maximumf %24, %25 : vector<64x128xf32>
      %c0_18 = arith.constant 0 : index
      %c0_19 = arith.constant 0 : index
      %c0_20 = arith.constant 0 : index
      %27 = vector.load %arg7[%c0_18, %c0_19, %c0_20] : memref<1x64x128xf32, #tpu.memory_space<vmem>>, vector<1x64x128xf32>
      %28 = vector.shape_cast %27 : vector<1x64x128xf32> to vector<64x128xf32>
      %29 = vector.shape_cast %26 : vector<64x128xf32> to vector<1x64x128xf32>
      tpu.vector_store %arg7[%c0_18, %c0_19, %c0_20], %29 {strides = array<i32>} : memref<1x64x128xf32, #tpu.memory_space<vmem>>, vector<1x64x128xf32>,
    } else {
    }
    return
  }
  func.func @transform_0(%arg0: i32, %arg1: i32, %arg2: memref<1xi32, #tpu.memory_space<smem>>) -> (i32, i32, i32) {
    %c0_i32 = arith.constant 0 : i32
    %c0_i32_0 = arith.constant 0 : i32
    %c0_i32_1 = arith.constant 0 : i32
    return %arg0, %c0_i32, %c0_i32_0 : i32, i32, i32
  }
  func.func @transform_1(%arg0: i32, %arg1: i32, %arg2: memref<1xi32, #tpu.memory_space<smem>>) -> (i32, i32, i32) {
    %c0_i32 = arith.constant 0 : i32
    %c0_i32_0 = arith.constant 0 : i32
    %c0_i32_1 = arith.constant 0 : i32
    return %arg1, %c0_i32, %c0_i32_0 : i32, i32, i32
  }
  func.func @transform_2(%arg0: i32, %arg1: i32, %arg2: memref<1xi32, #tpu.memory_space<smem>>) -> (i32, i32) {
    %c0_i32 = arith.constant 0 : i32
    %c0_i32_0 = arith.constant 0 : i32
    %c0_i32_1 = arith.constant 0 : i32
    return %c0_i32, %c0_i32_0 : i32, i32
  }
  func.func @transform_3(%arg0: i32, %arg1: i32, %arg2: memref<1xi32, #tpu.memory_space<smem>>) -> (i32, i32) {
    %c0_i32 = arith.constant 0 : i32
    %c0_i32_0 = arith.constant 0 : i32
    %c0_i32_1 = arith.constant 0 : i32
    return %c0_i32, %c0_i32_0 : i32, i32
  }
  func.func @transform_4(%arg0: i32, %arg1: i32, %arg2: memref<1xi32, #tpu.memory_space<smem>>) -> (i32, i32, i32) {
    %c0_i32 = arith.constant 0 : i32
    %c0_i32_0 = arith.constant 0 : i32
    %c0_i32_1 = arith.constant 0 : i32
    return %arg0, %c0_i32, %c0_i32_0 : i32, i32, i32
  }
}

module attributes {stable_mosaic.version = 11 : i64} {
  func.func @_conv_tap_kernel(%arg0: i32, %arg1: i32, %arg2: memref<27xi32, #tpu.memory_space<smem>>, %arg3: memref<1x230x32xf32, #tpu.memory_space<vmem>>, %arg4: memref<1x32x128xbf16, #tpu.memory_space<vmem>>, %arg5: memref<1x128xf32, #tpu.memory_space<vmem>>, %arg6: memref<1x128xf32, #tpu.memory_space<vmem>>, %arg7: memref<1x144x128xf32, #tpu.memory_space<vmem>>, %arg8: memref<144x128xf32, #tpu.memory_space<vmem>>) attributes {dimension_semantics = [#tpu.dimension_semantics<parallel>, #tpu.dimension_semantics<arbitrary>], iteration_bounds = array<i64: 2, 27>, scalar_prefetch = 1 : i64, scratch_operands = 1 : i64, tpu.core_type = #tpu.core_type<tc>, window_params = [{transform_indices = @transform_0, window_bounds = array<i64: 1, 230, 32>}, {transform_indices = @transform_1, window_bounds = array<i64: 1, 32, 128>}, {pipeline_mode = #tpu.pipeline_mode<synchronous>, transform_indices = @transform_2, window_bounds = array<i64: 1, 128>}, {pipeline_mode = #tpu.pipeline_mode<synchronous>, transform_indices = @transform_3, window_bounds = array<i64: 1, 128>}, {transform_indices = @transform_4, window_bounds = array<i64: 1, 144, 128>}]} {
    %c0_i32 = arith.constant 0 : i32
    %0 = arith.cmpi eq, %arg1, %c0_i32 : i32
    %1 = arith.extui %0 : i1 to i32
    %c0_i32_0 = arith.constant 0 : i32
    %2 = arith.cmpi ne, %1, %c0_i32_0 : i32
    scf.if %2 {
      %cst_10 = arith.constant 0.000000e+00 : f32
      %18 = vector.broadcast %cst_10 : f32 to vector<144x128xf32>
      %c0_11 = arith.constant 0 : index
      %c0_12 = arith.constant 0 : index
      %19 = vector.load %arg8[%c0_11, %c0_12] : memref<144x128xf32, #tpu.memory_space<vmem>>, vector<144x128xf32>
      tpu.vector_store %arg8[%c0_11, %c0_12], %18 {strides = array<i32>} : memref<144x128xf32, #tpu.memory_space<vmem>>, vector<144x128xf32>,
    } else {
    }
    %3 = arith.index_cast %arg1 : i32 to index
    %4 = memref.load %arg2[%3] : memref<27xi32, #tpu.memory_space<smem>>
    %c0 = arith.constant 0 : index
    %5 = arith.index_cast %4 : i32 to index
    %c0_1 = arith.constant 0 : index
    %6 = vector.load %arg3[%c0, %5, %c0_1] : memref<1x230x32xf32, #tpu.memory_space<vmem>>, vector<1x144x32xf32>
    %7 = vector.shape_cast %6 : vector<1x144x32xf32> to vector<144x32xf32>
    %c0_2 = arith.constant 0 : index
    %c0_3 = arith.constant 0 : index
    %8 = vector.load %arg8[%c0_2, %c0_3] : memref<144x128xf32, #tpu.memory_space<vmem>>, vector<144x128xf32>
    %9 = arith.truncf %7 : vector<144x32xf32> to vector<144x32xbf16>
    %c0_4 = arith.constant 0 : index
    %c0_5 = arith.constant 0 : index
    %c0_6 = arith.constant 0 : index
    %10 = vector.load %arg4[%c0_4, %c0_5, %c0_6] : memref<1x32x128xbf16, #tpu.memory_space<vmem>>, vector<1x32x128xbf16>
    %11 = vector.shape_cast %10 : vector<1x32x128xbf16> to vector<32x128xbf16>
    %cst = arith.constant dense<0.000000e+00> : vector<144x128xf32>
    %12 = tpu.matmul %9, %11, %cst {dimension_numbers = #tpu.dot_dimension_numbers<[1], [0], [0], [1], [0, 0, 1, 1], [], []>} : vector<144x32xbf16>, vector<32x128xbf16>, vector<144x128xf32> -> vector<144x128xf32>
    %13 = arith.addf %8, %12 : vector<144x128xf32>
    %c0_7 = arith.constant 0 : index
    %c0_8 = arith.constant 0 : index
    %14 = vector.load %arg8[%c0_7, %c0_8] : memref<144x128xf32, #tpu.memory_space<vmem>>, vector<144x128xf32>
    tpu.vector_store %arg8[%c0_7, %c0_8], %13 {strides = array<i32>} : memref<144x128xf32, #tpu.memory_space<vmem>>, vector<144x128xf32>,
    %c26_i32 = arith.constant 26 : i32
    %15 = arith.cmpi eq, %arg1, %c26_i32 : i32
    %16 = arith.extui %15 : i1 to i32
    %c0_i32_9 = arith.constant 0 : i32
    %17 = arith.cmpi ne, %16, %c0_i32_9 : i32
    scf.if %17 {
      %c0_10 = arith.constant 0 : index
      %c0_11 = arith.constant 0 : index
      %18 = vector.load %arg8[%c0_10, %c0_11] : memref<144x128xf32, #tpu.memory_space<vmem>>, vector<144x128xf32>
      %c0_12 = arith.constant 0 : index
      %c0_13 = arith.constant 0 : index
      %19 = vector.load %arg5[%c0_12, %c0_13] : memref<1x128xf32, #tpu.memory_space<vmem>>, vector<1x128xf32>
      %20 = vector.broadcast %19 : vector<1x128xf32> to vector<144x128xf32>
      %21 = arith.mulf %18, %20 : vector<144x128xf32>
      %c0_14 = arith.constant 0 : index
      %c0_15 = arith.constant 0 : index
      %22 = vector.load %arg6[%c0_14, %c0_15] : memref<1x128xf32, #tpu.memory_space<vmem>>, vector<1x128xf32>
      %23 = vector.broadcast %22 : vector<1x128xf32> to vector<144x128xf32>
      %24 = arith.addf %21, %23 : vector<144x128xf32>
      %cst_16 = arith.constant 0.000000e+00 : f32
      %25 = vector.broadcast %cst_16 : f32 to vector<144x128xf32>
      %26 = arith.maximumf %24, %25 : vector<144x128xf32>
      %c0_17 = arith.constant 0 : index
      %c0_18 = arith.constant 0 : index
      %c0_19 = arith.constant 0 : index
      %27 = vector.load %arg7[%c0_17, %c0_18, %c0_19] : memref<1x144x128xf32, #tpu.memory_space<vmem>>, vector<1x144x128xf32>
      %28 = vector.shape_cast %27 : vector<1x144x128xf32> to vector<144x128xf32>
      %29 = vector.shape_cast %26 : vector<144x128xf32> to vector<1x144x128xf32>
      tpu.vector_store %arg7[%c0_17, %c0_18, %c0_19], %29 {strides = array<i32>} : memref<1x144x128xf32, #tpu.memory_space<vmem>>, vector<1x144x128xf32>,
    } else {
    }
    return
  }
  func.func @transform_0(%arg0: i32, %arg1: i32, %arg2: memref<27xi32, #tpu.memory_space<smem>>) -> (i32, i32, i32) {
    %c0_i32 = arith.constant 0 : i32
    %c0_i32_0 = arith.constant 0 : i32
    %c0_i32_1 = arith.constant 0 : i32
    return %arg0, %c0_i32, %c0_i32_0 : i32, i32, i32
  }
  func.func @transform_1(%arg0: i32, %arg1: i32, %arg2: memref<27xi32, #tpu.memory_space<smem>>) -> (i32, i32, i32) {
    %c0_i32 = arith.constant 0 : i32
    %c0_i32_0 = arith.constant 0 : i32
    %c0_i32_1 = arith.constant 0 : i32
    return %arg1, %c0_i32, %c0_i32_0 : i32, i32, i32
  }
  func.func @transform_2(%arg0: i32, %arg1: i32, %arg2: memref<27xi32, #tpu.memory_space<smem>>) -> (i32, i32) {
    %c0_i32 = arith.constant 0 : i32
    %c0_i32_0 = arith.constant 0 : i32
    %c0_i32_1 = arith.constant 0 : i32
    return %c0_i32, %c0_i32_0 : i32, i32
  }
  func.func @transform_3(%arg0: i32, %arg1: i32, %arg2: memref<27xi32, #tpu.memory_space<smem>>) -> (i32, i32) {
    %c0_i32 = arith.constant 0 : i32
    %c0_i32_0 = arith.constant 0 : i32
    %c0_i32_1 = arith.constant 0 : i32
    return %c0_i32, %c0_i32_0 : i32, i32
  }
  func.func @transform_4(%arg0: i32, %arg1: i32, %arg2: memref<27xi32, #tpu.memory_space<smem>>) -> (i32, i32, i32) {
    %c0_i32 = arith.constant 0 : i32
    %c0_i32_0 = arith.constant 0 : i32
    %c0_i32_1 = arith.constant 0 : i32
    return %arg0, %c0_i32, %c0_i32_0 : i32, i32, i32
  }
}

module attributes {stable_mosaic.version = 11 : i64} {
  func.func @_conv_tap_kernel(%arg0: i32, %arg1: i32, %arg2: memref<1xi32, #tpu.memory_space<smem>>, %arg3: memref<1x64x8xf32, #tpu.memory_space<vmem>>, %arg4: memref<1x8x128xbf16, #tpu.memory_space<vmem>>, %arg5: memref<1x128xf32, #tpu.memory_space<vmem>>, %arg6: memref<1x128xf32, #tpu.memory_space<vmem>>, %arg7: memref<1x64x128xf32, #tpu.memory_space<vmem>>, %arg8: memref<64x128xf32, #tpu.memory_space<vmem>>) attributes {dimension_semantics = [#tpu.dimension_semantics<parallel>, #tpu.dimension_semantics<arbitrary>], iteration_bounds = array<i64: 2, 1>, scalar_prefetch = 1 : i64, scratch_operands = 1 : i64, tpu.core_type = #tpu.core_type<tc>, window_params = [{transform_indices = @transform_0, window_bounds = array<i64: 1, 64, 8>}, {transform_indices = @transform_1, window_bounds = array<i64: 1, 8, 128>}, {pipeline_mode = #tpu.pipeline_mode<synchronous>, transform_indices = @transform_2, window_bounds = array<i64: 1, 128>}, {pipeline_mode = #tpu.pipeline_mode<synchronous>, transform_indices = @transform_3, window_bounds = array<i64: 1, 128>}, {transform_indices = @transform_4, window_bounds = array<i64: 1, 64, 128>}]} {
    %c0_i32 = arith.constant 0 : i32
    %0 = arith.cmpi eq, %arg1, %c0_i32 : i32
    %1 = arith.extui %0 : i1 to i32
    %c0_i32_0 = arith.constant 0 : i32
    %2 = arith.cmpi ne, %1, %c0_i32_0 : i32
    scf.if %2 {
      %cst_11 = arith.constant 0.000000e+00 : f32
      %18 = vector.broadcast %cst_11 : f32 to vector<64x128xf32>
      %c0_12 = arith.constant 0 : index
      %c0_13 = arith.constant 0 : index
      %19 = vector.load %arg8[%c0_12, %c0_13] : memref<64x128xf32, #tpu.memory_space<vmem>>, vector<64x128xf32>
      tpu.vector_store %arg8[%c0_12, %c0_13], %18 {strides = array<i32>} : memref<64x128xf32, #tpu.memory_space<vmem>>, vector<64x128xf32>,
    } else {
    }
    %3 = arith.index_cast %arg1 : i32 to index
    %4 = memref.load %arg2[%3] : memref<1xi32, #tpu.memory_space<smem>>
    %c0 = arith.constant 0 : index
    %5 = arith.index_cast %4 : i32 to index
    %c0_1 = arith.constant 0 : index
    %6 = vector.load %arg3[%c0, %5, %c0_1] : memref<1x64x8xf32, #tpu.memory_space<vmem>>, vector<1x64x8xf32>
    %7 = vector.shape_cast %6 : vector<1x64x8xf32> to vector<64x8xf32>
    %c0_2 = arith.constant 0 : index
    %c0_3 = arith.constant 0 : index
    %8 = vector.load %arg8[%c0_2, %c0_3] : memref<64x128xf32, #tpu.memory_space<vmem>>, vector<64x128xf32>
    %9 = arith.truncf %7 : vector<64x8xf32> to vector<64x8xbf16>
    %c0_4 = arith.constant 0 : index
    %c0_5 = arith.constant 0 : index
    %c0_6 = arith.constant 0 : index
    %10 = vector.load %arg4[%c0_4, %c0_5, %c0_6] : memref<1x8x128xbf16, #tpu.memory_space<vmem>>, vector<1x8x128xbf16>
    %11 = vector.shape_cast %10 : vector<1x8x128xbf16> to vector<8x128xbf16>
    %cst = arith.constant dense<0.000000e+00> : vector<64x128xf32>
    %12 = tpu.matmul %9, %11, %cst {dimension_numbers = #tpu.dot_dimension_numbers<[1], [0], [0], [1], [0, 0, 1, 1], [], []>} : vector<64x8xbf16>, vector<8x128xbf16>, vector<64x128xf32> -> vector<64x128xf32>
    %13 = arith.addf %8, %12 : vector<64x128xf32>
    %c0_7 = arith.constant 0 : index
    %c0_8 = arith.constant 0 : index
    %14 = vector.load %arg8[%c0_7, %c0_8] : memref<64x128xf32, #tpu.memory_space<vmem>>, vector<64x128xf32>
    tpu.vector_store %arg8[%c0_7, %c0_8], %13 {strides = array<i32>} : memref<64x128xf32, #tpu.memory_space<vmem>>, vector<64x128xf32>,
    %c0_i32_9 = arith.constant 0 : i32
    %15 = arith.cmpi eq, %arg1, %c0_i32_9 : i32
    %16 = arith.extui %15 : i1 to i32
    %c0_i32_10 = arith.constant 0 : i32
    %17 = arith.cmpi ne, %16, %c0_i32_10 : i32
    scf.if %17 {
      %c0_11 = arith.constant 0 : index
      %c0_12 = arith.constant 0 : index
      %18 = vector.load %arg8[%c0_11, %c0_12] : memref<64x128xf32, #tpu.memory_space<vmem>>, vector<64x128xf32>
      %c0_13 = arith.constant 0 : index
      %c0_14 = arith.constant 0 : index
      %19 = vector.load %arg5[%c0_13, %c0_14] : memref<1x128xf32, #tpu.memory_space<vmem>>, vector<1x128xf32>
      %20 = vector.broadcast %19 : vector<1x128xf32> to vector<64x128xf32>
      %21 = arith.mulf %18, %20 : vector<64x128xf32>
      %c0_15 = arith.constant 0 : index
      %c0_16 = arith.constant 0 : index
      %22 = vector.load %arg6[%c0_15, %c0_16] : memref<1x128xf32, #tpu.memory_space<vmem>>, vector<1x128xf32>
      %23 = vector.broadcast %22 : vector<1x128xf32> to vector<64x128xf32>
      %24 = arith.addf %21, %23 : vector<64x128xf32>
      %cst_17 = arith.constant 0.000000e+00 : f32
      %25 = vector.broadcast %cst_17 : f32 to vector<64x128xf32>
      %26 = arith.maximumf %24, %25 : vector<64x128xf32>
      %c0_18 = arith.constant 0 : index
      %c0_19 = arith.constant 0 : index
      %c0_20 = arith.constant 0 : index
      %27 = vector.load %arg7[%c0_18, %c0_19, %c0_20] : memref<1x64x128xf32, #tpu.memory_space<vmem>>, vector<1x64x128xf32>
      %28 = vector.shape_cast %27 : vector<1x64x128xf32> to vector<64x128xf32>
      %29 = vector.shape_cast %26 : vector<64x128xf32> to vector<1x64x128xf32>
      tpu.vector_store %arg7[%c0_18, %c0_19, %c0_20], %29 {strides = array<i32>} : memref<1x64x128xf32, #tpu.memory_space<vmem>>, vector<1x64x128xf32>,
    } else {
    }
    return
  }
  func.func @transform_0(%arg0: i32, %arg1: i32, %arg2: memref<1xi32, #tpu.memory_space<smem>>) -> (i32, i32, i32) {
    %c0_i32 = arith.constant 0 : i32
    %c0_i32_0 = arith.constant 0 : i32
    %c0_i32_1 = arith.constant 0 : i32
    return %arg0, %c0_i32, %c0_i32_0 : i32, i32, i32
  }
  func.func @transform_1(%arg0: i32, %arg1: i32, %arg2: memref<1xi32, #tpu.memory_space<smem>>) -> (i32, i32, i32) {
    %c0_i32 = arith.constant 0 : i32
    %c0_i32_0 = arith.constant 0 : i32
    %c0_i32_1 = arith.constant 0 : i32
    return %arg1, %c0_i32, %c0_i32_0 : i32, i32, i32
  }
  func.func @transform_2(%arg0: i32, %arg1: i32, %arg2: memref<1xi32, #tpu.memory_space<smem>>) -> (i32, i32) {
    %c0_i32 = arith.constant 0 : i32
    %c0_i32_0 = arith.constant 0 : i32
    %c0_i32_1 = arith.constant 0 : i32
    return %c0_i32, %c0_i32_0 : i32, i32
  }
  func.func @transform_3(%arg0: i32, %arg1: i32, %arg2: memref<1xi32, #tpu.memory_space<smem>>) -> (i32, i32) {
    %c0_i32 = arith.constant 0 : i32
    %c0_i32_0 = arith.constant 0 : i32
    %c0_i32_1 = arith.constant 0 : i32
    return %c0_i32, %c0_i32_0 : i32, i32
  }
  func.func @transform_4(%arg0: i32, %arg1: i32, %arg2: memref<1xi32, #tpu.memory_space<smem>>) -> (i32, i32, i32) {
    %c0_i32 = arith.constant 0 : i32
    %c0_i32_0 = arith.constant 0 : i32
    %c0_i32_1 = arith.constant 0 : i32
    return %arg0, %c0_i32, %c0_i32_0 : i32, i32, i32
  }
}

module attributes {stable_mosaic.version = 11 : i64} {
  func.func @_conv_tap_kernel(%arg0: i32, %arg1: i32, %arg2: memref<1xi32, #tpu.memory_space<smem>>, %arg3: memref<1x64x24xf32, #tpu.memory_space<vmem>>, %arg4: memref<1x24x128xbf16, #tpu.memory_space<vmem>>, %arg5: memref<1x128xf32, #tpu.memory_space<vmem>>, %arg6: memref<1x128xf32, #tpu.memory_space<vmem>>, %arg7: memref<1x64x128xf32, #tpu.memory_space<vmem>>, %arg8: memref<64x128xf32, #tpu.memory_space<vmem>>) attributes {dimension_semantics = [#tpu.dimension_semantics<parallel>, #tpu.dimension_semantics<arbitrary>], iteration_bounds = array<i64: 2, 1>, scalar_prefetch = 1 : i64, scratch_operands = 1 : i64, tpu.core_type = #tpu.core_type<tc>, window_params = [{transform_indices = @transform_0, window_bounds = array<i64: 1, 64, 24>}, {transform_indices = @transform_1, window_bounds = array<i64: 1, 24, 128>}, {pipeline_mode = #tpu.pipeline_mode<synchronous>, transform_indices = @transform_2, window_bounds = array<i64: 1, 128>}, {pipeline_mode = #tpu.pipeline_mode<synchronous>, transform_indices = @transform_3, window_bounds = array<i64: 1, 128>}, {transform_indices = @transform_4, window_bounds = array<i64: 1, 64, 128>}]} {
    %c0_i32 = arith.constant 0 : i32
    %0 = arith.cmpi eq, %arg1, %c0_i32 : i32
    %1 = arith.extui %0 : i1 to i32
    %c0_i32_0 = arith.constant 0 : i32
    %2 = arith.cmpi ne, %1, %c0_i32_0 : i32
    scf.if %2 {
      %cst_11 = arith.constant 0.000000e+00 : f32
      %18 = vector.broadcast %cst_11 : f32 to vector<64x128xf32>
      %c0_12 = arith.constant 0 : index
      %c0_13 = arith.constant 0 : index
      %19 = vector.load %arg8[%c0_12, %c0_13] : memref<64x128xf32, #tpu.memory_space<vmem>>, vector<64x128xf32>
      tpu.vector_store %arg8[%c0_12, %c0_13], %18 {strides = array<i32>} : memref<64x128xf32, #tpu.memory_space<vmem>>, vector<64x128xf32>,
    } else {
    }
    %3 = arith.index_cast %arg1 : i32 to index
    %4 = memref.load %arg2[%3] : memref<1xi32, #tpu.memory_space<smem>>
    %c0 = arith.constant 0 : index
    %5 = arith.index_cast %4 : i32 to index
    %c0_1 = arith.constant 0 : index
    %6 = vector.load %arg3[%c0, %5, %c0_1] : memref<1x64x24xf32, #tpu.memory_space<vmem>>, vector<1x64x24xf32>
    %7 = vector.shape_cast %6 : vector<1x64x24xf32> to vector<64x24xf32>
    %c0_2 = arith.constant 0 : index
    %c0_3 = arith.constant 0 : index
    %8 = vector.load %arg8[%c0_2, %c0_3] : memref<64x128xf32, #tpu.memory_space<vmem>>, vector<64x128xf32>
    %9 = arith.truncf %7 : vector<64x24xf32> to vector<64x24xbf16>
    %c0_4 = arith.constant 0 : index
    %c0_5 = arith.constant 0 : index
    %c0_6 = arith.constant 0 : index
    %10 = vector.load %arg4[%c0_4, %c0_5, %c0_6] : memref<1x24x128xbf16, #tpu.memory_space<vmem>>, vector<1x24x128xbf16>
    %11 = vector.shape_cast %10 : vector<1x24x128xbf16> to vector<24x128xbf16>
    %cst = arith.constant dense<0.000000e+00> : vector<64x128xf32>
    %12 = tpu.matmul %9, %11, %cst {dimension_numbers = #tpu.dot_dimension_numbers<[1], [0], [0], [1], [0, 0, 1, 1], [], []>} : vector<64x24xbf16>, vector<24x128xbf16>, vector<64x128xf32> -> vector<64x128xf32>
    %13 = arith.addf %8, %12 : vector<64x128xf32>
    %c0_7 = arith.constant 0 : index
    %c0_8 = arith.constant 0 : index
    %14 = vector.load %arg8[%c0_7, %c0_8] : memref<64x128xf32, #tpu.memory_space<vmem>>, vector<64x128xf32>
    tpu.vector_store %arg8[%c0_7, %c0_8], %13 {strides = array<i32>} : memref<64x128xf32, #tpu.memory_space<vmem>>, vector<64x128xf32>,
    %c0_i32_9 = arith.constant 0 : i32
    %15 = arith.cmpi eq, %arg1, %c0_i32_9 : i32
    %16 = arith.extui %15 : i1 to i32
    %c0_i32_10 = arith.constant 0 : i32
    %17 = arith.cmpi ne, %16, %c0_i32_10 : i32
    scf.if %17 {
      %c0_11 = arith.constant 0 : index
      %c0_12 = arith.constant 0 : index
      %18 = vector.load %arg8[%c0_11, %c0_12] : memref<64x128xf32, #tpu.memory_space<vmem>>, vector<64x128xf32>
      %c0_13 = arith.constant 0 : index
      %c0_14 = arith.constant 0 : index
      %19 = vector.load %arg5[%c0_13, %c0_14] : memref<1x128xf32, #tpu.memory_space<vmem>>, vector<1x128xf32>
      %20 = vector.broadcast %19 : vector<1x128xf32> to vector<64x128xf32>
      %21 = arith.mulf %18, %20 : vector<64x128xf32>
      %c0_15 = arith.constant 0 : index
      %c0_16 = arith.constant 0 : index
      %22 = vector.load %arg6[%c0_15, %c0_16] : memref<1x128xf32, #tpu.memory_space<vmem>>, vector<1x128xf32>
      %23 = vector.broadcast %22 : vector<1x128xf32> to vector<64x128xf32>
      %24 = arith.addf %21, %23 : vector<64x128xf32>
      %cst_17 = arith.constant 0.000000e+00 : f32
      %25 = vector.broadcast %cst_17 : f32 to vector<64x128xf32>
      %26 = arith.maximumf %24, %25 : vector<64x128xf32>
      %c0_18 = arith.constant 0 : index
      %c0_19 = arith.constant 0 : index
      %c0_20 = arith.constant 0 : index
      %27 = vector.load %arg7[%c0_18, %c0_19, %c0_20] : memref<1x64x128xf32, #tpu.memory_space<vmem>>, vector<1x64x128xf32>
      %28 = vector.shape_cast %27 : vector<1x64x128xf32> to vector<64x128xf32>
      %29 = vector.shape_cast %26 : vector<64x128xf32> to vector<1x64x128xf32>
      tpu.vector_store %arg7[%c0_18, %c0_19, %c0_20], %29 {strides = array<i32>} : memref<1x64x128xf32, #tpu.memory_space<vmem>>, vector<1x64x128xf32>,
    } else {
    }
    return
  }
  func.func @transform_0(%arg0: i32, %arg1: i32, %arg2: memref<1xi32, #tpu.memory_space<smem>>) -> (i32, i32, i32) {
    %c0_i32 = arith.constant 0 : i32
    %c0_i32_0 = arith.constant 0 : i32
    %c0_i32_1 = arith.constant 0 : i32
    return %arg0, %c0_i32, %c0_i32_0 : i32, i32, i32
  }
  func.func @transform_1(%arg0: i32, %arg1: i32, %arg2: memref<1xi32, #tpu.memory_space<smem>>) -> (i32, i32, i32) {
    %c0_i32 = arith.constant 0 : i32
    %c0_i32_0 = arith.constant 0 : i32
    %c0_i32_1 = arith.constant 0 : i32
    return %arg1, %c0_i32, %c0_i32_0 : i32, i32, i32
  }
  func.func @transform_2(%arg0: i32, %arg1: i32, %arg2: memref<1xi32, #tpu.memory_space<smem>>) -> (i32, i32) {
    %c0_i32 = arith.constant 0 : i32
    %c0_i32_0 = arith.constant 0 : i32
    %c0_i32_1 = arith.constant 0 : i32
    return %c0_i32, %c0_i32_0 : i32, i32
  }
  func.func @transform_3(%arg0: i32, %arg1: i32, %arg2: memref<1xi32, #tpu.memory_space<smem>>) -> (i32, i32) {
    %c0_i32 = arith.constant 0 : i32
    %c0_i32_0 = arith.constant 0 : i32
    %c0_i32_1 = arith.constant 0 : i32
    return %c0_i32, %c0_i32_0 : i32, i32
  }
  func.func @transform_4(%arg0: i32, %arg1: i32, %arg2: memref<1xi32, #tpu.memory_space<smem>>) -> (i32, i32, i32) {
    %c0_i32 = arith.constant 0 : i32
    %c0_i32_0 = arith.constant 0 : i32
    %c0_i32_1 = arith.constant 0 : i32
    return %arg0, %c0_i32, %c0_i32_0 : i32, i32, i32
  }
}

module attributes {stable_mosaic.version = 11 : i64} {
  func.func @_avgpool8_affine_kernel(%arg0: i32, %arg1: memref<8x16x4xf32, #tpu.memory_space<vmem>>, %arg2: memref<1x4xf32, #tpu.memory_space<vmem>>, %arg3: memref<1x4xf32, #tpu.memory_space<vmem>>, %arg4: memref<16x4xf32, #tpu.memory_space<vmem>>) attributes {dimension_semantics = [#tpu.dimension_semantics<parallel>], iteration_bounds = array<i64: 1>, scalar_prefetch = 0 : i64, scratch_operands = 0 : i64, tpu.core_type = #tpu.core_type<tc>, window_params = [{transform_indices = @transform_0, window_bounds = array<i64: 8, 16, 4>}, {pipeline_mode = #tpu.pipeline_mode<synchronous>, transform_indices = @transform_1, window_bounds = array<i64: 1, 4>}, {pipeline_mode = #tpu.pipeline_mode<synchronous>, transform_indices = @transform_2, window_bounds = array<i64: 1, 4>}, {transform_indices = @transform_3, window_bounds = array<i64: 16, 4>}]} {
    %c0 = arith.constant 0 : index
    %c0_0 = arith.constant 0 : index
    %c0_1 = arith.constant 0 : index
    %0 = vector.load %arg1[%c0, %c0_0, %c0_1] : memref<8x16x4xf32, #tpu.memory_space<vmem>>, vector<1x16x4xf32>
    %1 = vector.shape_cast %0 : vector<1x16x4xf32> to vector<16x4xf32>
    %c1 = arith.constant 1 : index
    %c0_2 = arith.constant 0 : index
    %c0_3 = arith.constant 0 : index
    %2 = vector.load %arg1[%c1, %c0_2, %c0_3] : memref<8x16x4xf32, #tpu.memory_space<vmem>>, vector<1x16x4xf32>
    %3 = vector.shape_cast %2 : vector<1x16x4xf32> to vector<16x4xf32>
    %4 = arith.addf %1, %3 : vector<16x4xf32>
    %c2 = arith.constant 2 : index
    %c0_4 = arith.constant 0 : index
    %c0_5 = arith.constant 0 : index
    %5 = vector.load %arg1[%c2, %c0_4, %c0_5] : memref<8x16x4xf32, #tpu.memory_space<vmem>>, vector<1x16x4xf32>
    %6 = vector.shape_cast %5 : vector<1x16x4xf32> to vector<16x4xf32>
    %7 = arith.addf %4, %6 : vector<16x4xf32>
    %c3 = arith.constant 3 : index
    %c0_6 = arith.constant 0 : index
    %c0_7 = arith.constant 0 : index
    %8 = vector.load %arg1[%c3, %c0_6, %c0_7] : memref<8x16x4xf32, #tpu.memory_space<vmem>>, vector<1x16x4xf32>
    %9 = vector.shape_cast %8 : vector<1x16x4xf32> to vector<16x4xf32>
    %10 = arith.addf %7, %9 : vector<16x4xf32>
    %c4 = arith.constant 4 : index
    %c0_8 = arith.constant 0 : index
    %c0_9 = arith.constant 0 : index
    %11 = vector.load %arg1[%c4, %c0_8, %c0_9] : memref<8x16x4xf32, #tpu.memory_space<vmem>>, vector<1x16x4xf32>
    %12 = vector.shape_cast %11 : vector<1x16x4xf32> to vector<16x4xf32>
    %13 = arith.addf %10, %12 : vector<16x4xf32>
    %c5 = arith.constant 5 : index
    %c0_10 = arith.constant 0 : index
    %c0_11 = arith.constant 0 : index
    %14 = vector.load %arg1[%c5, %c0_10, %c0_11] : memref<8x16x4xf32, #tpu.memory_space<vmem>>, vector<1x16x4xf32>
    %15 = vector.shape_cast %14 : vector<1x16x4xf32> to vector<16x4xf32>
    %16 = arith.addf %13, %15 : vector<16x4xf32>
    %c6 = arith.constant 6 : index
    %c0_12 = arith.constant 0 : index
    %c0_13 = arith.constant 0 : index
    %17 = vector.load %arg1[%c6, %c0_12, %c0_13] : memref<8x16x4xf32, #tpu.memory_space<vmem>>, vector<1x16x4xf32>
    %18 = vector.shape_cast %17 : vector<1x16x4xf32> to vector<16x4xf32>
    %19 = arith.addf %16, %18 : vector<16x4xf32>
    %c7 = arith.constant 7 : index
    %c0_14 = arith.constant 0 : index
    %c0_15 = arith.constant 0 : index
    %20 = vector.load %arg1[%c7, %c0_14, %c0_15] : memref<8x16x4xf32, #tpu.memory_space<vmem>>, vector<1x16x4xf32>
    %21 = vector.shape_cast %20 : vector<1x16x4xf32> to vector<16x4xf32>
    %22 = arith.addf %19, %21 : vector<16x4xf32>
    %c0_16 = arith.constant 0 : index
    %c0_17 = arith.constant 0 : index
    %23 = vector.load %arg2[%c0_16, %c0_17] : memref<1x4xf32, #tpu.memory_space<vmem>>, vector<1x4xf32>
    %24 = vector.broadcast %23 : vector<1x4xf32> to vector<16x4xf32>
    %25 = arith.mulf %22, %24 : vector<16x4xf32>
    %c0_18 = arith.constant 0 : index
    %c0_19 = arith.constant 0 : index
    %26 = vector.load %arg3[%c0_18, %c0_19] : memref<1x4xf32, #tpu.memory_space<vmem>>, vector<1x4xf32>
    %27 = vector.broadcast %26 : vector<1x4xf32> to vector<16x4xf32>
    %28 = arith.addf %25, %27 : vector<16x4xf32>
    %c0_20 = arith.constant 0 : index
    %c0_21 = arith.constant 0 : index
    %29 = vector.load %arg4[%c0_20, %c0_21] : memref<16x4xf32, #tpu.memory_space<vmem>>, vector<16x4xf32>
    tpu.vector_store %arg4[%c0_20, %c0_21], %28 {strides = array<i32>} : memref<16x4xf32, #tpu.memory_space<vmem>>, vector<16x4xf32>,
    return
  }
  func.func @transform_0(%arg0: i32) -> (i32, i32, i32) {
    %c0_i32 = arith.constant 0 : i32
    %c0_i32_0 = arith.constant 0 : i32
    %c0_i32_1 = arith.constant 0 : i32
    return %c0_i32, %arg0, %c0_i32_0 : i32, i32, i32
  }
  func.func @transform_1(%arg0: i32) -> (i32, i32) {
    %c0_i32 = arith.constant 0 : i32
    %c0_i32_0 = arith.constant 0 : i32
    %c0_i32_1 = arith.constant 0 : i32
    return %c0_i32, %c0_i32_0 : i32, i32
  }
  func.func @transform_2(%arg0: i32) -> (i32, i32) {
    %c0_i32 = arith.constant 0 : i32
    %c0_i32_0 = arith.constant 0 : i32
    %c0_i32_1 = arith.constant 0 : i32
    return %c0_i32, %c0_i32_0 : i32, i32
  }
  func.func @transform_3(%arg0: i32) -> (i32, i32) {
    %c0_i32 = arith.constant 0 : i32
    %c0_i32_0 = arith.constant 0 : i32
    return %arg0, %c0_i32 : i32, i32
  }
}

module attributes {stable_mosaic.version = 11 : i64} {
  func.func @_conv_tap_kernel(%arg0: i32, %arg1: i32, %arg2: memref<1xi32, #tpu.memory_space<smem>>, %arg3: memref<1x8x4xf32, #tpu.memory_space<vmem>>, %arg4: memref<1x4x128xbf16, #tpu.memory_space<vmem>>, %arg5: memref<1x128xf32, #tpu.memory_space<vmem>>, %arg6: memref<1x128xf32, #tpu.memory_space<vmem>>, %arg7: memref<1x8x128xf32, #tpu.memory_space<vmem>>, %arg8: memref<8x128xf32, #tpu.memory_space<vmem>>) attributes {dimension_semantics = [#tpu.dimension_semantics<parallel>, #tpu.dimension_semantics<arbitrary>], iteration_bounds = array<i64: 2, 1>, scalar_prefetch = 1 : i64, scratch_operands = 1 : i64, tpu.core_type = #tpu.core_type<tc>, window_params = [{transform_indices = @transform_0, window_bounds = array<i64: 1, 8, 4>}, {transform_indices = @transform_1, window_bounds = array<i64: 1, 4, 128>}, {pipeline_mode = #tpu.pipeline_mode<synchronous>, transform_indices = @transform_2, window_bounds = array<i64: 1, 128>}, {pipeline_mode = #tpu.pipeline_mode<synchronous>, transform_indices = @transform_3, window_bounds = array<i64: 1, 128>}, {transform_indices = @transform_4, window_bounds = array<i64: 1, 8, 128>}]} {
    %c0_i32 = arith.constant 0 : i32
    %0 = arith.cmpi eq, %arg1, %c0_i32 : i32
    %1 = arith.extui %0 : i1 to i32
    %c0_i32_0 = arith.constant 0 : i32
    %2 = arith.cmpi ne, %1, %c0_i32_0 : i32
    scf.if %2 {
      %cst_11 = arith.constant 0.000000e+00 : f32
      %18 = vector.broadcast %cst_11 : f32 to vector<8x128xf32>
      %c0_12 = arith.constant 0 : index
      %c0_13 = arith.constant 0 : index
      %19 = vector.load %arg8[%c0_12, %c0_13] : memref<8x128xf32, #tpu.memory_space<vmem>>, vector<8x128xf32>
      tpu.vector_store %arg8[%c0_12, %c0_13], %18 {strides = array<i32>} : memref<8x128xf32, #tpu.memory_space<vmem>>, vector<8x128xf32>,
    } else {
    }
    %3 = arith.index_cast %arg1 : i32 to index
    %4 = memref.load %arg2[%3] : memref<1xi32, #tpu.memory_space<smem>>
    %c0 = arith.constant 0 : index
    %5 = arith.index_cast %4 : i32 to index
    %c0_1 = arith.constant 0 : index
    %6 = vector.load %arg3[%c0, %5, %c0_1] : memref<1x8x4xf32, #tpu.memory_space<vmem>>, vector<1x8x4xf32>
    %7 = vector.shape_cast %6 : vector<1x8x4xf32> to vector<8x4xf32>
    %c0_2 = arith.constant 0 : index
    %c0_3 = arith.constant 0 : index
    %8 = vector.load %arg8[%c0_2, %c0_3] : memref<8x128xf32, #tpu.memory_space<vmem>>, vector<8x128xf32>
    %9 = arith.truncf %7 : vector<8x4xf32> to vector<8x4xbf16>
    %c0_4 = arith.constant 0 : index
    %c0_5 = arith.constant 0 : index
    %c0_6 = arith.constant 0 : index
    %10 = vector.load %arg4[%c0_4, %c0_5, %c0_6] : memref<1x4x128xbf16, #tpu.memory_space<vmem>>, vector<1x4x128xbf16>
    %11 = vector.shape_cast %10 : vector<1x4x128xbf16> to vector<4x128xbf16>
    %cst = arith.constant dense<0.000000e+00> : vector<8x128xf32>
    %12 = tpu.matmul %9, %11, %cst {dimension_numbers = #tpu.dot_dimension_numbers<[1], [0], [0], [1], [0, 0, 1, 1], [], []>} : vector<8x4xbf16>, vector<4x128xbf16>, vector<8x128xf32> -> vector<8x128xf32>
    %13 = arith.addf %8, %12 : vector<8x128xf32>
    %c0_7 = arith.constant 0 : index
    %c0_8 = arith.constant 0 : index
    %14 = vector.load %arg8[%c0_7, %c0_8] : memref<8x128xf32, #tpu.memory_space<vmem>>, vector<8x128xf32>
    tpu.vector_store %arg8[%c0_7, %c0_8], %13 {strides = array<i32>} : memref<8x128xf32, #tpu.memory_space<vmem>>, vector<8x128xf32>,
    %c0_i32_9 = arith.constant 0 : i32
    %15 = arith.cmpi eq, %arg1, %c0_i32_9 : i32
    %16 = arith.extui %15 : i1 to i32
    %c0_i32_10 = arith.constant 0 : i32
    %17 = arith.cmpi ne, %16, %c0_i32_10 : i32
    scf.if %17 {
      %c0_11 = arith.constant 0 : index
      %c0_12 = arith.constant 0 : index
      %18 = vector.load %arg8[%c0_11, %c0_12] : memref<8x128xf32, #tpu.memory_space<vmem>>, vector<8x128xf32>
      %c0_13 = arith.constant 0 : index
      %c0_14 = arith.constant 0 : index
      %19 = vector.load %arg5[%c0_13, %c0_14] : memref<1x128xf32, #tpu.memory_space<vmem>>, vector<1x128xf32>
      %20 = vector.broadcast %19 : vector<1x128xf32> to vector<8x128xf32>
      %21 = arith.mulf %18, %20 : vector<8x128xf32>
      %c0_15 = arith.constant 0 : index
      %c0_16 = arith.constant 0 : index
      %22 = vector.load %arg6[%c0_15, %c0_16] : memref<1x128xf32, #tpu.memory_space<vmem>>, vector<1x128xf32>
      %23 = vector.broadcast %22 : vector<1x128xf32> to vector<8x128xf32>
      %24 = arith.addf %21, %23 : vector<8x128xf32>
      %cst_17 = arith.constant 0.000000e+00 : f32
      %25 = vector.broadcast %cst_17 : f32 to vector<8x128xf32>
      %26 = arith.maximumf %24, %25 : vector<8x128xf32>
      %c0_18 = arith.constant 0 : index
      %c0_19 = arith.constant 0 : index
      %c0_20 = arith.constant 0 : index
      %27 = vector.load %arg7[%c0_18, %c0_19, %c0_20] : memref<1x8x128xf32, #tpu.memory_space<vmem>>, vector<1x8x128xf32>
      %28 = vector.shape_cast %27 : vector<1x8x128xf32> to vector<8x128xf32>
      %29 = vector.shape_cast %26 : vector<8x128xf32> to vector<1x8x128xf32>
      tpu.vector_store %arg7[%c0_18, %c0_19, %c0_20], %29 {strides = array<i32>} : memref<1x8x128xf32, #tpu.memory_space<vmem>>, vector<1x8x128xf32>,
    } else {
    }
    return
  }
  func.func @transform_0(%arg0: i32, %arg1: i32, %arg2: memref<1xi32, #tpu.memory_space<smem>>) -> (i32, i32, i32) {
    %c0_i32 = arith.constant 0 : i32
    %c0_i32_0 = arith.constant 0 : i32
    %c0_i32_1 = arith.constant 0 : i32
    return %arg0, %c0_i32, %c0_i32_0 : i32, i32, i32
  }
  func.func @transform_1(%arg0: i32, %arg1: i32, %arg2: memref<1xi32, #tpu.memory_space<smem>>) -> (i32, i32, i32) {
    %c0_i32 = arith.constant 0 : i32
    %c0_i32_0 = arith.constant 0 : i32
    %c0_i32_1 = arith.constant 0 : i32
    return %arg1, %c0_i32, %c0_i32_0 : i32, i32, i32
  }
  func.func @transform_2(%arg0: i32, %arg1: i32, %arg2: memref<1xi32, #tpu.memory_space<smem>>) -> (i32, i32) {
    %c0_i32 = arith.constant 0 : i32
    %c0_i32_0 = arith.constant 0 : i32
    %c0_i32_1 = arith.constant 0 : i32
    return %c0_i32, %c0_i32_0 : i32, i32
  }
  func.func @transform_3(%arg0: i32, %arg1: i32, %arg2: memref<1xi32, #tpu.memory_space<smem>>) -> (i32, i32) {
    %c0_i32 = arith.constant 0 : i32
    %c0_i32_0 = arith.constant 0 : i32
    %c0_i32_1 = arith.constant 0 : i32
    return %c0_i32, %c0_i32_0 : i32, i32
  }
  func.func @transform_4(%arg0: i32, %arg1: i32, %arg2: memref<1xi32, #tpu.memory_space<smem>>) -> (i32, i32, i32) {
    %c0_i32 = arith.constant 0 : i32
    %c0_i32_0 = arith.constant 0 : i32
    %c0_i32_1 = arith.constant 0 : i32
    return %arg0, %c0_i32, %c0_i32_0 : i32, i32, i32
  }
}

module attributes {stable_mosaic.version = 11 : i64} {
  func.func @_conv_tap_kernel(%arg0: i32, %arg1: i32, %arg2: memref<1xi32, #tpu.memory_space<smem>>, %arg3: memref<1x8x12xf32, #tpu.memory_space<vmem>>, %arg4: memref<1x12x128xbf16, #tpu.memory_space<vmem>>, %arg5: memref<1x128xf32, #tpu.memory_space<vmem>>, %arg6: memref<1x128xf32, #tpu.memory_space<vmem>>, %arg7: memref<1x8x128xf32, #tpu.memory_space<vmem>>, %arg8: memref<8x128xf32, #tpu.memory_space<vmem>>) attributes {dimension_semantics = [#tpu.dimension_semantics<parallel>, #tpu.dimension_semantics<arbitrary>], iteration_bounds = array<i64: 2, 1>, scalar_prefetch = 1 : i64, scratch_operands = 1 : i64, tpu.core_type = #tpu.core_type<tc>, window_params = [{transform_indices = @transform_0, window_bounds = array<i64: 1, 8, 12>}, {transform_indices = @transform_1, window_bounds = array<i64: 1, 12, 128>}, {pipeline_mode = #tpu.pipeline_mode<synchronous>, transform_indices = @transform_2, window_bounds = array<i64: 1, 128>}, {pipeline_mode = #tpu.pipeline_mode<synchronous>, transform_indices = @transform_3, window_bounds = array<i64: 1, 128>}, {transform_indices = @transform_4, window_bounds = array<i64: 1, 8, 128>}]} {
    %c0_i32 = arith.constant 0 : i32
    %0 = arith.cmpi eq, %arg1, %c0_i32 : i32
    %1 = arith.extui %0 : i1 to i32
    %c0_i32_0 = arith.constant 0 : i32
    %2 = arith.cmpi ne, %1, %c0_i32_0 : i32
    scf.if %2 {
      %cst_11 = arith.constant 0.000000e+00 : f32
      %18 = vector.broadcast %cst_11 : f32 to vector<8x128xf32>
      %c0_12 = arith.constant 0 : index
      %c0_13 = arith.constant 0 : index
      %19 = vector.load %arg8[%c0_12, %c0_13] : memref<8x128xf32, #tpu.memory_space<vmem>>, vector<8x128xf32>
      tpu.vector_store %arg8[%c0_12, %c0_13], %18 {strides = array<i32>} : memref<8x128xf32, #tpu.memory_space<vmem>>, vector<8x128xf32>,
    } else {
    }
    %3 = arith.index_cast %arg1 : i32 to index
    %4 = memref.load %arg2[%3] : memref<1xi32, #tpu.memory_space<smem>>
    %c0 = arith.constant 0 : index
    %5 = arith.index_cast %4 : i32 to index
    %c0_1 = arith.constant 0 : index
    %6 = vector.load %arg3[%c0, %5, %c0_1] : memref<1x8x12xf32, #tpu.memory_space<vmem>>, vector<1x8x12xf32>
    %7 = vector.shape_cast %6 : vector<1x8x12xf32> to vector<8x12xf32>
    %c0_2 = arith.constant 0 : index
    %c0_3 = arith.constant 0 : index
    %8 = vector.load %arg8[%c0_2, %c0_3] : memref<8x128xf32, #tpu.memory_space<vmem>>, vector<8x128xf32>
    %9 = arith.truncf %7 : vector<8x12xf32> to vector<8x12xbf16>
    %c0_4 = arith.constant 0 : index
    %c0_5 = arith.constant 0 : index
    %c0_6 = arith.constant 0 : index
    %10 = vector.load %arg4[%c0_4, %c0_5, %c0_6] : memref<1x12x128xbf16, #tpu.memory_space<vmem>>, vector<1x12x128xbf16>
    %11 = vector.shape_cast %10 : vector<1x12x128xbf16> to vector<12x128xbf16>
    %cst = arith.constant dense<0.000000e+00> : vector<8x128xf32>
    %12 = tpu.matmul %9, %11, %cst {dimension_numbers = #tpu.dot_dimension_numbers<[1], [0], [0], [1], [0, 0, 1, 1], [], []>} : vector<8x12xbf16>, vector<12x128xbf16>, vector<8x128xf32> -> vector<8x128xf32>
    %13 = arith.addf %8, %12 : vector<8x128xf32>
    %c0_7 = arith.constant 0 : index
    %c0_8 = arith.constant 0 : index
    %14 = vector.load %arg8[%c0_7, %c0_8] : memref<8x128xf32, #tpu.memory_space<vmem>>, vector<8x128xf32>
    tpu.vector_store %arg8[%c0_7, %c0_8], %13 {strides = array<i32>} : memref<8x128xf32, #tpu.memory_space<vmem>>, vector<8x128xf32>,
    %c0_i32_9 = arith.constant 0 : i32
    %15 = arith.cmpi eq, %arg1, %c0_i32_9 : i32
    %16 = arith.extui %15 : i1 to i32
    %c0_i32_10 = arith.constant 0 : i32
    %17 = arith.cmpi ne, %16, %c0_i32_10 : i32
    scf.if %17 {
      %c0_11 = arith.constant 0 : index
      %c0_12 = arith.constant 0 : index
      %18 = vector.load %arg8[%c0_11, %c0_12] : memref<8x128xf32, #tpu.memory_space<vmem>>, vector<8x128xf32>
      %c0_13 = arith.constant 0 : index
      %c0_14 = arith.constant 0 : index
      %19 = vector.load %arg5[%c0_13, %c0_14] : memref<1x128xf32, #tpu.memory_space<vmem>>, vector<1x128xf32>
      %20 = vector.broadcast %19 : vector<1x128xf32> to vector<8x128xf32>
      %21 = arith.mulf %18, %20 : vector<8x128xf32>
      %c0_15 = arith.constant 0 : index
      %c0_16 = arith.constant 0 : index
      %22 = vector.load %arg6[%c0_15, %c0_16] : memref<1x128xf32, #tpu.memory_space<vmem>>, vector<1x128xf32>
      %23 = vector.broadcast %22 : vector<1x128xf32> to vector<8x128xf32>
      %24 = arith.addf %21, %23 : vector<8x128xf32>
      %cst_17 = arith.constant 0.000000e+00 : f32
      %25 = vector.broadcast %cst_17 : f32 to vector<8x128xf32>
      %26 = arith.maximumf %24, %25 : vector<8x128xf32>
      %c0_18 = arith.constant 0 : index
      %c0_19 = arith.constant 0 : index
      %c0_20 = arith.constant 0 : index
      %27 = vector.load %arg7[%c0_18, %c0_19, %c0_20] : memref<1x8x128xf32, #tpu.memory_space<vmem>>, vector<1x8x128xf32>
      %28 = vector.shape_cast %27 : vector<1x8x128xf32> to vector<8x128xf32>
      %29 = vector.shape_cast %26 : vector<8x128xf32> to vector<1x8x128xf32>
      tpu.vector_store %arg7[%c0_18, %c0_19, %c0_20], %29 {strides = array<i32>} : memref<1x8x128xf32, #tpu.memory_space<vmem>>, vector<1x8x128xf32>,
    } else {
    }
    return
  }
  func.func @transform_0(%arg0: i32, %arg1: i32, %arg2: memref<1xi32, #tpu.memory_space<smem>>) -> (i32, i32, i32) {
    %c0_i32 = arith.constant 0 : i32
    %c0_i32_0 = arith.constant 0 : i32
    %c0_i32_1 = arith.constant 0 : i32
    return %arg0, %c0_i32, %c0_i32_0 : i32, i32, i32
  }
  func.func @transform_1(%arg0: i32, %arg1: i32, %arg2: memref<1xi32, #tpu.memory_space<smem>>) -> (i32, i32, i32) {
    %c0_i32 = arith.constant 0 : i32
    %c0_i32_0 = arith.constant 0 : i32
    %c0_i32_1 = arith.constant 0 : i32
    return %arg1, %c0_i32, %c0_i32_0 : i32, i32, i32
  }
  func.func @transform_2(%arg0: i32, %arg1: i32, %arg2: memref<1xi32, #tpu.memory_space<smem>>) -> (i32, i32) {
    %c0_i32 = arith.constant 0 : i32
    %c0_i32_0 = arith.constant 0 : i32
    %c0_i32_1 = arith.constant 0 : i32
    return %c0_i32, %c0_i32_0 : i32, i32
  }
  func.func @transform_3(%arg0: i32, %arg1: i32, %arg2: memref<1xi32, #tpu.memory_space<smem>>) -> (i32, i32) {
    %c0_i32 = arith.constant 0 : i32
    %c0_i32_0 = arith.constant 0 : i32
    %c0_i32_1 = arith.constant 0 : i32
    return %c0_i32, %c0_i32_0 : i32, i32
  }
  func.func @transform_4(%arg0: i32, %arg1: i32, %arg2: memref<1xi32, #tpu.memory_space<smem>>) -> (i32, i32, i32) {
    %c0_i32 = arith.constant 0 : i32
    %c0_i32_0 = arith.constant 0 : i32
    %c0_i32_1 = arith.constant 0 : i32
    return %arg0, %c0_i32, %c0_i32_0 : i32, i32, i32
  }
}

module attributes {stable_mosaic.version = 11 : i64} {
  func.func @_conv_tap_kernel(%arg0: i32, %arg1: i32, %arg2: memref<27xi32, #tpu.memory_space<smem>>, %arg3: memref<1x74x32xf32, #tpu.memory_space<vmem>>, %arg4: memref<1x32x128xbf16, #tpu.memory_space<vmem>>, %arg5: memref<1x128xf32, #tpu.memory_space<vmem>>, %arg6: memref<1x128xf32, #tpu.memory_space<vmem>>, %arg7: memref<1x32x128xf32, #tpu.memory_space<vmem>>, %arg8: memref<32x128xf32, #tpu.memory_space<vmem>>) attributes {dimension_semantics = [#tpu.dimension_semantics<parallel>, #tpu.dimension_semantics<arbitrary>], iteration_bounds = array<i64: 2, 27>, scalar_prefetch = 1 : i64, scratch_operands = 1 : i64, tpu.core_type = #tpu.core_type<tc>, window_params = [{transform_indices = @transform_0, window_bounds = array<i64: 1, 74, 32>}, {transform_indices = @transform_1, window_bounds = array<i64: 1, 32, 128>}, {pipeline_mode = #tpu.pipeline_mode<synchronous>, transform_indices = @transform_2, window_bounds = array<i64: 1, 128>}, {pipeline_mode = #tpu.pipeline_mode<synchronous>, transform_indices = @transform_3, window_bounds = array<i64: 1, 128>}, {transform_indices = @transform_4, window_bounds = array<i64: 1, 32, 128>}]} {
    %c0_i32 = arith.constant 0 : i32
    %0 = arith.cmpi eq, %arg1, %c0_i32 : i32
    %1 = arith.extui %0 : i1 to i32
    %c0_i32_0 = arith.constant 0 : i32
    %2 = arith.cmpi ne, %1, %c0_i32_0 : i32
    scf.if %2 {
      %cst_10 = arith.constant 0.000000e+00 : f32
      %18 = vector.broadcast %cst_10 : f32 to vector<32x128xf32>
      %c0_11 = arith.constant 0 : index
      %c0_12 = arith.constant 0 : index
      %19 = vector.load %arg8[%c0_11, %c0_12] : memref<32x128xf32, #tpu.memory_space<vmem>>, vector<32x128xf32>
      tpu.vector_store %arg8[%c0_11, %c0_12], %18 {strides = array<i32>} : memref<32x128xf32, #tpu.memory_space<vmem>>, vector<32x128xf32>,
    } else {
    }
    %3 = arith.index_cast %arg1 : i32 to index
    %4 = memref.load %arg2[%3] : memref<27xi32, #tpu.memory_space<smem>>
    %c0 = arith.constant 0 : index
    %5 = arith.index_cast %4 : i32 to index
    %c0_1 = arith.constant 0 : index
    %6 = vector.load %arg3[%c0, %5, %c0_1] : memref<1x74x32xf32, #tpu.memory_space<vmem>>, vector<1x32x32xf32>
    %7 = vector.shape_cast %6 : vector<1x32x32xf32> to vector<32x32xf32>
    %c0_2 = arith.constant 0 : index
    %c0_3 = arith.constant 0 : index
    %8 = vector.load %arg8[%c0_2, %c0_3] : memref<32x128xf32, #tpu.memory_space<vmem>>, vector<32x128xf32>
    %9 = arith.truncf %7 : vector<32x32xf32> to vector<32x32xbf16>
    %c0_4 = arith.constant 0 : index
    %c0_5 = arith.constant 0 : index
    %c0_6 = arith.constant 0 : index
    %10 = vector.load %arg4[%c0_4, %c0_5, %c0_6] : memref<1x32x128xbf16, #tpu.memory_space<vmem>>, vector<1x32x128xbf16>
    %11 = vector.shape_cast %10 : vector<1x32x128xbf16> to vector<32x128xbf16>
    %cst = arith.constant dense<0.000000e+00> : vector<32x128xf32>
    %12 = tpu.matmul %9, %11, %cst {dimension_numbers = #tpu.dot_dimension_numbers<[1], [0], [0], [1], [0, 0, 1, 1], [], []>} : vector<32x32xbf16>, vector<32x128xbf16>, vector<32x128xf32> -> vector<32x128xf32>
    %13 = arith.addf %8, %12 : vector<32x128xf32>
    %c0_7 = arith.constant 0 : index
    %c0_8 = arith.constant 0 : index
    %14 = vector.load %arg8[%c0_7, %c0_8] : memref<32x128xf32, #tpu.memory_space<vmem>>, vector<32x128xf32>
    tpu.vector_store %arg8[%c0_7, %c0_8], %13 {strides = array<i32>} : memref<32x128xf32, #tpu.memory_space<vmem>>, vector<32x128xf32>,
    %c26_i32 = arith.constant 26 : i32
    %15 = arith.cmpi eq, %arg1, %c26_i32 : i32
    %16 = arith.extui %15 : i1 to i32
    %c0_i32_9 = arith.constant 0 : i32
    %17 = arith.cmpi ne, %16, %c0_i32_9 : i32
    scf.if %17 {
      %c0_10 = arith.constant 0 : index
      %c0_11 = arith.constant 0 : index
      %18 = vector.load %arg8[%c0_10, %c0_11] : memref<32x128xf32, #tpu.memory_space<vmem>>, vector<32x128xf32>
      %c0_12 = arith.constant 0 : index
      %c0_13 = arith.constant 0 : index
      %19 = vector.load %arg5[%c0_12, %c0_13] : memref<1x128xf32, #tpu.memory_space<vmem>>, vector<1x128xf32>
      %20 = vector.broadcast %19 : vector<1x128xf32> to vector<32x128xf32>
      %21 = arith.mulf %18, %20 : vector<32x128xf32>
      %c0_14 = arith.constant 0 : index
      %c0_15 = arith.constant 0 : index
      %22 = vector.load %arg6[%c0_14, %c0_15] : memref<1x128xf32, #tpu.memory_space<vmem>>, vector<1x128xf32>
      %23 = vector.broadcast %22 : vector<1x128xf32> to vector<32x128xf32>
      %24 = arith.addf %21, %23 : vector<32x128xf32>
      %cst_16 = arith.constant 0.000000e+00 : f32
      %25 = vector.broadcast %cst_16 : f32 to vector<32x128xf32>
      %26 = arith.maximumf %24, %25 : vector<32x128xf32>
      %c0_17 = arith.constant 0 : index
      %c0_18 = arith.constant 0 : index
      %c0_19 = arith.constant 0 : index
      %27 = vector.load %arg7[%c0_17, %c0_18, %c0_19] : memref<1x32x128xf32, #tpu.memory_space<vmem>>, vector<1x32x128xf32>
      %28 = vector.shape_cast %27 : vector<1x32x128xf32> to vector<32x128xf32>
      %29 = vector.shape_cast %26 : vector<32x128xf32> to vector<1x32x128xf32>
      tpu.vector_store %arg7[%c0_17, %c0_18, %c0_19], %29 {strides = array<i32>} : memref<1x32x128xf32, #tpu.memory_space<vmem>>, vector<1x32x128xf32>,
    } else {
    }
    return
  }
  func.func @transform_0(%arg0: i32, %arg1: i32, %arg2: memref<27xi32, #tpu.memory_space<smem>>) -> (i32, i32, i32) {
    %c0_i32 = arith.constant 0 : i32
    %c0_i32_0 = arith.constant 0 : i32
    %c0_i32_1 = arith.constant 0 : i32
    return %arg0, %c0_i32, %c0_i32_0 : i32, i32, i32
  }
  func.func @transform_1(%arg0: i32, %arg1: i32, %arg2: memref<27xi32, #tpu.memory_space<smem>>) -> (i32, i32, i32) {
    %c0_i32 = arith.constant 0 : i32
    %c0_i32_0 = arith.constant 0 : i32
    %c0_i32_1 = arith.constant 0 : i32
    return %arg1, %c0_i32, %c0_i32_0 : i32, i32, i32
  }
  func.func @transform_2(%arg0: i32, %arg1: i32, %arg2: memref<27xi32, #tpu.memory_space<smem>>) -> (i32, i32) {
    %c0_i32 = arith.constant 0 : i32
    %c0_i32_0 = arith.constant 0 : i32
    %c0_i32_1 = arith.constant 0 : i32
    return %c0_i32, %c0_i32_0 : i32, i32
  }
  func.func @transform_3(%arg0: i32, %arg1: i32, %arg2: memref<27xi32, #tpu.memory_space<smem>>) -> (i32, i32) {
    %c0_i32 = arith.constant 0 : i32
    %c0_i32_0 = arith.constant 0 : i32
    %c0_i32_1 = arith.constant 0 : i32
    return %c0_i32, %c0_i32_0 : i32, i32
  }
  func.func @transform_4(%arg0: i32, %arg1: i32, %arg2: memref<27xi32, #tpu.memory_space<smem>>) -> (i32, i32, i32) {
    %c0_i32 = arith.constant 0 : i32
    %c0_i32_0 = arith.constant 0 : i32
    %c0_i32_1 = arith.constant 0 : i32
    return %arg0, %c0_i32, %c0_i32_0 : i32, i32, i32
  }
}

</mosaic_0001>

<llo_original>
// kernel: densenet_forward.12
$region0: #{densenet_forward.12}
  #allocation0 [shape = 'u32[]', space=smem, size = 0x4, offset = 0x4, fixed_abs, tag = 'smem constant byte address 0x4 - core index']
  #allocation1 [shape = 'u32[144,128]{1,0:T(1,128)}', space=vmem, size = 0x12000, scoped, tag = 'internal scratch']
  #allocation2 [shape = 'f32[968,128]{1,0:T(8,128)}', space=vmem, size = 0x79000, scoped, tag = 'scratch operand']
  #allocation3 [shape = 's32[1]{0}', space=sflag, size = 0x4, scoped, tag = 'scoped memory for densenet_forward.12']
  #allocation4 [shape = 'u8[512]{0}', space=smem, size = 0x200, scoped, tag = 'prefetched SMEM operand 0']
  %s0 = inlined_call_operand.vmem [shape: s32[64], index: 0, kind: input, shape index: {}]
  %s1 = inlined_call_operand.vmem [shape: f32[2,1367,8], index: 1, kind: input, shape index: {}]
  %s2 = inlined_call_operand.vmem [shape: bf16[64,8,128], index: 2, kind: input, shape index: {}]
  %s3 = inlined_call_operand.vmem [shape: f32[1,128], index: 3, kind: input, shape index: {}]
  %s4 = inlined_call_operand.vmem [shape: f32[1,128], index: 4, kind: input, shape index: {}]
  %s5 = inlined_call_operand.vmem [shape: f32[2,968,128], index: 5, kind: output, shape index: {}]
  %s6 = sld [smem:[#allocation0]]
  $region57: #{densenet_forward.12} parent=0
    _
  %s8 = ssub.s32 1, %s6
  %s9 = scalar_select 0, %s8, %s6
  %s10 = sshll.u32 %s0, 4
  %s11 = int_to_ptr.vmem [resolvable:$true] %s10
  %13 = dma.vmem_to_smem %s11, 16, [#allocation4], [#allocation3]
  %14 = dma.done [#allocation3], 16
  %15 = sfence
  loop: start=0, step=1, limit=130
  $region2: #{densenet_forward.12} parent=0 // loop_pre_header
    _
  $region3: #{densenet_forward.12} parent=0 // loop_header
    %s17 = sphi 0, %s21
    %p18 = scmp.ge.s32.totalorder %s17, 130
    %s24 = sphi 0, %s36
    %s25 = sphi 0, %s32
    %s26 = sphi 0, %s24
    %s27 = sphi 0, %s25
    %s28 = sphi 0, %s26
    %s29 = sphi 0, %s27
    %s39 = sphi 0, %s41
    %s42 = sphi 0, %s39
    %s43 = sphi 0, %s42
    %s59 = sphi 0, %s43
    %s65 = sphi 0, %s67
    %s68 = sphi 0, %s65
    %s69 = sphi 0, %s68
    %s85 = sphi 0, %s69
    %s89 = sphi 0, %s89
    %s91 = sphi 0, %s89
    %s92 = sphi 0, %s91
    %s106 = sphi 0, %s92
    %s110 = sphi 0, %s110
    %s112 = sphi 0, %s110
    %s113 = sphi 0, %s112
    %s127 = sphi 0, %s113
    %s133 = sphi 0, %s135
    %s136 = sphi 0, %s133
    %s137 = sphi 0, %s136
    %s153 = sphi 0, %s137
  $region4: #{densenet_forward.12} parent=0 // loop_header_branch
    %20 = sbr.rel (%p18) target = $region8
  $region5: #{densenet_forward.12} parent=0 // loop_body
    %s22 = ssub.s32 %s17, 1
    %s23 = ssub.s32 %s17, 2
    %s30 = sadd.s32 1, %s25
    %p31 = scmp.ge.s32.totalorder %s30, 64
    %s32 = scalar_select %p31, 0, %s30
    %s33 = sadd.s32 1, %s24
    %s34 = scalar_select %p31, %s33, %s24
    %p35 = scmp.ge.s32.totalorder %s34, 2
    %s36 = scalar_select %p35, 0, %s34
    %s37 = ssub.s32 %s24, %s36
    %p38 = scmp.eq.s32.totalorder %s37, 0
    %s40 = sadd.s32 %s39, 1
    %s41 = scalar_select %p38, %s39, %s40
    %p44 = pneg %p38
    %p45 = scmp.eq.s32.totalorder %s17, 127
    %p46 = por %p44, %p45
    %p47 = scmp.ne.s32.totalorder %s39, %s42
    %p48 = scmp.eq.s32.totalorder %s17, 0
    %p49 = por %p47, %p48
    %p50 = scmp.ne.s32.totalorder %s39, %s42
    %p51 = scmp.eq.s32.totalorder %s22, 127
    %p52 = por %p50, %p51
    %p53 = scmp.ne.s32.totalorder %s42, %s43
    %p54 = scmp.eq.s32.totalorder %s22, 0
    %p55 = por %p53, %p54
    %p56 = scmp.ne.s32.totalorder %s42, %s43
    %p57 = scmp.eq.s32.totalorder %s23, 127
    %p58 = por %p56, %p57
    %p60 = scmp.ne.s32.totalorder %s43, %s59
    %p61 = scmp.eq.s32.totalorder %s23, 0
    %p62 = por %p60, %p61
    %s63 = ssub.s32 %s25, %s32
    %p64 = scmp.eq.s32.totalorder %s63, 0
    %s66 = sadd.s32 %s65, 1
    %s67 = scalar_select %p64, %s65, %s66
    %p70 = pneg %p64
    %p71 = scmp.eq.s32.totalorder %s17, 127
    %p72 = por %p70, %p71
    %p73 = scmp.ne.s32.totalorder %s65, %s68
    %p74 = scmp.eq.s32.totalorder %s17, 0
    %p75 = por %p73, %p74
    %p76 = scmp.ne.s32.totalorder %s65, %s68
    %p77 = scmp.eq.s32.totalorder %s22, 127
    %p78 = por %p76, %p77
    %p79 = scmp.ne.s32.totalorder %s68, %s69
    %p80 = scmp.eq.s32.totalorder %s22, 0
    %p81 = por %p79, %p80
    %p82 = scmp.ne.s32.totalorder %s68, %s69
    %p83 = scmp.eq.s32.totalorder %s23, 127
    %p84 = por %p82, %p83
    %p86 = scmp.ne.s32.totalorder %s69, %s85
    %p87 = scmp.eq.s32.totalorder %s23, 0
    %p88 = por %p86, %p87
    %s90 = sadd.s32 %s89, 1
    %p93 = scmp.eq.s32.totalorder %s17, 127
    %p94 = scmp.ne.s32.totalorder %s89, %s91
    %p95 = scmp.eq.s32.totalorder %s17, 0
    %p96 = por %p94, %p95
    %p97 = scmp.ne.s32.totalorder %s89, %s91
    %p98 = scmp.eq.s32.totalorder %s22, 127
    %p99 = por %p97, %p98
    %p100 = scmp.ne.s32.totalorder %s91, %s92
    %p101 = scmp.eq.s32.totalorder %s22, 0
    %p102 = por %p100, %p101
    %p103 = scmp.ne.s32.totalorder %s91, %s92
    %p104 = scmp.eq.s32.totalorder %s23, 127
    %p105 = por %p103, %p104
    %p107 = scmp.ne.s32.totalorder %s92, %s106
    %p108 = scmp.eq.s32.totalorder %s23, 0
    %p109 = por %p107, %p108
    %s111 = sadd.s32 %s110, 1
    %p114 = scmp.eq.s32.totalorder %s17, 127
    %p115 = scmp.ne.s32.totalorder %s110, %s112
    %p116 = scmp.eq.s32.totalorder %s17, 0
    %p117 = por %p115, %p116
    %p118 = scmp.ne.s32.totalorder %s110, %s112
    %p119 = scmp.eq.s32.totalorder %s22, 127
    %p120 = por %p118, %p119
    %p121 = scmp.ne.s32.totalorder %s112, %s113
    %p122 = scmp.eq.s32.totalorder %s22, 0
    %p123 = por %p121, %p122
    %p124 = scmp.ne.s32.totalorder %s112, %s113
    %p125 = scmp.eq.s32.totalorder %s23, 127
    %p126 = por %p124, %p125
    %p128 = scmp.ne.s32.totalorder %s113, %s127
    %p129 = scmp.eq.s32.totalorder %s23, 0
    %p130 = por %p128, %p129
    %s131 = ssub.s32 %s24, %s36
    %p132 = scmp.eq.s32.totalorder %s131, 0
    %s134 = sadd.s32 %s133, 1
    %s135 = scalar_select %p132, %s133, %s134
    %p138 = pneg %p132
    %p139 = scmp.eq.s32.totalorder %s17, 127
    %p140 = por %p138, %p139
    %p141 = scmp.ne.s32.totalorder %s133, %s136
    %p142 = scmp.eq.s32.totalorder %s17, 0
    %p143 = por %p141, %p142
    %p144 = scmp.ne.s32.totalorder %s133, %s136
    %p145 = scmp.eq.s32.totalorder %s22, 127
    %p146 = por %p144, %p145
    %p147 = scmp.ne.s32.totalorder %s136, %s137
    %p148 = scmp.eq.s32.totalorder %s22, 0
    %p149 = por %p147, %p148
    %p150 = scmp.ne.s32.totalorder %s136, %s137
    %p151 = scmp.eq.s32.totalorder %s23, 127
    %p152 = por %p150, %p151
    %p154 = scmp.ne.s32.totalorder %s137, %s153
    %p155 = scmp.eq.s32.totalorder %s23, 0
    %p156 = por %p154, %p155
    %p157 = scmp.le.s32.totalorder 1, %s17
    %p158 = scmp.lt.s32.totalorder %s17, 129
    %p159 = pnand %p157, %p158
    %p160 = pneg %p159
    // Predicated region
    $region9: #{densenet_forward.12} parent=5 // pred_check
      _
    $region10: #{densenet_forward.12} parent=5 // pred_check_branch
      %162 = sbr.rel (%p159) target = $region12
    $region11: #{densenet_forward.12} parent=5 // pred_region
      %s163 = ssub.s32 %s17, 1
      // Predicated region
      $region13: #{densenet_forward.12} parent=11 // pred_check
        %p164 = pneg %p102
      $region14: #{densenet_forward.12} parent=11 // pred_check_branch
        %166 = sbr.rel (%p164) target = $region16
      $region15: #{densenet_forward.12} parent=11 // pred_region
        _
      $region16: #{densenet_forward.12} parent=11 // pred_fallthru
        _
      // Predicated region
      $region17: #{densenet_forward.12} parent=11 // pred_check
        %p167 = pneg %p123
      $region18: #{densenet_forward.12} parent=11 // pred_check_branch
        %169 = sbr.rel (%p167) target = $region20
      $region19: #{densenet_forward.12} parent=11 // pred_region
        _
      $region20: #{densenet_forward.12} parent=11 // pred_fallthru
        _
    $region12: #{densenet_forward.12} parent=5 // pred_fallthru
      _
    %p170 = scmp.lt.s32.totalorder %s17, 128
    // Predicated region
    $region21: #{densenet_forward.12} parent=5 // pred_check
      %p171 = pneg %p170
    $region22: #{densenet_forward.12} parent=5 // pred_check_branch
      %173 = sbr.rel (%p171) target = $region24
    $region23: #{densenet_forward.12} parent=5 // pred_region
      // Predicated region
      $region25: #{densenet_forward.12} parent=23 // pred_check
        %p174 = pneg %p49
      $region26: #{densenet_forward.12} parent=23 // pred_check_branch
        %176 = sbr.rel (%p174) target = $region28
      $region27: #{densenet_forward.12} parent=23 // pred_region
        %p177 = scmp.lt.s32.totalorder %s24, 1
        %s178 = scalar_select %p177, %s24, 1
        %s179 = smul.addr %s178, 171
        %s180 = smul.addr %s179, 8
        %s181 = scalar_lea.vmem %s1, %s180
      $region28: #{densenet_forward.12} parent=23 // pred_fallthru
        _
      // Predicated region
      $region29: #{densenet_forward.12} parent=23 // pred_check
        %p182 = pneg %p75
      $region30: #{densenet_forward.12} parent=23 // pred_check_branch
        %184 = sbr.rel (%p182) target = $region32
      $region31: #{densenet_forward.12} parent=23 // pred_region
        %p185 = scmp.lt.s32.totalorder %s25, 63
        %s186 = scalar_select %p185, %s25, 63
        %s187 = smul.addr %s186, 4
        %s188 = scalar_lea.vmem %s2, %s187
      $region32: #{densenet_forward.12} parent=23 // pred_fallthru
        _
    $region24: #{densenet_forward.12} parent=5 // pred_fallthru
      _
    %p189 = scmp.le.s32.totalorder 1, %s17
    %p190 = scmp.lt.s32.totalorder %s17, 129
    %p191 = pnand %p189, %p190
    %p192 = pneg %p191
    // Predicated region
    $region33: #{densenet_forward.12} parent=5 // pred_check
      _
    $region34: #{densenet_forward.12} parent=5 // pred_check_branch
      %194 = sbr.rel (%p191) target = $region36
    $region35: #{densenet_forward.12} parent=5 // pred_region
      %s195 = ssub.s32 %s17, 1
      %p196 = scmp.lt.s32.totalorder %s26, 1
      %s197 = scalar_select %p196, %s26, 1
      %s198 = smul.addr %s197, 171
      %s199 = smul.addr %s198, 8
      %s200 = scalar_lea.vmem %s1, %s199
      %p201 = pneg %p55
      %p202 = pneg %p52
      %p203 = scmp.lt.s32.totalorder %s27, 63
      %s204 = scalar_select %p203, %s27, 63
      %s205 = smul.addr %s204, 4
      %s206 = scalar_lea.vmem %s2, %s205
      %p207 = pneg %p81
      %p208 = pneg %p78
      %p209 = pneg %p102
      %p210 = pneg %p99
      %p211 = pneg %p123
      %p212 = pneg %p120
      %p213 = pneg %p149
      %p214 = pneg %p146
      %p215 = scmp.lt.s32.totalorder %s26, 1
      %s216 = scalar_select %p215, %s26, 1
      %s217 = smul.addr %s216, 121
      %s218 = smul.addr %s217, 8
      %s219 = scalar_lea.vmem %s5, %s218
      %p220 = scmp.lt.s32.totalorder %s26, 1
      %s221 = scalar_select %p220, %s26, 1
      %s222 = smul.addr %s221, 171
      %s223 = smul.addr %s222, 8
      %s224 = scalar_lea.vmem %s1, %s223
      %p225 = scmp.lt.s32.totalorder %s27, 63
      %s226 = scalar_select %p225, %s27, 63
      %s227 = smul.addr %s226, 4
      %s228 = scalar_lea.vmem %s2, %s227
      %p229 = scmp.lt.s32.totalorder %s26, 1
      %s230 = scalar_select %p229, %s26, 1
      %s231 = smul.addr %s230, 121
      %s232 = smul.addr %s231, 8
      %s233 = scalar_lea.vmem %s5, %s232
      %p235 = scmp.eq.s32.totalorder %s27, 0
      // Predicated region
      $region37: #{densenet_forward.12} parent=35 // pred_check
        %p236 = pneg %p235
      $region38: #{densenet_forward.12} parent=35 // pred_check_branch
        %238 = sbr.rel (%p236) target = $region40
      $region39: #{densenet_forward.12} parent=35 // pred_region
        %239 = vst [vmem:[#allocation2] sm:$0xff] 0.0
        %240 = vst [vmem:[#allocation2 + $0x8] sm:$0xff] 0.0
        %241 = vst [vmem:[#allocation2 + $0x10] sm:$0xff] 0.0
        %242 = vst [vmem:[#allocation2 + $0x18] sm:$0xff] 0.0
        %243 = vst [vmem:[#allocation2 + $0x20] sm:$0xff] 0.0
        %244 = vst [vmem:[#allocation2 + $0x28] sm:$0xff] 0.0
        %245 = vst [vmem:[#allocation2 + $0x30] sm:$0xff] 0.0
        %246 = vst [vmem:[#allocation2 + $0x38] sm:$0xff] 0.0
        %247 = vst [vmem:[#allocation2 + $0x40] sm:$0xff] 0.0
        %248 = vst [vmem:[#allocation2 + $0x48] sm:$0xff] 0.0
        %249 = vst [vmem:[#allocation2 + $0x50] sm:$0xff] 0.0
        %250 = vst [vmem:[#allocation2 + $0x58] sm:$0xff] 0.0
        %251 = vst [vmem:[#allocation2 + $0x60] sm:$0xff] 0.0
        %252 = vst [vmem:[#allocation2 + $0x68] sm:$0xff] 0.0
        %253 = vst [vmem:[#allocation2 + $0x70] sm:$0xff] 0.0
        %254 = vst [vmem:[#allocation2 + $0x78] sm:$0xff] 0.0
        %255 = vst [vmem:[#allocation2 + $0x80] sm:$0xff] 0.0
        %256 = vst [vmem:[#allocation2 + $0x88] sm:$0xff] 0.0
        %257 = vst [vmem:[#allocation2 + $0x90] sm:$0xff] 0.0
        %258 = vst [vmem:[#allocation2 + $0x98] sm:$0xff] 0.0
        %259 = vst [vmem:[#allocation2 + $0xa0] sm:$0xff] 0.0
        %260 = vst [vmem:[#allocation2 + $0xa8] sm:$0xff] 0.0
        %261 = vst [vmem:[#allocation2 + $0xb0] sm:$0xff] 0.0
        %262 = vst [vmem:[#allocation2 + $0xb8] sm:$0xff] 0.0
        %263 = vst [vmem:[#allocation2 + $0xc0] sm:$0xff] 0.0
        %264 = vst [vmem:[#allocation2 + $0xc8] sm:$0xff] 0.0
        %265 = vst [vmem:[#allocation2 + $0xd0] sm:$0xff] 0.0
        %266 = vst [vmem:[#allocation2 + $0xd8] sm:$0xff] 0.0
        %267 = vst [vmem:[#allocation2 + $0xe0] sm:$0xff] 0.0
        %268 = vst [vmem:[#allocation2 + $0xe8] sm:$0xff] 0.0
        %269 = vst [vmem:[#allocation2 + $0xf0] sm:$0xff] 0.0
        %270 = vst [vmem:[#allocation2 + $0xf8] sm:$0xff] 0.0
        %271 = vst [vmem:[#allocation2 + $0x100] sm:$0xff] 0.0
        %272 = vst [vmem:[#allocation2 + $0x108] sm:$0xff] 0.0
        %273 = vst [vmem:[#allocation2 + $0x110] sm:$0xff] 0.0
        %274 = vst [vmem:[#allocation2 + $0x118] sm:$0xff] 0.0
        %275 = vst [vmem:[#allocation2 + $0x120] sm:$0xff] 0.0
        %276 = vst [vmem:[#allocation2 + $0x128] sm:$0xff] 0.0
        %277 = vst [vmem:[#allocation2 + $0x130] sm:$0xff] 0.0
        %278 = vst [vmem:[#allocation2 + $0x138] sm:$0xff] 0.0
        %279 = vst [vmem:[#allocation2 + $0x140] sm:$0xff] 0.0
        %280 = vst [vmem:[#allocation2 + $0x148] sm:$0xff] 0.0
        %281 = vst [vmem:[#allocation2 + $0x150] sm:$0xff] 0.0
        %282 = vst [vmem:[#allocation2 + $0x158] sm:$0xff] 0.0
        %283 = vst [vmem:[#allocation2 + $0x160] sm:$0xff] 0.0
        %284 = vst [vmem:[#allocation2 + $0x168] sm:$0xff] 0.0
        %285 = vst [vmem:[#allocation2 + $0x170] sm:$0xff] 0.0
        %286 = vst [vmem:[#allocation2 + $0x178] sm:$0xff] 0.0
        %287 = vst [vmem:[#allocation2 + $0x180] sm:$0xff] 0.0
        %288 = vst [vmem:[#allocation2 + $0x188] sm:$0xff] 0.0
        %289 = vst [vmem:[#allocation2 + $0x190] sm:$0xff] 0.0
        %290 = vst [vmem:[#allocation2 + $0x198] sm:$0xff] 0.0
        %291 = vst [vmem:[#allocation2 + $0x1a0] sm:$0xff] 0.0
        %292 = vst [vmem:[#allocation2 + $0x1a8] sm:$0xff] 0.0
        %293 = vst [vmem:[#allocation2 + $0x1b0] sm:$0xff] 0.0
        %294 = vst [vmem:[#allocation2 + $0x1b8] sm:$0xff] 0.0
        %295 = vst [vmem:[#allocation2 + $0x1c0] sm:$0xff] 0.0
        %296 = vst [vmem:[#allocation2 + $0x1c8] sm:$0xff] 0.0
        %297 = vst [vmem:[#allocation2 + $0x1d0] sm:$0xff] 0.0
        %298 = vst [vmem:[#allocation2 + $0x1d8] sm:$0xff] 0.0
        %299 = vst [vmem:[#allocation2 + $0x1e0] sm:$0xff] 0.0
        %300 = vst [vmem:[#allocation2 + $0x1e8] sm:$0xff] 0.0
        %301 = vst [vmem:[#allocation2 + $0x1f0] sm:$0xff] 0.0
        %302 = vst [vmem:[#allocation2 + $0x1f8] sm:$0xff] 0.0
        %303 = vst [vmem:[#allocation2 + $0x200] sm:$0xff] 0.0
        %304 = vst [vmem:[#allocation2 + $0x208] sm:$0xff] 0.0
        %305 = vst [vmem:[#allocation2 + $0x210] sm:$0xff] 0.0
        %306 = vst [vmem:[#allocation2 + $0x218] sm:$0xff] 0.0
        %307 = vst [vmem:[#allocation2 + $0x220] sm:$0xff] 0.0
        %308 = vst [vmem:[#allocation2 + $0x228] sm:$0xff] 0.0
        %309 = vst [vmem:[#allocation2 + $0x230] sm:$0xff] 0.0
        %310 = vst [vmem:[#allocation2 + $0x238] sm:$0xff] 0.0
        %311 = vst [vmem:[#allocation2 + $0x240] sm:$0xff] 0.0
        %312 = vst [vmem:[#allocation2 + $0x248] sm:$0xff] 0.0
        %313 = vst [vmem:[#allocation2 + $0x250] sm:$0xff] 0.0
        %314 = vst [vmem:[#allocation2 + $0x258] sm:$0xff] 0.0
        %315 = vst [vmem:[#allocation2 + $0x260] sm:$0xff] 0.0
        %316 = vst [vmem:[#allocation2 + $0x268] sm:$0xff] 0.0
        %317 = vst [vmem:[#allocation2 + $0x270] sm:$0xff] 0.0
        %318 = vst [vmem:[#allocation2 + $0x278] sm:$0xff] 0.0
        %319 = vst [vmem:[#allocation2 + $0x280] sm:$0xff] 0.0
        %320 = vst [vmem:[#allocation2 + $0x288] sm:$0xff] 0.0
        %321 = vst [vmem:[#allocation2 + $0x290] sm:$0xff] 0.0
        %322 = vst [vmem:[#allocation2 + $0x298] sm:$0xff] 0.0
        %323 = vst [vmem:[#allocation2 + $0x2a0] sm:$0xff] 0.0
        %324 = vst [vmem:[#allocation2 + $0x2a8] sm:$0xff] 0.0
        %325 = vst [vmem:[#allocation2 + $0x2b0] sm:$0xff] 0.0
        %326 = vst [vmem:[#allocation2 + $0x2b8] sm:$0xff] 0.0
        %327 = vst [vmem:[#allocation2 + $0x2c0] sm:$0xff] 0.0
        %328 = vst [vmem:[#allocation2 + $0x2c8] sm:$0xff] 0.0
        %329 = vst [vmem:[#allocation2 + $0x2d0] sm:$0xff] 0.0
        %330 = vst [vmem:[#allocation2 + $0x2d8] sm:$0xff] 0.0
        %331 = vst [vmem:[#allocation2 + $0x2e0] sm:$0xff] 0.0
        %332 = vst [vmem:[#allocation2 + $0x2e8] sm:$0xff] 0.0
        %333 = vst [vmem:[#allocation2 + $0x2f0] sm:$0xff] 0.0
        %334 = vst [vmem:[#allocation2 + $0x2f8] sm:$0xff] 0.0
        %335 = vst [vmem:[#allocation2 + $0x300] sm:$0xff] 0.0
        %336 = vst [vmem:[#allocation2 + $0x308] sm:$0xff] 0.0
        %337 = vst [vmem:[#allocation2 + $0x310] sm:$0xff] 0.0
        %338 = vst [vmem:[#allocation2 + $0x318] sm:$0xff] 0.0
        %339 = vst [vmem:[#allocation2 + $0x320] sm:$0xff] 0.0
        %340 = vst [vmem:[#allocation2 + $0x328] sm:$0xff] 0.0
        %341 = vst [vmem:[#allocation2 + $0x330] sm:$0xff] 0.0
        %342 = vst [vmem:[#allocation2 + $0x338] sm:$0xff] 0.0
        %343 = vst [vmem:[#allocation2 + $0x340] sm:$0xff] 0.0
        %344 = vst [vmem:[#allocation2 + $0x348] sm:$0xff] 0.0
        %345 = vst [vmem:[#allocation2 + $0x350] sm:$0xff] 0.0
        %346 = vst [vmem:[#allocation2 + $0x358] sm:$0xff] 0.0
        %347 = vst [vmem:[#allocation2 + $0x360] sm:$0xff] 0.0
        %348 = vst [vmem:[#allocation2 + $0x368] sm:$0xff] 0.0
        %349 = vst [vmem:[#allocation2 + $0x370] sm:$0xff] 0.0
        %350 = vst [vmem:[#allocation2 + $0x378] sm:$0xff] 0.0
        %351 = vst [vmem:[#allocation2 + $0x380] sm:$0xff] 0.0
        %352 = vst [vmem:[#allocation2 + $0x388] sm:$0xff] 0.0
        %353 = vst [vmem:[#allocation2 + $0x390] sm:$0xff] 0.0
        %354 = vst [vmem:[#allocation2 + $0x398] sm:$0xff] 0.0
        %355 = vst [vmem:[#allocation2 + $0x3a0] sm:$0xff] 0.0
        %356 = vst [vmem:[#allocation2 + $0x3a8] sm:$0xff] 0.0
        %357 = vst [vmem:[#allocation2 + $0x3b0] sm:$0xff] 0.0
        %358 = vst [vmem:[#allocation2 + $0x3b8] sm:$0xff] 0.0
        %359 = vst [vmem:[#allocation2 + $0x3c0] sm:$0xff] 0.0
      $region40: #{densenet_forward.12} parent=35 // pred_fallthru
        _
      %s360 = sld [smem:[#allocation4 + %s27]]
      %s361 = scalar_lea.vmem %s224, %s360
      %v362 = vld [vmem:[%s361] sm:$0xff]
      %v363 = vld [vmem:[%s361 + $0x8] sm:$0xff]
      %v364 = vld [vmem:[%s361 + $0x10] sm:$0xff]
      %v365 = vld [vmem:[%s361 + $0x18] sm:$0xff]
      %v366 = vld [vmem:[%s361 + $0x20] sm:$0xff]
      %v367 = vld [vmem:[%s361 + $0x28] sm:$0xff]
      %v368 = vld [vmem:[%s361 + $0x30] sm:$0xff]
      %v369 = vld [vmem:[%s361 + $0x38] sm:$0xff]
      %v370 = vld [vmem:[%s361 + $0x40] sm:$0xff]
      %v371 = vld [vmem:[%s361 + $0x48] sm:$0xff]
      %v372 = vld [vmem:[%s361 + $0x50] sm:$0xff]
      %v373 = vld [vmem:[%s361 + $0x58] sm:$0xff]
      %v374 = vld [vmem:[%s361 + $0x60] sm:$0xff]
      %v375 = vld [vmem:[%s361 + $0x68] sm:$0xff]
      %v376 = vld [vmem:[%s361 + $0x70] sm:$0xff]
      %v377 = vld [vmem:[%s361 + $0x78] sm:$0xff]
      %v378 = vld [vmem:[%s361 + $0x80] sm:$0xff]
      %v379 = vld [vmem:[%s361 + $0x88] sm:$0xff]
      %v380 = vld [vmem:[%s361 + $0x90] sm:$0xff]
      %v381 = vld [vmem:[%s361 + $0x98] sm:$0xff]
      %v382 = vld [vmem:[%s361 + $0xa0] sm:$0xff]
      %v383 = vld [vmem:[%s361 + $0xa8] sm:$0xff]
      %v384 = vld [vmem:[%s361 + $0xb0] sm:$0xff]
      %v385 = vld [vmem:[%s361 + $0xb8] sm:$0xff]
      %v386 = vld [vmem:[%s361 + $0xc0] sm:$0xff]
      %v387 = vld [vmem:[%s361 + $0xc8] sm:$0xff]
      %v388 = vld [vmem:[%s361 + $0xd0] sm:$0xff]
      %v389 = vld [vmem:[%s361 + $0xd8] sm:$0xff]
      %v390 = vld [vmem:[%s361 + $0xe0] sm:$0xff]
      %v391 = vld [vmem:[%s361 + $0xe8] sm:$0xff]
      %v392 = vld [vmem:[%s361 + $0xf0] sm:$0xff]
      %v393 = vld [vmem:[%s361 + $0xf8] sm:$0xff]
      %v394 = vld [vmem:[%s361 + $0x100] sm:$0xff]
      %v395 = vld [vmem:[%s361 + $0x108] sm:$0xff]
      %v396 = vld [vmem:[%s361 + $0x110] sm:$0xff]
      %v397 = vld [vmem:[%s361 + $0x118] sm:$0xff]
      %v398 = vld [vmem:[%s361 + $0x120] sm:$0xff]
      %v399 = vld [vmem:[%s361 + $0x128] sm:$0xff]
      %v400 = vld [vmem:[%s361 + $0x130] sm:$0xff]
      %v401 = vld [vmem:[%s361 + $0x138] sm:$0xff]
      %v402 = vld [vmem:[%s361 + $0x140] sm:$0xff]
      %v403 = vld [vmem:[%s361 + $0x148] sm:$0xff]
      %v404 = vld [vmem:[%s361 + $0x150] sm:$0xff]
      %v405 = vld [vmem:[%s361 + $0x158] sm:$0xff]
      %v406 = vld [vmem:[%s361 + $0x160] sm:$0xff]
      %v407 = vld [vmem:[%s361 + $0x168] sm:$0xff]
      %v408 = vld [vmem:[%s361 + $0x170] sm:$0xff]
      %v409 = vld [vmem:[%s361 + $0x178] sm:$0xff]
      %v410 = vld [vmem:[%s361 + $0x180] sm:$0xff]
      %v411 = vld [vmem:[%s361 + $0x188] sm:$0xff]
      %v412 = vld [vmem:[%s361 + $0x190] sm:$0xff]
      %v413 = vld [vmem:[%s361 + $0x198] sm:$0xff]
      %v414 = vld [vmem:[%s361 + $0x1a0] sm:$0xff]
      %v415 = vld [vmem:[%s361 + $0x1a8] sm:$0xff]
      %v416 = vld [vmem:[%s361 + $0x1b0] sm:$0xff]
      %v417 = vld [vmem:[%s361 + $0x1b8] sm:$0xff]
      %v418 = vld [vmem:[%s361 + $0x1c0] sm:$0xff]
      %v419 = vld [vmem:[%s361 + $0x1c8] sm:$0xff]
      %v420 = vld [vmem:[%s361 + $0x1d0] sm:$0xff]
      %v421 = vld [vmem:[%s361 + $0x1d8] sm:$0xff]
      %v422 = vld [vmem:[%s361 + $0x1e0] sm:$0xff]
      %v423 = vld [vmem:[%s361 + $0x1e8] sm:$0xff]
      %v424 = vld [vmem:[%s361 + $0x1f0] sm:$0xff]
      %v425 = vld [vmem:[%s361 + $0x1f8] sm:$0xff]
      %v426 = vld [vmem:[%s361 + $0x200] sm:$0xff]
      %v427 = vld [vmem:[%s361 + $0x208] sm:$0xff]
      %v428 = vld [vmem:[%s361 + $0x210] sm:$0xff]
      %v429 = vld [vmem:[%s361 + $0x218] sm:$0xff]
      %v430 = vld [vmem:[%s361 + $0x220] sm:$0xff]
      %v431 = vld [vmem:[%s361 + $0x228] sm:$0xff]
      %v432 = vld [vmem:[%s361 + $0x230] sm:$0xff]
      %v433 = vld [vmem:[%s361 + $0x238] sm:$0xff]
      %v434 = vld [vmem:[%s361 + $0x240] sm:$0xff]
      %v435 = vld [vmem:[%s361 + $0x248] sm:$0xff]
      %v436 = vld [vmem:[%s361 + $0x250] sm:$0xff]
      %v437 = vld [vmem:[%s361 + $0x258] sm:$0xff]
      %v438 = vld [vmem:[%s361 + $0x260] sm:$0xff]
      %v439 = vld [vmem:[%s361 + $0x268] sm:$0xff]
      %v440 = vld [vmem:[%s361 + $0x270] sm:$0xff]
      %v441 = vld [vmem:[%s361 + $0x278] sm:$0xff]
      %v442 = vld [vmem:[%s361 + $0x280] sm:$0xff]
      %v443 = vld [vmem:[%s361 + $0x288] sm:$0xff]
      %v444 = vld [vmem:[%s361 + $0x290] sm:$0xff]
      %v445 = vld [vmem:[%s361 + $0x298] sm:$0xff]
      %v446 = vld [vmem:[%s361 + $0x2a0] sm:$0xff]
      %v447 = vld [vmem:[%s361 + $0x2a8] sm:$0xff]
      %v448 = vld [vmem:[%s361 + $0x2b0] sm:$0xff]
      %v449 = vld [vmem:[%s361 + $0x2b8] sm:$0xff]
      %v450 = vld [vmem:[%s361 + $0x2c0] sm:$0xff]
      %v451 = vld [vmem:[%s361 + $0x2c8] sm:$0xff]
      %v452 = vld [vmem:[%s361 + $0x2d0] sm:$0xff]
      %v453 = vld [vmem:[%s361 + $0x2d8] sm:$0xff]
      %v454 = vld [vmem:[%s361 + $0x2e0] sm:$0xff]
      %v455 = vld [vmem:[%s361 + $0x2e8] sm:$0xff]
      %v456 = vld [vmem:[%s361 + $0x2f0] sm:$0xff]
      %v457 = vld [vmem:[%s361 + $0x2f8] sm:$0xff]
      %v458 = vld [vmem:[%s361 + $0x300] sm:$0xff]
      %v459 = vld [vmem:[%s361 + $0x308] sm:$0xff]
      %v460 = vld [vmem:[%s361 + $0x310] sm:$0xff]
      %v461 = vld [vmem:[%s361 + $0x318] sm:$0xff]
      %v462 = vld [vmem:[%s361 + $0x320] sm:$0xff]
      %v463 = vld [vmem:[%s361 + $0x328] sm:$0xff]
      %v464 = vld [vmem:[%s361 + $0x330] sm:$0xff]
      %v465 = vld [vmem:[%s361 + $0x338] sm:$0xff]
      %v466 = vld [vmem:[%s361 + $0x340] sm:$0xff]
      %v467 = vld [vmem:[%s361 + $0x348] sm:$0xff]
      %v468 = vld [vmem:[%s361 + $0x350] sm:$0xff]
      %v469 = vld [vmem:[%s361 + $0x358] sm:$0xff]
      %v470 = vld [vmem:[%s361 + $0x360] sm:$0xff]
      %v471 = vld [vmem:[%s361 + $0x368] sm:$0xff]
      %v472 = vld [vmem:[%s361 + $0x370] sm:$0xff]
      %v473 = vld [vmem:[%s361 + $0x378] sm:$0xff]
      %v474 = vld [vmem:[%s361 + $0x380] sm:$0xff]
      %v475 = vld [vmem:[%s361 + $0x388] sm:$0xff]
      %v476 = vld [vmem:[%s361 + $0x390] sm:$0xff]
      %v477 = vld [vmem:[%s361 + $0x398] sm:$0xff]
      %v478 = vld [vmem:[%s361 + $0x3a0] sm:$0xff]
      %v479 = vld [vmem:[%s361 + $0x3a8] sm:$0xff]
      %v480 = vld [vmem:[%s361 + $0x3b0] sm:$0xff]
      %v481 = vld [vmem:[%s361 + $0x3b8] sm:$0xff]
      %v482 = vld [vmem:[%s361 + $0x3c0] sm:$0xff]
      %v483 = vld [vmem:[#allocation2] sm:$0xff]
      %v484 = vld [vmem:[#allocation2 + $0x8] sm:$0xff]
      %v485 = vld [vmem:[#allocation2 + $0x10] sm:$0xff]
      %v486 = vld [vmem:[#allocation2 + $0x18] sm:$0xff]
      %v487 = vld [vmem:[#allocation2 + $0x20] sm:$0xff]
      %v488 = vld [vmem:[#allocation2 + $0x28] sm:$0xff]
      %v489 = vld [vmem:[#allocation2 + $0x30] sm:$0xff]
      %v490 = vld [vmem:[#allocation2 + $0x38] sm:$0xff]
      %v491 = vld [vmem:[#allocation2 + $0x40] sm:$0xff]
      %v492 = vld [vmem:[#allocation2 + $0x48] sm:$0xff]
      %v493 = vld [vmem:[#allocation2 + $0x50] sm:$0xff]
      %v494 = vld [vmem:[#allocation2 + $0x58] sm:$0xff]
      %v495 = vld [vmem:[#allocation2 + $0x60] sm:$0xff]
      %v496 = vld [vmem:[#allocation2 + $0x68] sm:$0xff]
      %v497 = vld [vmem:[#allocation2 + $0x70] sm:$0xff]
      %v498 = vld [vmem:[#allocation2 + $0x78] sm:$0xff]
      %v499 = vld [vmem:[#allocation2 + $0x80] sm:$0xff]
      %v500 = vld [vmem:[#allocation2 + $0x88] sm:$0xff]
      %v501 = vld [vmem:[#allocation2 + $0x90] sm:$0xff]
      %v502 = vld [vmem:[#allocation2 + $0x98] sm:$0xff]
      %v503 = vld [vmem:[#allocation2 + $0xa0] sm:$0xff]
      %v504 = vld [vmem:[#allocation2 + $0xa8] sm:$0xff]
      %v505 = vld [vmem:[#allocation2 + $0xb0] sm:$0xff]
      %v506 = vld [vmem:[#allocation2 + $0xb8] sm:$0xff]
      %v507 = vld [vmem:[#allocation2 + $0xc0] sm:$0xff]
      %v508 = vld [vmem:[#allocation2 + $0xc8] sm:$0xff]
      %v509 = vld [vmem:[#allocation2 + $0xd0] sm:$0xff]
      %v510 = vld [vmem:[#allocation2 + $0xd8] sm:$0xff]
      %v511 = vld [vmem:[#allocation2 + $0xe0] sm:$0xff]
      %v512 = vld [vmem:[#allocation2 + $0xe8] sm:$0xff]
      %v513 = vld [vmem:[#allocation2 + $0xf0] sm:$0xff]
      %v514 = vld [vmem:[#allocation2 + $0xf8] sm:$0xff]
      %v515 = vld [vmem:[#allocation2 + $0x100] sm:$0xff]
      %v516 = vld [vmem:[#allocation2 + $0x108] sm:$0xff]
      %v517 = vld [vmem:[#allocation2 + $0x110] sm:$0xff]
      %v518 = vld [vmem:[#allocation2 + $0x118] sm:$0xff]
      %v519 = vld [vmem:[#allocation2 + $0x120] sm:$0xff]
      %v520 = vld [vmem:[#allocation2 + $0x128] sm:$0xff]
      %v521 = vld [vmem:[#allocation2 + $0x130] sm:$0xff]
      %v522 = vld [vmem:[#allocation2 + $0x138] sm:$0xff]
      %v523 = vld [vmem:[#allocation2 + $0x140] sm:$0xff]
      %v524 = vld [vmem:[#allocation2 + $0x148] sm:$0xff]
      %v525 = vld [vmem:[#allocation2 + $0x150] sm:$0xff]
      %v526 = vld [vmem:[#allocation2 + $0x158] sm:$0xff]
      %v527 = vld [vmem:[#allocation2 + $0x160] sm:$0xff]
      %v528 = vld [vmem:[#allocation2 + $0x168] sm:$0xff]
      %v529 = vld [vmem:[#allocation2 + $0x170] sm:$0xff]
      %v530 = vld [vmem:[#allocation2 + $0x178] sm:$0xff]
      %v531 = vld [vmem:[#allocation2 + $0x180] sm:$0xff]
      %v532 = vld [vmem:[#allocation2 + $0x188] sm:$0xff]
      %v533 = vld [vmem:[#allocation2 + $0x190] sm:$0xff]
      %v534 = vld [vmem:[#allocation2 + $0x198] sm:$0xff]
      %v535 = vld [vmem:[#allocation2 + $0x1a0] sm:$0xff]
      %v536 = vld [vmem:[#allocation2 + $0x1a8] sm:$0xff]
      %v537 = vld [vmem:[#allocation2 + $0x1b0] sm:$0xff]
      %v538 = vld [vmem:[#allocation2 + $0x1b8] sm:$0xff]
      %v539 = vld [vmem:[#allocation2 + $0x1c0] sm:$0xff]
      %v540 = vld [vmem:[#allocation2 + $0x1c8] sm:$0xff]
      %v541 = vld [vmem:[#allocation2 + $0x1d0] sm:$0xff]
      %v542 = vld [vmem:[#allocation2 + $0x1d8] sm:$0xff]
      %v543 = vld [vmem:[#allocation2 + $0x1e0] sm:$0xff]
      %v544 = vld [vmem:[#allocation2 + $0x1e8] sm:$0xff]
      %v545 = vld [vmem:[#allocation2 + $0x1f0] sm:$0xff]
      %v546 = vld [vmem:[#allocation2 + $0x1f8] sm:$0xff]
      %v547 = vld [vmem:[#allocation2 + $0x200] sm:$0xff]
      %v548 = vld [vmem:[#allocation2 + $0x208] sm:$0xff]
      %v549 = vld [vmem:[#allocation2 + $0x210] sm:$0xff]
      %v550 = vld [vmem:[#allocation2 + $0x218] sm:$0xff]
      %v551 = vld [vmem:[#allocation2 + $0x220] sm:$0xff]
      %v552 = vld [vmem:[#allocation2 + $0x228] sm:$0xff]
      %v553 = vld [vmem:[#allocation2 + $0x230] sm:$0xff]
      %v554 = vld [vmem:[#allocation2 + $0x238] sm:$0xff]
      %v555 = vld [vmem:[#allocation2 + $0x240] sm:$0xff]
      %v556 = vld [vmem:[#allocation2 + $0x248] sm:$0xff]
      %v557 = vld [vmem:[#allocation2 + $0x250] sm:$0xff]
      %v558 = vld [vmem:[#allocation2 + $0x258] sm:$0xff]
      %v559 = vld [vmem:[#allocation2 + $0x260] sm:$0xff]
      %v560 = vld [vmem:[#allocation2 + $0x268] sm:$0xff]
      %v561 = vld [vmem:[#allocation2 + $0x270] sm:$0xff]
      %v562 = vld [vmem:[#allocation2 + $0x278] sm:$0xff]
      %v563 = vld [vmem:[#allocation2 + $0x280] sm:$0xff]
      %v564 = vld [vmem:[#allocation2 + $0x288] sm:$0xff]
      %v565 = vld [vmem:[#allocation2 + $0x290] sm:$0xff]
      %v566 = vld [vmem:[#allocation2 + $0x298] sm:$0xff]
      %v567 = vld [vmem:[#allocation2 + $0x2a0] sm:$0xff]
      %v568 = vld [vmem:[#allocation2 + $0x2a8] sm:$0xff]
      %v569 = vld [vmem:[#allocation2 + $0x2b0] sm:$0xff]
      %v570 = vld [vmem:[#allocation2 + $0x2b8] sm:$0xff]
      %v571 = vld [vmem:[#allocation2 + $0x2c0] sm:$0xff]
      %v572 = vld [vmem:[#allocation2 + $0x2c8] sm:$0xff]
      %v573 = vld [vmem:[#allocation2 + $0x2d0] sm:$0xff]
      %v574 = vld [vmem:[#allocation2 + $0x2d8] sm:$0xff]
      %v575 = vld [vmem:[#allocation2 + $0x2e0] sm:$0xff]
      %v576 = vld [vmem:[#allocation2 + $0x2e8] sm:$0xff]
      %v577 = vld [vmem:[#allocation2 + $0x2f0] sm:$0xff]
      %v578 = vld [vmem:[#allocation2 + $0x2f8] sm:$0xff]
      %v579 = vld [vmem:[#allocation2 + $0x300] sm:$0xff]
      %v580 = vld [vmem:[#allocation2 + $0x308] sm:$0xff]
      %v581 = vld [vmem:[#allocation2 + $0x310] sm:$0xff]
      %v582 = vld [vmem:[#allocation2 + $0x318] sm:$0xff]
      %v583 = vld [vmem:[#allocation2 + $0x320] sm:$0xff]
      %v584 = vld [vmem:[#allocation2 + $0x328] sm:$0xff]
      %v585 = vld [vmem:[#allocation2 + $0x330] sm:$0xff]
      %v586 = vld [vmem:[#allocation2 + $0x338] sm:$0xff]
      %v587 = vld [vmem:[#allocation2 + $0x340] sm:$0xff]
      %v588 = vld [vmem:[#allocation2 + $0x348] sm:$0xff]
      %v589 = vld [vmem:[#allocation2 + $0x350] sm:$0xff]
      %v590 = vld [vmem:[#allocation2 + $0x358] sm:$0xff]
      %v591 = vld [vmem:[#allocation2 + $0x360] sm:$0xff]
      %v592 = vld [vmem:[#allocation2 + $0x368] sm:$0xff]
      %v593 = vld [vmem:[#allocation2 + $0x370] sm:$0xff]
      %v594 = vld [vmem:[#allocation2 + $0x378] sm:$0xff]
      %v595 = vld [vmem:[#allocation2 + $0x380] sm:$0xff]
      %v596 = vld [vmem:[#allocation2 + $0x388] sm:$0xff]
      %v597 = vld [vmem:[#allocation2 + $0x390] sm:$0xff]
      %v598 = vld [vmem:[#allocation2 + $0x398] sm:$0xff]
      %v599 = vld [vmem:[#allocation2 + $0x3a0] sm:$0xff]
      %v600 = vld [vmem:[#allocation2 + $0x3a8] sm:$0xff]
      %v601 = vld [vmem:[#allocation2 + $0x3b0] sm:$0xff]
      %v602 = vld [vmem:[#allocation2 + $0x3b8] sm:$0xff]
      %v603 = vld [vmem:[#allocation2 + $0x3c0] sm:$0xff]
      %v604 = vpack.c.bf16 %v363, %v362
      %v605 = vpack.c.bf16 %v365, %v364
      %v606 = vpack.c.bf16 %v367, %v366
      %v607 = vpack.c.bf16 %v369, %v368
      %v608 = vpack.c.bf16 %v371, %v370
      %v609 = vpack.c.bf16 %v373, %v372
      %v610 = vpack.c.bf16 %v375, %v374
      %v611 = vpack.c.bf16 %v377, %v376
      %v612 = vpack.c.bf16 %v379, %v378
      %v613 = vpack.c.bf16 %v381, %v380
      %v614 = vpack.c.bf16 %v383, %v382
      %v615 = vpack.c.bf16 %v385, %v384
      %v616 = vpack.c.bf16 %v387, %v386
      %v617 = vpack.c.bf16 %v389, %v388
      %v618 = vpack.c.bf16 %v391, %v390
      %v619 = vpack.c.bf16 %v393, %v392
      %v620 = vpack.c.bf16 %v395, %v394
      %v621 = vpack.c.bf16 %v397, %v396
      %v622 = vpack.c.bf16 %v399, %v398
      %v623 = vpack.c.bf16 %v401, %v400
      %v624 = vpack.c.bf16 %v403, %v402
      %v625 = vpack.c.bf16 %v405, %v404
      %v626 = vpack.c.bf16 %v407, %v406
      %v627 = vpack.c.bf16 %v409, %v408
      %v628 = vpack.c.bf16 %v411, %v410
      %v629 = vpack.c.bf16 %v413, %v412
      %v630 = vpack.c.bf16 %v415, %v414
      %v631 = vpack.c.bf16 %v417, %v416
      %v632 = vpack.c.bf16 %v419, %v418
      %v633 = vpack.c.bf16 %v421, %v420
      %v634 = vpack.c.bf16 %v423, %v422
      %v635 = vpack.c.bf16 %v425, %v424
      %v636 = vpack.c.bf16 %v427, %v426
      %v637 = vpack.c.bf16 %v429, %v428
      %v638 = vpack.c.bf16 %v431, %v430
      %v639 = vpack.c.bf16 %v433, %v432
      %v640 = vpack.c.bf16 %v435, %v434
      %v641 = vpack.c.bf16 %v437, %v436
      %v642 = vpack.c.bf16 %v439, %v438
      %v643 = vpack.c.bf16 %v441, %v440
      %v644 = vpack.c.bf16 %v443, %v442
      %v645 = vpack.c.bf16 %v445, %v444
      %v646 = vpack.c.bf16 %v447, %v446
      %v647 = vpack.c.bf16 %v449, %v448
      %v648 = vpack.c.bf16 %v451, %v450
      %v649 = vpack.c.bf16 %v453, %v452
      %v650 = vpack.c.bf16 %v455, %v454
      %v651 = vpack.c.bf16 %v457, %v456
      %v652 = vpack.c.bf16 %v459, %v458
      %v653 = vpack.c.bf16 %v461, %v460
      %v654 = vpack.c.bf16 %v463, %v462
      %v655 = vpack.c.bf16 %v465, %v464
      %v656 = vpack.c.bf16 %v467, %v466
      %v657 = vpack.c.bf16 %v469, %v468
      %v658 = vpack.c.bf16 %v471, %v470
      %v659 = vpack.c.bf16 %v473, %v472
      %v660 = vpack.c.bf16 %v475, %v474
      %v661 = vpack.c.bf16 %v477, %v476
      %v662 = vpack.c.bf16 %v479, %v478
      %v663 = vpack.c.bf16 %v481, %v480
      %v664 = vpack.c.bf16 %v482, %v482
      %v665 = vld [vmem:[%s228] sm:$0xf]
      %vm666 = vcmask 64512
      %v668 = vsel %vm666, %v604, 0
      %v671 = vsel %vm666, %v605, 0
      %v674 = vsel %vm666, %v606, 0
      %v677 = vsel %vm666, %v607, 0
      %v680 = vsel %vm666, %v608, 0
      %v683 = vsel %vm666, %v609, 0
      %v686 = vsel %vm666, %v610, 0
      %v689 = vsel %vm666, %v611, 0
      %v692 = vsel %vm666, %v612, 0
      %v695 = vsel %vm666, %v613, 0
      %v698 = vsel %vm666, %v614, 0
      %v701 = vsel %vm666, %v615, 0
      %v704 = vsel %vm666, %v616, 0
      %v707 = vsel %vm666, %v617, 0
      %v710 = vsel %vm666, %v618, 0
      %v713 = vsel %vm666, %v619, 0
      %v716 = vsel %vm666, %v620, 0
      %v719 = vsel %vm666, %v621, 0
      %v722 = vsel %vm666, %v622, 0
      %v725 = vsel %vm666, %v623, 0
      %v728 = vsel %vm666, %v624, 0
      %v731 = vsel %vm666, %v625, 0
      %v734 = vsel %vm666, %v626, 0
      %v737 = vsel %vm666, %v627, 0
      %v740 = vsel %vm666, %v628, 0
      %v743 = vsel %vm666, %v629, 0
      %v746 = vsel %vm666, %v630, 0
      %v749 = vsel %vm666, %v631, 0
      %v752 = vsel %vm666, %v632, 0
      %v755 = vsel %vm666, %v633, 0
      %v758 = vsel %vm666, %v634, 0
      %v761 = vsel %vm666, %v635, 0
      %v764 = vsel %vm666, %v636, 0
      %v767 = vsel %vm666, %v637, 0
      %v770 = vsel %vm666, %v638, 0
      %v773 = vsel %vm666, %v639, 0
      %v776 = vsel %vm666, %v640, 0
      %v779 = vsel %vm666, %v641, 0
      %v782 = vsel %vm666, %v642, 0
      %v785 = vsel %vm666, %v643, 0
      %v788 = vsel %vm666, %v644, 0
      %v791 = vsel %vm666, %v645, 0
      %v794 = vsel %vm666, %v646, 0
      %v797 = vsel %vm666, %v647, 0
      %v800 = vsel %vm666, %v648, 0
      %v803 = vsel %vm666, %v649, 0
      %v806 = vsel %vm666, %v650, 0
      %v809 = vsel %vm666, %v651, 0
      %v812 = vsel %vm666, %v652, 0
      %v815 = vsel %vm666, %v653, 0
      %v818 = vsel %vm666, %v654, 0
      %v821 = vsel %vm666, %v655, 0
      %v824 = vsel %vm666, %v656, 0
      %v827 = vsel %vm666, %v657, 0
      %v830 = vsel %vm666, %v658, 0
      %v833 = vsel %vm666, %v659, 0
      %v836 = vsel %vm666, %v660, 0
      %v839 = vsel %vm666, %v661, 0
      %v842 = vsel %vm666, %v662, 0
      %v845 = vsel %vm666, %v663, 0
      %v848 = vsel %vm666, %v664, 0
      %vm850 = vcmask 1043456
      %v852 = vsel %vm850, %v665, 0
      %854 = vmatprep.subr.bf16.mxu0 0
      %855 = vmatpush1.bf16.msra.mxu0 %v852
      %856 = vmatprep.subr.bf16.mxu0 0
      %857 = vmatpush1.bf16.msra.mxu0 0
      %858 = vmatprep.subr.bf16.mxu0 0
      %859 = vmatpush1.bf16.msra.mxu0 0
      %860 = vmatprep.subr.bf16.mxu0 0
      %861 = vmatpush1.bf16.msra.mxu0 0
      %862 = vmatprep.subr.bf16.mxu0 0
      %863 = vmatpush1.bf16.msra.mxu0 0
      %864 = vmatprep.subr.bf16.mxu0 0
      %865 = vmatpush1.bf16.msra.mxu0 0
      %866 = vmatprep.subr.bf16.mxu0 0
      %867 = vmatpush1.bf16.msra.mxu0 0
      %868 = vmatprep.subr.bf16.mxu0 0
      %869 = vmatpush1.bf16.msra.mxu0 0
      %870 = vmatprep.subr.bf16.mxu0 0
      %871 = vmatpush1.bf16.msra.mxu0 0
      %872 = vmatprep.subr.bf16.mxu0 0
      %873 = vmatpush1.bf16.msra.mxu0 0
      %874 = vmatprep.subr.bf16.mxu0 0
      %875 = vmatpush1.bf16.msra.mxu0 0
      %876 = vmatprep.subr.bf16.mxu0 0
      %877 = vmatpush1.bf16.msra.mxu0 0
      %878 = vmatprep.subr.bf16.mxu0 0
      %879 = vmatpush1.bf16.msra.mxu0 0
      %880 = vmatprep.subr.bf16.mxu0 0
      %881 = vmatpush1.bf16.msra.mxu0 0
      %882 = vmatprep.subr.bf16.mxu0 0
      %883 = vmatpush1.bf16.msra.mxu0 0
      %884 = vmatprep.subr.bf16.mxu0 0
      %885 = vmatpush1.bf16.msra.mxu0 0
      %886 = vmatprep.mubr.bf16.mxu0 0
      %887 = vmatmul.mubr.bf16.gmra.mrb[0].mxu0 %v668
      %v888 = vpop.f32.mrb[0].mxu0
      %v889 = vadd.f32 0.0, %v888
      %v890 = vpop.f32.mrb[0].mxu0
      %v891 = vpop.f32.mrb[0].mxu0
      %v892 = vadd.f32 0.0, %v891
      %v893 = vpop.f32.mrb[0].mxu0
      %894 = vmatprep.mubr.bf16.mxu0 0
      %895 = vmatmul.mubr.bf16.gmra.mrb[0].mxu0 %v671
      %v896 = vpop.f32.mrb[0].mxu0
      %v897 = vadd.f32 0.0, %v896
      %v898 = vpop.f32.mrb[0].mxu0
      %v899 = vpop.f32.mrb[0].mxu0
      %v900 = vadd.f32 0.0, %v899
      %v901 = vpop.f32.mrb[0].mxu0
      %902 = vmatprep.mubr.bf16.mxu0 0
      %903 = vmatmul.mubr.bf16.gmra.mrb[0].mxu0 %v674
      %v904 = vpop.f32.mrb[0].mxu0
      %v905 = vadd.f32 0.0, %v904
      %v906 = vpop.f32.mrb[0].mxu0
      %v907 = vpop.f32.mrb[0].mxu0
      %v908 = vadd.f32 0.0, %v907
      %v909 = vpop.f32.mrb[0].mxu0
      %910 = vmatprep.mubr.bf16.mxu0 0
      %911 = vmatmul.mubr.bf16.gmra.mrb[0].mxu0 %v677
      %v912 = vpop.f32.mrb[0].mxu0
      %v913 = vadd.f32 0.0, %v912
      %v914 = vpop.f32.mrb[0].mxu0
      %v915 = vpop.f32.mrb[0].mxu0
      %v916 = vadd.f32 0.0, %v915
      %v917 = vpop.f32.mrb[0].mxu0
      %918 = vmatprep.mubr.bf16.mxu0 0
      %919 = vmatmul.mubr.bf16.gmra.mrb[0].mxu0 %v680
      %v920 = vpop.f32.mrb[0].mxu0
      %v921 = vadd.f32 0.0, %v920
      %v922 = vpop.f32.mrb[0].mxu0
      %v923 = vpop.f32.mrb[0].mxu0
      %v924 = vadd.f32 0.0, %v923
      %v925 = vpop.f32.mrb[0].mxu0
      %926 = vmatprep.mubr.bf16.mxu0 0
      %927 = vmatmul.mubr.bf16.gmra.mrb[0].mxu0 %v683
      %v928 = vpop.f32.mrb[0].mxu0
      %v929 = vadd.f32 0.0, %v928
      %v930 = vpop.f32.mrb[0].mxu0
      %v931 = vpop.f32.mrb[0].mxu0
      %v932 = vadd.f32 0.0, %v931
      %v933 = vpop.f32.mrb[0].mxu0
      %934 = vmatprep.mubr.bf16.mxu0 0
      %935 = vmatmul.mubr.bf16.gmra.mrb[0].mxu0 %v686
      %v936 = vpop.f32.mrb[0].mxu0
      %v937 = vadd.f32 0.0, %v936
      %v938 = vpop.f32.mrb[0].mxu0
      %v939 = vpop.f32.mrb[0].mxu0
      %v940 = vadd.f32 0.0, %v939
      %v941 = vpop.f32.mrb[0].mxu0
      %942 = vmatprep.mubr.bf16.mxu0 0
      %943 = vmatmul.mubr.bf16.gmra.mrb[0].mxu0 %v689
      %v944 = vpop.f32.mrb[0].mxu0
      %v945 = vadd.f32 0.0, %v944
      %v946 = vpop.f32.mrb[0].mxu0
      %v947 = vpop.f32.mrb[0].mxu0
      %v948 = vadd.f32 0.0, %v947
      %v949 = vpop.f32.mrb[0].mxu0
      %950 = vmatprep.mubr.bf16.mxu0 0
      %951 = vmatmul.mubr.bf16.gmra.mrb[0].mxu0 %v692
      %v952 = vpop.f32.mrb[0].mxu0
      %v953 = vadd.f32 0.0, %v952
      %v954 = vpop.f32.mrb[0].mxu0
      %v955 = vpop.f32.mrb[0].mxu0
      %v956 = vadd.f32 0.0, %v955
      %v957 = vpop.f32.mrb[0].mxu0
      %958 = vmatprep.mubr.bf16.mxu0 0
      %959 = vmatmul.mubr.bf16.gmra.mrb[0].mxu0 %v695
      %v960 = vpop.f32.mrb[0].mxu0
      %v961 = vadd.f32 0.0, %v960
      %v962 = vpop.f32.mrb[0].mxu0
      %v963 = vpop.f32.mrb[0].mxu0
      %v964 = vadd.f32 0.0, %v963
      %v965 = vpop.f32.mrb[0].mxu0
      %966 = vmatprep.mubr.bf16.mxu0 0
      %967 = vmatmul.mubr.bf16.gmra.mrb[0].mxu0 %v698
      %v968 = vpop.f32.mrb[0].mxu0
      %v969 = vadd.f32 0.0, %v968
      %v970 = vpop.f32.mrb[0].mxu0
      %v971 = vpop.f32.mrb[0].mxu0
      %v972 = vadd.f32 0.0, %v971
      %v973 = vpop.f32.mrb[0].mxu0
      %974 = vmatprep.mubr.bf16.mxu0 0
      %975 = vmatmul.mubr.bf16.gmra.mrb[0].mxu0 %v701
      %v976 = vpop.f32.mrb[0].mxu0
      %v977 = vadd.f32 0.0, %v976
      %v978 = vpop.f32.mrb[0].mxu0
      %v979 = vpop.f32.mrb[0].mxu0
      %v980 = vadd.f32 0.0, %v979
      %v981 = vpop.f32.mrb[0].mxu0
      %982 = vmatprep.mubr.bf16.mxu0 0
      %983 = vmatmul.mubr.bf16.gmra.mrb[0].mxu0 %v704
      %v984 = vpop.f32.mrb[0].mxu0
      %v985 = vadd.f32 0.0, %v984
      %v986 = vpop.f32.mrb[0].mxu0
      %v987 = vpop.f32.mrb[0].mxu0
      %v988 = vadd.f32 0.0, %v987
      %v989 = vpop.f32.mrb[0].mxu0
      %990 = vmatprep.mubr.bf16.mxu0 0
      %991 = vmatmul.mubr.bf16.gmra.mrb[0].mxu0 %v707
      %v992 = vpop.f32.mrb[0].mxu0
      %v993 = vadd.f32 0.0, %v992
      %v994 = vpop.f32.mrb[0].mxu0
      %v995 = vpop.f32.mrb[0].mxu0
      %v996 = vadd.f32 0.0, %v995
      %v997 = vpop.f32.mrb[0].mxu0
      %998 = vmatprep.mubr.bf16.mxu0 0
      %999 = vmatmul.mubr.bf16.gmra.mrb[0].mxu0 %v710
      %v1000 = vpop.f32.mrb[0].mxu0
      %v1001 = vadd.f32 0.0, %v1000
      %v1002 = vpop.f32.mrb[0].mxu0
      %v1003 = vpop.f32.mrb[0].mxu0
      %v1004 = vadd.f32 0.0, %v1003
      %v1005 = vpop.f32.mrb[0].mxu0
      %1006 = vmatprep.mubr.bf16.mxu0 0
      %1007 = vmatmul.mubr.bf16.gmra.mrb[0].mxu0 %v713
      %v1008 = vpop.f32.mrb[0].mxu0
      %v1009 = vadd.f32 0.0, %v1008
      %v1010 = vpop.f32.mrb[0].mxu0
      %v1011 = vpop.f32.mrb[0].mxu0
      %v1012 = vadd.f32 0.0, %v1011
      %v1013 = vpop.f32.mrb[0].mxu0
      %1014 = vmatprep.mubr.bf16.mxu0 0
      %1015 = vmatmul.mubr.bf16.gmra.mrb[0].mxu0 %v716
      %v1016 = vpop.f32.mrb[0].mxu0
      %v1017 = vadd.f32 0.0, %v1016
      %v1018 = vpop.f32.mrb[0].mxu0
      %v1019 = vpop.f32.mrb[0].mxu0
      %v1020 = vadd.f32 0.0, %v1019
      %v1021 = vpop.f32.mrb[0].mxu0
      %1022 = vmatprep.mubr.bf16.mxu0 0
      %1023 = vmatmul.mubr.bf16.gmra.mrb[0].mxu0 %v719
      %v1024 = vpop.f32.mrb[0].mxu0
      %v1025 = vadd.f32 0.0, %v1024
      %v1026 = vpop.f32.mrb[0].mxu0
      %v1027 = vpop.f32.mrb[0].mxu0
      %v1028 = vadd.f32 0.0, %v1027
      %v1029 = vpop.f32.mrb[0].mxu0
      %1030 = vmatprep.mubr.bf16.mxu0 0
      %1031 = vmatmul.mubr.bf16.gmra.mrb[0].mxu0 %v722
      %v1032 = vpop.f32.mrb[0].mxu0
      %v1033 = vadd.f32 0.0, %v1032
      %v1034 = vpop.f32.mrb[0].mxu0
      %v1035 = vpop.f32.mrb[0].mxu0
      %v1036 = vadd.f32 0.0, %v1035
      %v1037 = vpop.f32.mrb[0].mxu0
      %1038 = vmatprep.mubr.bf16.mxu0 0
      %1039 = vmatmul.mubr.bf16.gmra.mrb[0].mxu0 %v725
      %v1040 = vpop.f32.mrb[0].mxu0
      %v1041 = vadd.f32 0.0, %v1040
      %v1042 = vpop.f32.mrb[0].mxu0
      %v1043 = vpop.f32.mrb[0].mxu0
      %v1044 = vadd.f32 0.0, %v1043
      %v1045 = vpop.f32.mrb[0].mxu0
      %1046 = vmatprep.mubr.bf16.mxu0 0
      %1047 = vmatmul.mubr.bf16.gmra.mrb[0].mxu0 %v728
      %v1048 = vpop.f32.mrb[0].mxu0
      %v1049 = vadd.f32 0.0, %v1048
      %v1050 = vpop.f32.mrb[0].mxu0
      %v1051 = vpop.f32.mrb[0].mxu0
      %v1052 = vadd.f32 0.0, %v1051
      %v1053 = vpop.f32.mrb[0].mxu0
      %1054 = vmatprep.mubr.bf16.mxu0 0
      %1055 = vmatmul.mubr.bf16.gmra.mrb[0].mxu0 %v731
      %v1056 = vpop.f32.mrb[0].mxu0
      %v1057 = vadd.f32 0.0, %v1056
      %v1058 = vpop.f32.mrb[0].mxu0
      %v1059 = vpop.f32.mrb[0].mxu0
      %v1060 = vadd.f32 0.0, %v1059
      %v1061 = vpop.f32.mrb[0].mxu0
      %1062 = vmatprep.mubr.bf16.mxu0 0
      %1063 = vmatmul.mubr.bf16.gmra.mrb[0].mxu0 %v734
      %v1064 = vpop.f32.mrb[0].mxu0
      %v1065 = vadd.f32 0.0, %v1064
      %v1066 = vpop.f32.mrb[0].mxu0
      %v1067 = vpop.f32.mrb[0].mxu0
      %v1068 = vadd.f32 0.0, %v1067
      %v1069 = vpop.f32.mrb[0].mxu0
      %1070 = vmatprep.mubr.bf16.mxu0 0
      %1071 = vmatmul.mubr.bf16.gmra.mrb[0].mxu0 %v737
      %v1072 = vpop.f32.mrb[0].mxu0
      %v1073 = vadd.f32 0.0, %v1072
      %v1074 = vpop.f32.mrb[0].mxu0
      %v1075 = vpop.f32.mrb[0].mxu0
      %v1076 = vadd.f32 0.0, %v1075
      %v1077 = vpop.f32.mrb[0].mxu0
      %1078 = vmatprep.mubr.bf16.mxu0 0
      %1079 = vmatmul.mubr.bf16.gmra.mrb[0].mxu0 %v740
      %v1080 = vpop.f32.mrb[0].mxu0
      %v1081 = vadd.f32 0.0, %v1080
      %v1082 = vpop.f32.mrb[0].mxu0
      %v1083 = vpop.f32.mrb[0].mxu0
      %v1084 = vadd.f32 0.0, %v1083
      %v1085 = vpop.f32.mrb[0].mxu0
      %1086 = vmatprep.mubr.bf16.mxu0 0
      %1087 = vmatmul.mubr.bf16.gmra.mrb[0].mxu0 %v743
      %v1088 = vpop.f32.mrb[0].mxu0
      %v1089 = vadd.f32 0.0, %v1088
      %v1090 = vpop.f32.mrb[0].mxu0
      %v1091 = vpop.f32.mrb[0].mxu0
      %v1092 = vadd.f32 0.0, %v1091
      %v1093 = vpop.f32.mrb[0].mxu0
      %1094 = vmatprep.mubr.bf16.mxu0 0
      %1095 = vmatmul.mubr.bf16.gmra.mrb[0].mxu0 %v746
      %v1096 = vpop.f32.mrb[0].mxu0
      %v1097 = vadd.f32 0.0, %v1096
      %v1098 = vpop.f32.mrb[0].mxu0
      %v1099 = vpop.f32.mrb[0].mxu0
      %v1100 = vadd.f32 0.0, %v1099
      %v1101 = vpop.f32.mrb[0].mxu0
      %1102 = vmatprep.mubr.bf16.mxu0 0
      %1103 = vmatmul.mubr.bf16.gmra.mrb[0].mxu0 %v749
      %v1104 = vpop.f32.mrb[0].mxu0
      %v1105 = vadd.f32 0.0, %v1104
      %v1106 = vpop.f32.mrb[0].mxu0
      %v1107 = vpop.f32.mrb[0].mxu0
      %v1108 = vadd.f32 0.0, %v1107
      %v1109 = vpop.f32.mrb[0].mxu0
      %1110 = vmatprep.mubr.bf16.mxu0 0
      %1111 = vmatmul.mubr.bf16.gmra.mrb[0].mxu0 %v752
      %v1112 = vpop.f32.mrb[0].mxu0
      %v1113 = vadd.f32 0.0, %v1112
      %v1114 = vpop.f32.mrb[0].mxu0
      %v1115 = vpop.f32.mrb[0].mxu0
      %v1116 = vadd.f32 0.0, %v1115
      %v1117 = vpop.f32.mrb[0].mxu0
      %1118 = vmatprep.mubr.bf16.mxu0 0
      %1119 = vmatmul.mubr.bf16.gmra.mrb[0].mxu0 %v755
      %v1120 = vpop.f32.mrb[0].mxu0
      %v1121 = vadd.f32 0.0, %v1120
      %v1122 = vpop.f32.mrb[0].mxu0
      %v1123 = vpop.f32.mrb[0].mxu0
      %v1124 = vadd.f32 0.0, %v1123
      %v1125 = vpop.f32.mrb[0].mxu0
      %1126 = vmatprep.mubr.bf16.mxu0 0
      %1127 = vmatmul.mubr.bf16.gmra.mrb[0].mxu0 %v758
      %v1128 = vpop.f32.mrb[0].mxu0
      %v1129 = vadd.f32 0.0, %v1128
      %v1130 = vpop.f32.mrb[0].mxu0
      %v1131 = vpop.f32.mrb[0].mxu0
      %v1132 = vadd.f32 0.0, %v1131
      %v1133 = vpop.f32.mrb[0].mxu0
      %1134 = vmatprep.mubr.bf16.mxu0 0
      %1135 = vmatmul.mubr.bf16.gmra.mrb[0].mxu0 %v761
      %v1136 = vpop.f32.mrb[0].mxu0
      %v1137 = vadd.f32 0.0, %v1136
      %v1138 = vpop.f32.mrb[0].mxu0
      %v1139 = vpop.f32.mrb[0].mxu0
      %v1140 = vadd.f32 0.0, %v1139
      %v1141 = vpop.f32.mrb[0].mxu0
      %1142 = vmatprep.mubr.bf16.mxu0 0
      %1143 = vmatmul.mubr.bf16.gmra.mrb[0].mxu0 %v764
      %v1144 = vpop.f32.mrb[0].mxu0
      %v1145 = vadd.f32 0.0, %v1144
      %v1146 = vpop.f32.mrb[0].mxu0
      %v1147 = vpop.f32.mrb[0].mxu0
      %v1148 = vadd.f32 0.0, %v1147
      %v1149 = vpop.f32.mrb[0].mxu0
      %1150 = vmatprep.mubr.bf16.mxu0 0
      %1151 = vmatmul.mubr.bf16.gmra.mrb[0].mxu0 %v767
      %v1152 = vpop.f32.mrb[0].mxu0
      %v1153 = vadd.f32 0.0, %v1152
      %v1154 = vpop.f32.mrb[0].mxu0
      %v1155 = vpop.f32.mrb[0].mxu0
      %v1156 = vadd.f32 0.0, %v1155
      %v1157 = vpop.f32.mrb[0].mxu0
      %1158 = vmatprep.mubr.bf16.mxu0 0
      %1159 = vmatmul.mubr.bf16.gmra.mrb[0].mxu0 %v770
      %v1160 = vpop.f32.mrb[0].mxu0
      %v1161 = vadd.f32 0.0, %v1160
      %v1162 = vpop.f32.mrb[0].mxu0
      %v1163 = vpop.f32.mrb[0].mxu0
      %v1164 = vadd.f32 0.0, %v1163
      %v1165 = vpop.f32.mrb[0].mxu0
      %1166 = vmatprep.mubr.bf16.mxu0 0
      %1167 = vmatmul.mubr.bf16.gmra.mrb[0].mxu0 %v773
      %v1168 = vpop.f32.mrb[0].mxu0
      %v1169 = vadd.f32 0.0, %v1168
      %v1170 = vpop.f32.mrb[0].mxu0
      %v1171 = vpop.f32.mrb[0].mxu0
      %v1172 = vadd.f32 0.0, %v1171
      %v1173 = vpop.f32.mrb[0].mxu0
      %1174 = vmatprep.mubr.bf16.mxu0 0
      %1175 = vmatmul.mubr.bf16.gmra.mrb[0].mxu0 %v776
      %v1176 = vpop.f32.mrb[0].mxu0
      %v1177 = vadd.f32 0.0, %v1176
      %v1178 = vpop.f32.mrb[0].mxu0
      %v1179 = vpop.f32.mrb[0].mxu0
      %v1180 = vadd.f32 0.0, %v1179
      %v1181 = vpop.f32.mrb[0].mxu0
      %1182 = vmatprep.mubr.bf16.mxu0 0
      %1183 = vmatmul.mubr.bf16.gmra.mrb[0].mxu0 %v779
      %v1184 = vpop.f32.mrb[0].mxu0
      %v1185 = vadd.f32 0.0, %v1184
      %v1186 = vpop.f32.mrb[0].mxu0
      %v1187 = vpop.f32.mrb[0].mxu0
      %v1188 = vadd.f32 0.0, %v1187
      %v1189 = vpop.f32.mrb[0].mxu0
      %1190 = vmatprep.mubr.bf16.mxu0 0
      %1191 = vmatmul.mubr.bf16.gmra.mrb[0].mxu0 %v782
      %v1192 = vpop.f32.mrb[0].mxu0
      %v1193 = vadd.f32 0.0, %v1192
      %v1194 = vpop.f32.mrb[0].mxu0
      %v1195 = vpop.f32.mrb[0].mxu0
      %v1196 = vadd.f32 0.0, %v1195
      %v1197 = vpop.f32.mrb[0].mxu0
      %1198 = vmatprep.mubr.bf16.mxu0 0
      %1199 = vmatmul.mubr.bf16.gmra.mrb[0].mxu0 %v785
      %v1200 = vpop.f32.mrb[0].mxu0
      %v1201 = vadd.f32 0.0, %v1200
      %v1202 = vpop.f32.mrb[0].mxu0
      %v1203 = vpop.f32.mrb[0].mxu0
      %v1204 = vadd.f32 0.0, %v1203
      %v1205 = vpop.f32.mrb[0].mxu0
      %1206 = vmatprep.mubr.bf16.mxu0 0
      %1207 = vmatmul.mubr.bf16.gmra.mrb[0].mxu0 %v788
      %v1208 = vpop.f32.mrb[0].mxu0
      %v1209 = vadd.f32 0.0, %v1208
      %v1210 = vpop.f32.mrb[0].mxu0
      %v1211 = vpop.f32.mrb[0].mxu0
      %v1212 = vadd.f32 0.0, %v1211
      %v1213 = vpop.f32.mrb[0].mxu0
      %1214 = vmatprep.mubr.bf16.mxu0 0
      %1215 = vmatmul.mubr.bf16.gmra.mrb[0].mxu0 %v791
      %v1216 = vpop.f32.mrb[0].mxu0
      %v1217 = vadd.f32 0.0, %v1216
      %v1218 = vpop.f32.mrb[0].mxu0
      %v1219 = vpop.f32.mrb[0].mxu0
      %v1220 = vadd.f32 0.0, %v1219
      %v1221 = vpop.f32.mrb[0].mxu0
      %1222 = vmatprep.mubr.bf16.mxu0 0
      %1223 = vmatmul.mubr.bf16.gmra.mrb[0].mxu0 %v794
      %v1224 = vpop.f32.mrb[0].mxu0
      %v1225 = vadd.f32 0.0, %v1224
      %v1226 = vpop.f32.mrb[0].mxu0
      %v1227 = vpop.f32.mrb[0].mxu0
      %v1228 = vadd.f32 0.0, %v1227
      %v1229 = vpop.f32.mrb[0].mxu0
      %1230 = vmatprep.mubr.bf16.mxu0 0
      %1231 = vmatmul.mubr.bf16.gmra.mrb[0].mxu0 %v797
      %v1232 = vpop.f32.mrb[0].mxu0
      %v1233 = vadd.f32 0.0, %v1232
      %v1234 = vpop.f32.mrb[0].mxu0
      %v1235 = vpop.f32.mrb[0].mxu0
      %v1236 = vadd.f32 0.0, %v1235
      %v1237 = vpop.f32.mrb[0].mxu0
      %1238 = vmatprep.mubr.bf16.mxu0 0
      %1239 = vmatmul.mubr.bf16.gmra.mrb[0].mxu0 %v800
      %v1240 = vpop.f32.mrb[0].mxu0
      %v1241 = vadd.f32 0.0, %v1240
      %v1242 = vpop.f32.mrb[0].mxu0
      %v1243 = vpop.f32.mrb[0].mxu0
      %v1244 = vadd.f32 0.0, %v1243
      %v1245 = vpop.f32.mrb[0].mxu0
      %1246 = vmatprep.mubr.bf16.mxu0 0
      %1247 = vmatmul.mubr.bf16.gmra.mrb[0].mxu0 %v803
      %v1248 = vpop.f32.mrb[0].mxu0
      %v1249 = vadd.f32 0.0, %v1248
      %v1250 = vpop.f32.mrb[0].mxu0
      %v1251 = vpop.f32.mrb[0].mxu0
      %v1252 = vadd.f32 0.0, %v1251
      %v1253 = vpop.f32.mrb[0].mxu0
      %1254 = vmatprep.mubr.bf16.mxu0 0
      %1255 = vmatmul.mubr.bf16.gmra.mrb[0].mxu0 %v806
      %v1256 = vpop.f32.mrb[0].mxu0
      %v1257 = vadd.f32 0.0, %v1256
      %v1258 = vpop.f32.mrb[0].mxu0
      %v1259 = vpop.f32.mrb[0].mxu0
      %v1260 = vadd.f32 0.0, %v1259
      %v1261 = vpop.f32.mrb[0].mxu0
      %1262 = vmatprep.mubr.bf16.mxu0 0
      %1263 = vmatmul.mubr.bf16.gmra.mrb[0].mxu0 %v809
      %v1264 = vpop.f32.mrb[0].mxu0
      %v1265 = vadd.f32 0.0, %v1264
      %v1266 = vpop.f32.mrb[0].mxu0
      %v1267 = vpop.f32.mrb[0].mxu0
      %v1268 = vadd.f32 0.0, %v1267
      %v1269 = vpop.f32.mrb[0].mxu0
      %1270 = vmatprep.mubr.bf16.mxu0 0
      %1271 = vmatmul.mubr.bf16.gmra.mrb[0].mxu0 %v812
      %v1272 = vpop.f32.mrb[0].mxu0
      %v1273 = vadd.f32 0.0, %v1272
      %v1274 = vpop.f32.mrb[0].mxu0
      %v1275 = vpop.f32.mrb[0].mxu0
      %v1276 = vadd.f32 0.0, %v1275
      %v1277 = vpop.f32.mrb[0].mxu0
      %1278 = vmatprep.mubr.bf16.mxu0 0
      %1279 = vmatmul.mubr.bf16.gmra.mrb[0].mxu0 %v815
      %v1280 = vpop.f32.mrb[0].mxu0
      %v1281 = vadd.f32 0.0, %v1280
      %v1282 = vpop.f32.mrb[0].mxu0
      %v1283 = vpop.f32.mrb[0].mxu0
      %v1284 = vadd.f32 0.0, %v1283
      %v1285 = vpop.f32.mrb[0].mxu0
      %1286 = vmatprep.mubr.bf16.mxu0 0
      %1287 = vmatmul.mubr.bf16.gmra.mrb[0].mxu0 %v818
      %v1288 = vpop.f32.mrb[0].mxu0
      %v1289 = vadd.f32 0.0, %v1288
      %v1290 = vpop.f32.mrb[0].mxu0
      %v1291 = vpop.f32.mrb[0].mxu0
      %v1292 = vadd.f32 0.0, %v1291
      %v1293 = vpop.f32.mrb[0].mxu0
      %1294 = vmatprep.mubr.bf16.mxu0 0
      %1295 = vmatmul.mubr.bf16.gmra.mrb[0].mxu0 %v821
      %v1296 = vpop.f32.mrb[0].mxu0
      %v1297 = vadd.f32 0.0, %v1296
      %v1298 = vpop.f32.mrb[0].mxu0
      %v1299 = vpop.f32.mrb[0].mxu0
      %v1300 = vadd.f32 0.0, %v1299
      %v1301 = vpop.f32.mrb[0].mxu0
      %1302 = vmatprep.mubr.bf16.mxu0 0
      %1303 = vmatmul.mubr.bf16.gmra.mrb[0].mxu0 %v824
      %v1304 = vpop.f32.mrb[0].mxu0
      %v1305 = vadd.f32 0.0, %v1304
      %v1306 = vpop.f32.mrb[0].mxu0
      %v1307 = vpop.f32.mrb[0].mxu0
      %v1308 = vadd.f32 0.0, %v1307
      %v1309 = vpop.f32.mrb[0].mxu0
      %1310 = vmatprep.mubr.bf16.mxu0 0
      %1311 = vmatmul.mubr.bf16.gmra.mrb[0].mxu0 %v827
      %v1312 = vpop.f32.mrb[0].mxu0
      %v1313 = vadd.f32 0.0, %v1312
      %v1314 = vpop.f32.mrb[0].mxu0
      %v1315 = vpop.f32.mrb[0].mxu0
      %v1316 = vadd.f32 0.0, %v1315
      %v1317 = vpop.f32.mrb[0].mxu0
      %1318 = vmatprep.mubr.bf16.mxu0 0
      %1319 = vmatmul.mubr.bf16.gmra.mrb[0].mxu0 %v830
      %v1320 = vpop.f32.mrb[0].mxu0
      %v1321 = vadd.f32 0.0, %v1320
      %v1322 = vpop.f32.mrb[0].mxu0
      %v1323 = vpop.f32.mrb[0].mxu0
      %v1324 = vadd.f32 0.0, %v1323
      %v1325 = vpop.f32.mrb[0].mxu0
      %1326 = vmatprep.mubr.bf16.mxu0 0
      %1327 = vmatmul.mubr.bf16.gmra.mrb[0].mxu0 %v833
      %v1328 = vpop.f32.mrb[0].mxu0
      %v1329 = vadd.f32 0.0, %v1328
      %v1330 = vpop.f32.mrb[0].mxu0
      %v1331 = vpop.f32.mrb[0].mxu0
      %v1332 = vadd.f32 0.0, %v1331
      %v1333 = vpop.f32.mrb[0].mxu0
      %1334 = vmatprep.mubr.bf16.mxu0 0
      %1335 = vmatmul.mubr.bf16.gmra.mrb[0].mxu0 %v836
      %v1336 = vpop.f32.mrb[0].mxu0
      %v1337 = vadd.f32 0.0, %v1336
      %v1338 = vpop.f32.mrb[0].mxu0
      %v1339 = vpop.f32.mrb[0].mxu0
      %v1340 = vadd.f32 0.0, %v1339
      %v1341 = vpop.f32.mrb[0].mxu0
      %1342 = vmatprep.mubr.bf16.mxu0 0
      %1343 = vmatmul.mubr.bf16.gmra.mrb[0].mxu0 %v839
      %v1344 = vpop.f32.mrb[0].mxu0
      %v1345 = vadd.f32 0.0, %v1344
      %v1346 = vpop.f32.mrb[0].mxu0
      %v1347 = vpop.f32.mrb[0].mxu0
      %v1348 = vadd.f32 0.0, %v1347
      %v1349 = vpop.f32.mrb[0].mxu0
      %1350 = vmatprep.mubr.bf16.mxu0 0
      %1351 = vmatmul.mubr.bf16.gmra.mrb[0].mxu0 %v842
      %v1352 = vpop.f32.mrb[0].mxu0
      %v1353 = vadd.f32 0.0, %v1352
      %v1354 = vpop.f32.mrb[0].mxu0
      %v1355 = vpop.f32.mrb[0].mxu0
      %v1356 = vadd.f32 0.0, %v1355
      %v1357 = vpop.f32.mrb[0].mxu0
      %1358 = vmatprep.mubr.bf16.mxu0 0
      %1359 = vmatmul.mubr.bf16.gmra.mrb[0].mxu0 %v845
      %v1360 = vpop.f32.mrb[0].mxu0
      %v1361 = vadd.f32 0.0, %v1360
      %v1362 = vpop.f32.mrb[0].mxu0
      %v1363 = vpop.f32.mrb[0].mxu0
      %v1364 = vadd.f32 0.0, %v1363
      %v1365 = vpop.f32.mrb[0].mxu0
      %1366 = vmatprep.mubr.bf16.mxu0 0
      %1367 = vmatmul.mubr.bf16.gmra.mrb[0].mxu0 %v848
      %v1368 = vpop.f32.mrb[0].mxu0
      %v1369 = vadd.f32 0.0, %v1368
      %v1370 = vpop.f32.mrb[0].mxu0
      %v1371 = vpop.f32.mrb[0].mxu0
      %v1372 = vpop.f32.mrb[0].mxu0
      %1373 = vdwg.mxu0
      %v1374 = vadd.f32 %v483, %v889
      %v1375 = vadd.f32 %v484, %v892
      %v1376 = vadd.f32 %v485, %v897
      %v1377 = vadd.f32 %v486, %v900
      %v1378 = vadd.f32 %v487, %v905
      %v1379 = vadd.f32 %v488, %v908
      %v1380 = vadd.f32 %v489, %v913
      %v1381 = vadd.f32 %v490, %v916
      %v1382 = vadd.f32 %v491, %v921
      %v1383 = vadd.f32 %v492, %v924
      %v1384 = vadd.f32 %v493, %v929
      %v1385 = vadd.f32 %v494, %v932
      %v1386 = vadd.f32 %v495, %v937
      %v1387 = vadd.f32 %v496, %v940
      %v1388 = vadd.f32 %v497, %v945
      %v1389 = vadd.f32 %v498, %v948
      %v1390 = vadd.f32 %v499, %v953
      %v1391 = vadd.f32 %v500, %v956
      %v1392 = vadd.f32 %v501, %v961
      %v1393 = vadd.f32 %v502, %v964
      %v1394 = vadd.f32 %v503, %v969
      %v1395 = vadd.f32 %v504, %v972
      %v1396 = vadd.f32 %v505, %v977
      %v1397 = vadd.f32 %v506, %v980
      %v1398 = vadd.f32 %v507, %v985
      %v1399 = vadd.f32 %v508, %v988
      %v1400 = vadd.f32 %v509, %v993
      %v1401 = vadd.f32 %v510, %v996
      %v1402 = vadd.f32 %v511, %v1001
      %v1403 = vadd.f32 %v512, %v1004
      %v1404 = vadd.f32 %v513, %v1009
      %v1405 = vadd.f32 %v514, %v1012
      %v1406 = vadd.f32 %v515, %v1017
      %v1407 = vadd.f32 %v516, %v1020
      %v1408 = vadd.f32 %v517, %v1025
      %v1409 = vadd.f32 %v518, %v1028
      %v1410 = vadd.f32 %v519, %v1033
      %v1411 = vadd.f32 %v520, %v1036
      %v1412 = vadd.f32 %v521, %v1041
      %v1413 = vadd.f32 %v522, %v1044
      %v1414 = vadd.f32 %v523, %v1049
      %v1415 = vadd.f32 %v524, %v1052
      %v1416 = vadd.f32 %v525, %v1057
      %v1417 = vadd.f32 %v526, %v1060
      %v1418 = vadd.f32 %v527, %v1065
      %v1419 = vadd.f32 %v528, %v1068
      %v1420 = vadd.f32 %v529, %v1073
      %v1421 = vadd.f32 %v530, %v1076
      %v1422 = vadd.f32 %v531, %v1081
      %v1423 = vadd.f32 %v532, %v1084
      %v1424 = vadd.f32 %v533, %v1089
      %v1425 = vadd.f32 %v534, %v1092
      %v1426 = vadd.f32 %v535, %v1097
      %v1427 = vadd.f32 %v536, %v1100
      %v1428 = vadd.f32 %v537, %v1105
      %v1429 = vadd.f32 %v538, %v1108
      %v1430 = vadd.f32 %v539, %v1113
      %v1431 = vadd.f32 %v540, %v1116
      %v1432 = vadd.f32 %v541, %v1121
      %v1433 = vadd.f32 %v542, %v1124
      %v1434 = vadd.f32 %v543, %v1129
      %v1435 = vadd.f32 %v544, %v1132
      %v1436 = vadd.f32 %v545, %v1137
      %v1437 = vadd.f32 %v546, %v1140
      %v1438 = vadd.f32 %v547, %v1145
      %v1439 = vadd.f32 %v548, %v1148
      %v1440 = vadd.f32 %v549, %v1153
      %v1441 = vadd.f32 %v550, %v1156
      %v1442 = vadd.f32 %v551, %v1161
      %v1443 = vadd.f32 %v552, %v1164
      %v1444 = vadd.f32 %v553, %v1169
      %v1445 = vadd.f32 %v554, %v1172
      %v1446 = vadd.f32 %v555, %v1177
      %v1447 = vadd.f32 %v556, %v1180
      %v1448 = vadd.f32 %v557, %v1185
      %v1449 = vadd.f32 %v558, %v1188
      %v1450 = vadd.f32 %v559, %v1193
      %v1451 = vadd.f32 %v560, %v1196
      %v1452 = vadd.f32 %v561, %v1201
      %v1453 = vadd.f32 %v562, %v1204
      %v1454 = vadd.f32 %v563, %v1209
      %v1455 = vadd.f32 %v564, %v1212
      %v1456 = vadd.f32 %v565, %v1217
      %v1457 = vadd.f32 %v566, %v1220
      %v1458 = vadd.f32 %v567, %v1225
      %v1459 = vadd.f32 %v568, %v1228
      %v1460 = vadd.f32 %v569, %v1233
      %v1461 = vadd.f32 %v570, %v1236
      %v1462 = vadd.f32 %v571, %v1241
      %v1463 = vadd.f32 %v572, %v1244
      %v1464 = vadd.f32 %v573, %v1249
      %v1465 = vadd.f32 %v574, %v1252
      %v1466 = vadd.f32 %v575, %v1257
      %v1467 = vadd.f32 %v576, %v1260
      %v1468 = vadd.f32 %v577, %v1265
      %v1469 = vadd.f32 %v578, %v1268
      %v1470 = vadd.f32 %v579, %v1273
      %v1471 = vadd.f32 %v580, %v1276
      %v1472 = vadd.f32 %v581, %v1281
      %v1473 = vadd.f32 %v582, %v1284
      %v1474 = vadd.f32 %v583, %v1289
      %v1475 = vadd.f32 %v584, %v1292
      %v1476 = vadd.f32 %v585, %v1297
      %v1477 = vadd.f32 %v586, %v1300
      %v1478 = vadd.f32 %v587, %v1305
      %v1479 = vadd.f32 %v588, %v1308
      %v1480 = vadd.f32 %v589, %v1313
      %v1481 = vadd.f32 %v590, %v1316
      %v1482 = vadd.f32 %v591, %v1321
      %v1483 = vadd.f32 %v592, %v1324
      %v1484 = vadd.f32 %v593, %v1329
      %v1485 = vadd.f32 %v594, %v1332
      %v1486 = vadd.f32 %v595, %v1337
      %v1487 = vadd.f32 %v596, %v1340
      %v1488 = vadd.f32 %v597, %v1345
      %v1489 = vadd.f32 %v598, %v1348
      %v1490 = vadd.f32 %v599, %v1353
      %v1491 = vadd.f32 %v600, %v1356
      %v1492 = vadd.f32 %v601, %v1361
      %v1493 = vadd.f32 %v602, %v1364
      %v1494 = vadd.f32 %v603, %v1369
      %1495 = vst [vmem:[#allocation2] sm:$0xff] %v1374
      %1496 = vst [vmem:[#allocation2 + $0x8] sm:$0xff] %v1375
      %1497 = vst [vmem:[#allocation2 + $0x10] sm:$0xff] %v1376
      %1498 = vst [vmem:[#allocation2 + $0x18] sm:$0xff] %v1377
      %1499 = vst [vmem:[#allocation2 + $0x20] sm:$0xff] %v1378
      %1500 = vst [vmem:[#allocation2 + $0x28] sm:$0xff] %v1379
      %1501 = vst [vmem:[#allocation2 + $0x30] sm:$0xff] %v1380
      %1502 = vst [vmem:[#allocation2 + $0x38] sm:$0xff] %v1381
      %1503 = vst [vmem:[#allocation2 + $0x40] sm:$0xff] %v1382
      %1504 = vst [vmem:[#allocation2 + $0x48] sm:$0xff] %v1383
      %1505 = vst [vmem:[#allocation2 + $0x50] sm:$0xff] %v1384
      %1506 = vst [vmem:[#allocation2 + $0x58] sm:$0xff] %v1385
      %1507 = vst [vmem:[#allocation2 + $0x60] sm:$0xff] %v1386
      %1508 = vst [vmem:[#allocation2 + $0x68] sm:$0xff] %v1387
      %1509 = vst [vmem:[#allocation2 + $0x70] sm:$0xff] %v1388
      %1510 = vst [vmem:[#allocation2 + $0x78] sm:$0xff] %v1389
      %1511 = vst [vmem:[#allocation2 + $0x80] sm:$0xff] %v1390
      %1512 = vst [vmem:[#allocation2 + $0x88] sm:$0xff] %v1391
      %1513 = vst [vmem:[#allocation2 + $0x90] sm:$0xff] %v1392
      %1514 = vst [vmem:[#allocation2 + $0x98] sm:$0xff] %v1393
      %1515 = vst [vmem:[#allocation2 + $0xa0] sm:$0xff] %v1394
      %1516 = vst [vmem:[#allocation2 + $0xa8] sm:$0xff] %v1395
      %1517 = vst [vmem:[#allocation2 + $0xb0] sm:$0xff] %v1396
      %1518 = vst [vmem:[#allocation2 + $0xb8] sm:$0xff] %v1397
      %1519 = vst [vmem:[#allocation2 + $0xc0] sm:$0xff] %v1398
      %1520 = vst [vmem:[#allocation2 + $0xc8] sm:$0xff] %v1399
      %1521 = vst [vmem:[#allocation2 + $0xd0] sm:$0xff] %v1400
      %1522 = vst [vmem:[#allocation2 + $0xd8] sm:$0xff] %v1401
      %1523 = vst [vmem:[#allocation2 + $0xe0] sm:$0xff] %v1402
      %1524 = vst [vmem:[#allocation2 + $0xe8] sm:$0xff] %v1403
      %1525 = vst [vmem:[#allocation2 + $0xf0] sm:$0xff] %v1404
      %1526 = vst [vmem:[#allocation2 + $0xf8] sm:$0xff] %v1405
      %1527 = vst [vmem:[#allocation2 + $0x100] sm:$0xff] %v1406
      %1528 = vst [vmem:[#allocation2 + $0x108] sm:$0xff] %v1407
      %1529 = vst [vmem:[#allocation2 + $0x110] sm:$0xff] %v1408
      %1530 = vst [vmem:[#allocation2 + $0x118] sm:$0xff] %v1409
      %1531 = vst [vmem:[#allocation2 + $0x120] sm:$0xff] %v1410
      %1532 = vst [vmem:[#allocation2 + $0x128] sm:$0xff] %v1411
      %1533 = vst [vmem:[#allocation2 + $0x130] sm:$0xff] %v1412
      %1534 = vst [vmem:[#allocation2 + $0x138] sm:$0xff] %v1413
      %1535 = vst [vmem:[#allocation2 + $0x140] sm:$0xff] %v1414
      %1536 = vst [vmem:[#allocation2 + $0x148] sm:$0xff] %v1415
      %1537 = vst [vmem:[#allocation2 + $0x150] sm:$0xff] %v1416
      %1538 = vst [vmem:[#allocation2 + $0x158] sm:$0xff] %v1417
      %1539 = vst [vmem:[#allocation2 + $0x160] sm:$0xff] %v1418
      %1540 = vst [vmem:[#allocation2 + $0x168] sm:$0xff] %v1419
      %1541 = vst [vmem:[#allocation2 + $0x170] sm:$0xff] %v1420
      %1542 = vst [vmem:[#allocation2 + $0x178] sm:$0xff] %v1421
      %1543 = vst [vmem:[#allocation2 + $0x180] sm:$0xff] %v1422
      %1544 = vst [vmem:[#allocation2 + $0x188] sm:$0xff] %v1423
      %1545 = vst [vmem:[#allocation2 + $0x190] sm:$0xff] %v1424
      %1546 = vst [vmem:[#allocation2 + $0x198] sm:$0xff] %v1425
      %1547 = vst [vmem:[#allocation2 + $0x1a0] sm:$0xff] %v1426
      %1548 = vst [vmem:[#allocation2 + $0x1a8] sm:$0xff] %v1427
      %1549 = vst [vmem:[#allocation2 + $0x1b0] sm:$0xff] %v1428
      %1550 = vst [vmem:[#allocation2 + $0x1b8] sm:$0xff] %v1429
      %1551 = vst [vmem:[#allocation2 + $0x1c0] sm:$0xff] %v1430
      %1552 = vst [vmem:[#allocation2 + $0x1c8] sm:$0xff] %v1431
      %1553 = vst [vmem:[#allocation2 + $0x1d0] sm:$0xff] %v1432
      %1554 = vst [vmem:[#allocation2 + $0x1d8] sm:$0xff] %v1433
      %1555 = vst [vmem:[#allocation2 + $0x1e0] sm:$0xff] %v1434
      %1556 = vst [vmem:[#allocation2 + $0x1e8] sm:$0xff] %v1435
      %1557 = vst [vmem:[#allocation2 + $0x1f0] sm:$0xff] %v1436
      %1558 = vst [vmem:[#allocation2 + $0x1f8] sm:$0xff] %v1437
      %1559 = vst [vmem:[#allocation2 + $0x200] sm:$0xff] %v1438
      %1560 = vst [vmem:[#allocation2 + $0x208] sm:$0xff] %v1439
      %1561 = vst [vmem:[#allocation2 + $0x210] sm:$0xff] %v1440
      %1562 = vst [vmem:[#allocation2 + $0x218] sm:$0xff] %v1441
      %1563 = vst [vmem:[#allocation2 + $0x220] sm:$0xff] %v1442
      %1564 = vst [vmem:[#allocation2 + $0x228] sm:$0xff] %v1443
      %1565 = vst [vmem:[#allocation2 + $0x230] sm:$0xff] %v1444
      %1566 = vst [vmem:[#allocation2 + $0x238] sm:$0xff] %v1445
      %1567 = vst [vmem:[#allocation2 + $0x240] sm:$0xff] %v1446
      %1568 = vst [vmem:[#allocation2 + $0x248] sm:$0xff] %v1447
      %1569 = vst [vmem:[#allocation2 + $0x250] sm:$0xff] %v1448
      %1570 = vst [vmem:[#allocation2 + $0x258] sm:$0xff] %v1449
      %1571 = vst [vmem:[#allocation2 + $0x260] sm:$0xff] %v1450
      %1572 = vst [vmem:[#allocation2 + $0x268] sm:$0xff] %v1451
      %1573 = vst [vmem:[#allocation2 + $0x270] sm:$0xff] %v1452
      %1574 = vst [vmem:[#allocation2 + $0x278] sm:$0xff] %v1453
      %1575 = vst [vmem:[#allocation2 + $0x280] sm:$0xff] %v1454
      %1576 = vst [vmem:[#allocation2 + $0x288] sm:$0xff] %v1455
      %1577 = vst [vmem:[#allocation2 + $0x290] sm:$0xff] %v1456
      %1578 = vst [vmem:[#allocation2 + $0x298] sm:$0xff] %v1457
      %1579 = vst [vmem:[#allocation2 + $0x2a0] sm:$0xff] %v1458
      %1580 = vst [vmem:[#allocation2 + $0x2a8] sm:$0xff] %v1459
      %1581 = vst [vmem:[#allocation2 + $0x2b0] sm:$0xff] %v1460
      %1582 = vst [vmem:[#allocation2 + $0x2b8] sm:$0xff] %v1461
      %1583 = vst [vmem:[#allocation2 + $0x2c0] sm:$0xff] %v1462
      %1584 = vst [vmem:[#allocation2 + $0x2c8] sm:$0xff] %v1463
      %1585 = vst [vmem:[#allocation2 + $0x2d0] sm:$0xff] %v1464
      %1586 = vst [vmem:[#allocation2 + $0x2d8] sm:$0xff] %v1465
      %1587 = vst [vmem:[#allocation2 + $0x2e0] sm:$0xff] %v1466
      %1588 = vst [vmem:[#allocation2 + $0x2e8] sm:$0xff] %v1467
      %1589 = vst [vmem:[#allocation2 + $0x2f0] sm:$0xff] %v1468
      %1590 = vst [vmem:[#allocation2 + $0x2f8] sm:$0xff] %v1469
      %1591 = vst [vmem:[#allocation2 + $0x300] sm:$0xff] %v1470
      %1592 = vst [vmem:[#allocation2 + $0x308] sm:$0xff] %v1471
      %1593 = vst [vmem:[#allocation2 + $0x310] sm:$0xff] %v1472
      %1594 = vst [vmem:[#allocation2 + $0x318] sm:$0xff] %v1473
      %1595 = vst [vmem:[#allocation2 + $0x320] sm:$0xff] %v1474
      %1596 = vst [vmem:[#allocation2 + $0x328] sm:$0xff] %v1475
      %1597 = vst [vmem:[#allocation2 + $0x330] sm:$0xff] %v1476
      %1598 = vst [vmem:[#allocation2 + $0x338] sm:$0xff] %v1477
      %1599 = vst [vmem:[#allocation2 + $0x340] sm:$0xff] %v1478
      %1600 = vst [vmem:[#allocation2 + $0x348] sm:$0xff] %v1479
      %1601 = vst [vmem:[#allocation2 + $0x350] sm:$0xff] %v1480
      %1602 = vst [vmem:[#allocation2 + $0x358] sm:$0xff] %v1481
      %1603 = vst [vmem:[#allocation2 + $0x360] sm:$0xff] %v1482
      %1604 = vst [vmem:[#allocation2 + $0x368] sm:$0xff] %v1483
      %1605 = vst [vmem:[#allocation2 + $0x370] sm:$0xff] %v1484
      %1606 = vst [vmem:[#allocation2 + $0x378] sm:$0xff] %v1485
      %1607 = vst [vmem:[#allocation2 + $0x380] sm:$0xff] %v1486
      %1608 = vst [vmem:[#allocation2 + $0x388] sm:$0xff] %v1487
      %1609 = vst [vmem:[#allocation2 + $0x390] sm:$0xff] %v1488
      %1610 = vst [vmem:[#allocation2 + $0x398] sm:$0xff] %v1489
      %1611 = vst [vmem:[#allocation2 + $0x3a0] sm:$0xff] %v1490
      %1612 = vst [vmem:[#allocation2 + $0x3a8] sm:$0xff] %v1491
      %1613 = vst [vmem:[#allocation2 + $0x3b0] sm:$0xff] %v1492
      %1614 = vst [vmem:[#allocation2 + $0x3b8] sm:$0xff] %v1493
      %1615 = vst [vmem:[#allocation2 + $0x3c0] sm:$0xff] %v1494
      %p1616 = scmp.eq.s32.totalorder %s27, 63
      // Predicated region
      $region41: #{densenet_forward.12} parent=35 // pred_check
        %p1617 = pneg %p1616
      $region42: #{densenet_forward.12} parent=35 // pred_check_branch
        %1619 = sbr.rel (%p1617) target = $region44
      $region43: #{densenet_forward.12} parent=35 // pred_region
        %v1620 = vld [vmem:[#allocation2] sm:$0xff]
        %v1621 = vld [vmem:[#allocation2 + $0x8] sm:$0xff]
        %v1622 = vld [vmem:[#allocation2 + $0x10] sm:$0xff]
        %v1623 = vld [vmem:[#allocation2 + $0x18] sm:$0xff]
        %v1624 = vld [vmem:[#allocation2 + $0x20] sm:$0xff]
        %v1625 = vld [vmem:[#allocation2 + $0x28] sm:$0xff]
        %v1626 = vld [vmem:[#allocation2 + $0x30] sm:$0xff]
        %v1627 = vld [vmem:[#allocation2 + $0x38] sm:$0xff]
        %v1628 = vld [vmem:[#allocation2 + $0x40] sm:$0xff]
        %v1629 = vld [vmem:[#allocation2 + $0x48] sm:$0xff]
        %v1630 = vld [vmem:[#allocation2 + $0x50] sm:$0xff]
        %v1631 = vld [vmem:[#allocation2 + $0x58] sm:$0xff]
        %v1632 = vld [vmem:[#allocation2 + $0x60] sm:$0xff]
        %v1633 = vld [vmem:[#allocation2 + $0x68] sm:$0xff]
        %v1634 = vld [vmem:[#allocation2 + $0x70] sm:$0xff]
        %v1635 = vld [vmem:[#allocation2 + $0x78] sm:$0xff]
        %v1636 = vld [vmem:[#allocation2 + $0x80] sm:$0xff]
        %v1637 = vld [vmem:[#allocation2 + $0x88] sm:$0xff]
        %v1638 = vld [vmem:[#allocation2 + $0x90] sm:$0xff]
        %v1639 = vld [vmem:[#allocation2 + $0x98] sm:$0xff]
        %v1640 = vld [vmem:[#allocation2 + $0xa0] sm:$0xff]
        %v1641 = vld [vmem:[#allocation2 + $0xa8] sm:$0xff]
        %v1642 = vld [vmem:[#allocation2 + $0xb0] sm:$0xff]
        %v1643 = vld [vmem:[#allocation2 + $0xb8] sm:$0xff]
        %v1644 = vld [vmem:[#allocation2 + $0xc0] sm:$0xff]
        %v1645 = vld [vmem:[#allocation2 + $0xc8] sm:$0xff]
        %v1646 = vld [vmem:[#allocation2 + $0xd0] sm:$0xff]
        %v1647 = vld [vmem:[#allocation2 + $0xd8] sm:$0xff]
        %v1648 = vld [vmem:[#allocation2 + $0xe0] sm:$0xff]
        %v1649 = vld [vmem:[#allocation2 + $0xe8] sm:$0xff]
        %v1650 = vld [vmem:[#allocation2 + $0xf0] sm:$0xff]
        %v1651 = vld [vmem:[#allocation2 + $0xf8] sm:$0xff]
        %v1652 = vld [vmem:[#allocation2 + $0x100] sm:$0xff]
        %v1653 = vld [vmem:[#allocation2 + $0x108] sm:$0xff]
        %v1654 = vld [vmem:[#allocation2 + $0x110] sm:$0xff]
        %v1655 = vld [vmem:[#allocation2 + $0x118] sm:$0xff]
        %v1656 = vld [vmem:[#allocation2 + $0x120] sm:$0xff]
        %v1657 = vld [vmem:[#allocation2 + $0x128] sm:$0xff]
        %v1658 = vld [vmem:[#allocation2 + $0x130] sm:$0xff]
        %v1659 = vld [vmem:[#allocation2 + $0x138] sm:$0xff]
        %v1660 = vld [vmem:[#allocation2 + $0x140] sm:$0xff]
        %v1661 = vld [vmem:[#allocation2 + $0x148] sm:$0xff]
        %v1662 = vld [vmem:[#allocation2 + $0x150] sm:$0xff]
        %v1663 = vld [vmem:[#allocation2 + $0x158] sm:$0xff]
        %v1664 = vld [vmem:[#allocation2 + $0x160] sm:$0xff]
        %v1665 = vld [vmem:[#allocation2 + $0x168] sm:$0xff]
        %v1666 = vld [vmem:[#allocation2 + $0x170] sm:$0xff]
        %v1667 = vld [vmem:[#allocation2 + $0x178] sm:$0xff]
        %v1668 = vld [vmem:[#allocation2 + $0x180] sm:$0xff]
        %v1669 = vld [vmem:[#allocation2 + $0x188] sm:$0xff]
        %v1670 = vld [vmem:[#allocation2 + $0x190] sm:$0xff]
        %v1671 = vld [vmem:[#allocation2 + $0x198] sm:$0xff]
        %v1672 = vld [vmem:[#allocation2 + $0x1a0] sm:$0xff]
        %v1673 = vld [vmem:[#allocation2 + $0x1a8] sm:$0xff]
        %v1674 = vld [vmem:[#allocation2 + $0x1b0] sm:$0xff]
        %v1675 = vld [vmem:[#allocation2 + $0x1b8] sm:$0xff]
        %v1676 = vld [vmem:[#allocation2 + $0x1c0] sm:$0xff]
        %v1677 = vld [vmem:[#allocation2 + $0x1c8] sm:$0xff]
        %v1678 = vld [vmem:[#allocation2 + $0x1d0] sm:$0xff]
        %v1679 = vld [vmem:[#allocation2 + $0x1d8] sm:$0xff]
        %v1680 = vld [vmem:[#allocation2 + $0x1e0] sm:$0xff]
        %v1681 = vld [vmem:[#allocation2 + $0x1e8] sm:$0xff]
        %v1682 = vld [vmem:[#allocation2 + $0x1f0] sm:$0xff]
        %v1683 = vld [vmem:[#allocation2 + $0x1f8] sm:$0xff]
        %v1684 = vld [vmem:[#allocation2 + $0x200] sm:$0xff]
        %v1685 = vld [vmem:[#allocation2 + $0x208] sm:$0xff]
        %v1686 = vld [vmem:[#allocation2 + $0x210] sm:$0xff]
        %v1687 = vld [vmem:[#allocation2 + $0x218] sm:$0xff]
        %v1688 = vld [vmem:[#allocation2 + $0x220] sm:$0xff]
        %v1689 = vld [vmem:[#allocation2 + $0x228] sm:$0xff]
        %v1690 = vld [vmem:[#allocation2 + $0x230] sm:$0xff]
        %v1691 = vld [vmem:[#allocation2 + $0x238] sm:$0xff]
        %v1692 = vld [vmem:[#allocation2 + $0x240] sm:$0xff]
        %v1693 = vld [vmem:[#allocation2 + $0x248] sm:$0xff]
        %v1694 = vld [vmem:[#allocation2 + $0x250] sm:$0xff]
        %v1695 = vld [vmem:[#allocation2 + $0x258] sm:$0xff]
        %v1696 = vld [vmem:[#allocation2 + $0x260] sm:$0xff]
        %v1697 = vld [vmem:[#allocation2 + $0x268] sm:$0xff]
        %v1698 = vld [vmem:[#allocation2 + $0x270] sm:$0xff]
        %v1699 = vld [vmem:[#allocation2 + $0x278] sm:$0xff]
        %v1700 = vld [vmem:[#allocation2 + $0x280] sm:$0xff]
        %v1701 = vld [vmem:[#allocation2 + $0x288] sm:$0xff]
        %v1702 = vld [vmem:[#allocation2 + $0x290] sm:$0xff]
        %v1703 = vld [vmem:[#allocation2 + $0x298] sm:$0xff]
        %v1704 = vld [vmem:[#allocation2 + $0x2a0] sm:$0xff]
        %v1705 = vld [vmem:[#allocation2 + $0x2a8] sm:$0xff]
        %v1706 = vld [vmem:[#allocation2 + $0x2b0] sm:$0xff]
        %v1707 = vld [vmem:[#allocation2 + $0x2b8] sm:$0xff]
        %v1708 = vld [vmem:[#allocation2 + $0x2c0] sm:$0xff]
        %v1709 = vld [vmem:[#allocation2 + $0x2c8] sm:$0xff]
        %v1710 = vld [vmem:[#allocation2 + $0x2d0] sm:$0xff]
        %v1711 = vld [vmem:[#allocation2 + $0x2d8] sm:$0xff]
        %v1712 = vld [vmem:[#allocation2 + $0x2e0] sm:$0xff]
        %v1713 = vld [vmem:[#allocation2 + $0x2e8] sm:$0xff]
        %v1714 = vld [vmem:[#allocation2 + $0x2f0] sm:$0xff]
        %v1715 = vld [vmem:[#allocation2 + $0x2f8] sm:$0xff]
        %v1716 = vld [vmem:[#allocation2 + $0x300] sm:$0xff]
        %v1717 = vld [vmem:[#allocation2 + $0x308] sm:$0xff]
        %v1718 = vld [vmem:[#allocation2 + $0x310] sm:$0xff]
        %v1719 = vld [vmem:[#allocation2 + $0x318] sm:$0xff]
        %v1720 = vld [vmem:[#allocation2 + $0x320] sm:$0xff]
        %v1721 = vld [vmem:[#allocation2 + $0x328] sm:$0xff]
        %v1722 = vld [vmem:[#allocation2 + $0x330] sm:$0xff]
        %v1723 = vld [vmem:[#allocation2 + $0x338] sm:$0xff]
        %v1724 = vld [vmem:[#allocation2 + $0x340] sm:$0xff]
        %v1725 = vld [vmem:[#allocation2 + $0x348] sm:$0xff]
        %v1726 = vld [vmem:[#allocation2 + $0x350] sm:$0xff]
        %v1727 = vld [vmem:[#allocation2 + $0x358] sm:$0xff]
        %v1728 = vld [vmem:[#allocation2 + $0x360] sm:$0xff]
        %v1729 = vld [vmem:[#allocation2 + $0x368] sm:$0xff]
        %v1730 = vld [vmem:[#allocation2 + $0x370] sm:$0xff]
        %v1731 = vld [vmem:[#allocation2 + $0x378] sm:$0xff]
        %v1732 = vld [vmem:[#allocation2 + $0x380] sm:$0xff]
        %v1733 = vld [vmem:[#allocation2 + $0x388] sm:$0xff]
        %v1734 = vld [vmem:[#allocation2 + $0x390] sm:$0xff]
        %v1735 = vld [vmem:[#allocation2 + $0x398] sm:$0xff]
        %v1736 = vld [vmem:[#allocation2 + $0x3a0] sm:$0xff]
        %v1737 = vld [vmem:[#allocation2 + $0x3a8] sm:$0xff]
        %v1738 = vld [vmem:[#allocation2 + $0x3b0] sm:$0xff]
        %v1739 = vld [vmem:[#allocation2 + $0x3b8] sm:$0xff]
        %v1740 = vld [vmem:[#allocation2 + $0x3c0] sm:$0xff]
        %v1741 = vld [vmem:[%s3] sm:$0x1]
        %v1743 = vlaneseq
        %v1744 = vshrl.u32 %v1743, 7
        %v1745 = vsub.s32 0, %v1744
        %v1746 = vrot.slane %v1741, %v1745
        %v1748 = vmul.f32 %v1620, %v1746
        %v1749 = vmul.f32 %v1621, %v1746
        %v1750 = vmul.f32 %v1622, %v1746
        %v1751 = vmul.f32 %v1623, %v1746
        %v1752 = vmul.f32 %v1624, %v1746
        %v1753 = vmul.f32 %v1625, %v1746
        %v1754 = vmul.f32 %v1626, %v1746
        %v1755 = vmul.f32 %v1627, %v1746
        %v1756 = vmul.f32 %v1628, %v1746
        %v1757 = vmul.f32 %v1629, %v1746
        %v1758 = vmul.f32 %v1630, %v1746
        %v1759 = vmul.f32 %v1631, %v1746
        %v1760 = vmul.f32 %v1632, %v1746
        %v1761 = vmul.f32 %v1633, %v1746
        %v1762 = vmul.f32 %v1634, %v1746
        %v1763 = vmul.f32 %v1635, %v1746
        %v1764 = vmul.f32 %v1636, %v1746
        %v1765 = vmul.f32 %v1637, %v1746
        %v1766 = vmul.f32 %v1638, %v1746
        %v1767 = vmul.f32 %v1639, %v1746
        %v1768 = vmul.f32 %v1640, %v1746
        %v1769 = vmul.f32 %v1641, %v1746
        %v1770 = vmul.f32 %v1642, %v1746
        %v1771 = vmul.f32 %v1643, %v1746
        %v1772 = vmul.f32 %v1644, %v1746
        %v1773 = vmul.f32 %v1645, %v1746
        %v1774 = vmul.f32 %v1646, %v1746
        %v1775 = vmul.f32 %v1647, %v1746
        %v1776 = vmul.f32 %v1648, %v1746
        %v1777 = vmul.f32 %v1649, %v1746
        %v1778 = vmul.f32 %v1650, %v1746
        %v1779 = vmul.f32 %v1651, %v1746
        %v1780 = vmul.f32 %v1652, %v1746
        %v1781 = vmul.f32 %v1653, %v1746
        %v1782 = vmul.f32 %v1654, %v1746
        %v1783 = vmul.f32 %v1655, %v1746
        %v1784 = vmul.f32 %v1656, %v1746
        %v1785 = vmul.f32 %v1657, %v1746
        %v1786 = vmul.f32 %v1658, %v1746
        %v1787 = vmul.f32 %v1659, %v1746
        %v1788 = vmul.f32 %v1660, %v1746
        %v1789 = vmul.f32 %v1661, %v1746
        %v1790 = vmul.f32 %v1662, %v1746
        %v1791 = vmul.f32 %v1663, %v1746
        %v1792 = vmul.f32 %v1664, %v1746
        %v1793 = vmul.f32 %v1665, %v1746
        %v1794 = vmul.f32 %v1666, %v1746
        %v1795 = vmul.f32 %v1667, %v1746
        %v1796 = vmul.f32 %v1668, %v1746
        %v1797 = vmul.f32 %v1669, %v1746
        %v1798 = vmul.f32 %v1670, %v1746
        %v1799 = vmul.f32 %v1671, %v1746
        %v1800 = vmul.f32 %v1672, %v1746
        %v1801 = vmul.f32 %v1673, %v1746
        %v1802 = vmul.f32 %v1674, %v1746
        %v1803 = vmul.f32 %v1675, %v1746
        %v1804 = vmul.f32 %v1676, %v1746
        %v1805 = vmul.f32 %v1677, %v1746
        %v1806 = vmul.f32 %v1678, %v1746
        %v1807 = vmul.f32 %v1679, %v1746
        %v1808 = vmul.f32 %v1680, %v1746
        %v1809 = vmul.f32 %v1681, %v1746
        %v1810 = vmul.f32 %v1682, %v1746
        %v1811 = vmul.f32 %v1683, %v1746
        %v1812 = vmul.f32 %v1684, %v1746
        %v1813 = vmul.f32 %v1685, %v1746
        %v1814 = vmul.f32 %v1686, %v1746
        %v1815 = vmul.f32 %v1687, %v1746
        %v1816 = vmul.f32 %v1688, %v1746
        %v1817 = vmul.f32 %v1689, %v1746
        %v1818 = vmul.f32 %v1690, %v1746
        %v1819 = vmul.f32 %v1691, %v1746
        %v1820 = vmul.f32 %v1692, %v1746
        %v1821 = vmul.f32 %v1693, %v1746
        %v1822 = vmul.f32 %v1694, %v1746
        %v1823 = vmul.f32 %v1695, %v1746
        %v1824 = vmul.f32 %v1696, %v1746
        %v1825 = vmul.f32 %v1697, %v1746
        %v1826 = vmul.f32 %v1698, %v1746
        %v1827 = vmul.f32 %v1699, %v1746
        %v1828 = vmul.f32 %v1700, %v1746
        %v1829 = vmul.f32 %v1701, %v1746
        %v1830 = vmul.f32 %v1702, %v1746
        %v1831 = vmul.f32 %v1703, %v1746
        %v1832 = vmul.f32 %v1704, %v1746
        %v1833 = vmul.f32 %v1705, %v1746
        %v1834 = vmul.f32 %v1706, %v1746
        %v1835 = vmul.f32 %v1707, %v1746
        %v1836 = vmul.f32 %v1708, %v1746
        %v1837 = vmul.f32 %v1709, %v1746
        %v1838 = vmul.f32 %v1710, %v1746
        %v1839 = vmul.f32 %v1711, %v1746
        %v1840 = vmul.f32 %v1712, %v1746
        %v1841 = vmul.f32 %v1713, %v1746
        %v1842 = vmul.f32 %v1714, %v1746
        %v1843 = vmul.f32 %v1715, %v1746
        %v1844 = vmul.f32 %v1716, %v1746
        %v1845 = vmul.f32 %v1717, %v1746
        %v1846 = vmul.f32 %v1718, %v1746
        %v1847 = vmul.f32 %v1719, %v1746
        %v1848 = vmul.f32 %v1720, %v1746
        %v1849 = vmul.f32 %v1721, %v1746
        %v1850 = vmul.f32 %v1722, %v1746
        %v1851 = vmul.f32 %v1723, %v1746
        %v1852 = vmul.f32 %v1724, %v1746
        %v1853 = vmul.f32 %v1725, %v1746
        %v1854 = vmul.f32 %v1726, %v1746
        %v1855 = vmul.f32 %v1727, %v1746
        %v1856 = vmul.f32 %v1728, %v1746
        %v1857 = vmul.f32 %v1729, %v1746
        %v1858 = vmul.f32 %v1730, %v1746
        %v1859 = vmul.f32 %v1731, %v1746
        %v1860 = vmul.f32 %v1732, %v1746
        %v1861 = vmul.f32 %v1733, %v1746
        %v1862 = vmul.f32 %v1734, %v1746
        %v1863 = vmul.f32 %v1735, %v1746
        %v1864 = vmul.f32 %v1736, %v1746
        %v1865 = vmul.f32 %v1737, %v1746
        %v1866 = vmul.f32 %v1738, %v1746
        %v1867 = vmul.f32 %v1739, %v1746
        %v1868 = vmul.f32 %v1740, %v1746
        %v1869 = vld [vmem:[%s4] sm:$0x1]
        %v1871 = vlaneseq
        %v1872 = vshrl.u32 %v1871, 7
        %v1873 = vsub.s32 0, %v1872
        %v1874 = vrot.slane %v1869, %v1873
        %v1876 = vadd.f32 %v1748, %v1874
        %v1877 = vadd.f32 %v1749, %v1874
        %v1878 = vadd.f32 %v1750, %v1874
        %v1879 = vadd.f32 %v1751, %v1874
        %v1880 = vadd.f32 %v1752, %v1874
        %v1881 = vadd.f32 %v1753, %v1874
        %v1882 = vadd.f32 %v1754, %v1874
        %v1883 = vadd.f32 %v1755, %v1874
        %v1884 = vadd.f32 %v1756, %v1874
        %v1885 = vadd.f32 %v1757, %v1874
        %v1886 = vadd.f32 %v1758, %v1874
        %v1887 = vadd.f32 %v1759, %v1874
        %v1888 = vadd.f32 %v1760, %v1874
        %v1889 = vadd.f32 %v1761, %v1874
        %v1890 = vadd.f32 %v1762, %v1874
        %v1891 = vadd.f32 %v1763, %v1874
        %v1892 = vadd.f32 %v1764, %v1874
        %v1893 = vadd.f32 %v1765, %v1874
        %v1894 = vadd.f32 %v1766, %v1874
        %v1895 = vadd.f32 %v1767, %v1874
        %v1896 = vadd.f32 %v1768, %v1874
        %v1897 = vadd.f32 %v1769, %v1874
        %v1898 = vadd.f32 %v1770, %v1874
        %v1899 = vadd.f32 %v1771, %v1874
        %v1900 = vadd.f32 %v1772, %v1874
        %v1901 = vadd.f32 %v1773, %v1874
        %v1902 = vadd.f32 %v1774, %v1874
        %v1903 = vadd.f32 %v1775, %v1874
        %v1904 = vadd.f32 %v1776, %v1874
        %v1905 = vadd.f32 %v1777, %v1874
        %v1906 = vadd.f32 %v1778, %v1874
        %v1907 = vadd.f32 %v1779, %v1874
        %v1908 = vadd.f32 %v1780, %v1874
        %v1909 = vadd.f32 %v1781, %v1874
        %v1910 = vadd.f32 %v1782, %v1874
        %v1911 = vadd.f32 %v1783, %v1874
        %v1912 = vadd.f32 %v1784, %v1874
        %v1913 = vadd.f32 %v1785, %v1874
        %v1914 = vadd.f32 %v1786, %v1874
        %v1915 = vadd.f32 %v1787, %v1874
        %v1916 = vadd.f32 %v1788, %v1874
        %v1917 = vadd.f32 %v1789, %v1874
        %v1918 = vadd.f32 %v1790, %v1874
        %v1919 = vadd.f32 %v1791, %v1874
        %v1920 = vadd.f32 %v1792, %v1874
        %v1921 = vadd.f32 %v1793, %v1874
        %v1922 = vadd.f32 %v1794, %v1874
        %v1923 = vadd.f32 %v1795, %v1874
        %v1924 = vadd.f32 %v1796, %v1874
        %v1925 = vadd.f32 %v1797, %v1874
        %v1926 = vadd.f32 %v1798, %v1874
        %v1927 = vadd.f32 %v1799, %v1874
        %v1928 = vadd.f32 %v1800, %v1874
        %v1929 = vadd.f32 %v1801, %v1874
        %v1930 = vadd.f32 %v1802, %v1874
        %v1931 = vadd.f32 %v1803, %v1874
        %v1932 = vadd.f32 %v1804, %v1874
        %v1933 = vadd.f32 %v1805, %v1874
        %v1934 = vadd.f32 %v1806, %v1874
        %v1935 = vadd.f32 %v1807, %v1874
        %v1936 = vadd.f32 %v1808, %v1874
        %v1937 = vadd.f32 %v1809, %v1874
        %v1938 = vadd.f32 %v1810, %v1874
        %v1939 = vadd.f32 %v1811, %v1874
        %v1940 = vadd.f32 %v1812, %v1874
        %v1941 = vadd.f32 %v1813, %v1874
        %v1942 = vadd.f32 %v1814, %v1874
        %v1943 = vadd.f32 %v1815, %v1874
        %v1944 = vadd.f32 %v1816, %v1874
        %v1945 = vadd.f32 %v1817, %v1874
        %v1946 = vadd.f32 %v1818, %v1874
        %v1947 = vadd.f32 %v1819, %v1874
        %v1948 = vadd.f32 %v1820, %v1874
        %v1949 = vadd.f32 %v1821, %v1874
        %v1950 = vadd.f32 %v1822, %v1874
        %v1951 = vadd.f32 %v1823, %v1874
        %v1952 = vadd.f32 %v1824, %v1874
        %v1953 = vadd.f32 %v1825, %v1874
        %v1954 = vadd.f32 %v1826, %v1874
        %v1955 = vadd.f32 %v1827, %v1874
        %v1956 = vadd.f32 %v1828, %v1874
        %v1957 = vadd.f32 %v1829, %v1874
        %v1958 = vadd.f32 %v1830, %v1874
        %v1959 = vadd.f32 %v1831, %v1874
        %v1960 = vadd.f32 %v1832, %v1874
        %v1961 = vadd.f32 %v1833, %v1874
        %v1962 = vadd.f32 %v1834, %v1874
        %v1963 = vadd.f32 %v1835, %v1874
        %v1964 = vadd.f32 %v1836, %v1874
        %v1965 = vadd.f32 %v1837, %v1874
        %v1966 = vadd.f32 %v1838, %v1874
        %v1967 = vadd.f32 %v1839, %v1874
        %v1968 = vadd.f32 %v1840, %v1874
        %v1969 = vadd.f32 %v1841, %v1874
        %v1970 = vadd.f32 %v1842, %v1874
        %v1971 = vadd.f32 %v1843, %v1874
        %v1972 = vadd.f32 %v1844, %v1874
        %v1973 = vadd.f32 %v1845, %v1874
        %v1974 = vadd.f32 %v1846, %v1874
        %v1975 = vadd.f32 %v1847, %v1874
        %v1976 = vadd.f32 %v1848, %v1874
        %v1977 = vadd.f32 %v1849, %v1874
        %v1978 = vadd.f32 %v1850, %v1874
        %v1979 = vadd.f32 %v1851, %v1874
        %v1980 = vadd.f32 %v1852, %v1874
        %v1981 = vadd.f32 %v1853, %v1874
        %v1982 = vadd.f32 %v1854, %v1874
        %v1983 = vadd.f32 %v1855, %v1874
        %v1984 = vadd.f32 %v1856, %v1874
        %v1985 = vadd.f32 %v1857, %v1874
        %v1986 = vadd.f32 %v1858, %v1874
        %v1987 = vadd.f32 %v1859, %v1874
        %v1988 = vadd.f32 %v1860, %v1874
        %v1989 = vadd.f32 %v1861, %v1874
        %v1990 = vadd.f32 %v1862, %v1874
        %v1991 = vadd.f32 %v1863, %v1874
        %v1992 = vadd.f32 %v1864, %v1874
        %v1993 = vadd.f32 %v1865, %v1874
        %v1994 = vadd.f32 %v1866, %v1874
        %v1995 = vadd.f32 %v1867, %v1874
        %v1996 = vadd.f32 %v1868, %v1874
        %v1997 = vmax.f32 %v1876, 0.0
        %v1998 = vmax.f32 %v1877, 0.0
        %v1999 = vmax.f32 %v1878, 0.0
        %v2000 = vmax.f32 %v1879, 0.0
        %v2001 = vmax.f32 %v1880, 0.0
        %v2002 = vmax.f32 %v1881, 0.0
        %v2003 = vmax.f32 %v1882, 0.0
        %v2004 = vmax.f32 %v1883, 0.0
        %v2005 = vmax.f32 %v1884, 0.0
        %v2006 = vmax.f32 %v1885, 0.0
        %v2007 = vmax.f32 %v1886, 0.0
        %v2008 = vmax.f32 %v1887, 0.0
        %v2009 = vmax.f32 %v1888, 0.0
        %v2010 = vmax.f32 %v1889, 0.0
        %v2011 = vmax.f32 %v1890, 0.0
        %v2012 = vmax.f32 %v1891, 0.0
        %v2013 = vmax.f32 %v1892, 0.0
        %v2014 = vmax.f32 %v1893, 0.0
        %v2015 = vmax.f32 %v1894, 0.0
        %v2016 = vmax.f32 %v1895, 0.0
        %v2017 = vmax.f32 %v1896, 0.0
        %v2018 = vmax.f32 %v1897, 0.0
        %v2019 = vmax.f32 %v1898, 0.0
        %v2020 = vmax.f32 %v1899, 0.0
        %v2021 = vmax.f32 %v1900, 0.0
        %v2022 = vmax.f32 %v1901, 0.0
        %v2023 = vmax.f32 %v1902, 0.0
        %v2024 = vmax.f32 %v1903, 0.0
        %v2025 = vmax.f32 %v1904, 0.0
        %v2026 = vmax.f32 %v1905, 0.0
        %v2027 = vmax.f32 %v1906, 0.0
        %v2028 = vmax.f32 %v1907, 0.0
        %v2029 = vmax.f32 %v1908, 0.0
        %v2030 = vmax.f32 %v1909, 0.0
        %v2031 = vmax.f32 %v1910, 0.0
        %v2032 = vmax.f32 %v1911, 0.0
        %v2033 = vmax.f32 %v1912, 0.0
        %v2034 = vmax.f32 %v1913, 0.0
        %v2035 = vmax.f32 %v1914, 0.0
        %v2036 = vmax.f32 %v1915, 0.0
        %v2037 = vmax.f32 %v1916, 0.0
        %v2038 = vmax.f32 %v1917, 0.0
        %v2039 = vmax.f32 %v1918, 0.0
        %v2040 = vmax.f32 %v1919, 0.0
        %v2041 = vmax.f32 %v1920, 0.0
        %v2042 = vmax.f32 %v1921, 0.0
        %v2043 = vmax.f32 %v1922, 0.0
        %v2044 = vmax.f32 %v1923, 0.0
        %v2045 = vmax.f32 %v1924, 0.0
        %v2046 = vmax.f32 %v1925, 0.0
        %v2047 = vmax.f32 %v1926, 0.0
        %v2048 = vmax.f32 %v1927, 0.0
        %v2049 = vmax.f32 %v1928, 0.0
        %v2050 = vmax.f32 %v1929, 0.0
        %v2051 = vmax.f32 %v1930, 0.0
        %v2052 = vmax.f32 %v1931, 0.0
        %v2053 = vmax.f32 %v1932, 0.0
        %v2054 = vmax.f32 %v1933, 0.0
        %v2055 = vmax.f32 %v1934, 0.0
        %v2056 = vmax.f32 %v1935, 0.0
        %v2057 = vmax.f32 %v1936, 0.0
        %v2058 = vmax.f32 %v1937, 0.0
        %v2059 = vmax.f32 %v1938, 0.0
        %v2060 = vmax.f32 %v1939, 0.0
        %v2061 = vmax.f32 %v1940, 0.0
        %v2062 = vmax.f32 %v1941, 0.0
        %v2063 = vmax.f32 %v1942, 0.0
        %v2064 = vmax.f32 %v1943, 0.0
        %v2065 = vmax.f32 %v1944, 0.0
        %v2066 = vmax.f32 %v1945, 0.0
        %v2067 = vmax.f32 %v1946, 0.0
        %v2068 = vmax.f32 %v1947, 0.0
        %v2069 = vmax.f32 %v1948, 0.0
        %v2070 = vmax.f32 %v1949, 0.0
        %v2071 = vmax.f32 %v1950, 0.0
        %v2072 = vmax.f32 %v1951, 0.0
        %v2073 = vmax.f32 %v1952, 0.0
        %v2074 = vmax.f32 %v1953, 0.0
        %v2075 = vmax.f32 %v1954, 0.0
        %v2076 = vmax.f32 %v1955, 0.0
        %v2077 = vmax.f32 %v1956, 0.0
        %v2078 = vmax.f32 %v1957, 0.0
        %v2079 = vmax.f32 %v1958, 0.0
        %v2080 = vmax.f32 %v1959, 0.0
        %v2081 = vmax.f32 %v1960, 0.0
        %v2082 = vmax.f32 %v1961, 0.0
        %v2083 = vmax.f32 %v1962, 0.0
        %v2084 = vmax.f32 %v1963, 0.0
        %v2085 = vmax.f32 %v1964, 0.0
        %v2086 = vmax.f32 %v1965, 0.0
        %v2087 = vmax.f32 %v1966, 0.0
        %v2088 = vmax.f32 %v1967, 0.0
        %v2089 = vmax.f32 %v1968, 0.0
        %v2090 = vmax.f32 %v1969, 0.0
        %v2091 = vmax.f32 %v1970, 0.0
        %v2092 = vmax.f32 %v1971, 0.0
        %v2093 = vmax.f32 %v1972, 0.0
        %v2094 = vmax.f32 %v1973, 0.0
        %v2095 = vmax.f32 %v1974, 0.0
        %v2096 = vmax.f32 %v1975, 0.0
        %v2097 = vmax.f32 %v1976, 0.0
        %v2098 = vmax.f32 %v1977, 0.0
        %v2099 = vmax.f32 %v1978, 0.0
        %v2100 = vmax.f32 %v1979, 0.0
        %v2101 = vmax.f32 %v1980, 0.0
        %v2102 = vmax.f32 %v1981, 0.0
        %v2103 = vmax.f32 %v1982, 0.0
        %v2104 = vmax.f32 %v1983, 0.0
        %v2105 = vmax.f32 %v1984, 0.0
        %v2106 = vmax.f32 %v1985, 0.0
        %v2107 = vmax.f32 %v1986, 0.0
        %v2108 = vmax.f32 %v1987, 0.0
        %v2109 = vmax.f32 %v1988, 0.0
        %v2110 = vmax.f32 %v1989, 0.0
        %v2111 = vmax.f32 %v1990, 0.0
        %v2112 = vmax.f32 %v1991, 0.0
        %v2113 = vmax.f32 %v1992, 0.0
        %v2114 = vmax.f32 %v1993, 0.0
        %v2115 = vmax.f32 %v1994, 0.0
        %v2116 = vmax.f32 %v1995, 0.0
        %v2117 = vmax.f32 %v1996, 0.0
        %2118 = vst [vmem:[%s233] sm:$0xff] %v1997
        %2119 = vst [vmem:[%s233 + $0x8] sm:$0xff] %v1998
        %2120 = vst [vmem:[%s233 + $0x10] sm:$0xff] %v1999
        %2121 = vst [vmem:[%s233 + $0x18] sm:$0xff] %v2000
        %2122 = vst [vmem:[%s233 + $0x20] sm:$0xff] %v2001
        %2123 = vst [vmem:[%s233 + $0x28] sm:$0xff] %v2002
        %2124 = vst [vmem:[%s233 + $0x30] sm:$0xff] %v2003
        %2125 = vst [vmem:[%s233 + $0x38] sm:$0xff] %v2004
        %2126 = vst [vmem:[%s233 + $0x40] sm:$0xff] %v2005
        %2127 = vst [vmem:[%s233 + $0x48] sm:$0xff] %v2006
        %2128 = vst [vmem:[%s233 + $0x50] sm:$0xff] %v2007
        %2129 = vst [vmem:[%s233 + $0x58] sm:$0xff] %v2008
        %2130 = vst [vmem:[%s233 + $0x60] sm:$0xff] %v2009
        %2131 = vst [vmem:[%s233 + $0x68] sm:$0xff] %v2010
        %2132 = vst [vmem:[%s233 + $0x70] sm:$0xff] %v2011
        %2133 = vst [vmem:[%s233 + $0x78] sm:$0xff] %v2012
        %2134 = vst [vmem:[%s233 + $0x80] sm:$0xff] %v2013
        %2135 = vst [vmem:[%s233 + $0x88] sm:$0xff] %v2014
        %2136 = vst [vmem:[%s233 + $0x90] sm:$0xff] %v2015
        %2137 = vst [vmem:[%s233 + $0x98] sm:$0xff] %v2016
        %2138 = vst [vmem:[%s233 + $0xa0] sm:$0xff] %v2017
        %2139 = vst [vmem:[%s233 + $0xa8] sm:$0xff] %v2018
        %2140 = vst [vmem:[%s233 + $0xb0] sm:$0xff] %v2019
        %2141 = vst [vmem:[%s233 + $0xb8] sm:$0xff] %v2020
        %2142 = vst [vmem:[%s233 + $0xc0] sm:$0xff] %v2021
        %2143 = vst [vmem:[%s233 + $0xc8] sm:$0xff] %v2022
        %2144 = vst [vmem:[%s233 + $0xd0] sm:$0xff] %v2023
        %2145 = vst [vmem:[%s233 + $0xd8] sm:$0xff] %v2024
        %2146 = vst [vmem:[%s233 + $0xe0] sm:$0xff] %v2025
        %2147 = vst [vmem:[%s233 + $0xe8] sm:$0xff] %v2026
        %2148 = vst [vmem:[%s233 + $0xf0] sm:$0xff] %v2027
        %2149 = vst [vmem:[%s233 + $0xf8] sm:$0xff] %v2028
        %2150 = vst [vmem:[%s233 + $0x100] sm:$0xff] %v2029
        %2151 = vst [vmem:[%s233 + $0x108] sm:$0xff] %v2030
        %2152 = vst [vmem:[%s233 + $0x110] sm:$0xff] %v2031
        %2153 = vst [vmem:[%s233 + $0x118] sm:$0xff] %v2032
        %2154 = vst [vmem:[%s233 + $0x120] sm:$0xff] %v2033
        %2155 = vst [vmem:[%s233 + $0x128] sm:$0xff] %v2034
        %2156 = vst [vmem:[%s233 + $0x130] sm:$0xff] %v2035
        %2157 = vst [vmem:[%s233 + $0x138] sm:$0xff] %v2036
        %2158 = vst [vmem:[%s233 + $0x140] sm:$0xff] %v2037
        %2159 = vst [vmem:[%s233 + $0x148] sm:$0xff] %v2038
        %2160 = vst [vmem:[%s233 + $0x150] sm:$0xff] %v2039
        %2161 = vst [vmem:[%s233 + $0x158] sm:$0xff] %v2040
        %2162 = vst [vmem:[%s233 + $0x160] sm:$0xff] %v2041
        %2163 = vst [vmem:[%s233 + $0x168] sm:$0xff] %v2042
        %2164 = vst [vmem:[%s233 + $0x170] sm:$0xff] %v2043
        %2165 = vst [vmem:[%s233 + $0x178] sm:$0xff] %v2044
        %2166 = vst [vmem:[%s233 + $0x180] sm:$0xff] %v2045
        %2167 = vst [vmem:[%s233 + $0x188] sm:$0xff] %v2046
        %2168 = vst [vmem:[%s233 + $0x190] sm:$0xff] %v2047
        %2169 = vst [vmem:[%s233 + $0x198] sm:$0xff] %v2048
        %2170 = vst [vmem:[%s233 + $0x1a0] sm:$0xff] %v2049
        %2171 = vst [vmem:[%s233 + $0x1a8] sm:$0xff] %v2050
        %2172 = vst [vmem:[%s233 + $0x1b0] sm:$0xff] %v2051
        %2173 = vst [vmem:[%s233 + $0x1b8] sm:$0xff] %v2052
        %2174 = vst [vmem:[%s233 + $0x1c0] sm:$0xff] %v2053
        %2175 = vst [vmem:[%s233 + $0x1c8] sm:$0xff] %v2054
        %2176 = vst [vmem:[%s233 + $0x1d0] sm:$0xff] %v2055
        %2177 = vst [vmem:[%s233 + $0x1d8] sm:$0xff] %v2056
        %2178 = vst [vmem:[%s233 + $0x1e0] sm:$0xff] %v2057
        %2179 = vst [vmem:[%s233 + $0x1e8] sm:$0xff] %v2058
        %2180 = vst [vmem:[%s233 + $0x1f0] sm:$0xff] %v2059
        %2181 = vst [vmem:[%s233 + $0x1f8] sm:$0xff] %v2060
        %2182 = vst [vmem:[%s233 + $0x200] sm:$0xff] %v2061
        %2183 = vst [vmem:[%s233 + $0x208] sm:$0xff] %v2062
        %2184 = vst [vmem:[%s233 + $0x210] sm:$0xff] %v2063
        %2185 = vst [vmem:[%s233 + $0x218] sm:$0xff] %v2064
        %2186 = vst [vmem:[%s233 + $0x220] sm:$0xff] %v2065
        %2187 = vst [vmem:[%s233 + $0x228] sm:$0xff] %v2066
        %2188 = vst [vmem:[%s233 + $0x230] sm:$0xff] %v2067
        %2189 = vst [vmem:[%s233 + $0x238] sm:$0xff] %v2068
        %2190 = vst [vmem:[%s233 + $0x240] sm:$0xff] %v2069
        %2191 = vst [vmem:[%s233 + $0x248] sm:$0xff] %v2070
        %2192 = vst [vmem:[%s233 + $0x250] sm:$0xff] %v2071
        %2193 = vst [vmem:[%s233 + $0x258] sm:$0xff] %v2072
        %2194 = vst [vmem:[%s233 + $0x260] sm:$0xff] %v2073
        %2195 = vst [vmem:[%s233 + $0x268] sm:$0xff] %v2074
        %2196 = vst [vmem:[%s233 + $0x270] sm:$0xff] %v2075
        %2197 = vst [vmem:[%s233 + $0x278] sm:$0xff] %v2076
        %2198 = vst [vmem:[%s233 + $0x280] sm:$0xff] %v2077
        %2199 = vst [vmem:[%s233 + $0x288] sm:$0xff] %v2078
        %2200 = vst [vmem:[%s233 + $0x290] sm:$0xff] %v2079
        %2201 = vst [vmem:[%s233 + $0x298] sm:$0xff] %v2080
        %2202 = vst [vmem:[%s233 + $0x2a0] sm:$0xff] %v2081
        %2203 = vst [vmem:[%s233 + $0x2a8] sm:$0xff] %v2082
        %2204 = vst [vmem:[%s233 + $0x2b0] sm:$0xff] %v2083
        %2205 = vst [vmem:[%s233 + $0x2b8] sm:$0xff] %v2084
        %2206 = vst [vmem:[%s233 + $0x2c0] sm:$0xff] %v2085
        %2207 = vst [vmem:[%s233 + $0x2c8] sm:$0xff] %v2086
        %2208 = vst [vmem:[%s233 + $0x2d0] sm:$0xff] %v2087
        %2209 = vst [vmem:[%s233 + $0x2d8] sm:$0xff] %v2088
        %2210 = vst [vmem:[%s233 + $0x2e0] sm:$0xff] %v2089
        %2211 = vst [vmem:[%s233 + $0x2e8] sm:$0xff] %v2090
        %2212 = vst [vmem:[%s233 + $0x2f0] sm:$0xff] %v2091
        %2213 = vst [vmem:[%s233 + $0x2f8] sm:$0xff] %v2092
        %2214 = vst [vmem:[%s233 + $0x300] sm:$0xff] %v2093
        %2215 = vst [vmem:[%s233 + $0x308] sm:$0xff] %v2094
        %2216 = vst [vmem:[%s233 + $0x310] sm:$0xff] %v2095
        %2217 = vst [vmem:[%s233 + $0x318] sm:$0xff] %v2096
        %2218 = vst [vmem:[%s233 + $0x320] sm:$0xff] %v2097
        %2219 = vst [vmem:[%s233 + $0x328] sm:$0xff] %v2098
        %2220 = vst [vmem:[%s233 + $0x330] sm:$0xff] %v2099
        %2221 = vst [vmem:[%s233 + $0x338] sm:$0xff] %v2100
        %2222 = vst [vmem:[%s233 + $0x340] sm:$0xff] %v2101
        %2223 = vst [vmem:[%s233 + $0x348] sm:$0xff] %v2102
        %2224 = vst [vmem:[%s233 + $0x350] sm:$0xff] %v2103
        %2225 = vst [vmem:[%s233 + $0x358] sm:$0xff] %v2104
        %2226 = vst [vmem:[%s233 + $0x360] sm:$0xff] %v2105
        %2227 = vst [vmem:[%s233 + $0x368] sm:$0xff] %v2106
        %2228 = vst [vmem:[%s233 + $0x370] sm:$0xff] %v2107
        %2229 = vst [vmem:[%s233 + $0x378] sm:$0xff] %v2108
        %2230 = vst [vmem:[%s233 + $0x380] sm:$0xff] %v2109
        %2231 = vst [vmem:[%s233 + $0x388] sm:$0xff] %v2110
        %2232 = vst [vmem:[%s233 + $0x390] sm:$0xff] %v2111
        %2233 = vst [vmem:[%s233 + $0x398] sm:$0xff] %v2112
        %2234 = vst [vmem:[%s233 + $0x3a0] sm:$0xff] %v2113
        %2235 = vst [vmem:[%s233 + $0x3a8] sm:$0xff] %v2114
        %2236 = vst [vmem:[%s233 + $0x3b0] sm:$0xff] %v2115
        %2237 = vst [vmem:[%s233 + $0x3b8] sm:$0xff] %v2116
        %2238 = vst [vmem:[%s233 + $0x3c0] sm:$0xff] %v2117
      $region44: #{densenet_forward.12} parent=35 // pred_fallthru
        _
      %p2239 = scmp.lt.s32.totalorder %s26, 1
      %s2240 = scalar_select %p2239, %s26, 1
      %s2241 = smul.addr %s2240, 121
      %s2242 = smul.addr %s2241, 8
      %s2243 = scalar_lea.vmem %s5, %s2242
      // Predicated region
      $region45: #{densenet_forward.12} parent=35 // pred_check
        %p2244 = pneg %p146
      $region46: #{densenet_forward.12} parent=35 // pred_check_branch
        %2246 = sbr.rel (%p2244) target = $region48
      $region47: #{densenet_forward.12} parent=35 // pred_region
        _
      $region48: #{densenet_forward.12} parent=35 // pred_fallthru
        _
    $region36: #{densenet_forward.12} parent=5 // pred_fallthru
      _
    %p2247 = scmp.le.s32.totalorder 2, %s17
    // Predicated region
    $region49: #{densenet_forward.12} parent=5 // pred_check
      %p2248 = pneg %p2247
    $region50: #{densenet_forward.12} parent=5 // pred_check_branch
      %2250 = sbr.rel (%p2248) target = $region52
    $region51: #{densenet_forward.12} parent=5 // pred_region
      %s2251 = ssub.s32 %s17, 2
      // Predicated region
      $region53: #{densenet_forward.12} parent=51 // pred_check
        %p2252 = pneg %p152
      $region54: #{densenet_forward.12} parent=51 // pred_check_branch
        %2254 = sbr.rel (%p2252) target = $region56
      $region55: #{densenet_forward.12} parent=51 // pred_region
        %p2255 = scmp.lt.s32.totalorder %s28, 1
        %s2256 = scalar_select %p2255, %s28, 1
        %s2257 = smul.addr %s2256, 121
        %s2258 = smul.addr %s2257, 8
        %s2259 = scalar_lea.vmem %s5, %s2258
      $region56: #{densenet_forward.12} parent=51 // pred_fallthru
        _
    $region52: #{densenet_forward.12} parent=5 // pred_fallthru
      _
  $region6: #{densenet_forward.12} parent=0 // loop_footer
    %s21 = sadd.s32 1, %s17
  $region7: #{densenet_forward.12} parent=0 // loop_footer_branch
    %16 = sbr.rel target = $region3
  $region8: #{densenet_forward.12} parent=0 // loop_exit
    _

// kernel: densenet_forward.13
$region0: #{densenet_forward.13}
  #allocation0 [shape = 'u32[]', space=smem, size = 0x4, offset = 0x4, fixed_abs, tag = 'smem constant byte address 0x4 - core index']
  #allocation1 [shape = 'u32[144,128]{1,0:T(1,128)}', space=vmem, size = 0x12000, scoped, tag = 'internal scratch']
  %s0 = inlined_call_operand.vmem [shape: f32[8,128,16], index: 0, kind: input, shape index: {}]
  %s1 = inlined_call_operand.vmem [shape: f32[128,16], index: 1, kind: output, shape index: {}]
  %s2 = sld [smem:[#allocation0]]
  $region14: #{densenet_forward.13} parent=0
    _
  %s4 = ssub.s32 1, %s2
  %s5 = scalar_select 0, %s4, %s2
  // Predicated region
  $region2: #{densenet_forward.13} parent=0 // pred_check
    _
  $region3: #{densenet_forward.13} parent=0 // pred_check_branch
    %7 = sbr.rel (0) target = $region5
  $region4: #{densenet_forward.13} parent=0 // pred_region
    _
  $region5: #{densenet_forward.13} parent=0 // pred_fallthru
    _
  %v8 = vld [vmem:[%s0] sm:$0xff]
  %v9 = vld [vmem:[%s0 + $0x8] sm:$0xff]
  %v10 = vld [vmem:[%s0 + $0x10] sm:$0xff]
  %v11 = vld [vmem:[%s0 + $0x18] sm:$0xff]
  %v12 = vld [vmem:[%s0 + $0x20] sm:$0xff]
  %v13 = vld [vmem:[%s0 + $0x28] sm:$0xff]
  %v14 = vld [vmem:[%s0 + $0x30] sm:$0xff]
  %v15 = vld [vmem:[%s0 + $0x38] sm:$0xff]
  %v16 = vld [vmem:[%s0 + $0x40] sm:$0xff]
  %v17 = vld [vmem:[%s0 + $0x48] sm:$0xff]
  %v18 = vld [vmem:[%s0 + $0x50] sm:$0xff]
  %v19 = vld [vmem:[%s0 + $0x58] sm:$0xff]
  %v20 = vld [vmem:[%s0 + $0x60] sm:$0xff]
  %v21 = vld [vmem:[%s0 + $0x68] sm:$0xff]
  %v22 = vld [vmem:[%s0 + $0x70] sm:$0xff]
  %v23 = vld [vmem:[%s0 + $0x78] sm:$0xff]
  %s24 = scalar_lea.vmem %s0, 128
  %v25 = vld [vmem:[%s24] sm:$0xff]
  %v26 = vld [vmem:[%s24 + $0x8] sm:$0xff]
  %v27 = vld [vmem:[%s24 + $0x10] sm:$0xff]
  %v28 = vld [vmem:[%s24 + $0x18] sm:$0xff]
  %v29 = vld [vmem:[%s24 + $0x20] sm:$0xff]
  %v30 = vld [vmem:[%s24 + $0x28] sm:$0xff]
  %v31 = vld [vmem:[%s24 + $0x30] sm:$0xff]
  %v32 = vld [vmem:[%s24 + $0x38] sm:$0xff]
  %v33 = vld [vmem:[%s24 + $0x40] sm:$0xff]
  %v34 = vld [vmem:[%s24 + $0x48] sm:$0xff]
  %v35 = vld [vmem:[%s24 + $0x50] sm:$0xff]
  %v36 = vld [vmem:[%s24 + $0x58] sm:$0xff]
  %v37 = vld [vmem:[%s24 + $0x60] sm:$0xff]
  %v38 = vld [vmem:[%s24 + $0x68] sm:$0xff]
  %v39 = vld [vmem:[%s24 + $0x70] sm:$0xff]
  %v40 = vld [vmem:[%s24 + $0x78] sm:$0xff]
  %v41 = vmax.f32 %v8, %v25
  %v42 = vmax.f32 %v9, %v26
  %v43 = vmax.f32 %v10, %v27
  %v44 = vmax.f32 %v11, %v28
  %v45 = vmax.f32 %v12, %v29
  %v46 = vmax.f32 %v13, %v30
  %v47 = vmax.f32 %v14, %v31
  %v48 = vmax.f32 %v15, %v32
  %v49 = vmax.f32 %v16, %v33
  %v50 = vmax.f32 %v17, %v34
  %v51 = vmax.f32 %v18, %v35
  %v52 = vmax.f32 %v19, %v36
  %v53 = vmax.f32 %v20, %v37
  %v54 = vmax.f32 %v21, %v38
  %v55 = vmax.f32 %v22, %v39
  %v56 = vmax.f32 %v23, %v40
  %s57 = scalar_lea.vmem %s0, 256
  %v58 = vld [vmem:[%s57] sm:$0xff]
  %v59 = vld [vmem:[%s57 + $0x8] sm:$0xff]
  %v60 = vld [vmem:[%s57 + $0x10] sm:$0xff]
  %v61 = vld [vmem:[%s57 + $0x18] sm:$0xff]
  %v62 = vld [vmem:[%s57 + $0x20] sm:$0xff]
  %v63 = vld [vmem:[%s57 + $0x28] sm:$0xff]
  %v64 = vld [vmem:[%s57 + $0x30] sm:$0xff]
  %v65 = vld [vmem:[%s57 + $0x38] sm:$0xff]
  %v66 = vld [vmem:[%s57 + $0x40] sm:$0xff]
  %v67 = vld [vmem:[%s57 + $0x48] sm:$0xff]
  %v68 = vld [vmem:[%s57 + $0x50] sm:$0xff]
  %v69 = vld [vmem:[%s57 + $0x58] sm:$0xff]
  %v70 = vld [vmem:[%s57 + $0x60] sm:$0xff]
  %v71 = vld [vmem:[%s57 + $0x68] sm:$0xff]
  %v72 = vld [vmem:[%s57 + $0x70] sm:$0xff]
  %v73 = vld [vmem:[%s57 + $0x78] sm:$0xff]
  %v74 = vmax.f32 %v41, %v58
  %v75 = vmax.f32 %v42, %v59
  %v76 = vmax.f32 %v43, %v60
  %v77 = vmax.f32 %v44, %v61
  %v78 = vmax.f32 %v45, %v62
  %v79 = vmax.f32 %v46, %v63
  %v80 = vmax.f32 %v47, %v64
  %v81 = vmax.f32 %v48, %v65
  %v82 = vmax.f32 %v49, %v66
  %v83 = vmax.f32 %v50, %v67
  %v84 = vmax.f32 %v51, %v68
  %v85 = vmax.f32 %v52, %v69
  %v86 = vmax.f32 %v53, %v70
  %v87 = vmax.f32 %v54, %v71
  %v88 = vmax.f32 %v55, %v72
  %v89 = vmax.f32 %v56, %v73
  %s90 = scalar_lea.vmem %s0, 384
  %v91 = vld [vmem:[%s90] sm:$0xff]
  %v92 = vld [vmem:[%s90 + $0x8] sm:$0xff]
  %v93 = vld [vmem:[%s90 + $0x10] sm:$0xff]
  %v94 = vld [vmem:[%s90 + $0x18] sm:$0xff]
  %v95 = vld [vmem:[%s90 + $0x20] sm:$0xff]
  %v96 = vld [vmem:[%s90 + $0x28] sm:$0xff]
  %v97 = vld [vmem:[%s90 + $0x30] sm:$0xff]
  %v98 = vld [vmem:[%s90 + $0x38] sm:$0xff]
  %v99 = vld [vmem:[%s90 + $0x40] sm:$0xff]
  %v100 = vld [vmem:[%s90 + $0x48] sm:$0xff]
  %v101 = vld [vmem:[%s90 + $0x50] sm:$0xff]
  %v102 = vld [vmem:[%s90 + $0x58] sm:$0xff]
  %v103 = vld [vmem:[%s90 + $0x60] sm:$0xff]
  %v104 = vld [vmem:[%s90 + $0x68] sm:$0xff]
  %v105 = vld [vmem:[%s90 + $0x70] sm:$0xff]
  %v106 = vld [vmem:[%s90 + $0x78] sm:$0xff]
  %v107 = vmax.f32 %v74, %v91
  %v108 = vmax.f32 %v75, %v92
  %v109 = vmax.f32 %v76, %v93
  %v110 = vmax.f32 %v77, %v94
  %v111 = vmax.f32 %v78, %v95
  %v112 = vmax.f32 %v79, %v96
  %v113 = vmax.f32 %v80, %v97
  %v114 = vmax.f32 %v81, %v98
  %v115 = vmax.f32 %v82, %v99
  %v116 = vmax.f32 %v83, %v100
  %v117 = vmax.f32 %v84, %v101
  %v118 = vmax.f32 %v85, %v102
  %v119 = vmax.f32 %v86, %v103
  %v120 = vmax.f32 %v87, %v104
  %v121 = vmax.f32 %v88, %v105
  %v122 = vmax.f32 %v89, %v106
  %s123 = scalar_lea.vmem %s0, 512
  %v124 = vld [vmem:[%s123] sm:$0xff]
  %v125 = vld [vmem:[%s123 + $0x8] sm:$0xff]
  %v126 = vld [vmem:[%s123 + $0x10] sm:$0xff]
  %v127 = vld [vmem:[%s123 + $0x18] sm:$0xff]
  %v128 = vld [vmem:[%s123 + $0x20] sm:$0xff]
  %v129 = vld [vmem:[%s123 + $0x28] sm:$0xff]
  %v130 = vld [vmem:[%s123 + $0x30] sm:$0xff]
  %v131 = vld [vmem:[%s123 + $0x38] sm:$0xff]
  %v132 = vld [vmem:[%s123 + $0x40] sm:$0xff]
  %v133 = vld [vmem:[%s123 + $0x48] sm:$0xff]
  %v134 = vld [vmem:[%s123 + $0x50] sm:$0xff]
  %v135 = vld [vmem:[%s123 + $0x58] sm:$0xff]
  %v136 = vld [vmem:[%s123 + $0x60] sm:$0xff]
  %v137 = vld [vmem:[%s123 + $0x68] sm:$0xff]
  %v138 = vld [vmem:[%s123 + $0x70] sm:$0xff]
  %v139 = vld [vmem:[%s123 + $0x78] sm:$0xff]
  %v140 = vmax.f32 %v107, %v124
  %v141 = vmax.f32 %v108, %v125
  %v142 = vmax.f32 %v109, %v126
  %v143 = vmax.f32 %v110, %v127
  %v144 = vmax.f32 %v111, %v128
  %v145 = vmax.f32 %v112, %v129
  %v146 = vmax.f32 %v113, %v130
  %v147 = vmax.f32 %v114, %v131
  %v148 = vmax.f32 %v115, %v132
  %v149 = vmax.f32 %v116, %v133
  %v150 = vmax.f32 %v117, %v134
  %v151 = vmax.f32 %v118, %v135
  %v152 = vmax.f32 %v119, %v136
  %v153 = vmax.f32 %v120, %v137
  %v154 = vmax.f32 %v121, %v138
  %v155 = vmax.f32 %v122, %v139
  %s156 = scalar_lea.vmem %s0, 640
  %v157 = vld [vmem:[%s156] sm:$0xff]
  %v158 = vld [vmem:[%s156 + $0x8] sm:$0xff]
  %v159 = vld [vmem:[%s156 + $0x10] sm:$0xff]
  %v160 = vld [vmem:[%s156 + $0x18] sm:$0xff]
  %v161 = vld [vmem:[%s156 + $0x20] sm:$0xff]
  %v162 = vld [vmem:[%s156 + $0x28] sm:$0xff]
  %v163 = vld [vmem:[%s156 + $0x30] sm:$0xff]
  %v164 = vld [vmem:[%s156 + $0x38] sm:$0xff]
  %v165 = vld [vmem:[%s156 + $0x40] sm:$0xff]
  %v166 = vld [vmem:[%s156 + $0x48] sm:$0xff]
  %v167 = vld [vmem:[%s156 + $0x50] sm:$0xff]
  %v168 = vld [vmem:[%s156 + $0x58] sm:$0xff]
  %v169 = vld [vmem:[%s156 + $0x60] sm:$0xff]
  %v170 = vld [vmem:[%s156 + $0x68] sm:$0xff]
  %v171 = vld [vmem:[%s156 + $0x70] sm:$0xff]
  %v172 = vld [vmem:[%s156 + $0x78] sm:$0xff]
  %v173 = vmax.f32 %v140, %v157
  %v174 = vmax.f32 %v141, %v158
  %v175 = vmax.f32 %v142, %v159
  %v176 = vmax.f32 %v143, %v160
  %v177 = vmax.f32 %v144, %v161
  %v178 = vmax.f32 %v145, %v162
  %v179 = vmax.f32 %v146, %v163
  %v180 = vmax.f32 %v147, %v164
  %v181 = vmax.f32 %v148, %v165
  %v182 = vmax.f32 %v149, %v166
  %v183 = vmax.f32 %v150, %v167
  %v184 = vmax.f32 %v151, %v168
  %v185 = vmax.f32 %v152, %v169
  %v186 = vmax.f32 %v153, %v170
  %v187 = vmax.f32 %v154, %v171
  %v188 = vmax.f32 %v155, %v172
  %s189 = scalar_lea.vmem %s0, 768
  %v190 = vld [vmem:[%s189] sm:$0xff]
  %v191 = vld [vmem:[%s189 + $0x8] sm:$0xff]
  %v192 = vld [vmem:[%s189 + $0x10] sm:$0xff]
  %v193 = vld [vmem:[%s189 + $0x18] sm:$0xff]
  %v194 = vld [vmem:[%s189 + $0x20] sm:$0xff]
  %v195 = vld [vmem:[%s189 + $0x28] sm:$0xff]
  %v196 = vld [vmem:[%s189 + $0x30] sm:$0xff]
  %v197 = vld [vmem:[%s189 + $0x38] sm:$0xff]
  %v198 = vld [vmem:[%s189 + $0x40] sm:$0xff]
  %v199 = vld [vmem:[%s189 + $0x48] sm:$0xff]
  %v200 = vld [vmem:[%s189 + $0x50] sm:$0xff]
  %v201 = vld [vmem:[%s189 + $0x58] sm:$0xff]
  %v202 = vld [vmem:[%s189 + $0x60] sm:$0xff]
  %v203 = vld [vmem:[%s189 + $0x68] sm:$0xff]
  %v204 = vld [vmem:[%s189 + $0x70] sm:$0xff]
  %v205 = vld [vmem:[%s189 + $0x78] sm:$0xff]
  %v206 = vmax.f32 %v173, %v190
  %v207 = vmax.f32 %v174, %v191
  %v208 = vmax.f32 %v175, %v192
  %v209 = vmax.f32 %v176, %v193
  %v210 = vmax.f32 %v177, %v194
  %v211 = vmax.f32 %v178, %v195
  %v212 = vmax.f32 %v179, %v196
  %v213 = vmax.f32 %v180, %v197
  %v214 = vmax.f32 %v181, %v198
  %v215 = vmax.f32 %v182, %v199
  %v216 = vmax.f32 %v183, %v200
  %v217 = vmax.f32 %v184, %v201
  %v218 = vmax.f32 %v185, %v202
  %v219 = vmax.f32 %v186, %v203
  %v220 = vmax.f32 %v187, %v204
  %v221 = vmax.f32 %v188, %v205
  %s222 = scalar_lea.vmem %s0, 896
  %v223 = vld [vmem:[%s222] sm:$0xff]
  %v224 = vld [vmem:[%s222 + $0x8] sm:$0xff]
  %v225 = vld [vmem:[%s222 + $0x10] sm:$0xff]
  %v226 = vld [vmem:[%s222 + $0x18] sm:$0xff]
  %v227 = vld [vmem:[%s222 + $0x20] sm:$0xff]
  %v228 = vld [vmem:[%s222 + $0x28] sm:$0xff]
  %v229 = vld [vmem:[%s222 + $0x30] sm:$0xff]
  %v230 = vld [vmem:[%s222 + $0x38] sm:$0xff]
  %v231 = vld [vmem:[%s222 + $0x40] sm:$0xff]
  %v232 = vld [vmem:[%s222 + $0x48] sm:$0xff]
  %v233 = vld [vmem:[%s222 + $0x50] sm:$0xff]
  %v234 = vld [vmem:[%s222 + $0x58] sm:$0xff]
  %v235 = vld [vmem:[%s222 + $0x60] sm:$0xff]
  %v236 = vld [vmem:[%s222 + $0x68] sm:$0xff]
  %v237 = vld [vmem:[%s222 + $0x70] sm:$0xff]
  %v238 = vld [vmem:[%s222 + $0x78] sm:$0xff]
  %v239 = vmax.f32 %v206, %v223
  %v240 = vmax.f32 %v207, %v224
  %v241 = vmax.f32 %v208, %v225
  %v242 = vmax.f32 %v209, %v226
  %v243 = vmax.f32 %v210, %v227
  %v244 = vmax.f32 %v211, %v228
  %v245 = vmax.f32 %v212, %v229
  %v246 = vmax.f32 %v213, %v230
  %v247 = vmax.f32 %v214, %v231
  %v248 = vmax.f32 %v215, %v232
  %v249 = vmax.f32 %v216, %v233
  %v250 = vmax.f32 %v217, %v234
  %v251 = vmax.f32 %v218, %v235
  %v252 = vmax.f32 %v219, %v236
  %v253 = vmax.f32 %v220, %v237
  %v254 = vmax.f32 %v221, %v238
  %vm255 = vcmask 130048
  %256 = vst.msk [vmem:[%s1] sm:$0xff] %vm255, %v239
  %257 = vst.msk [vmem:[%s1 + $0x8] sm:$0xff] %vm255, %v240
  %258 = vst.msk [vmem:[%s1 + $0x10] sm:$0xff] %vm255, %v241
  %259 = vst.msk [vmem:[%s1 + $0x18] sm:$0xff] %vm255, %v242
  %260 = vst.msk [vmem:[%s1 + $0x20] sm:$0xff] %vm255, %v243
  %261 = vst.msk [vmem:[%s1 + $0x28] sm:$0xff] %vm255, %v244
  %262 = vst.msk [vmem:[%s1 + $0x30] sm:$0xff] %vm255, %v245
  %263 = vst.msk [vmem:[%s1 + $0x38] sm:$0xff] %vm255, %v246
  %264 = vst.msk [vmem:[%s1 + $0x40] sm:$0xff] %vm255, %v247
  %265 = vst.msk [vmem:[%s1 + $0x48] sm:$0xff] %vm255, %v248
  %266 = vst.msk [vmem:[%s1 + $0x50] sm:$0xff] %vm255, %v249
  %267 = vst.msk [vmem:[%s1 + $0x58] sm:$0xff] %vm255, %v250
  %268 = vst.msk [vmem:[%s1 + $0x60] sm:$0xff] %vm255, %v251
  %269 = vst.msk [vmem:[%s1 + $0x68] sm:$0xff] %vm255, %v252
  %270 = vst.msk [vmem:[%s1 + $0x70] sm:$0xff] %vm255, %v253
  %271 = vst.msk [vmem:[%s1 + $0x78] sm:$0xff] %vm255, %v254
  // Predicated region
  $region6: #{densenet_forward.13} parent=0 // pred_check
    _
  $region7: #{densenet_forward.13} parent=0 // pred_check_branch
    %273 = sbr.rel (0) target = $region9
  $region8: #{densenet_forward.13} parent=0 // pred_region
    _
  $region9: #{densenet_forward.13} parent=0 // pred_fallthru
    _
  // Predicated region
  $region10: #{densenet_forward.13} parent=0 // pred_check
    _
  $region11: #{densenet_forward.13} parent=0 // pred_check_branch
    %275 = sbr.rel (0) target = $region13
  $region12: #{densenet_forward.13} parent=0 // pred_region
    _
  $region13: #{densenet_forward.13} parent=0 // pred_fallthru
    _

// kernel: densenet_forward.14
$region0: #{densenet_forward.14}
  #allocation0 [shape = 'u32[]', space=smem, size = 0x4, offset = 0x4, fixed_abs, tag = 'smem constant byte address 0x4 - core index']
  #allocation1 [shape = 'u32[144,128]{1,0:T(1,128)}', space=vmem, size = 0x12000, scoped, tag = 'internal scratch']
  #allocation2 [shape = 'f32[64,128]{1,0:T(8,128)}', space=vmem, size = 0x8000, scoped, tag = 'scratch operand']
  #allocation3 [shape = 's32[1]{0}', space=sflag, size = 0x4, scoped, tag = 'scoped memory for densenet_forward.14']
  #allocation4 [shape = 's32[1]{0:T(128)S(6)}', space=smem, size = 0x200, scoped, tag = 'prefetched SMEM operand 0']
  %s0 = inlined_call_operand.<no memory space> [shape: s32[1], index: 0, kind: input, shape index: {}]
  %s1 = inlined_call_operand.vmem [shape: f32[2,64,16], index: 1, kind: input, shape index: {}]
  %s2 = inlined_call_operand.vmem [shape: bf16[1,16,128], index: 2, kind: input, shape index: {}]
  %s3 = inlined_call_operand.vmem [shape: f32[1,128], index: 3, kind: input, shape index: {}]
  %s4 = inlined_call_operand.vmem [shape: f32[1,128], index: 4, kind: input, shape index: {}]
  %s5 = inlined_call_operand.vmem [shape: f32[2,64,128], index: 5, kind: output, shape index: {}]
  %s6 = sld [smem:[#allocation0]]
  $region57: #{densenet_forward.14} parent=0
    _
  %s8 = ssub.s32 1, %s6
  %s9 = scalar_select 0, %s8, %s6
  %10 = sst [smem:[#allocation4]] %s0
  loop: start=0, step=1, limit=4
  $region2: #{densenet_forward.14} parent=0 // loop_pre_header
    _
  $region3: #{densenet_forward.14} parent=0 // loop_header
    %s12 = sphi 0, %s16
    %p13 = scmp.ge.s32.totalorder %s12, 4
    %s19 = sphi 0, %s31
    %s20 = sphi 0, %s27
    %s21 = sphi 0, %s19
    %s22 = sphi 0, %s20
    %s23 = sphi 0, %s21
    %s24 = sphi 0, %s22
    %s34 = sphi 0, %s36
    %s37 = sphi 0, %s34
    %s38 = sphi 0, %s37
    %s54 = sphi 0, %s38
    %s60 = sphi 0, %s62
    %s63 = sphi 0, %s60
    %s64 = sphi 0, %s63
    %s80 = sphi 0, %s64
    %s84 = sphi 0, %s84
    %s86 = sphi 0, %s84
    %s87 = sphi 0, %s86
    %s101 = sphi 0, %s87
    %s105 = sphi 0, %s105
    %s107 = sphi 0, %s105
    %s108 = sphi 0, %s107
    %s122 = sphi 0, %s108
    %s128 = sphi 0, %s130
    %s131 = sphi 0, %s128
    %s132 = sphi 0, %s131
    %s148 = sphi 0, %s132
  $region4: #{densenet_forward.14} parent=0 // loop_header_branch
    %15 = sbr.rel (%p13) target = $region8
  $region5: #{densenet_forward.14} parent=0 // loop_body
    %s17 = ssub.s32 %s12, 1
    %s18 = ssub.s32 %s12, 2
    %s25 = sadd.s32 1, %s20
    %p26 = scmp.ge.s32.totalorder %s25, 1
    %s27 = scalar_select %p26, 0, %s25
    %s28 = sadd.s32 1, %s19
    %s29 = scalar_select %p26, %s28, %s19
    %p30 = scmp.ge.s32.totalorder %s29, 2
    %s31 = scalar_select %p30, 0, %s29
    %s32 = ssub.s32 %s19, %s31
    %p33 = scmp.eq.s32.totalorder %s32, 0
    %s35 = sadd.s32 %s34, 1
    %s36 = scalar_select %p33, %s34, %s35
    %p39 = pneg %p33
    %p40 = scmp.eq.s32.totalorder %s12, 1
    %p41 = por %p39, %p40
    %p42 = scmp.ne.s32.totalorder %s34, %s37
    %p43 = scmp.eq.s32.totalorder %s12, 0
    %p44 = por %p42, %p43
    %p45 = scmp.ne.s32.totalorder %s34, %s37
    %p46 = scmp.eq.s32.totalorder %s17, 1
    %p47 = por %p45, %p46
    %p48 = scmp.ne.s32.totalorder %s37, %s38
    %p49 = scmp.eq.s32.totalorder %s17, 0
    %p50 = por %p48, %p49
    %p51 = scmp.ne.s32.totalorder %s37, %s38
    %p52 = scmp.eq.s32.totalorder %s18, 1
    %p53 = por %p51, %p52
    %p55 = scmp.ne.s32.totalorder %s38, %s54
    %p56 = scmp.eq.s32.totalorder %s18, 0
    %p57 = por %p55, %p56
    %s58 = ssub.s32 %s20, %s27
    %p59 = scmp.eq.s32.totalorder %s58, 0
    %s61 = sadd.s32 %s60, 1
    %s62 = scalar_select %p59, %s60, %s61
    %p65 = pneg %p59
    %p66 = scmp.eq.s32.totalorder %s12, 1
    %p67 = por %p65, %p66
    %p68 = scmp.ne.s32.totalorder %s60, %s63
    %p69 = scmp.eq.s32.totalorder %s12, 0
    %p70 = por %p68, %p69
    %p71 = scmp.ne.s32.totalorder %s60, %s63
    %p72 = scmp.eq.s32.totalorder %s17, 1
    %p73 = por %p71, %p72
    %p74 = scmp.ne.s32.totalorder %s63, %s64
    %p75 = scmp.eq.s32.totalorder %s17, 0
    %p76 = por %p74, %p75
    %p77 = scmp.ne.s32.totalorder %s63, %s64
    %p78 = scmp.eq.s32.totalorder %s18, 1
    %p79 = por %p77, %p78
    %p81 = scmp.ne.s32.totalorder %s64, %s80
    %p82 = scmp.eq.s32.totalorder %s18, 0
    %p83 = por %p81, %p82
    %s85 = sadd.s32 %s84, 1
    %p88 = scmp.eq.s32.totalorder %s12, 1
    %p89 = scmp.ne.s32.totalorder %s84, %s86
    %p90 = scmp.eq.s32.totalorder %s12, 0
    %p91 = por %p89, %p90
    %p92 = scmp.ne.s32.totalorder %s84, %s86
    %p93 = scmp.eq.s32.totalorder %s17, 1
    %p94 = por %p92, %p93
    %p95 = scmp.ne.s32.totalorder %s86, %s87
    %p96 = scmp.eq.s32.totalorder %s17, 0
    %p97 = por %p95, %p96
    %p98 = scmp.ne.s32.totalorder %s86, %s87
    %p99 = scmp.eq.s32.totalorder %s18, 1
    %p100 = por %p98, %p99
    %p102 = scmp.ne.s32.totalorder %s87, %s101
    %p103 = scmp.eq.s32.totalorder %s18, 0
    %p104 = por %p102, %p103
    %s106 = sadd.s32 %s105, 1
    %p109 = scmp.eq.s32.totalorder %s12, 1
    %p110 = scmp.ne.s32.totalorder %s105, %s107
    %p111 = scmp.eq.s32.totalorder %s12, 0
    %p112 = por %p110, %p111
    %p113 = scmp.ne.s32.totalorder %s105, %s107
    %p114 = scmp.eq.s32.totalorder %s17, 1
    %p115 = por %p113, %p114
    %p116 = scmp.ne.s32.totalorder %s107, %s108
    %p117 = scmp.eq.s32.totalorder %s17, 0
    %p118 = por %p116, %p117
    %p119 = scmp.ne.s32.totalorder %s107, %s108
    %p120 = scmp.eq.s32.totalorder %s18, 1
    %p121 = por %p119, %p120
    %p123 = scmp.ne.s32.totalorder %s108, %s122
    %p124 = scmp.eq.s32.totalorder %s18, 0
    %p125 = por %p123, %p124
    %s126 = ssub.s32 %s19, %s31
    %p127 = scmp.eq.s32.totalorder %s126, 0
    %s129 = sadd.s32 %s128, 1
    %s130 = scalar_select %p127, %s128, %s129
    %p133 = pneg %p127
    %p134 = scmp.eq.s32.totalorder %s12, 1
    %p135 = por %p133, %p134
    %p136 = scmp.ne.s32.totalorder %s128, %s131
    %p137 = scmp.eq.s32.totalorder %s12, 0
    %p138 = por %p136, %p137
    %p139 = scmp.ne.s32.totalorder %s128, %s131
    %p140 = scmp.eq.s32.totalorder %s17, 1
    %p141 = por %p139, %p140
    %p142 = scmp.ne.s32.totalorder %s131, %s132
    %p143 = scmp.eq.s32.totalorder %s17, 0
    %p144 = por %p142, %p143
    %p145 = scmp.ne.s32.totalorder %s131, %s132
    %p146 = scmp.eq.s32.totalorder %s18, 1
    %p147 = por %p145, %p146
    %p149 = scmp.ne.s32.totalorder %s132, %s148
    %p150 = scmp.eq.s32.totalorder %s18, 0
    %p151 = por %p149, %p150
    %p152 = scmp.le.s32.totalorder 1, %s12
    %p153 = scmp.lt.s32.totalorder %s12, 3
    %p154 = pnand %p152, %p153
    %p155 = pneg %p154
    // Predicated region
    $region9: #{densenet_forward.14} parent=5 // pred_check
      _
    $region10: #{densenet_forward.14} parent=5 // pred_check_branch
      %157 = sbr.rel (%p154) target = $region12
    $region11: #{densenet_forward.14} parent=5 // pred_region
      %s158 = ssub.s32 %s12, 1
      // Predicated region
      $region13: #{densenet_forward.14} parent=11 // pred_check
        %p159 = pneg %p76
      $region14: #{densenet_forward.14} parent=11 // pred_check_branch
        %161 = sbr.rel (%p159) target = $region16
      $region15: #{densenet_forward.14} parent=11 // pred_region
        %p162 = scmp.lt.s32.totalorder %s22, 0
        %s163 = scalar_select %p162, %s22, 0
        %s164 = smul.addr %s163, 2
        %s165 = smul.addr %s164, 4
        %s166 = scalar_lea.vmem %s2, %s165
      $region16: #{densenet_forward.14} parent=11 // pred_fallthru
        _
      // Predicated region
      $region17: #{densenet_forward.14} parent=11 // pred_check
        %p167 = pneg %p97
      $region18: #{densenet_forward.14} parent=11 // pred_check_branch
        %169 = sbr.rel (%p167) target = $region20
      $region19: #{densenet_forward.14} parent=11 // pred_region
        _
      $region20: #{densenet_forward.14} parent=11 // pred_fallthru
        _
      // Predicated region
      $region21: #{densenet_forward.14} parent=11 // pred_check
        %p170 = pneg %p118
      $region22: #{densenet_forward.14} parent=11 // pred_check_branch
        %172 = sbr.rel (%p170) target = $region24
      $region23: #{densenet_forward.14} parent=11 // pred_region
        _
      $region24: #{densenet_forward.14} parent=11 // pred_fallthru
        _
    $region12: #{densenet_forward.14} parent=5 // pred_fallthru
      _
    %p173 = scmp.lt.s32.totalorder %s12, 2
    // Predicated region
    $region25: #{densenet_forward.14} parent=5 // pred_check
      %p174 = pneg %p173
    $region26: #{densenet_forward.14} parent=5 // pred_check_branch
      %176 = sbr.rel (%p174) target = $region28
    $region27: #{densenet_forward.14} parent=5 // pred_region
      // Predicated region
      $region29: #{densenet_forward.14} parent=27 // pred_check
        %p177 = pneg %p44
      $region30: #{densenet_forward.14} parent=27 // pred_check_branch
        %179 = sbr.rel (%p177) target = $region32
      $region31: #{densenet_forward.14} parent=27 // pred_region
        %p180 = scmp.lt.s32.totalorder %s19, 1
        %s181 = scalar_select %p180, %s19, 1
        %s182 = smul.addr %s181, 8
        %s183 = smul.addr %s182, 8
        %s184 = scalar_lea.vmem %s1, %s183
      $region32: #{densenet_forward.14} parent=27 // pred_fallthru
        _
    $region28: #{densenet_forward.14} parent=5 // pred_fallthru
      _
    %p185 = scmp.le.s32.totalorder 1, %s12
    %p186 = scmp.lt.s32.totalorder %s12, 3
    %p187 = pnand %p185, %p186
    %p188 = pneg %p187
    // Predicated region
    $region33: #{densenet_forward.14} parent=5 // pred_check
      _
    $region34: #{densenet_forward.14} parent=5 // pred_check_branch
      %190 = sbr.rel (%p187) target = $region36
    $region35: #{densenet_forward.14} parent=5 // pred_region
      %s191 = ssub.s32 %s12, 1
      %p192 = scmp.lt.s32.totalorder %s21, 1
      %s193 = scalar_select %p192, %s21, 1
      %s194 = smul.addr %s193, 8
      %s195 = smul.addr %s194, 8
      %s196 = scalar_lea.vmem %s1, %s195
      %p197 = pneg %p50
      %p198 = pneg %p47
      %p199 = scmp.lt.s32.totalorder %s22, 0
      %s200 = scalar_select %p199, %s22, 0
      %s201 = smul.addr %s200, 2
      %s202 = smul.addr %s201, 4
      %s203 = scalar_lea.vmem %s2, %s202
      %p204 = pneg %p76
      %p205 = pneg %p73
      %p206 = pneg %p97
      %p207 = pneg %p94
      %p208 = pneg %p118
      %p209 = pneg %p115
      %p210 = pneg %p144
      %p211 = pneg %p141
      %p212 = scmp.lt.s32.totalorder %s21, 1
      %s213 = scalar_select %p212, %s21, 1
      %s214 = smul.addr %s213, 8
      %s215 = smul.addr %s214, 8
      %s216 = scalar_lea.vmem %s5, %s215
      %p217 = scmp.lt.s32.totalorder %s21, 1
      %s218 = scalar_select %p217, %s21, 1
      %s219 = smul.addr %s218, 8
      %s220 = smul.addr %s219, 8
      %s221 = scalar_lea.vmem %s1, %s220
      %p222 = scmp.lt.s32.totalorder %s22, 0
      %s223 = scalar_select %p222, %s22, 0
      %s224 = smul.addr %s223, 2
      %s225 = smul.addr %s224, 4
      %s226 = scalar_lea.vmem %s2, %s225
      %p227 = scmp.lt.s32.totalorder %s21, 1
      %s228 = scalar_select %p227, %s21, 1
      %s229 = smul.addr %s228, 8
      %s230 = smul.addr %s229, 8
      %s231 = scalar_lea.vmem %s5, %s230
      %p233 = scmp.eq.s32.totalorder %s22, 0
      // Predicated region
      $region37: #{densenet_forward.14} parent=35 // pred_check
        %p234 = pneg %p233
      $region38: #{densenet_forward.14} parent=35 // pred_check_branch
        %236 = sbr.rel (%p234) target = $region40
      $region39: #{densenet_forward.14} parent=35 // pred_region
        %237 = vst [vmem:[#allocation2] sm:$0xff] 0.0
        %238 = vst [vmem:[#allocation2 + $0x8] sm:$0xff] 0.0
        %239 = vst [vmem:[#allocation2 + $0x10] sm:$0xff] 0.0
        %240 = vst [vmem:[#allocation2 + $0x18] sm:$0xff] 0.0
        %241 = vst [vmem:[#allocation2 + $0x20] sm:$0xff] 0.0
        %242 = vst [vmem:[#allocation2 + $0x28] sm:$0xff] 0.0
        %243 = vst [vmem:[#allocation2 + $0x30] sm:$0xff] 0.0
        %244 = vst [vmem:[#allocation2 + $0x38] sm:$0xff] 0.0
      $region40: #{densenet_forward.14} parent=35 // pred_fallthru
        _
      %s245 = sld [smem:[#allocation4 + %s22]]
      %s246 = scalar_lea.vmem %s221, %s245
      %v247 = vld [vmem:[%s246] sm:$0xff]
      %v248 = vld [vmem:[%s246 + $0x8] sm:$0xff]
      %v249 = vld [vmem:[%s246 + $0x10] sm:$0xff]
      %v250 = vld [vmem:[%s246 + $0x18] sm:$0xff]
      %v251 = vld [vmem:[%s246 + $0x20] sm:$0xff]
      %v252 = vld [vmem:[%s246 + $0x28] sm:$0xff]
      %v253 = vld [vmem:[%s246 + $0x30] sm:$0xff]
      %v254 = vld [vmem:[%s246 + $0x38] sm:$0xff]
      %v255 = vld [vmem:[#allocation2] sm:$0xff]
      %v256 = vld [vmem:[#allocation2 + $0x8] sm:$0xff]
      %v257 = vld [vmem:[#allocation2 + $0x10] sm:$0xff]
      %v258 = vld [vmem:[#allocation2 + $0x18] sm:$0xff]
      %v259 = vld [vmem:[#allocation2 + $0x20] sm:$0xff]
      %v260 = vld [vmem:[#allocation2 + $0x28] sm:$0xff]
      %v261 = vld [vmem:[#allocation2 + $0x30] sm:$0xff]
      %v262 = vld [vmem:[#allocation2 + $0x38] sm:$0xff]
      %v263 = vpack.c.bf16 %v248, %v247
      %v264 = vpack.c.bf16 %v250, %v249
      %v265 = vpack.c.bf16 %v252, %v251
      %v266 = vpack.c.bf16 %v254, %v253
      %v267 = vld [vmem:[%s226] sm:$0xf]
      %v268 = vld [vmem:[%s226 + $0x4] sm:$0xf]
      %v271 = vunpack.c.l.b16 %v267
      %v272 = vunpack.c.l.b16 %v268
      %v273 = vpack.c.b16 %v272, %v271
      %vm275 = vcmask 130048
      %v277 = vsel %vm275, %v263, 0
      %v280 = vsel %vm275, %v264, 0
      %v283 = vsel %vm275, %v265, 0
      %v286 = vsel %vm275, %v266, 0
      %288 = vmatprep.subr.bf16.mxu0 0
      %289 = vmatpush1.bf16.msra.mxu0 %v273
      %290 = vmatprep.subr.bf16.mxu0 0
      %291 = vmatpush1.bf16.msra.mxu0 0
      %292 = vmatprep.subr.bf16.mxu0 0
      %293 = vmatpush1.bf16.msra.mxu0 0
      %294 = vmatprep.subr.bf16.mxu0 0
      %295 = vmatpush1.bf16.msra.mxu0 0
      %296 = vmatprep.subr.bf16.mxu0 0
      %297 = vmatpush1.bf16.msra.mxu0 0
      %298 = vmatprep.subr.bf16.mxu0 0
      %299 = vmatpush1.bf16.msra.mxu0 0
      %300 = vmatprep.subr.bf16.mxu0 0
      %301 = vmatpush1.bf16.msra.mxu0 0
      %302 = vmatprep.subr.bf16.mxu0 0
      %303 = vmatpush1.bf16.msra.mxu0 0
      %304 = vmatprep.subr.bf16.mxu0 0
      %305 = vmatpush1.bf16.msra.mxu0 0
      %306 = vmatprep.subr.bf16.mxu0 0
      %307 = vmatpush1.bf16.msra.mxu0 0
      %308 = vmatprep.subr.bf16.mxu0 0
      %309 = vmatpush1.bf16.msra.mxu0 0
      %310 = vmatprep.subr.bf16.mxu0 0
      %311 = vmatpush1.bf16.msra.mxu0 0
      %312 = vmatprep.subr.bf16.mxu0 0
      %313 = vmatpush1.bf16.msra.mxu0 0
      %314 = vmatprep.subr.bf16.mxu0 0
      %315 = vmatpush1.bf16.msra.mxu0 0
      %316 = vmatprep.subr.bf16.mxu0 0
      %317 = vmatpush1.bf16.msra.mxu0 0
      %318 = vmatprep.subr.bf16.mxu0 0
      %319 = vmatpush1.bf16.msra.mxu0 0
      %320 = vmatprep.mubr.bf16.mxu0 0
      %321 = vmatmul.mubr.bf16.gmra.mrb[0].mxu0 %v277
      %v322 = vpop.f32.mrb[0].mxu0
      %v323 = vadd.f32 0.0, %v322
      %v324 = vpop.f32.mrb[0].mxu0
      %v325 = vpop.f32.mrb[0].mxu0
      %v326 = vadd.f32 0.0, %v325
      %v327 = vpop.f32.mrb[0].mxu0
      %328 = vmatprep.mubr.bf16.mxu0 0
      %329 = vmatmul.mubr.bf16.gmra.mrb[0].mxu0 %v280
      %v330 = vpop.f32.mrb[0].mxu0
      %v331 = vadd.f32 0.0, %v330
      %v332 = vpop.f32.mrb[0].mxu0
      %v333 = vpop.f32.mrb[0].mxu0
      %v334 = vadd.f32 0.0, %v333
      %v335 = vpop.f32.mrb[0].mxu0
      %336 = vmatprep.mubr.bf16.mxu0 0
      %337 = vmatmul.mubr.bf16.gmra.mrb[0].mxu0 %v283
      %v338 = vpop.f32.mrb[0].mxu0
      %v339 = vadd.f32 0.0, %v338
      %v340 = vpop.f32.mrb[0].mxu0
      %v341 = vpop.f32.mrb[0].mxu0
      %v342 = vadd.f32 0.0, %v341
      %v343 = vpop.f32.mrb[0].mxu0
      %344 = vmatprep.mubr.bf16.mxu0 0
      %345 = vmatmul.mubr.bf16.gmra.mrb[0].mxu0 %v286
      %v346 = vpop.f32.mrb[0].mxu0
      %v347 = vadd.f32 0.0, %v346
      %v348 = vpop.f32.mrb[0].mxu0
      %v349 = vpop.f32.mrb[0].mxu0
      %v350 = vadd.f32 0.0, %v349
      %v351 = vpop.f32.mrb[0].mxu0
      %352 = vdwg.mxu0
      %v353 = vadd.f32 %v255, %v323
      %v354 = vadd.f32 %v256, %v326
      %v355 = vadd.f32 %v257, %v331
      %v356 = vadd.f32 %v258, %v334
      %v357 = vadd.f32 %v259, %v339
      %v358 = vadd.f32 %v260, %v342
      %v359 = vadd.f32 %v261, %v347
      %v360 = vadd.f32 %v262, %v350
      %361 = vst [vmem:[#allocation2] sm:$0xff] %v353
      %362 = vst [vmem:[#allocation2 + $0x8] sm:$0xff] %v354
      %363 = vst [vmem:[#allocation2 + $0x10] sm:$0xff] %v355
      %364 = vst [vmem:[#allocation2 + $0x18] sm:$0xff] %v356
      %365 = vst [vmem:[#allocation2 + $0x20] sm:$0xff] %v357
      %366 = vst [vmem:[#allocation2 + $0x28] sm:$0xff] %v358
      %367 = vst [vmem:[#allocation2 + $0x30] sm:$0xff] %v359
      %368 = vst [vmem:[#allocation2 + $0x38] sm:$0xff] %v360
      // Predicated region
      $region41: #{densenet_forward.14} parent=35 // pred_check
        %p369 = pneg %p233
      $region42: #{densenet_forward.14} parent=35 // pred_check_branch
        %371 = sbr.rel (%p369) target = $region44
      $region43: #{densenet_forward.14} parent=35 // pred_region
        %v372 = vld [vmem:[#allocation2] sm:$0xff]
        %v373 = vld [vmem:[#allocation2 + $0x8] sm:$0xff]
        %v374 = vld [vmem:[#allocation2 + $0x10] sm:$0xff]
        %v375 = vld [vmem:[#allocation2 + $0x18] sm:$0xff]
        %v376 = vld [vmem:[#allocation2 + $0x20] sm:$0xff]
        %v377 = vld [vmem:[#allocation2 + $0x28] sm:$0xff]
        %v378 = vld [vmem:[#allocation2 + $0x30] sm:$0xff]
        %v379 = vld [vmem:[#allocation2 + $0x38] sm:$0xff]
        %v380 = vld [vmem:[%s3] sm:$0x1]
        %v382 = vlaneseq
        %v383 = vshrl.u32 %v382, 7
        %v384 = vsub.s32 0, %v383
        %v385 = vrot.slane %v380, %v384
        %v387 = vmul.f32 %v372, %v385
        %v388 = vmul.f32 %v373, %v385
        %v389 = vmul.f32 %v374, %v385
        %v390 = vmul.f32 %v375, %v385
        %v391 = vmul.f32 %v376, %v385
        %v392 = vmul.f32 %v377, %v385
        %v393 = vmul.f32 %v378, %v385
        %v394 = vmul.f32 %v379, %v385
        %v395 = vld [vmem:[%s4] sm:$0x1]
        %v397 = vlaneseq
        %v398 = vshrl.u32 %v397, 7
        %v399 = vsub.s32 0, %v398
        %v400 = vrot.slane %v395, %v399
        %v402 = vadd.f32 %v387, %v400
        %v403 = vadd.f32 %v388, %v400
        %v404 = vadd.f32 %v389, %v400
        %v405 = vadd.f32 %v390, %v400
        %v406 = vadd.f32 %v391, %v400
        %v407 = vadd.f32 %v392, %v400
        %v408 = vadd.f32 %v393, %v400
        %v409 = vadd.f32 %v394, %v400
        %v410 = vmax.f32 %v402, 0.0
        %v411 = vmax.f32 %v403, 0.0
        %v412 = vmax.f32 %v404, 0.0
        %v413 = vmax.f32 %v405, 0.0
        %v414 = vmax.f32 %v406, 0.0
        %v415 = vmax.f32 %v407, 0.0
        %v416 = vmax.f32 %v408, 0.0
        %v417 = vmax.f32 %v409, 0.0
        %418 = vst [vmem:[%s231] sm:$0xff] %v410
        %419 = vst [vmem:[%s231 + $0x8] sm:$0xff] %v411
        %420 = vst [vmem:[%s231 + $0x10] sm:$0xff] %v412
        %421 = vst [vmem:[%s231 + $0x18] sm:$0xff] %v413
        %422 = vst [vmem:[%s231 + $0x20] sm:$0xff] %v414
        %423 = vst [vmem:[%s231 + $0x28] sm:$0xff] %v415
        %424 = vst [vmem:[%s231 + $0x30] sm:$0xff] %v416
        %425 = vst [vmem:[%s231 + $0x38] sm:$0xff] %v417
      $region44: #{densenet_forward.14} parent=35 // pred_fallthru
        _
      %p426 = scmp.lt.s32.totalorder %s21, 1
      %s427 = scalar_select %p426, %s21, 1
      %s428 = smul.addr %s427, 8
      %s429 = smul.addr %s428, 8
      %s430 = scalar_lea.vmem %s5, %s429
      // Predicated region
      $region45: #{densenet_forward.14} parent=35 // pred_check
        %p431 = pneg %p141
      $region46: #{densenet_forward.14} parent=35 // pred_check_branch
        %433 = sbr.rel (%p431) target = $region48
      $region47: #{densenet_forward.14} parent=35 // pred_region
        _
      $region48: #{densenet_forward.14} parent=35 // pred_fallthru
        _
    $region36: #{densenet_forward.14} parent=5 // pred_fallthru
      _
    %p434 = scmp.le.s32.totalorder 2, %s12
    // Predicated region
    $region49: #{densenet_forward.14} parent=5 // pred_check
      %p435 = pneg %p434
    $region50: #{densenet_forward.14} parent=5 // pred_check_branch
      %437 = sbr.rel (%p435) target = $region52
    $region51: #{densenet_forward.14} parent=5 // pred_region
      %s438 = ssub.s32 %s12, 2
      // Predicated region
      $region53: #{densenet_forward.14} parent=51 // pred_check
        %p439 = pneg %p147
      $region54: #{densenet_forward.14} parent=51 // pred_check_branch
        %441 = sbr.rel (%p439) target = $region56
      $region55: #{densenet_forward.14} parent=51 // pred_region
        %p442 = scmp.lt.s32.totalorder %s23, 1
        %s443 = scalar_select %p442, %s23, 1
        %s444 = smul.addr %s443, 8
        %s445 = smul.addr %s444, 8
        %s446 = scalar_lea.vmem %s5, %s445
      $region56: #{densenet_forward.14} parent=51 // pred_fallthru
        _
    $region52: #{densenet_forward.14} parent=5 // pred_fallthru
      _
  $region6: #{densenet_forward.14} parent=0 // loop_footer
    %s16 = sadd.s32 1, %s12
  $region7: #{densenet_forward.14} parent=0 // loop_footer_branch
    %11 = sbr.rel target = $region3
  $region8: #{densenet_forward.14} parent=0 // loop_exit
    _

// kernel: densenet_forward.15
$region0: #{densenet_forward.15}
  #allocation0 [shape = 'u32[]', space=smem, size = 0x4, offset = 0x4, fixed_abs, tag = 'smem constant byte address 0x4 - core index']
  #allocation1 [shape = 'u32[144,128]{1,0:T(1,128)}', space=vmem, size = 0x12000, scoped, tag = 'internal scratch']
  #allocation2 [shape = 'f32[144,128]{1,0:T(8,128)}', space=vmem, size = 0x12000, scoped, tag = 'scratch operand']
  #allocation3 [shape = 's32[1]{0}', space=sflag, size = 0x4, scoped, tag = 'scoped memory for densenet_forward.15']
  #allocation4 [shape = 'u8[512]{0}', space=smem, size = 0x200, scoped, tag = 'prefetched SMEM operand 0']
  %s0 = inlined_call_operand.vmem [shape: s32[27], index: 0, kind: input, shape index: {}]
  %s1 = inlined_call_operand.vmem [shape: f32[2,230,32], index: 1, kind: input, shape index: {}]
  %s2 = inlined_call_operand.vmem [shape: bf16[27,32,128], index: 2, kind: input, shape index: {}]
  %s3 = inlined_call_operand.vmem [shape: f32[1,128], index: 3, kind: input, shape index: {}]
  %s4 = inlined_call_operand.vmem [shape: f32[1,128], index: 4, kind: input, shape index: {}]
  %s5 = inlined_call_operand.vmem [shape: f32[2,144,128], index: 5, kind: output, shape index: {}]
  %s6 = sld [smem:[#allocation0]]
  $region57: #{densenet_forward.15} parent=0
    _
  %s8 = ssub.s32 1, %s6
  %s9 = scalar_select 0, %s8, %s6
  %s10 = sshll.u32 %s0, 4
  %s11 = int_to_ptr.vmem [resolvable:$true] %s10
  %13 = dma.vmem_to_smem %s11, 16, [#allocation4], [#allocation3]
  %14 = dma.done [#allocation3], 16
  %15 = sfence
  loop: start=0, step=1, limit=56
  $region2: #{densenet_forward.15} parent=0 // loop_pre_header
    _
  $region3: #{densenet_forward.15} parent=0 // loop_header
    %s17 = sphi 0, %s21
    %p18 = scmp.ge.s32.totalorder %s17, 56
    %s24 = sphi 0, %s36
    %s25 = sphi 0, %s32
    %s26 = sphi 0, %s24
    %s27 = sphi 0, %s25
    %s28 = sphi 0, %s26
    %s29 = sphi 0, %s27
    %s39 = sphi 0, %s41
    %s42 = sphi 0, %s39
    %s43 = sphi 0, %s42
    %s59 = sphi 0, %s43
    %s65 = sphi 0, %s67
    %s68 = sphi 0, %s65
    %s69 = sphi 0, %s68
    %s85 = sphi 0, %s69
    %s89 = sphi 0, %s89
    %s91 = sphi 0, %s89
    %s92 = sphi 0, %s91
    %s106 = sphi 0, %s92
    %s110 = sphi 0, %s110
    %s112 = sphi 0, %s110
    %s113 = sphi 0, %s112
    %s127 = sphi 0, %s113
    %s133 = sphi 0, %s135
    %s136 = sphi 0, %s133
    %s137 = sphi 0, %s136
    %s153 = sphi 0, %s137
  $region4: #{densenet_forward.15} parent=0 // loop_header_branch
    %20 = sbr.rel (%p18) target = $region8
  $region5: #{densenet_forward.15} parent=0 // loop_body
    %s22 = ssub.s32 %s17, 1
    %s23 = ssub.s32 %s17, 2
    %s30 = sadd.s32 1, %s25
    %p31 = scmp.ge.s32.totalorder %s30, 27
    %s32 = scalar_select %p31, 0, %s30
    %s33 = sadd.s32 1, %s24
    %s34 = scalar_select %p31, %s33, %s24
    %p35 = scmp.ge.s32.totalorder %s34, 2
    %s36 = scalar_select %p35, 0, %s34
    %s37 = ssub.s32 %s24, %s36
    %p38 = scmp.eq.s32.totalorder %s37, 0
    %s40 = sadd.s32 %s39, 1
    %s41 = scalar_select %p38, %s39, %s40
    %p44 = pneg %p38
    %p45 = scmp.eq.s32.totalorder %s17, 53
    %p46 = por %p44, %p45
    %p47 = scmp.ne.s32.totalorder %s39, %s42
    %p48 = scmp.eq.s32.totalorder %s17, 0
    %p49 = por %p47, %p48
    %p50 = scmp.ne.s32.totalorder %s39, %s42
    %p51 = scmp.eq.s32.totalorder %s22, 53
    %p52 = por %p50, %p51
    %p53 = scmp.ne.s32.totalorder %s42, %s43
    %p54 = scmp.eq.s32.totalorder %s22, 0
    %p55 = por %p53, %p54
    %p56 = scmp.ne.s32.totalorder %s42, %s43
    %p57 = scmp.eq.s32.totalorder %s23, 53
    %p58 = por %p56, %p57
    %p60 = scmp.ne.s32.totalorder %s43, %s59
    %p61 = scmp.eq.s32.totalorder %s23, 0
    %p62 = por %p60, %p61
    %s63 = ssub.s32 %s25, %s32
    %p64 = scmp.eq.s32.totalorder %s63, 0
    %s66 = sadd.s32 %s65, 1
    %s67 = scalar_select %p64, %s65, %s66
    %p70 = pneg %p64
    %p71 = scmp.eq.s32.totalorder %s17, 53
    %p72 = por %p70, %p71
    %p73 = scmp.ne.s32.totalorder %s65, %s68
    %p74 = scmp.eq.s32.totalorder %s17, 0
    %p75 = por %p73, %p74
    %p76 = scmp.ne.s32.totalorder %s65, %s68
    %p77 = scmp.eq.s32.totalorder %s22, 53
    %p78 = por %p76, %p77
    %p79 = scmp.ne.s32.totalorder %s68, %s69
    %p80 = scmp.eq.s32.totalorder %s22, 0
    %p81 = por %p79, %p80
    %p82 = scmp.ne.s32.totalorder %s68, %s69
    %p83 = scmp.eq.s32.totalorder %s23, 53
    %p84 = por %p82, %p83
    %p86 = scmp.ne.s32.totalorder %s69, %s85
    %p87 = scmp.eq.s32.totalorder %s23, 0
    %p88 = por %p86, %p87
    %s90 = sadd.s32 %s89, 1
    %p93 = scmp.eq.s32.totalorder %s17, 53
    %p94 = scmp.ne.s32.totalorder %s89, %s91
    %p95 = scmp.eq.s32.totalorder %s17, 0
    %p96 = por %p94, %p95
    %p97 = scmp.ne.s32.totalorder %s89, %s91
    %p98 = scmp.eq.s32.totalorder %s22, 53
    %p99 = por %p97, %p98
    %p100 = scmp.ne.s32.totalorder %s91, %s92
    %p101 = scmp.eq.s32.totalorder %s22, 0
    %p102 = por %p100, %p101
    %p103 = scmp.ne.s32.totalorder %s91, %s92
    %p104 = scmp.eq.s32.totalorder %s23, 53
    %p105 = por %p103, %p104
    %p107 = scmp.ne.s32.totalorder %s92, %s106
    %p108 = scmp.eq.s32.totalorder %s23, 0
    %p109 = por %p107, %p108
    %s111 = sadd.s32 %s110, 1
    %p114 = scmp.eq.s32.totalorder %s17, 53
    %p115 = scmp.ne.s32.totalorder %s110, %s112
    %p116 = scmp.eq.s32.totalorder %s17, 0
    %p117 = por %p115, %p116
    %p118 = scmp.ne.s32.totalorder %s110, %s112
    %p119 = scmp.eq.s32.totalorder %s22, 53
    %p120 = por %p118, %p119
    %p121 = scmp.ne.s32.totalorder %s112, %s113
    %p122 = scmp.eq.s32.totalorder %s22, 0
    %p123 = por %p121, %p122
    %p124 = scmp.ne.s32.totalorder %s112, %s113
    %p125 = scmp.eq.s32.totalorder %s23, 53
    %p126 = por %p124, %p125
    %p128 = scmp.ne.s32.totalorder %s113, %s127
    %p129 = scmp.eq.s32.totalorder %s23, 0
    %p130 = por %p128, %p129
    %s131 = ssub.s32 %s24, %s36
    %p132 = scmp.eq.s32.totalorder %s131, 0
    %s134 = sadd.s32 %s133, 1
    %s135 = scalar_select %p132, %s133, %s134
    %p138 = pneg %p132
    %p139 = scmp.eq.s32.totalorder %s17, 53
    %p140 = por %p138, %p139
    %p141 = scmp.ne.s32.totalorder %s133, %s136
    %p142 = scmp.eq.s32.totalorder %s17, 0
    %p143 = por %p141, %p142
    %p144 = scmp.ne.s32.totalorder %s133, %s136
    %p145 = scmp.eq.s32.totalorder %s22, 53
    %p146 = por %p144, %p145
    %p147 = scmp.ne.s32.totalorder %s136, %s137
    %p148 = scmp.eq.s32.totalorder %s22, 0
    %p149 = por %p147, %p148
    %p150 = scmp.ne.s32.totalorder %s136, %s137
    %p151 = scmp.eq.s32.totalorder %s23, 53
    %p152 = por %p150, %p151
    %p154 = scmp.ne.s32.totalorder %s137, %s153
    %p155 = scmp.eq.s32.totalorder %s23, 0
    %p156 = por %p154, %p155
    %p157 = scmp.le.s32.totalorder 1, %s17
    %p158 = scmp.lt.s32.totalorder %s17, 55
    %p159 = pnand %p157, %p158
    %p160 = pneg %p159
    // Predicated region
    $region9: #{densenet_forward.15} parent=5 // pred_check
      _
    $region10: #{densenet_forward.15} parent=5 // pred_check_branch
      %162 = sbr.rel (%p159) target = $region12
    $region11: #{densenet_forward.15} parent=5 // pred_region
      %s163 = ssub.s32 %s17, 1
      // Predicated region
      $region13: #{densenet_forward.15} parent=11 // pred_check
        %p164 = pneg %p102
      $region14: #{densenet_forward.15} parent=11 // pred_check_branch
        %166 = sbr.rel (%p164) target = $region16
      $region15: #{densenet_forward.15} parent=11 // pred_region
        _
      $region16: #{densenet_forward.15} parent=11 // pred_fallthru
        _
      // Predicated region
      $region17: #{densenet_forward.15} parent=11 // pred_check
        %p167 = pneg %p123
      $region18: #{densenet_forward.15} parent=11 // pred_check_branch
        %169 = sbr.rel (%p167) target = $region20
      $region19: #{densenet_forward.15} parent=11 // pred_region
        _
      $region20: #{densenet_forward.15} parent=11 // pred_fallthru
        _
    $region12: #{densenet_forward.15} parent=5 // pred_fallthru
      _
    %p170 = scmp.lt.s32.totalorder %s17, 54
    // Predicated region
    $region21: #{densenet_forward.15} parent=5 // pred_check
      %p171 = pneg %p170
    $region22: #{densenet_forward.15} parent=5 // pred_check_branch
      %173 = sbr.rel (%p171) target = $region24
    $region23: #{densenet_forward.15} parent=5 // pred_region
      // Predicated region
      $region25: #{densenet_forward.15} parent=23 // pred_check
        %p174 = pneg %p49
      $region26: #{densenet_forward.15} parent=23 // pred_check_branch
        %176 = sbr.rel (%p174) target = $region28
      $region27: #{densenet_forward.15} parent=23 // pred_region
        %p177 = scmp.lt.s32.totalorder %s24, 1
        %s178 = scalar_select %p177, %s24, 1
        %s179 = smul.addr %s178, 29
        %s180 = smul.addr %s179, 8
        %s181 = scalar_lea.vmem %s1, %s180
      $region28: #{densenet_forward.15} parent=23 // pred_fallthru
        _
      // Predicated region
      $region29: #{densenet_forward.15} parent=23 // pred_check
        %p182 = pneg %p75
      $region30: #{densenet_forward.15} parent=23 // pred_check_branch
        %184 = sbr.rel (%p182) target = $region32
      $region31: #{densenet_forward.15} parent=23 // pred_region
        %p185 = scmp.lt.s32.totalorder %s25, 26
        %s186 = scalar_select %p185, %s25, 26
        %s187 = smul.addr %s186, 4
        %s188 = smul.addr %s187, 4
        %s189 = scalar_lea.vmem %s2, %s188
      $region32: #{densenet_forward.15} parent=23 // pred_fallthru
        _
    $region24: #{densenet_forward.15} parent=5 // pred_fallthru
      _
    %p190 = scmp.le.s32.totalorder 1, %s17
    %p191 = scmp.lt.s32.totalorder %s17, 55
    %p192 = pnand %p190, %p191
    %p193 = pneg %p192
    // Predicated region
    $region33: #{densenet_forward.15} parent=5 // pred_check
      _
    $region34: #{densenet_forward.15} parent=5 // pred_check_branch
      %195 = sbr.rel (%p192) target = $region36
    $region35: #{densenet_forward.15} parent=5 // pred_region
      %s196 = ssub.s32 %s17, 1
      %p197 = scmp.lt.s32.totalorder %s26, 1
      %s198 = scalar_select %p197, %s26, 1
      %s199 = smul.addr %s198, 29
      %s200 = smul.addr %s199, 8
      %s201 = scalar_lea.vmem %s1, %s200
      %p202 = pneg %p55
      %p203 = pneg %p52
      %p204 = scmp.lt.s32.totalorder %s27, 26
      %s205 = scalar_select %p204, %s27, 26
      %s206 = smul.addr %s205, 4
      %s207 = smul.addr %s206, 4
      %s208 = scalar_lea.vmem %s2, %s207
      %p209 = pneg %p81
      %p210 = pneg %p78
      %p211 = pneg %p102
      %p212 = pneg %p99
      %p213 = pneg %p123
      %p214 = pneg %p120
      %p215 = pneg %p149
      %p216 = pneg %p146
      %p217 = scmp.lt.s32.totalorder %s26, 1
      %s218 = scalar_select %p217, %s26, 1
      %s219 = smul.addr %s218, 18
      %s220 = smul.addr %s219, 8
      %s221 = scalar_lea.vmem %s5, %s220
      %p222 = scmp.lt.s32.totalorder %s26, 1
      %s223 = scalar_select %p222, %s26, 1
      %s224 = smul.addr %s223, 29
      %s225 = smul.addr %s224, 8
      %s226 = scalar_lea.vmem %s1, %s225
      %p227 = scmp.lt.s32.totalorder %s27, 26
      %s228 = scalar_select %p227, %s27, 26
      %s229 = smul.addr %s228, 4
      %s230 = smul.addr %s229, 4
      %s231 = scalar_lea.vmem %s2, %s230
      %p232 = scmp.lt.s32.totalorder %s26, 1
      %s233 = scalar_select %p232, %s26, 1
      %s234 = smul.addr %s233, 18
      %s235 = smul.addr %s234, 8
      %s236 = scalar_lea.vmem %s5, %s235
      %p238 = scmp.eq.s32.totalorder %s27, 0
      // Predicated region
      $region37: #{densenet_forward.15} parent=35 // pred_check
        %p239 = pneg %p238
      $region38: #{densenet_forward.15} parent=35 // pred_check_branch
        %241 = sbr.rel (%p239) target = $region40
      $region39: #{densenet_forward.15} parent=35 // pred_region
        %242 = vst [vmem:[#allocation2] sm:$0xff] 0.0
        %243 = vst [vmem:[#allocation2 + $0x8] sm:$0xff] 0.0
        %244 = vst [vmem:[#allocation2 + $0x10] sm:$0xff] 0.0
        %245 = vst [vmem:[#allocation2 + $0x18] sm:$0xff] 0.0
        %246 = vst [vmem:[#allocation2 + $0x20] sm:$0xff] 0.0
        %247 = vst [vmem:[#allocation2 + $0x28] sm:$0xff] 0.0
        %248 = vst [vmem:[#allocation2 + $0x30] sm:$0xff] 0.0
        %249 = vst [vmem:[#allocation2 + $0x38] sm:$0xff] 0.0
        %250 = vst [vmem:[#allocation2 + $0x40] sm:$0xff] 0.0
        %251 = vst [vmem:[#allocation2 + $0x48] sm:$0xff] 0.0
        %252 = vst [vmem:[#allocation2 + $0x50] sm:$0xff] 0.0
        %253 = vst [vmem:[#allocation2 + $0x58] sm:$0xff] 0.0
        %254 = vst [vmem:[#allocation2 + $0x60] sm:$0xff] 0.0
        %255 = vst [vmem:[#allocation2 + $0x68] sm:$0xff] 0.0
        %256 = vst [vmem:[#allocation2 + $0x70] sm:$0xff] 0.0
        %257 = vst [vmem:[#allocation2 + $0x78] sm:$0xff] 0.0
        %258 = vst [vmem:[#allocation2 + $0x80] sm:$0xff] 0.0
        %259 = vst [vmem:[#allocation2 + $0x88] sm:$0xff] 0.0
      $region40: #{densenet_forward.15} parent=35 // pred_fallthru
        _
      %s260 = sld [smem:[#allocation4 + %s27]]
      %s261 = scalar_lea.vmem %s226, %s260
      %v262 = vld [vmem:[%s261] sm:$0xff]
      %v263 = vld [vmem:[%s261 + $0x8] sm:$0xff]
      %v264 = vld [vmem:[%s261 + $0x10] sm:$0xff]
      %v265 = vld [vmem:[%s261 + $0x18] sm:$0xff]
      %v266 = vld [vmem:[%s261 + $0x20] sm:$0xff]
      %v267 = vld [vmem:[%s261 + $0x28] sm:$0xff]
      %v268 = vld [vmem:[%s261 + $0x30] sm:$0xff]
      %v269 = vld [vmem:[%s261 + $0x38] sm:$0xff]
      %v270 = vld [vmem:[%s261 + $0x40] sm:$0xff]
      %v271 = vld [vmem:[%s261 + $0x48] sm:$0xff]
      %v272 = vld [vmem:[%s261 + $0x50] sm:$0xff]
      %v273 = vld [vmem:[%s261 + $0x58] sm:$0xff]
      %v274 = vld [vmem:[%s261 + $0x60] sm:$0xff]
      %v275 = vld [vmem:[%s261 + $0x68] sm:$0xff]
      %v276 = vld [vmem:[%s261 + $0x70] sm:$0xff]
      %v277 = vld [vmem:[%s261 + $0x78] sm:$0xff]
      %v278 = vld [vmem:[%s261 + $0x80] sm:$0xff]
      %v279 = vld [vmem:[%s261 + $0x88] sm:$0xff]
      %v280 = vld [vmem:[#allocation2] sm:$0xff]
      %v281 = vld [vmem:[#allocation2 + $0x8] sm:$0xff]
      %v282 = vld [vmem:[#allocation2 + $0x10] sm:$0xff]
      %v283 = vld [vmem:[#allocation2 + $0x18] sm:$0xff]
      %v284 = vld [vmem:[#allocation2 + $0x20] sm:$0xff]
      %v285 = vld [vmem:[#allocation2 + $0x28] sm:$0xff]
      %v286 = vld [vmem:[#allocation2 + $0x30] sm:$0xff]
      %v287 = vld [vmem:[#allocation2 + $0x38] sm:$0xff]
      %v288 = vld [vmem:[#allocation2 + $0x40] sm:$0xff]
      %v289 = vld [vmem:[#allocation2 + $0x48] sm:$0xff]
      %v290 = vld [vmem:[#allocation2 + $0x50] sm:$0xff]
      %v291 = vld [vmem:[#allocation2 + $0x58] sm:$0xff]
      %v292 = vld [vmem:[#allocation2 + $0x60] sm:$0xff]
      %v293 = vld [vmem:[#allocation2 + $0x68] sm:$0xff]
      %v294 = vld [vmem:[#allocation2 + $0x70] sm:$0xff]
      %v295 = vld [vmem:[#allocation2 + $0x78] sm:$0xff]
      %v296 = vld [vmem:[#allocation2 + $0x80] sm:$0xff]
      %v297 = vld [vmem:[#allocation2 + $0x88] sm:$0xff]
      %v298 = vpack.c.bf16 %v263, %v262
      %v299 = vpack.c.bf16 %v265, %v264
      %v300 = vpack.c.bf16 %v267, %v266
      %v301 = vpack.c.bf16 %v269, %v268
      %v302 = vpack.c.bf16 %v271, %v270
      %v303 = vpack.c.bf16 %v273, %v272
      %v304 = vpack.c.bf16 %v275, %v274
      %v305 = vpack.c.bf16 %v277, %v276
      %v306 = vpack.c.bf16 %v279, %v278
      %v307 = vld [vmem:[%s231] sm:$0xf]
      %v308 = vld [vmem:[%s231 + $0x4] sm:$0xf]
      %v309 = vld [vmem:[%s231 + $0x8] sm:$0xf]
      %v310 = vld [vmem:[%s231 + $0xc] sm:$0xf]
      %v315 = vunpack.c.l.b16 %v307
      %v316 = vunpack.c.l.b16 %v308
      %v317 = vunpack.c.l.b16 %v309
      %v318 = vunpack.c.l.b16 %v310
      %v319 = vpack.c.b16 %v316, %v315
      %v320 = vpack.c.b16 %v318, %v317
      %vm323 = vcmask 261120
      %v325 = vsel %vm323, %v298, 0
      %v328 = vsel %vm323, %v299, 0
      %v331 = vsel %vm323, %v300, 0
      %v334 = vsel %vm323, %v301, 0
      %v337 = vsel %vm323, %v302, 0
      %v340 = vsel %vm323, %v303, 0
      %v343 = vsel %vm323, %v304, 0
      %v346 = vsel %vm323, %v305, 0
      %v349 = vsel %vm323, %v306, 0
      %351 = vmatprep.subr.bf16.mxu0 0
      %352 = vmatpush1.bf16.msra.mxu0 %v319
      %353 = vmatprep.subr.bf16.mxu0 0
      %354 = vmatpush1.bf16.msra.mxu0 %v320
      %355 = vmatprep.subr.bf16.mxu0 0
      %356 = vmatpush1.bf16.msra.mxu0 0
      %357 = vmatprep.subr.bf16.mxu0 0
      %358 = vmatpush1.bf16.msra.mxu0 0
      %359 = vmatprep.subr.bf16.mxu0 0
      %360 = vmatpush1.bf16.msra.mxu0 0
      %361 = vmatprep.subr.bf16.mxu0 0
      %362 = vmatpush1.bf16.msra.mxu0 0
      %363 = vmatprep.subr.bf16.mxu0 0
      %364 = vmatpush1.bf16.msra.mxu0 0
      %365 = vmatprep.subr.bf16.mxu0 0
      %366 = vmatpush1.bf16.msra.mxu0 0
      %367 = vmatprep.subr.bf16.mxu0 0
      %368 = vmatpush1.bf16.msra.mxu0 0
      %369 = vmatprep.subr.bf16.mxu0 0
      %370 = vmatpush1.bf16.msra.mxu0 0
      %371 = vmatprep.subr.bf16.mxu0 0
      %372 = vmatpush1.bf16.msra.mxu0 0
      %373 = vmatprep.subr.bf16.mxu0 0
      %374 = vmatpush1.bf16.msra.mxu0 0
      %375 = vmatprep.subr.bf16.mxu0 0
      %376 = vmatpush1.bf16.msra.mxu0 0
      %377 = vmatprep.subr.bf16.mxu0 0
      %378 = vmatpush1.bf16.msra.mxu0 0
      %379 = vmatprep.subr.bf16.mxu0 0
      %380 = vmatpush1.bf16.msra.mxu0 0
      %381 = vmatprep.subr.bf16.mxu0 0
      %382 = vmatpush1.bf16.msra.mxu0 0
      %383 = vmatprep.mubr.bf16.mxu0 0
      %384 = vmatmul.mubr.bf16.gmra.mrb[0].mxu0 %v325
      %v385 = vpop.f32.mrb[0].mxu0
      %v386 = vadd.f32 0.0, %v385
      %v387 = vpop.f32.mrb[0].mxu0
      %v388 = vpop.f32.mrb[0].mxu0
      %v389 = vadd.f32 0.0, %v388
      %v390 = vpop.f32.mrb[0].mxu0
      %391 = vmatprep.mubr.bf16.mxu0 0
      %392 = vmatmul.mubr.bf16.gmra.mrb[0].mxu0 %v328
      %v393 = vpop.f32.mrb[0].mxu0
      %v394 = vadd.f32 0.0, %v393
      %v395 = vpop.f32.mrb[0].mxu0
      %v396 = vpop.f32.mrb[0].mxu0
      %v397 = vadd.f32 0.0, %v396
      %v398 = vpop.f32.mrb[0].mxu0
      %399 = vmatprep.mubr.bf16.mxu0 0
      %400 = vmatmul.mubr.bf16.gmra.mrb[0].mxu0 %v331
      %v401 = vpop.f32.mrb[0].mxu0
      %v402 = vadd.f32 0.0, %v401
      %v403 = vpop.f32.mrb[0].mxu0
      %v404 = vpop.f32.mrb[0].mxu0
      %v405 = vadd.f32 0.0, %v404
      %v406 = vpop.f32.mrb[0].mxu0
      %407 = vmatprep.mubr.bf16.mxu0 0
      %408 = vmatmul.mubr.bf16.gmra.mrb[0].mxu0 %v334
      %v409 = vpop.f32.mrb[0].mxu0
      %v410 = vadd.f32 0.0, %v409
      %v411 = vpop.f32.mrb[0].mxu0
      %v412 = vpop.f32.mrb[0].mxu0
      %v413 = vadd.f32 0.0, %v412
      %v414 = vpop.f32.mrb[0].mxu0
      %415 = vmatprep.mubr.bf16.mxu0 0
      %416 = vmatmul.mubr.bf16.gmra.mrb[0].mxu0 %v337
      %v417 = vpop.f32.mrb[0].mxu0
      %v418 = vadd.f32 0.0, %v417
      %v419 = vpop.f32.mrb[0].mxu0
      %v420 = vpop.f32.mrb[0].mxu0
      %v421 = vadd.f32 0.0, %v420
      %v422 = vpop.f32.mrb[0].mxu0
      %423 = vmatprep.mubr.bf16.mxu0 0
      %424 = vmatmul.mubr.bf16.gmra.mrb[0].mxu0 %v340
      %v425 = vpop.f32.mrb[0].mxu0
      %v426 = vadd.f32 0.0, %v425
      %v427 = vpop.f32.mrb[0].mxu0
      %v428 = vpop.f32.mrb[0].mxu0
      %v429 = vadd.f32 0.0, %v428
      %v430 = vpop.f32.mrb[0].mxu0
      %431 = vmatprep.mubr.bf16.mxu0 0
      %432 = vmatmul.mubr.bf16.gmra.mrb[0].mxu0 %v343
      %v433 = vpop.f32.mrb[0].mxu0
      %v434 = vadd.f32 0.0, %v433
      %v435 = vpop.f32.mrb[0].mxu0
      %v436 = vpop.f32.mrb[0].mxu0
      %v437 = vadd.f32 0.0, %v436
      %v438 = vpop.f32.mrb[0].mxu0
      %439 = vmatprep.mubr.bf16.mxu0 0
      %440 = vmatmul.mubr.bf16.gmra.mrb[0].mxu0 %v346
      %v441 = vpop.f32.mrb[0].mxu0
      %v442 = vadd.f32 0.0, %v441
      %v443 = vpop.f32.mrb[0].mxu0
      %v444 = vpop.f32.mrb[0].mxu0
      %v445 = vadd.f32 0.0, %v444
      %v446 = vpop.f32.mrb[0].mxu0
      %447 = vmatprep.mubr.bf16.mxu0 0
      %448 = vmatmul.mubr.bf16.gmra.mrb[0].mxu0 %v349
      %v449 = vpop.f32.mrb[0].mxu0
      %v450 = vadd.f32 0.0, %v449
      %v451 = vpop.f32.mrb[0].mxu0
      %v452 = vpop.f32.mrb[0].mxu0
      %v453 = vadd.f32 0.0, %v452
      %v454 = vpop.f32.mrb[0].mxu0
      %455 = vdwg.mxu0
      %v456 = vadd.f32 %v280, %v386
      %v457 = vadd.f32 %v281, %v389
      %v458 = vadd.f32 %v282, %v394
      %v459 = vadd.f32 %v283, %v397
      %v460 = vadd.f32 %v284, %v402
      %v461 = vadd.f32 %v285, %v405
      %v462 = vadd.f32 %v286, %v410
      %v463 = vadd.f32 %v287, %v413
      %v464 = vadd.f32 %v288, %v418
      %v465 = vadd.f32 %v289, %v421
      %v466 = vadd.f32 %v290, %v426
      %v467 = vadd.f32 %v291, %v429
      %v468 = vadd.f32 %v292, %v434
      %v469 = vadd.f32 %v293, %v437
      %v470 = vadd.f32 %v294, %v442
      %v471 = vadd.f32 %v295, %v445
      %v472 = vadd.f32 %v296, %v450
      %v473 = vadd.f32 %v297, %v453
      %474 = vst [vmem:[#allocation2] sm:$0xff] %v456
      %475 = vst [vmem:[#allocation2 + $0x8] sm:$0xff] %v457
      %476 = vst [vmem:[#allocation2 + $0x10] sm:$0xff] %v458
      %477 = vst [vmem:[#allocation2 + $0x18] sm:$0xff] %v459
      %478 = vst [vmem:[#allocation2 + $0x20] sm:$0xff] %v460
      %479 = vst [vmem:[#allocation2 + $0x28] sm:$0xff] %v461
      %480 = vst [vmem:[#allocation2 + $0x30] sm:$0xff] %v462
      %481 = vst [vmem:[#allocation2 + $0x38] sm:$0xff] %v463
      %482 = vst [vmem:[#allocation2 + $0x40] sm:$0xff] %v464
      %483 = vst [vmem:[#allocation2 + $0x48] sm:$0xff] %v465
      %484 = vst [vmem:[#allocation2 + $0x50] sm:$0xff] %v466
      %485 = vst [vmem:[#allocation2 + $0x58] sm:$0xff] %v467
      %486 = vst [vmem:[#allocation2 + $0x60] sm:$0xff] %v468
      %487 = vst [vmem:[#allocation2 + $0x68] sm:$0xff] %v469
      %488 = vst [vmem:[#allocation2 + $0x70] sm:$0xff] %v470
      %489 = vst [vmem:[#allocation2 + $0x78] sm:$0xff] %v471
      %490 = vst [vmem:[#allocation2 + $0x80] sm:$0xff] %v472
      %491 = vst [vmem:[#allocation2 + $0x88] sm:$0xff] %v473
      %p492 = scmp.eq.s32.totalorder %s27, 26
      // Predicated region
      $region41: #{densenet_forward.15} parent=35 // pred_check
        %p493 = pneg %p492
      $region42: #{densenet_forward.15} parent=35 // pred_check_branch
        %495 = sbr.rel (%p493) target = $region44
      $region43: #{densenet_forward.15} parent=35 // pred_region
        %v496 = vld [vmem:[#allocation2] sm:$0xff]
        %v497 = vld [vmem:[#allocation2 + $0x8] sm:$0xff]
        %v498 = vld [vmem:[#allocation2 + $0x10] sm:$0xff]
        %v499 = vld [vmem:[#allocation2 + $0x18] sm:$0xff]
        %v500 = vld [vmem:[#allocation2 + $0x20] sm:$0xff]
        %v501 = vld [vmem:[#allocation2 + $0x28] sm:$0xff]
        %v502 = vld [vmem:[#allocation2 + $0x30] sm:$0xff]
        %v503 = vld [vmem:[#allocation2 + $0x38] sm:$0xff]
        %v504 = vld [vmem:[#allocation2 + $0x40] sm:$0xff]
        %v505 = vld [vmem:[#allocation2 + $0x48] sm:$0xff]
        %v506 = vld [vmem:[#allocation2 + $0x50] sm:$0xff]
        %v507 = vld [vmem:[#allocation2 + $0x58] sm:$0xff]
        %v508 = vld [vmem:[#allocation2 + $0x60] sm:$0xff]
        %v509 = vld [vmem:[#allocation2 + $0x68] sm:$0xff]
        %v510 = vld [vmem:[#allocation2 + $0x70] sm:$0xff]
        %v511 = vld [vmem:[#allocation2 + $0x78] sm:$0xff]
        %v512 = vld [vmem:[#allocation2 + $0x80] sm:$0xff]
        %v513 = vld [vmem:[#allocation2 + $0x88] sm:$0xff]
        %v514 = vld [vmem:[%s3] sm:$0x1]
        %v516 = vlaneseq
        %v517 = vshrl.u32 %v516, 7
        %v518 = vsub.s32 0, %v517
        %v519 = vrot.slane %v514, %v518
        %v521 = vmul.f32 %v496, %v519
        %v522 = vmul.f32 %v497, %v519
        %v523 = vmul.f32 %v498, %v519
        %v524 = vmul.f32 %v499, %v519
        %v525 = vmul.f32 %v500, %v519
        %v526 = vmul.f32 %v501, %v519
        %v527 = vmul.f32 %v502, %v519
        %v528 = vmul.f32 %v503, %v519
        %v529 = vmul.f32 %v504, %v519
        %v530 = vmul.f32 %v505, %v519
        %v531 = vmul.f32 %v506, %v519
        %v532 = vmul.f32 %v507, %v519
        %v533 = vmul.f32 %v508, %v519
        %v534 = vmul.f32 %v509, %v519
        %v535 = vmul.f32 %v510, %v519
        %v536 = vmul.f32 %v511, %v519
        %v537 = vmul.f32 %v512, %v519
        %v538 = vmul.f32 %v513, %v519
        %v539 = vld [vmem:[%s4] sm:$0x1]
        %v541 = vlaneseq
        %v542 = vshrl.u32 %v541, 7
        %v543 = vsub.s32 0, %v542
        %v544 = vrot.slane %v539, %v543
        %v546 = vadd.f32 %v521, %v544
        %v547 = vadd.f32 %v522, %v544
        %v548 = vadd.f32 %v523, %v544
        %v549 = vadd.f32 %v524, %v544
        %v550 = vadd.f32 %v525, %v544
        %v551 = vadd.f32 %v526, %v544
        %v552 = vadd.f32 %v527, %v544
        %v553 = vadd.f32 %v528, %v544
        %v554 = vadd.f32 %v529, %v544
        %v555 = vadd.f32 %v530, %v544
        %v556 = vadd.f32 %v531, %v544
        %v557 = vadd.f32 %v532, %v544
        %v558 = vadd.f32 %v533, %v544
        %v559 = vadd.f32 %v534, %v544
        %v560 = vadd.f32 %v535, %v544
        %v561 = vadd.f32 %v536, %v544
        %v562 = vadd.f32 %v537, %v544
        %v563 = vadd.f32 %v538, %v544
        %v564 = vmax.f32 %v546, 0.0
        %v565 = vmax.f32 %v547, 0.0
        %v566 = vmax.f32 %v548, 0.0
        %v567 = vmax.f32 %v549, 0.0
        %v568 = vmax.f32 %v550, 0.0
        %v569 = vmax.f32 %v551, 0.0
        %v570 = vmax.f32 %v552, 0.0
        %v571 = vmax.f32 %v553, 0.0
        %v572 = vmax.f32 %v554, 0.0
        %v573 = vmax.f32 %v555, 0.0
        %v574 = vmax.f32 %v556, 0.0
        %v575 = vmax.f32 %v557, 0.0
        %v576 = vmax.f32 %v558, 0.0
        %v577 = vmax.f32 %v559, 0.0
        %v578 = vmax.f32 %v560, 0.0
        %v579 = vmax.f32 %v561, 0.0
        %v580 = vmax.f32 %v562, 0.0
        %v581 = vmax.f32 %v563, 0.0
        %582 = vst [vmem:[%s236] sm:$0xff] %v564
        %583 = vst [vmem:[%s236 + $0x8] sm:$0xff] %v565
        %584 = vst [vmem:[%s236 + $0x10] sm:$0xff] %v566
        %585 = vst [vmem:[%s236 + $0x18] sm:$0xff] %v567
        %586 = vst [vmem:[%s236 + $0x20] sm:$0xff] %v568
        %587 = vst [vmem:[%s236 + $0x28] sm:$0xff] %v569
        %588 = vst [vmem:[%s236 + $0x30] sm:$0xff] %v570
        %589 = vst [vmem:[%s236 + $0x38] sm:$0xff] %v571
        %590 = vst [vmem:[%s236 + $0x40] sm:$0xff] %v572
        %591 = vst [vmem:[%s236 + $0x48] sm:$0xff] %v573
        %592 = vst [vmem:[%s236 + $0x50] sm:$0xff] %v574
        %593 = vst [vmem:[%s236 + $0x58] sm:$0xff] %v575
        %594 = vst [vmem:[%s236 + $0x60] sm:$0xff] %v576
        %595 = vst [vmem:[%s236 + $0x68] sm:$0xff] %v577
        %596 = vst [vmem:[%s236 + $0x70] sm:$0xff] %v578
        %597 = vst [vmem:[%s236 + $0x78] sm:$0xff] %v579
        %598 = vst [vmem:[%s236 + $0x80] sm:$0xff] %v580
        %599 = vst [vmem:[%s236 + $0x88] sm:$0xff] %v581
      $region44: #{densenet_forward.15} parent=35 // pred_fallthru
        _
      %p600 = scmp.lt.s32.totalorder %s26, 1
      %s601 = scalar_select %p600, %s26, 1
      %s602 = smul.addr %s601, 18
      %s603 = smul.addr %s602, 8
      %s604 = scalar_lea.vmem %s5, %s603
      // Predicated region
      $region45: #{densenet_forward.15} parent=35 // pred_check
        %p605 = pneg %p146
      $region46: #{densenet_forward.15} parent=35 // pred_check_branch
        %607 = sbr.rel (%p605) target = $region48
      $region47: #{densenet_forward.15} parent=35 // pred_region
        _
      $region48: #{densenet_forward.15} parent=35 // pred_fallthru
        _
    $region36: #{densenet_forward.15} parent=5 // pred_fallthru
      _
    %p608 = scmp.le.s32.totalorder 2, %s17
    // Predicated region
    $region49: #{densenet_forward.15} parent=5 // pred_check
      %p609 = pneg %p608
    $region50: #{densenet_forward.15} parent=5 // pred_check_branch
      %611 = sbr.rel (%p609) target = $region52
    $region51: #{densenet_forward.15} parent=5 // pred_region
      %s612 = ssub.s32 %s17, 2
      // Predicated region
      $region53: #{densenet_forward.15} parent=51 // pred_check
        %p613 = pneg %p152
      $region54: #{densenet_forward.15} parent=51 // pred_check_branch
        %615 = sbr.rel (%p613) target = $region56
      $region55: #{densenet_forward.15} parent=51 // pred_region
        %p616 = scmp.lt.s32.totalorder %s28, 1
        %s617 = scalar_select %p616, %s28, 1
        %s618 = smul.addr %s617, 18
        %s619 = smul.addr %s618, 8
        %s620 = scalar_lea.vmem %s5, %s619
      $region56: #{densenet_forward.15} parent=51 // pred_fallthru
        _
    $region52: #{densenet_forward.15} parent=5 // pred_fallthru
      _
  $region6: #{densenet_forward.15} parent=0 // loop_footer
    %s21 = sadd.s32 1, %s17
  $region7: #{densenet_forward.15} parent=0 // loop_footer_branch
    %16 = sbr.rel target = $region3
  $region8: #{densenet_forward.15} parent=0 // loop_exit
    _

// kernel: densenet_forward.18
$region0: #{densenet_forward.18}
  #allocation0 [shape = 'u32[]', space=smem, size = 0x4, offset = 0x4, fixed_abs, tag = 'smem constant byte address 0x4 - core index']
  #allocation1 [shape = 'u32[144,128]{1,0:T(1,128)}', space=vmem, size = 0x12000, scoped, tag = 'internal scratch']
  #allocation2 [shape = 'f32[64,128]{1,0:T(8,128)}', space=vmem, size = 0x8000, scoped, tag = 'scratch operand']
  #allocation3 [shape = 's32[1]{0}', space=sflag, size = 0x4, scoped, tag = 'scoped memory for densenet_forward.18']
  #allocation4 [shape = 's32[1]{0:T(128)S(6)}', space=smem, size = 0x200, scoped, tag = 'prefetched SMEM operand 0']
  %s0 = inlined_call_operand.<no memory space> [shape: s32[1], index: 0, kind: input, shape index: {}]
  %s1 = inlined_call_operand.vmem [shape: f32[2,64,8], index: 1, kind: input, shape index: {}]
  %s2 = inlined_call_operand.vmem [shape: bf16[1,8,128], index: 2, kind: input, shape index: {}]
  %s3 = inlined_call_operand.vmem [shape: f32[1,128], index: 3, kind: input, shape index: {}]
  %s4 = inlined_call_operand.vmem [shape: f32[1,128], index: 4, kind: input, shape index: {}]
  %s5 = inlined_call_operand.vmem [shape: f32[2,64,128], index: 5, kind: output, shape index: {}]
  %s6 = sld [smem:[#allocation0]]
  $region57: #{densenet_forward.18} parent=0
    _
  %s8 = ssub.s32 1, %s6
  %s9 = scalar_select 0, %s8, %s6
  %10 = sst [smem:[#allocation4]] %s0
  loop: start=0, step=1, limit=4
  $region2: #{densenet_forward.18} parent=0 // loop_pre_header
    _
  $region3: #{densenet_forward.18} parent=0 // loop_header
    %s12 = sphi 0, %s16
    %p13 = scmp.ge.s32.totalorder %s12, 4
    %s19 = sphi 0, %s31
    %s20 = sphi 0, %s27
    %s21 = sphi 0, %s19
    %s22 = sphi 0, %s20
    %s23 = sphi 0, %s21
    %s24 = sphi 0, %s22
    %s34 = sphi 0, %s36
    %s37 = sphi 0, %s34
    %s38 = sphi 0, %s37
    %s54 = sphi 0, %s38
    %s60 = sphi 0, %s62
    %s63 = sphi 0, %s60
    %s64 = sphi 0, %s63
    %s80 = sphi 0, %s64
    %s84 = sphi 0, %s84
    %s86 = sphi 0, %s84
    %s87 = sphi 0, %s86
    %s101 = sphi 0, %s87
    %s105 = sphi 0, %s105
    %s107 = sphi 0, %s105
    %s108 = sphi 0, %s107
    %s122 = sphi 0, %s108
    %s128 = sphi 0, %s130
    %s131 = sphi 0, %s128
    %s132 = sphi 0, %s131
    %s148 = sphi 0, %s132
  $region4: #{densenet_forward.18} parent=0 // loop_header_branch
    %15 = sbr.rel (%p13) target = $region8
  $region5: #{densenet_forward.18} parent=0 // loop_body
    %s17 = ssub.s32 %s12, 1
    %s18 = ssub.s32 %s12, 2
    %s25 = sadd.s32 1, %s20
    %p26 = scmp.ge.s32.totalorder %s25, 1
    %s27 = scalar_select %p26, 0, %s25
    %s28 = sadd.s32 1, %s19
    %s29 = scalar_select %p26, %s28, %s19
    %p30 = scmp.ge.s32.totalorder %s29, 2
    %s31 = scalar_select %p30, 0, %s29
    %s32 = ssub.s32 %s19, %s31
    %p33 = scmp.eq.s32.totalorder %s32, 0
    %s35 = sadd.s32 %s34, 1
    %s36 = scalar_select %p33, %s34, %s35
    %p39 = pneg %p33
    %p40 = scmp.eq.s32.totalorder %s12, 1
    %p41 = por %p39, %p40
    %p42 = scmp.ne.s32.totalorder %s34, %s37
    %p43 = scmp.eq.s32.totalorder %s12, 0
    %p44 = por %p42, %p43
    %p45 = scmp.ne.s32.totalorder %s34, %s37
    %p46 = scmp.eq.s32.totalorder %s17, 1
    %p47 = por %p45, %p46
    %p48 = scmp.ne.s32.totalorder %s37, %s38
    %p49 = scmp.eq.s32.totalorder %s17, 0
    %p50 = por %p48, %p49
    %p51 = scmp.ne.s32.totalorder %s37, %s38
    %p52 = scmp.eq.s32.totalorder %s18, 1
    %p53 = por %p51, %p52
    %p55 = scmp.ne.s32.totalorder %s38, %s54
    %p56 = scmp.eq.s32.totalorder %s18, 0
    %p57 = por %p55, %p56
    %s58 = ssub.s32 %s20, %s27
    %p59 = scmp.eq.s32.totalorder %s58, 0
    %s61 = sadd.s32 %s60, 1
    %s62 = scalar_select %p59, %s60, %s61
    %p65 = pneg %p59
    %p66 = scmp.eq.s32.totalorder %s12, 1
    %p67 = por %p65, %p66
    %p68 = scmp.ne.s32.totalorder %s60, %s63
    %p69 = scmp.eq.s32.totalorder %s12, 0
    %p70 = por %p68, %p69
    %p71 = scmp.ne.s32.totalorder %s60, %s63
    %p72 = scmp.eq.s32.totalorder %s17, 1
    %p73 = por %p71, %p72
    %p74 = scmp.ne.s32.totalorder %s63, %s64
    %p75 = scmp.eq.s32.totalorder %s17, 0
    %p76 = por %p74, %p75
    %p77 = scmp.ne.s32.totalorder %s63, %s64
    %p78 = scmp.eq.s32.totalorder %s18, 1
    %p79 = por %p77, %p78
    %p81 = scmp.ne.s32.totalorder %s64, %s80
    %p82 = scmp.eq.s32.totalorder %s18, 0
    %p83 = por %p81, %p82
    %s85 = sadd.s32 %s84, 1
    %p88 = scmp.eq.s32.totalorder %s12, 1
    %p89 = scmp.ne.s32.totalorder %s84, %s86
    %p90 = scmp.eq.s32.totalorder %s12, 0
    %p91 = por %p89, %p90
    %p92 = scmp.ne.s32.totalorder %s84, %s86
    %p93 = scmp.eq.s32.totalorder %s17, 1
    %p94 = por %p92, %p93
    %p95 = scmp.ne.s32.totalorder %s86, %s87
    %p96 = scmp.eq.s32.totalorder %s17, 0
    %p97 = por %p95, %p96
    %p98 = scmp.ne.s32.totalorder %s86, %s87
    %p99 = scmp.eq.s32.totalorder %s18, 1
    %p100 = por %p98, %p99
    %p102 = scmp.ne.s32.totalorder %s87, %s101
    %p103 = scmp.eq.s32.totalorder %s18, 0
    %p104 = por %p102, %p103
    %s106 = sadd.s32 %s105, 1
    %p109 = scmp.eq.s32.totalorder %s12, 1
    %p110 = scmp.ne.s32.totalorder %s105, %s107
    %p111 = scmp.eq.s32.totalorder %s12, 0
    %p112 = por %p110, %p111
    %p113 = scmp.ne.s32.totalorder %s105, %s107
    %p114 = scmp.eq.s32.totalorder %s17, 1
    %p115 = por %p113, %p114
    %p116 = scmp.ne.s32.totalorder %s107, %s108
    %p117 = scmp.eq.s32.totalorder %s17, 0
    %p118 = por %p116, %p117
    %p119 = scmp.ne.s32.totalorder %s107, %s108
    %p120 = scmp.eq.s32.totalorder %s18, 1
    %p121 = por %p119, %p120
    %p123 = scmp.ne.s32.totalorder %s108, %s122
    %p124 = scmp.eq.s32.totalorder %s18, 0
    %p125 = por %p123, %p124
    %s126 = ssub.s32 %s19, %s31
    %p127 = scmp.eq.s32.totalorder %s126, 0
    %s129 = sadd.s32 %s128, 1
    %s130 = scalar_select %p127, %s128, %s129
    %p133 = pneg %p127
    %p134 = scmp.eq.s32.totalorder %s12, 1
    %p135 = por %p133, %p134
    %p136 = scmp.ne.s32.totalorder %s128, %s131
    %p137 = scmp.eq.s32.totalorder %s12, 0
    %p138 = por %p136, %p137
    %p139 = scmp.ne.s32.totalorder %s128, %s131
    %p140 = scmp.eq.s32.totalorder %s17, 1
    %p141 = por %p139, %p140
    %p142 = scmp.ne.s32.totalorder %s131, %s132
    %p143 = scmp.eq.s32.totalorder %s17, 0
    %p144 = por %p142, %p143
    %p145 = scmp.ne.s32.totalorder %s131, %s132
    %p146 = scmp.eq.s32.totalorder %s18, 1
    %p147 = por %p145, %p146
    %p149 = scmp.ne.s32.totalorder %s132, %s148
    %p150 = scmp.eq.s32.totalorder %s18, 0
    %p151 = por %p149, %p150
    %p152 = scmp.le.s32.totalorder 1, %s12
    %p153 = scmp.lt.s32.totalorder %s12, 3
    %p154 = pnand %p152, %p153
    %p155 = pneg %p154
    // Predicated region
    $region9: #{densenet_forward.18} parent=5 // pred_check
      _
    $region10: #{densenet_forward.18} parent=5 // pred_check_branch
      %157 = sbr.rel (%p154) target = $region12
    $region11: #{densenet_forward.18} parent=5 // pred_region
      %s158 = ssub.s32 %s12, 1
      // Predicated region
      $region13: #{densenet_forward.18} parent=11 // pred_check
        %p159 = pneg %p76
      $region14: #{densenet_forward.18} parent=11 // pred_check_branch
        %161 = sbr.rel (%p159) target = $region16
      $region15: #{densenet_forward.18} parent=11 // pred_region
        %p162 = scmp.lt.s32.totalorder %s22, 0
        %s163 = scalar_select %p162, %s22, 0
        %s164 = smul.addr %s163, 4
        %s165 = scalar_lea.vmem %s2, %s164
      $region16: #{densenet_forward.18} parent=11 // pred_fallthru
        _
      // Predicated region
      $region17: #{densenet_forward.18} parent=11 // pred_check
        %p166 = pneg %p97
      $region18: #{densenet_forward.18} parent=11 // pred_check_branch
        %168 = sbr.rel (%p166) target = $region20
      $region19: #{densenet_forward.18} parent=11 // pred_region
        _
      $region20: #{densenet_forward.18} parent=11 // pred_fallthru
        _
      // Predicated region
      $region21: #{densenet_forward.18} parent=11 // pred_check
        %p169 = pneg %p118
      $region22: #{densenet_forward.18} parent=11 // pred_check_branch
        %171 = sbr.rel (%p169) target = $region24
      $region23: #{densenet_forward.18} parent=11 // pred_region
        _
      $region24: #{densenet_forward.18} parent=11 // pred_fallthru
        _
    $region12: #{densenet_forward.18} parent=5 // pred_fallthru
      _
    %p172 = scmp.lt.s32.totalorder %s12, 2
    // Predicated region
    $region25: #{densenet_forward.18} parent=5 // pred_check
      %p173 = pneg %p172
    $region26: #{densenet_forward.18} parent=5 // pred_check_branch
      %175 = sbr.rel (%p173) target = $region28
    $region27: #{densenet_forward.18} parent=5 // pred_region
      // Predicated region
      $region29: #{densenet_forward.18} parent=27 // pred_check
        %p176 = pneg %p44
      $region30: #{densenet_forward.18} parent=27 // pred_check_branch
        %178 = sbr.rel (%p176) target = $region32
      $region31: #{densenet_forward.18} parent=27 // pred_region
        %p179 = scmp.lt.s32.totalorder %s19, 1
        %s180 = scalar_select %p179, %s19, 1
        %s181 = smul.addr %s180, 8
        %s182 = smul.addr %s181, 8
        %s183 = scalar_lea.vmem %s1, %s182
      $region32: #{densenet_forward.18} parent=27 // pred_fallthru
        _
    $region28: #{densenet_forward.18} parent=5 // pred_fallthru
      _
    %p184 = scmp.le.s32.totalorder 1, %s12
    %p185 = scmp.lt.s32.totalorder %s12, 3
    %p186 = pnand %p184, %p185
    %p187 = pneg %p186
    // Predicated region
    $region33: #{densenet_forward.18} parent=5 // pred_check
      _
    $region34: #{densenet_forward.18} parent=5 // pred_check_branch
      %189 = sbr.rel (%p186) target = $region36
    $region35: #{densenet_forward.18} parent=5 // pred_region
      %s190 = ssub.s32 %s12, 1
      %p191 = scmp.lt.s32.totalorder %s21, 1
      %s192 = scalar_select %p191, %s21, 1
      %s193 = smul.addr %s192, 8
      %s194 = smul.addr %s193, 8
      %s195 = scalar_lea.vmem %s1, %s194
      %p196 = pneg %p50
      %p197 = pneg %p47
      %p198 = scmp.lt.s32.totalorder %s22, 0
      %s199 = scalar_select %p198, %s22, 0
      %s200 = smul.addr %s199, 4
      %s201 = scalar_lea.vmem %s2, %s200
      %p202 = pneg %p76
      %p203 = pneg %p73
      %p204 = pneg %p97
      %p205 = pneg %p94
      %p206 = pneg %p118
      %p207 = pneg %p115
      %p208 = pneg %p144
      %p209 = pneg %p141
      %p210 = scmp.lt.s32.totalorder %s21, 1
      %s211 = scalar_select %p210, %s21, 1
      %s212 = smul.addr %s211, 8
      %s213 = smul.addr %s212, 8
      %s214 = scalar_lea.vmem %s5, %s213
      %p215 = scmp.lt.s32.totalorder %s21, 1
      %s216 = scalar_select %p215, %s21, 1
      %s217 = smul.addr %s216, 8
      %s218 = smul.addr %s217, 8
      %s219 = scalar_lea.vmem %s1, %s218
      %p220 = scmp.lt.s32.totalorder %s22, 0
      %s221 = scalar_select %p220, %s22, 0
      %s222 = smul.addr %s221, 4
      %s223 = scalar_lea.vmem %s2, %s222
      %p224 = scmp.lt.s32.totalorder %s21, 1
      %s225 = scalar_select %p224, %s21, 1
      %s226 = smul.addr %s225, 8
      %s227 = smul.addr %s226, 8
      %s228 = scalar_lea.vmem %s5, %s227
      %p230 = scmp.eq.s32.totalorder %s22, 0
      // Predicated region
      $region37: #{densenet_forward.18} parent=35 // pred_check
        %p231 = pneg %p230
      $region38: #{densenet_forward.18} parent=35 // pred_check_branch
        %233 = sbr.rel (%p231) target = $region40
      $region39: #{densenet_forward.18} parent=35 // pred_region
        %234 = vst [vmem:[#allocation2] sm:$0xff] 0.0
        %235 = vst [vmem:[#allocation2 + $0x8] sm:$0xff] 0.0
        %236 = vst [vmem:[#allocation2 + $0x10] sm:$0xff] 0.0
        %237 = vst [vmem:[#allocation2 + $0x18] sm:$0xff] 0.0
        %238 = vst [vmem:[#allocation2 + $0x20] sm:$0xff] 0.0
        %239 = vst [vmem:[#allocation2 + $0x28] sm:$0xff] 0.0
        %240 = vst [vmem:[#allocation2 + $0x30] sm:$0xff] 0.0
        %241 = vst [vmem:[#allocation2 + $0x38] sm:$0xff] 0.0
      $region40: #{densenet_forward.18} parent=35 // pred_fallthru
        _
      %s242 = sld [smem:[#allocation4 + %s22]]
      %s243 = scalar_lea.vmem %s219, %s242
      %v244 = vld [vmem:[%s243] sm:$0xff]
      %v245 = vld [vmem:[%s243 + $0x8] sm:$0xff]
      %v246 = vld [vmem:[%s243 + $0x10] sm:$0xff]
      %v247 = vld [vmem:[%s243 + $0x18] sm:$0xff]
      %v248 = vld [vmem:[%s243 + $0x20] sm:$0xff]
      %v249 = vld [vmem:[%s243 + $0x28] sm:$0xff]
      %v250 = vld [vmem:[%s243 + $0x30] sm:$0xff]
      %v251 = vld [vmem:[%s243 + $0x38] sm:$0xff]
      %v252 = vld [vmem:[#allocation2] sm:$0xff]
      %v253 = vld [vmem:[#allocation2 + $0x8] sm:$0xff]
      %v254 = vld [vmem:[#allocation2 + $0x10] sm:$0xff]
      %v255 = vld [vmem:[#allocation2 + $0x18] sm:$0xff]
      %v256 = vld [vmem:[#allocation2 + $0x20] sm:$0xff]
      %v257 = vld [vmem:[#allocation2 + $0x28] sm:$0xff]
      %v258 = vld [vmem:[#allocation2 + $0x30] sm:$0xff]
      %v259 = vld [vmem:[#allocation2 + $0x38] sm:$0xff]
      %v260 = vpack.c.bf16 %v245, %v244
      %v261 = vpack.c.bf16 %v247, %v246
      %v262 = vpack.c.bf16 %v249, %v248
      %v263 = vpack.c.bf16 %v251, %v250
      %v264 = vld [vmem:[%s223] sm:$0xf]
      %vm265 = vcmask 64512
      %v267 = vsel %vm265, %v260, 0
      %v270 = vsel %vm265, %v261, 0
      %v273 = vsel %vm265, %v262, 0
      %v276 = vsel %vm265, %v263, 0
      %vm278 = vcmask 1043456
      %v280 = vsel %vm278, %v264, 0
      %282 = vmatprep.subr.bf16.mxu0 0
      %283 = vmatpush1.bf16.msra.mxu0 %v280
      %284 = vmatprep.subr.bf16.mxu0 0
      %285 = vmatpush1.bf16.msra.mxu0 0
      %286 = vmatprep.subr.bf16.mxu0 0
      %287 = vmatpush1.bf16.msra.mxu0 0
      %288 = vmatprep.subr.bf16.mxu0 0
      %289 = vmatpush1.bf16.msra.mxu0 0
      %290 = vmatprep.subr.bf16.mxu0 0
      %291 = vmatpush1.bf16.msra.mxu0 0
      %292 = vmatprep.subr.bf16.mxu0 0
      %293 = vmatpush1.bf16.msra.mxu0 0
      %294 = vmatprep.subr.bf16.mxu0 0
      %295 = vmatpush1.bf16.msra.mxu0 0
      %296 = vmatprep.subr.bf16.mxu0 0
      %297 = vmatpush1.bf16.msra.mxu0 0
      %298 = vmatprep.subr.bf16.mxu0 0
      %299 = vmatpush1.bf16.msra.mxu0 0
      %300 = vmatprep.subr.bf16.mxu0 0
      %301 = vmatpush1.bf16.msra.mxu0 0
      %302 = vmatprep.subr.bf16.mxu0 0
      %303 = vmatpush1.bf16.msra.mxu0 0
      %304 = vmatprep.subr.bf16.mxu0 0
      %305 = vmatpush1.bf16.msra.mxu0 0
      %306 = vmatprep.subr.bf16.mxu0 0
      %307 = vmatpush1.bf16.msra.mxu0 0
      %308 = vmatprep.subr.bf16.mxu0 0
      %309 = vmatpush1.bf16.msra.mxu0 0
      %310 = vmatprep.subr.bf16.mxu0 0
      %311 = vmatpush1.bf16.msra.mxu0 0
      %312 = vmatprep.subr.bf16.mxu0 0
      %313 = vmatpush1.bf16.msra.mxu0 0
      %314 = vmatprep.mubr.bf16.mxu0 0
      %315 = vmatmul.mubr.bf16.gmra.mrb[0].mxu0 %v267
      %v316 = vpop.f32.mrb[0].mxu0
      %v317 = vadd.f32 0.0, %v316
      %v318 = vpop.f32.mrb[0].mxu0
      %v319 = vpop.f32.mrb[0].mxu0
      %v320 = vadd.f32 0.0, %v319
      %v321 = vpop.f32.mrb[0].mxu0
      %322 = vmatprep.mubr.bf16.mxu0 0
      %323 = vmatmul.mubr.bf16.gmra.mrb[0].mxu0 %v270
      %v324 = vpop.f32.mrb[0].mxu0
      %v325 = vadd.f32 0.0, %v324
      %v326 = vpop.f32.mrb[0].mxu0
      %v327 = vpop.f32.mrb[0].mxu0
      %v328 = vadd.f32 0.0, %v327
      %v329 = vpop.f32.mrb[0].mxu0
      %330 = vmatprep.mubr.bf16.mxu0 0
      %331 = vmatmul.mubr.bf16.gmra.mrb[0].mxu0 %v273
      %v332 = vpop.f32.mrb[0].mxu0
      %v333 = vadd.f32 0.0, %v332
      %v334 = vpop.f32.mrb[0].mxu0
      %v335 = vpop.f32.mrb[0].mxu0
      %v336 = vadd.f32 0.0, %v335
      %v337 = vpop.f32.mrb[0].mxu0
      %338 = vmatprep.mubr.bf16.mxu0 0
      %339 = vmatmul.mubr.bf16.gmra.mrb[0].mxu0 %v276
      %v340 = vpop.f32.mrb[0].mxu0
      %v341 = vadd.f32 0.0, %v340
      %v342 = vpop.f32.mrb[0].mxu0
      %v343 = vpop.f32.mrb[0].mxu0
      %v344 = vadd.f32 0.0, %v343
      %v345 = vpop.f32.mrb[0].mxu0
      %346 = vdwg.mxu0
      %v347 = vadd.f32 %v252, %v317
      %v348 = vadd.f32 %v253, %v320
      %v349 = vadd.f32 %v254, %v325
      %v350 = vadd.f32 %v255, %v328
      %v351 = vadd.f32 %v256, %v333
      %v352 = vadd.f32 %v257, %v336
      %v353 = vadd.f32 %v258, %v341
      %v354 = vadd.f32 %v259, %v344
      %355 = vst [vmem:[#allocation2] sm:$0xff] %v347
      %356 = vst [vmem:[#allocation2 + $0x8] sm:$0xff] %v348
      %357 = vst [vmem:[#allocation2 + $0x10] sm:$0xff] %v349
      %358 = vst [vmem:[#allocation2 + $0x18] sm:$0xff] %v350
      %359 = vst [vmem:[#allocation2 + $0x20] sm:$0xff] %v351
      %360 = vst [vmem:[#allocation2 + $0x28] sm:$0xff] %v352
      %361 = vst [vmem:[#allocation2 + $0x30] sm:$0xff] %v353
      %362 = vst [vmem:[#allocation2 + $0x38] sm:$0xff] %v354
      // Predicated region
      $region41: #{densenet_forward.18} parent=35 // pred_check
        %p363 = pneg %p230
      $region42: #{densenet_forward.18} parent=35 // pred_check_branch
        %365 = sbr.rel (%p363) target = $region44
      $region43: #{densenet_forward.18} parent=35 // pred_region
        %v366 = vld [vmem:[#allocation2] sm:$0xff]
        %v367 = vld [vmem:[#allocation2 + $0x8] sm:$0xff]
        %v368 = vld [vmem:[#allocation2 + $0x10] sm:$0xff]
        %v369 = vld [vmem:[#allocation2 + $0x18] sm:$0xff]
        %v370 = vld [vmem:[#allocation2 + $0x20] sm:$0xff]
        %v371 = vld [vmem:[#allocation2 + $0x28] sm:$0xff]
        %v372 = vld [vmem:[#allocation2 + $0x30] sm:$0xff]
        %v373 = vld [vmem:[#allocation2 + $0x38] sm:$0xff]
        %v374 = vld [vmem:[%s3] sm:$0x1]
        %v376 = vlaneseq
        %v377 = vshrl.u32 %v376, 7
        %v378 = vsub.s32 0, %v377
        %v379 = vrot.slane %v374, %v378
        %v381 = vmul.f32 %v366, %v379
        %v382 = vmul.f32 %v367, %v379
        %v383 = vmul.f32 %v368, %v379
        %v384 = vmul.f32 %v369, %v379
        %v385 = vmul.f32 %v370, %v379
        %v386 = vmul.f32 %v371, %v379
        %v387 = vmul.f32 %v372, %v379
        %v388 = vmul.f32 %v373, %v379
        %v389 = vld [vmem:[%s4] sm:$0x1]
        %v391 = vlaneseq
        %v392 = vshrl.u32 %v391, 7
        %v393 = vsub.s32 0, %v392
        %v394 = vrot.slane %v389, %v393
        %v396 = vadd.f32 %v381, %v394
        %v397 = vadd.f32 %v382, %v394
        %v398 = vadd.f32 %v383, %v394
        %v399 = vadd.f32 %v384, %v394
        %v400 = vadd.f32 %v385, %v394
        %v401 = vadd.f32 %v386, %v394
        %v402 = vadd.f32 %v387, %v394
        %v403 = vadd.f32 %v388, %v394
        %v404 = vmax.f32 %v396, 0.0
        %v405 = vmax.f32 %v397, 0.0
        %v406 = vmax.f32 %v398, 0.0
        %v407 = vmax.f32 %v399, 0.0
        %v408 = vmax.f32 %v400, 0.0
        %v409 = vmax.f32 %v401, 0.0
        %v410 = vmax.f32 %v402, 0.0
        %v411 = vmax.f32 %v403, 0.0
        %412 = vst [vmem:[%s228] sm:$0xff] %v404
        %413 = vst [vmem:[%s228 + $0x8] sm:$0xff] %v405
        %414 = vst [vmem:[%s228 + $0x10] sm:$0xff] %v406
        %415 = vst [vmem:[%s228 + $0x18] sm:$0xff] %v407
        %416 = vst [vmem:[%s228 + $0x20] sm:$0xff] %v408
        %417 = vst [vmem:[%s228 + $0x28] sm:$0xff] %v409
        %418 = vst [vmem:[%s228 + $0x30] sm:$0xff] %v410
        %419 = vst [vmem:[%s228 + $0x38] sm:$0xff] %v411
      $region44: #{densenet_forward.18} parent=35 // pred_fallthru
        _
      %p420 = scmp.lt.s32.totalorder %s21, 1
      %s421 = scalar_select %p420, %s21, 1
      %s422 = smul.addr %s421, 8
      %s423 = smul.addr %s422, 8
      %s424 = scalar_lea.vmem %s5, %s423
      // Predicated region
      $region45: #{densenet_forward.18} parent=35 // pred_check
        %p425 = pneg %p141
      $region46: #{densenet_forward.18} parent=35 // pred_check_branch
        %427 = sbr.rel (%p425) target = $region48
      $region47: #{densenet_forward.18} parent=35 // pred_region
        _
      $region48: #{densenet_forward.18} parent=35 // pred_fallthru
        _
    $region36: #{densenet_forward.18} parent=5 // pred_fallthru
      _
    %p428 = scmp.le.s32.totalorder 2, %s12
    // Predicated region
    $region49: #{densenet_forward.18} parent=5 // pred_check
      %p429 = pneg %p428
    $region50: #{densenet_forward.18} parent=5 // pred_check_branch
      %431 = sbr.rel (%p429) target = $region52
    $region51: #{densenet_forward.18} parent=5 // pred_region
      %s432 = ssub.s32 %s12, 2
      // Predicated region
      $region53: #{densenet_forward.18} parent=51 // pred_check
        %p433 = pneg %p147
      $region54: #{densenet_forward.18} parent=51 // pred_check_branch
        %435 = sbr.rel (%p433) target = $region56
      $region55: #{densenet_forward.18} parent=51 // pred_region
        %p436 = scmp.lt.s32.totalorder %s23, 1
        %s437 = scalar_select %p436, %s23, 1
        %s438 = smul.addr %s437, 8
        %s439 = smul.addr %s438, 8
        %s440 = scalar_lea.vmem %s5, %s439
      $region56: #{densenet_forward.18} parent=51 // pred_fallthru
        _
    $region52: #{densenet_forward.18} parent=5 // pred_fallthru
      _
  $region6: #{densenet_forward.18} parent=0 // loop_footer
    %s16 = sadd.s32 1, %s12
  $region7: #{densenet_forward.18} parent=0 // loop_footer_branch
    %11 = sbr.rel target = $region3
  $region8: #{densenet_forward.18} parent=0 // loop_exit
    _

// kernel: densenet_forward.19
$region0: #{densenet_forward.19}
  #allocation0 [shape = 'u32[]', space=smem, size = 0x4, offset = 0x4, fixed_abs, tag = 'smem constant byte address 0x4 - core index']
  #allocation1 [shape = 'u32[144,128]{1,0:T(1,128)}', space=vmem, size = 0x12000, scoped, tag = 'internal scratch']
  %s0 = inlined_call_operand.vmem [shape: f32[8,16,4], index: 0, kind: input, shape index: {}]
  %s1 = inlined_call_operand.vmem [shape: f32[1,4], index: 1, kind: input, shape index: {}]
  %s2 = inlined_call_operand.vmem [shape: f32[1,4], index: 2, kind: input, shape index: {}]
  %s3 = inlined_call_operand.vmem [shape: f32[16,4], index: 3, kind: output, shape index: {}]
  %s4 = sld [smem:[#allocation0]]
  $region22: #{densenet_forward.19} parent=0
    _
  %s6 = ssub.s32 1, %s4
  %s7 = scalar_select 0, %s6, %s4
  // Predicated region
  $region2: #{densenet_forward.19} parent=0 // pred_check
    _
  $region3: #{densenet_forward.19} parent=0 // pred_check_branch
    %9 = sbr.rel (0) target = $region5
  $region4: #{densenet_forward.19} parent=0 // pred_region
    _
  $region5: #{densenet_forward.19} parent=0 // pred_fallthru
    _
  // Predicated region
  $region6: #{densenet_forward.19} parent=0 // pred_check
    _
  $region7: #{densenet_forward.19} parent=0 // pred_check_branch
    %11 = sbr.rel (0) target = $region9
  $region8: #{densenet_forward.19} parent=0 // pred_region
    _
  $region9: #{densenet_forward.19} parent=0 // pred_fallthru
    _
  // Predicated region
  $region10: #{densenet_forward.19} parent=0 // pred_check
    _
  $region11: #{densenet_forward.19} parent=0 // pred_check_branch
    %13 = sbr.rel (0) target = $region13
  $region12: #{densenet_forward.19} parent=0 // pred_region
    _
  $region13: #{densenet_forward.19} parent=0 // pred_fallthru
    _
  %v14 = vld [vmem:[%s0] sm:$0xff]
  %v15 = vld [vmem:[%s0 + $0x8] sm:$0xff]
  %s16 = scalar_lea.vmem %s0, 16
  %v17 = vld [vmem:[%s16] sm:$0xff]
  %v18 = vld [vmem:[%s16 + $0x8] sm:$0xff]
  %v19 = vadd.f32 %v14, %v17
  %v20 = vadd.f32 %v15, %v18
  %s21 = scalar_lea.vmem %s0, 32
  %v22 = vld [vmem:[%s21] sm:$0xff]
  %v23 = vld [vmem:[%s21 + $0x8] sm:$0xff]
  %v24 = vadd.f32 %v19, %v22
  %v25 = vadd.f32 %v20, %v23
  %s26 = scalar_lea.vmem %s0, 48
  %v27 = vld [vmem:[%s26] sm:$0xff]
  %v28 = vld [vmem:[%s26 + $0x8] sm:$0xff]
  %v29 = vadd.f32 %v24, %v27
  %v30 = vadd.f32 %v25, %v28
  %s31 = scalar_lea.vmem %s0, 64
  %v32 = vld [vmem:[%s31] sm:$0xff]
  %v33 = vld [vmem:[%s31 + $0x8] sm:$0xff]
  %v34 = vadd.f32 %v29, %v32
  %v35 = vadd.f32 %v30, %v33
  %s36 = scalar_lea.vmem %s0, 80
  %v37 = vld [vmem:[%s36] sm:$0xff]
  %v38 = vld [vmem:[%s36 + $0x8] sm:$0xff]
  %v39 = vadd.f32 %v34, %v37
  %v40 = vadd.f32 %v35, %v38
  %s41 = scalar_lea.vmem %s0, 96
  %v42 = vld [vmem:[%s41] sm:$0xff]
  %v43 = vld [vmem:[%s41 + $0x8] sm:$0xff]
  %v44 = vadd.f32 %v39, %v42
  %v45 = vadd.f32 %v40, %v43
  %s46 = scalar_lea.vmem %s0, 112
  %v47 = vld [vmem:[%s46] sm:$0xff]
  %v48 = vld [vmem:[%s46 + $0x8] sm:$0xff]
  %v49 = vadd.f32 %v44, %v47
  %v50 = vadd.f32 %v45, %v48
  %v51 = vld [vmem:[%s1] sm:$0x1]
  %v53 = vlaneseq
  %v54 = vshrl.u32 %v53, 7
  %v55 = vsub.s32 0, %v54
  %v56 = vrot.slane %v51, %v55
  %v58 = vmul.f32 %v49, %v56
  %v59 = vmul.f32 %v50, %v56
  %v60 = vld [vmem:[%s2] sm:$0x1]
  %v62 = vlaneseq
  %v63 = vshrl.u32 %v62, 7
  %v64 = vsub.s32 0, %v63
  %v65 = vrot.slane %v60, %v64
  %v67 = vadd.f32 %v58, %v65
  %v68 = vadd.f32 %v59, %v65
  %vm69 = vcmask 31744
  %70 = vst.msk [vmem:[%s3] sm:$0xff] %vm69, %v67
  %71 = vst.msk [vmem:[%s3 + $0x8] sm:$0xff] %vm69, %v68
  // Predicated region
  $region14: #{densenet_forward.19} parent=0 // pred_check
    _
  $region15: #{densenet_forward.19} parent=0 // pred_check_branch
    %73 = sbr.rel (0) target = $region17
  $region16: #{densenet_forward.19} parent=0 // pred_region
    _
  $region17: #{densenet_forward.19} parent=0 // pred_fallthru
    _
  // Predicated region
  $region18: #{densenet_forward.19} parent=0 // pred_check
    _
  $region19: #{densenet_forward.19} parent=0 // pred_check_branch
    %75 = sbr.rel (0) target = $region21
  $region20: #{densenet_forward.19} parent=0 // pred_region
    _
  $region21: #{densenet_forward.19} parent=0 // pred_fallthru
    _

// kernel: densenet_forward.16
$region0: #{densenet_forward.16}
  #allocation0 [shape = 'u32[]', space=smem, size = 0x4, offset = 0x4, fixed_abs, tag = 'smem constant byte address 0x4 - core index']
  #allocation1 [shape = 'u32[144,128]{1,0:T(1,128)}', space=vmem, size = 0x12000, scoped, tag = 'internal scratch']
  #allocation2 [shape = 'f32[64,128]{1,0:T(8,128)}', space=vmem, size = 0x8000, scoped, tag = 'scratch operand']
  #allocation3 [shape = 's32[1]{0}', space=sflag, size = 0x4, scoped, tag = 'scoped memory for densenet_forward.16']
  #allocation4 [shape = 's32[1]{0:T(128)S(6)}', space=smem, size = 0x200, scoped, tag = 'prefetched SMEM operand 0']
  %s0 = inlined_call_operand.<no memory space> [shape: s32[1], index: 0, kind: input, shape index: {}]
  %s1 = inlined_call_operand.vmem [shape: f32[2,64,24], index: 1, kind: input, shape index: {}]
  %s2 = inlined_call_operand.vmem [shape: bf16[1,24,128], index: 2, kind: input, shape index: {}]
  %s3 = inlined_call_operand.vmem [shape: f32[1,128], index: 3, kind: input, shape index: {}]
  %s4 = inlined_call_operand.vmem [shape: f32[1,128], index: 4, kind: input, shape index: {}]
  %s5 = inlined_call_operand.vmem [shape: f32[2,64,128], index: 5, kind: output, shape index: {}]
  %s6 = sld [smem:[#allocation0]]
  $region57: #{densenet_forward.16} parent=0
    _
  %s8 = ssub.s32 1, %s6
  %s9 = scalar_select 0, %s8, %s6
  %10 = sst [smem:[#allocation4]] %s0
  loop: start=0, step=1, limit=4
  $region2: #{densenet_forward.16} parent=0 // loop_pre_header
    _
  $region3: #{densenet_forward.16} parent=0 // loop_header
    %s12 = sphi 0, %s16
    %p13 = scmp.ge.s32.totalorder %s12, 4
    %s19 = sphi 0, %s31
    %s20 = sphi 0, %s27
    %s21 = sphi 0, %s19
    %s22 = sphi 0, %s20
    %s23 = sphi 0, %s21
    %s24 = sphi 0, %s22
    %s34 = sphi 0, %s36
    %s37 = sphi 0, %s34
    %s38 = sphi 0, %s37
    %s54 = sphi 0, %s38
    %s60 = sphi 0, %s62
    %s63 = sphi 0, %s60
    %s64 = sphi 0, %s63
    %s80 = sphi 0, %s64
    %s84 = sphi 0, %s84
    %s86 = sphi 0, %s84
    %s87 = sphi 0, %s86
    %s101 = sphi 0, %s87
    %s105 = sphi 0, %s105
    %s107 = sphi 0, %s105
    %s108 = sphi 0, %s107
    %s122 = sphi 0, %s108
    %s128 = sphi 0, %s130
    %s131 = sphi 0, %s128
    %s132 = sphi 0, %s131
    %s148 = sphi 0, %s132
  $region4: #{densenet_forward.16} parent=0 // loop_header_branch
    %15 = sbr.rel (%p13) target = $region8
  $region5: #{densenet_forward.16} parent=0 // loop_body
    %s17 = ssub.s32 %s12, 1
    %s18 = ssub.s32 %s12, 2
    %s25 = sadd.s32 1, %s20
    %p26 = scmp.ge.s32.totalorder %s25, 1
    %s27 = scalar_select %p26, 0, %s25
    %s28 = sadd.s32 1, %s19
    %s29 = scalar_select %p26, %s28, %s19
    %p30 = scmp.ge.s32.totalorder %s29, 2
    %s31 = scalar_select %p30, 0, %s29
    %s32 = ssub.s32 %s19, %s31
    %p33 = scmp.eq.s32.totalorder %s32, 0
    %s35 = sadd.s32 %s34, 1
    %s36 = scalar_select %p33, %s34, %s35
    %p39 = pneg %p33
    %p40 = scmp.eq.s32.totalorder %s12, 1
    %p41 = por %p39, %p40
    %p42 = scmp.ne.s32.totalorder %s34, %s37
    %p43 = scmp.eq.s32.totalorder %s12, 0
    %p44 = por %p42, %p43
    %p45 = scmp.ne.s32.totalorder %s34, %s37
    %p46 = scmp.eq.s32.totalorder %s17, 1
    %p47 = por %p45, %p46
    %p48 = scmp.ne.s32.totalorder %s37, %s38
    %p49 = scmp.eq.s32.totalorder %s17, 0
    %p50 = por %p48, %p49
    %p51 = scmp.ne.s32.totalorder %s37, %s38
    %p52 = scmp.eq.s32.totalorder %s18, 1
    %p53 = por %p51, %p52
    %p55 = scmp.ne.s32.totalorder %s38, %s54
    %p56 = scmp.eq.s32.totalorder %s18, 0
    %p57 = por %p55, %p56
    %s58 = ssub.s32 %s20, %s27
    %p59 = scmp.eq.s32.totalorder %s58, 0
    %s61 = sadd.s32 %s60, 1
    %s62 = scalar_select %p59, %s60, %s61
    %p65 = pneg %p59
    %p66 = scmp.eq.s32.totalorder %s12, 1
    %p67 = por %p65, %p66
    %p68 = scmp.ne.s32.totalorder %s60, %s63
    %p69 = scmp.eq.s32.totalorder %s12, 0
    %p70 = por %p68, %p69
    %p71 = scmp.ne.s32.totalorder %s60, %s63
    %p72 = scmp.eq.s32.totalorder %s17, 1
    %p73 = por %p71, %p72
    %p74 = scmp.ne.s32.totalorder %s63, %s64
    %p75 = scmp.eq.s32.totalorder %s17, 0
    %p76 = por %p74, %p75
    %p77 = scmp.ne.s32.totalorder %s63, %s64
    %p78 = scmp.eq.s32.totalorder %s18, 1
    %p79 = por %p77, %p78
    %p81 = scmp.ne.s32.totalorder %s64, %s80
    %p82 = scmp.eq.s32.totalorder %s18, 0
    %p83 = por %p81, %p82
    %s85 = sadd.s32 %s84, 1
    %p88 = scmp.eq.s32.totalorder %s12, 1
    %p89 = scmp.ne.s32.totalorder %s84, %s86
    %p90 = scmp.eq.s32.totalorder %s12, 0
    %p91 = por %p89, %p90
    %p92 = scmp.ne.s32.totalorder %s84, %s86
    %p93 = scmp.eq.s32.totalorder %s17, 1
    %p94 = por %p92, %p93
    %p95 = scmp.ne.s32.totalorder %s86, %s87
    %p96 = scmp.eq.s32.totalorder %s17, 0
    %p97 = por %p95, %p96
    %p98 = scmp.ne.s32.totalorder %s86, %s87
    %p99 = scmp.eq.s32.totalorder %s18, 1
    %p100 = por %p98, %p99
    %p102 = scmp.ne.s32.totalorder %s87, %s101
    %p103 = scmp.eq.s32.totalorder %s18, 0
    %p104 = por %p102, %p103
    %s106 = sadd.s32 %s105, 1
    %p109 = scmp.eq.s32.totalorder %s12, 1
    %p110 = scmp.ne.s32.totalorder %s105, %s107
    %p111 = scmp.eq.s32.totalorder %s12, 0
    %p112 = por %p110, %p111
    %p113 = scmp.ne.s32.totalorder %s105, %s107
    %p114 = scmp.eq.s32.totalorder %s17, 1
    %p115 = por %p113, %p114
    %p116 = scmp.ne.s32.totalorder %s107, %s108
    %p117 = scmp.eq.s32.totalorder %s17, 0
    %p118 = por %p116, %p117
    %p119 = scmp.ne.s32.totalorder %s107, %s108
    %p120 = scmp.eq.s32.totalorder %s18, 1
    %p121 = por %p119, %p120
    %p123 = scmp.ne.s32.totalorder %s108, %s122
    %p124 = scmp.eq.s32.totalorder %s18, 0
    %p125 = por %p123, %p124
    %s126 = ssub.s32 %s19, %s31
    %p127 = scmp.eq.s32.totalorder %s126, 0
    %s129 = sadd.s32 %s128, 1
    %s130 = scalar_select %p127, %s128, %s129
    %p133 = pneg %p127
    %p134 = scmp.eq.s32.totalorder %s12, 1
    %p135 = por %p133, %p134
    %p136 = scmp.ne.s32.totalorder %s128, %s131
    %p137 = scmp.eq.s32.totalorder %s12, 0
    %p138 = por %p136, %p137
    %p139 = scmp.ne.s32.totalorder %s128, %s131
    %p140 = scmp.eq.s32.totalorder %s17, 1
    %p141 = por %p139, %p140
    %p142 = scmp.ne.s32.totalorder %s131, %s132
    %p143 = scmp.eq.s32.totalorder %s17, 0
    %p144 = por %p142, %p143
    %p145 = scmp.ne.s32.totalorder %s131, %s132
    %p146 = scmp.eq.s32.totalorder %s18, 1
    %p147 = por %p145, %p146
    %p149 = scmp.ne.s32.totalorder %s132, %s148
    %p150 = scmp.eq.s32.totalorder %s18, 0
    %p151 = por %p149, %p150
    %p152 = scmp.le.s32.totalorder 1, %s12
    %p153 = scmp.lt.s32.totalorder %s12, 3
    %p154 = pnand %p152, %p153
    %p155 = pneg %p154
    // Predicated region
    $region9: #{densenet_forward.16} parent=5 // pred_check
      _
    $region10: #{densenet_forward.16} parent=5 // pred_check_branch
      %157 = sbr.rel (%p154) target = $region12
    $region11: #{densenet_forward.16} parent=5 // pred_region
      %s158 = ssub.s32 %s12, 1
      // Predicated region
      $region13: #{densenet_forward.16} parent=11 // pred_check
        %p159 = pneg %p76
      $region14: #{densenet_forward.16} parent=11 // pred_check_branch
        %161 = sbr.rel (%p159) target = $region16
      $region15: #{densenet_forward.16} parent=11 // pred_region
        %p162 = scmp.lt.s32.totalorder %s22, 0
        %s163 = scalar_select %p162, %s22, 0
        %s164 = smul.addr %s163, 3
        %s165 = smul.addr %s164, 4
        %s166 = scalar_lea.vmem %s2, %s165
      $region16: #{densenet_forward.16} parent=11 // pred_fallthru
        _
      // Predicated region
      $region17: #{densenet_forward.16} parent=11 // pred_check
        %p167 = pneg %p97
      $region18: #{densenet_forward.16} parent=11 // pred_check_branch
        %169 = sbr.rel (%p167) target = $region20
      $region19: #{densenet_forward.16} parent=11 // pred_region
        _
      $region20: #{densenet_forward.16} parent=11 // pred_fallthru
        _
      // Predicated region
      $region21: #{densenet_forward.16} parent=11 // pred_check
        %p170 = pneg %p118
      $region22: #{densenet_forward.16} parent=11 // pred_check_branch
        %172 = sbr.rel (%p170) target = $region24
      $region23: #{densenet_forward.16} parent=11 // pred_region
        _
      $region24: #{densenet_forward.16} parent=11 // pred_fallthru
        _
    $region12: #{densenet_forward.16} parent=5 // pred_fallthru
      _
    %p173 = scmp.lt.s32.totalorder %s12, 2
    // Predicated region
    $region25: #{densenet_forward.16} parent=5 // pred_check
      %p174 = pneg %p173
    $region26: #{densenet_forward.16} parent=5 // pred_check_branch
      %176 = sbr.rel (%p174) target = $region28
    $region27: #{densenet_forward.16} parent=5 // pred_region
      // Predicated region
      $region29: #{densenet_forward.16} parent=27 // pred_check
        %p177 = pneg %p44
      $region30: #{densenet_forward.16} parent=27 // pred_check_branch
        %179 = sbr.rel (%p177) target = $region32
      $region31: #{densenet_forward.16} parent=27 // pred_region
        %p180 = scmp.lt.s32.totalorder %s19, 1
        %s181 = scalar_select %p180, %s19, 1
        %s182 = smul.addr %s181, 8
        %s183 = smul.addr %s182, 8
        %s184 = scalar_lea.vmem %s1, %s183
      $region32: #{densenet_forward.16} parent=27 // pred_fallthru
        _
    $region28: #{densenet_forward.16} parent=5 // pred_fallthru
      _
    %p185 = scmp.le.s32.totalorder 1, %s12
    %p186 = scmp.lt.s32.totalorder %s12, 3
    %p187 = pnand %p185, %p186
    %p188 = pneg %p187
    // Predicated region
    $region33: #{densenet_forward.16} parent=5 // pred_check
      _
    $region34: #{densenet_forward.16} parent=5 // pred_check_branch
      %190 = sbr.rel (%p187) target = $region36
    $region35: #{densenet_forward.16} parent=5 // pred_region
      %s191 = ssub.s32 %s12, 1
      %p192 = scmp.lt.s32.totalorder %s21, 1
      %s193 = scalar_select %p192, %s21, 1
      %s194 = smul.addr %s193, 8
      %s195 = smul.addr %s194, 8
      %s196 = scalar_lea.vmem %s1, %s195
      %p197 = pneg %p50
      %p198 = pneg %p47
      %p199 = scmp.lt.s32.totalorder %s22, 0
      %s200 = scalar_select %p199, %s22, 0
      %s201 = smul.addr %s200, 3
      %s202 = smul.addr %s201, 4
      %s203 = scalar_lea.vmem %s2, %s202
      %p204 = pneg %p76
      %p205 = pneg %p73
      %p206 = pneg %p97
      %p207 = pneg %p94
      %p208 = pneg %p118
      %p209 = pneg %p115
      %p210 = pneg %p144
      %p211 = pneg %p141
      %p212 = scmp.lt.s32.totalorder %s21, 1
      %s213 = scalar_select %p212, %s21, 1
      %s214 = smul.addr %s213, 8
      %s215 = smul.addr %s214, 8
      %s216 = scalar_lea.vmem %s5, %s215
      %p217 = scmp.lt.s32.totalorder %s21, 1
      %s218 = scalar_select %p217, %s21, 1
      %s219 = smul.addr %s218, 8
      %s220 = smul.addr %s219, 8
      %s221 = scalar_lea.vmem %s1, %s220
      %p222 = scmp.lt.s32.totalorder %s22, 0
      %s223 = scalar_select %p222, %s22, 0
      %s224 = smul.addr %s223, 3
      %s225 = smul.addr %s224, 4
      %s226 = scalar_lea.vmem %s2, %s225
      %p227 = scmp.lt.s32.totalorder %s21, 1
      %s228 = scalar_select %p227, %s21, 1
      %s229 = smul.addr %s228, 8
      %s230 = smul.addr %s229, 8
      %s231 = scalar_lea.vmem %s5, %s230
      %p233 = scmp.eq.s32.totalorder %s22, 0
      // Predicated region
      $region37: #{densenet_forward.16} parent=35 // pred_check
        %p234 = pneg %p233
      $region38: #{densenet_forward.16} parent=35 // pred_check_branch
        %236 = sbr.rel (%p234) target = $region40
      $region39: #{densenet_forward.16} parent=35 // pred_region
        %237 = vst [vmem:[#allocation2] sm:$0xff] 0.0
        %238 = vst [vmem:[#allocation2 + $0x8] sm:$0xff] 0.0
        %239 = vst [vmem:[#allocation2 + $0x10] sm:$0xff] 0.0
        %240 = vst [vmem:[#allocation2 + $0x18] sm:$0xff] 0.0
        %241 = vst [vmem:[#allocation2 + $0x20] sm:$0xff] 0.0
        %242 = vst [vmem:[#allocation2 + $0x28] sm:$0xff] 0.0
        %243 = vst [vmem:[#allocation2 + $0x30] sm:$0xff] 0.0
        %244 = vst [vmem:[#allocation2 + $0x38] sm:$0xff] 0.0
      $region40: #{densenet_forward.16} parent=35 // pred_fallthru
        _
      %s245 = sld [smem:[#allocation4 + %s22]]
      %s246 = scalar_lea.vmem %s221, %s245
      %v247 = vld [vmem:[%s246] sm:$0xff]
      %v248 = vld [vmem:[%s246 + $0x8] sm:$0xff]
      %v249 = vld [vmem:[%s246 + $0x10] sm:$0xff]
      %v250 = vld [vmem:[%s246 + $0x18] sm:$0xff]
      %v251 = vld [vmem:[%s246 + $0x20] sm:$0xff]
      %v252 = vld [vmem:[%s246 + $0x28] sm:$0xff]
      %v253 = vld [vmem:[%s246 + $0x30] sm:$0xff]
      %v254 = vld [vmem:[%s246 + $0x38] sm:$0xff]
      %v255 = vld [vmem:[#allocation2] sm:$0xff]
      %v256 = vld [vmem:[#allocation2 + $0x8] sm:$0xff]
      %v257 = vld [vmem:[#allocation2 + $0x10] sm:$0xff]
      %v258 = vld [vmem:[#allocation2 + $0x18] sm:$0xff]
      %v259 = vld [vmem:[#allocation2 + $0x20] sm:$0xff]
      %v260 = vld [vmem:[#allocation2 + $0x28] sm:$0xff]
      %v261 = vld [vmem:[#allocation2 + $0x30] sm:$0xff]
      %v262 = vld [vmem:[#allocation2 + $0x38] sm:$0xff]
      %v263 = vpack.c.bf16 %v248, %v247
      %v264 = vpack.c.bf16 %v250, %v249
      %v265 = vpack.c.bf16 %v252, %v251
      %v266 = vpack.c.bf16 %v254, %v253
      %v267 = vld [vmem:[%s226] sm:$0xf]
      %v268 = vld [vmem:[%s226 + $0x4] sm:$0xf]
      %v269 = vld [vmem:[%s226 + $0x8] sm:$0xf]
      %v273 = vunpack.c.l.b16 %v267
      %v274 = vunpack.c.l.b16 %v268
      %v275 = vunpack.c.l.b16 %v269
      %v276 = vpack.c.b16 %v274, %v273
      %v277 = vpack.c.b16 %v275, %v275
      %vm279 = vcmask 195584
      %v281 = vsel %vm279, %v263, 0
      %v284 = vsel %vm279, %v264, 0
      %v287 = vsel %vm279, %v265, 0
      %v290 = vsel %vm279, %v266, 0
      %vm292 = vcmask 1043456
      %v294 = vsel %vm292, %v277, 0
      %296 = vmatprep.subr.bf16.mxu0 0
      %297 = vmatpush1.bf16.msra.mxu0 %v276
      %298 = vmatprep.subr.bf16.mxu0 0
      %299 = vmatpush1.bf16.msra.mxu0 %v294
      %300 = vmatprep.subr.bf16.mxu0 0
      %301 = vmatpush1.bf16.msra.mxu0 0
      %302 = vmatprep.subr.bf16.mxu0 0
      %303 = vmatpush1.bf16.msra.mxu0 0
      %304 = vmatprep.subr.bf16.mxu0 0
      %305 = vmatpush1.bf16.msra.mxu0 0
      %306 = vmatprep.subr.bf16.mxu0 0
      %307 = vmatpush1.bf16.msra.mxu0 0
      %308 = vmatprep.subr.bf16.mxu0 0
      %309 = vmatpush1.bf16.msra.mxu0 0
      %310 = vmatprep.subr.bf16.mxu0 0
      %311 = vmatpush1.bf16.msra.mxu0 0
      %312 = vmatprep.subr.bf16.mxu0 0
      %313 = vmatpush1.bf16.msra.mxu0 0
      %314 = vmatprep.subr.bf16.mxu0 0
      %315 = vmatpush1.bf16.msra.mxu0 0
      %316 = vmatprep.subr.bf16.mxu0 0
      %317 = vmatpush1.bf16.msra.mxu0 0
      %318 = vmatprep.subr.bf16.mxu0 0
      %319 = vmatpush1.bf16.msra.mxu0 0
      %320 = vmatprep.subr.bf16.mxu0 0
      %321 = vmatpush1.bf16.msra.mxu0 0
      %322 = vmatprep.subr.bf16.mxu0 0
      %323 = vmatpush1.bf16.msra.mxu0 0
      %324 = vmatprep.subr.bf16.mxu0 0
      %325 = vmatpush1.bf16.msra.mxu0 0
      %326 = vmatprep.subr.bf16.mxu0 0
      %327 = vmatpush1.bf16.msra.mxu0 0
      %328 = vmatprep.mubr.bf16.mxu0 0
      %329 = vmatmul.mubr.bf16.gmra.mrb[0].mxu0 %v281
      %v330 = vpop.f32.mrb[0].mxu0
      %v331 = vadd.f32 0.0, %v330
      %v332 = vpop.f32.mrb[0].mxu0
      %v333 = vpop.f32.mrb[0].mxu0
      %v334 = vadd.f32 0.0, %v333
      %v335 = vpop.f32.mrb[0].mxu0
      %336 = vmatprep.mubr.bf16.mxu0 0
      %337 = vmatmul.mubr.bf16.gmra.mrb[0].mxu0 %v284
      %v338 = vpop.f32.mrb[0].mxu0
      %v339 = vadd.f32 0.0, %v338
      %v340 = vpop.f32.mrb[0].mxu0
      %v341 = vpop.f32.mrb[0].mxu0
      %v342 = vadd.f32 0.0, %v341
      %v343 = vpop.f32.mrb[0].mxu0
      %344 = vmatprep.mubr.bf16.mxu0 0
      %345 = vmatmul.mubr.bf16.gmra.mrb[0].mxu0 %v287
      %v346 = vpop.f32.mrb[0].mxu0
      %v347 = vadd.f32 0.0, %v346
      %v348 = vpop.f32.mrb[0].mxu0
      %v349 = vpop.f32.mrb[0].mxu0
      %v350 = vadd.f32 0.0, %v349
      %v351 = vpop.f32.mrb[0].mxu0
      %352 = vmatprep.mubr.bf16.mxu0 0
      %353 = vmatmul.mubr.bf16.gmra.mrb[0].mxu0 %v290
      %v354 = vpop.f32.mrb[0].mxu0
      %v355 = vadd.f32 0.0, %v354
      %v356 = vpop.f32.mrb[0].mxu0
      %v357 = vpop.f32.mrb[0].mxu0
      %v358 = vadd.f32 0.0, %v357
      %v359 = vpop.f32.mrb[0].mxu0
      %360 = vdwg.mxu0
      %v361 = vadd.f32 %v255, %v331
      %v362 = vadd.f32 %v256, %v334
      %v363 = vadd.f32 %v257, %v339
      %v364 = vadd.f32 %v258, %v342
      %v365 = vadd.f32 %v259, %v347
      %v366 = vadd.f32 %v260, %v350
      %v367 = vadd.f32 %v261, %v355
      %v368 = vadd.f32 %v262, %v358
      %369 = vst [vmem:[#allocation2] sm:$0xff] %v361
      %370 = vst [vmem:[#allocation2 + $0x8] sm:$0xff] %v362
      %371 = vst [vmem:[#allocation2 + $0x10] sm:$0xff] %v363
      %372 = vst [vmem:[#allocation2 + $0x18] sm:$0xff] %v364
      %373 = vst [vmem:[#allocation2 + $0x20] sm:$0xff] %v365
      %374 = vst [vmem:[#allocation2 + $0x28] sm:$0xff] %v366
      %375 = vst [vmem:[#allocation2 + $0x30] sm:$0xff] %v367
      %376 = vst [vmem:[#allocation2 + $0x38] sm:$0xff] %v368
      // Predicated region
      $region41: #{densenet_forward.16} parent=35 // pred_check
        %p377 = pneg %p233
      $region42: #{densenet_forward.16} parent=35 // pred_check_branch
        %379 = sbr.rel (%p377) target = $region44
      $region43: #{densenet_forward.16} parent=35 // pred_region
        %v380 = vld [vmem:[#allocation2] sm:$0xff]
        %v381 = vld [vmem:[#allocation2 + $0x8] sm:$0xff]
        %v382 = vld [vmem:[#allocation2 + $0x10] sm:$0xff]
        %v383 = vld [vmem:[#allocation2 + $0x18] sm:$0xff]
        %v384 = vld [vmem:[#allocation2 + $0x20] sm:$0xff]
        %v385 = vld [vmem:[#allocation2 + $0x28] sm:$0xff]
        %v386 = vld [vmem:[#allocation2 + $0x30] sm:$0xff]
        %v387 = vld [vmem:[#allocation2 + $0x38] sm:$0xff]
        %v388 = vld [vmem:[%s3] sm:$0x1]
        %v390 = vlaneseq
        %v391 = vshrl.u32 %v390, 7
        %v392 = vsub.s32 0, %v391
        %v393 = vrot.slane %v388, %v392
        %v395 = vmul.f32 %v380, %v393
        %v396 = vmul.f32 %v381, %v393
        %v397 = vmul.f32 %v382, %v393
        %v398 = vmul.f32 %v383, %v393
        %v399 = vmul.f32 %v384, %v393
        %v400 = vmul.f32 %v385, %v393
        %v401 = vmul.f32 %v386, %v393
        %v402 = vmul.f32 %v387, %v393
        %v403 = vld [vmem:[%s4] sm:$0x1]
        %v405 = vlaneseq
        %v406 = vshrl.u32 %v405, 7
        %v407 = vsub.s32 0, %v406
        %v408 = vrot.slane %v403, %v407
        %v410 = vadd.f32 %v395, %v408
        %v411 = vadd.f32 %v396, %v408
        %v412 = vadd.f32 %v397, %v408
        %v413 = vadd.f32 %v398, %v408
        %v414 = vadd.f32 %v399, %v408
        %v415 = vadd.f32 %v400, %v408
        %v416 = vadd.f32 %v401, %v408
        %v417 = vadd.f32 %v402, %v408
        %v418 = vmax.f32 %v410, 0.0
        %v419 = vmax.f32 %v411, 0.0
        %v420 = vmax.f32 %v412, 0.0
        %v421 = vmax.f32 %v413, 0.0
        %v422 = vmax.f32 %v414, 0.0
        %v423 = vmax.f32 %v415, 0.0
        %v424 = vmax.f32 %v416, 0.0
        %v425 = vmax.f32 %v417, 0.0
        %426 = vst [vmem:[%s231] sm:$0xff] %v418
        %427 = vst [vmem:[%s231 + $0x8] sm:$0xff] %v419
        %428 = vst [vmem:[%s231 + $0x10] sm:$0xff] %v420
        %429 = vst [vmem:[%s231 + $0x18] sm:$0xff] %v421
        %430 = vst [vmem:[%s231 + $0x20] sm:$0xff] %v422
        %431 = vst [vmem:[%s231 + $0x28] sm:$0xff] %v423
        %432 = vst [vmem:[%s231 + $0x30] sm:$0xff] %v424
        %433 = vst [vmem:[%s231 + $0x38] sm:$0xff] %v425
      $region44: #{densenet_forward.16} parent=35 // pred_fallthru
        _
      %p434 = scmp.lt.s32.totalorder %s21, 1
      %s435 = scalar_select %p434, %s21, 1
      %s436 = smul.addr %s435, 8
      %s437 = smul.addr %s436, 8
      %s438 = scalar_lea.vmem %s5, %s437
      // Predicated region
      $region45: #{densenet_forward.16} parent=35 // pred_check
        %p439 = pneg %p141
      $region46: #{densenet_forward.16} parent=35 // pred_check_branch
        %441 = sbr.rel (%p439) target = $region48
      $region47: #{densenet_forward.16} parent=35 // pred_region
        _
      $region48: #{densenet_forward.16} parent=35 // pred_fallthru
        _
    $region36: #{densenet_forward.16} parent=5 // pred_fallthru
      _
    %p442 = scmp.le.s32.totalorder 2, %s12
    // Predicated region
    $region49: #{densenet_forward.16} parent=5 // pred_check
      %p443 = pneg %p442
    $region50: #{densenet_forward.16} parent=5 // pred_check_branch
      %445 = sbr.rel (%p443) target = $region52
    $region51: #{densenet_forward.16} parent=5 // pred_region
      %s446 = ssub.s32 %s12, 2
      // Predicated region
      $region53: #{densenet_forward.16} parent=51 // pred_check
        %p447 = pneg %p147
      $region54: #{densenet_forward.16} parent=51 // pred_check_branch
        %449 = sbr.rel (%p447) target = $region56
      $region55: #{densenet_forward.16} parent=51 // pred_region
        %p450 = scmp.lt.s32.totalorder %s23, 1
        %s451 = scalar_select %p450, %s23, 1
        %s452 = smul.addr %s451, 8
        %s453 = smul.addr %s452, 8
        %s454 = scalar_lea.vmem %s5, %s453
      $region56: #{densenet_forward.16} parent=51 // pred_fallthru
        _
    $region52: #{densenet_forward.16} parent=5 // pred_fallthru
      _
  $region6: #{densenet_forward.16} parent=0 // loop_footer
    %s16 = sadd.s32 1, %s12
  $region7: #{densenet_forward.16} parent=0 // loop_footer_branch
    %11 = sbr.rel target = $region3
  $region8: #{densenet_forward.16} parent=0 // loop_exit
    _

// kernel: densenet_forward.20
$region0: #{densenet_forward.20}
  #allocation0 [shape = 'u32[]', space=smem, size = 0x4, offset = 0x4, fixed_abs, tag = 'smem constant byte address 0x4 - core index']
  #allocation1 [shape = 'u32[144,128]{1,0:T(1,128)}', space=vmem, size = 0x12000, scoped, tag = 'internal scratch']
  #allocation2 [shape = 'f32[8,128]{1,0:T(8,128)}', space=vmem, size = 0x1000, scoped, tag = 'scratch operand']
  #allocation3 [shape = 's32[1]{0}', space=sflag, size = 0x4, scoped, tag = 'scoped memory for densenet_forward.20']
  #allocation4 [shape = 's32[1]{0:T(128)S(6)}', space=smem, size = 0x200, scoped, tag = 'prefetched SMEM operand 0']
  %s0 = inlined_call_operand.<no memory space> [shape: s32[1], index: 0, kind: input, shape index: {}]
  %s1 = inlined_call_operand.vmem [shape: f32[2,8,4], index: 1, kind: input, shape index: {}]
  %s2 = inlined_call_operand.vmem [shape: bf16[1,4,128], index: 2, kind: input, shape index: {}]
  %s3 = inlined_call_operand.vmem [shape: f32[1,128], index: 3, kind: input, shape index: {}]
  %s4 = inlined_call_operand.vmem [shape: f32[1,128], index: 4, kind: input, shape index: {}]
  %s5 = inlined_call_operand.vmem [shape: f32[2,8,128], index: 5, kind: output, shape index: {}]
  %s6 = sld [smem:[#allocation0]]
  $region57: #{densenet_forward.20} parent=0
    _
  %s8 = ssub.s32 1, %s6
  %s9 = scalar_select 0, %s8, %s6
  %10 = sst [smem:[#allocation4]] %s0
  loop: start=0, step=1, limit=4
  $region2: #{densenet_forward.20} parent=0 // loop_pre_header
    _
  $region3: #{densenet_forward.20} parent=0 // loop_header
    %s12 = sphi 0, %s16
    %p13 = scmp.ge.s32.totalorder %s12, 4
    %s19 = sphi 0, %s31
    %s20 = sphi 0, %s27
    %s21 = sphi 0, %s19
    %s22 = sphi 0, %s20
    %s23 = sphi 0, %s21
    %s24 = sphi 0, %s22
    %s34 = sphi 0, %s36
    %s37 = sphi 0, %s34
    %s38 = sphi 0, %s37
    %s54 = sphi 0, %s38
    %s60 = sphi 0, %s62
    %s63 = sphi 0, %s60
    %s64 = sphi 0, %s63
    %s80 = sphi 0, %s64
    %s84 = sphi 0, %s84
    %s86 = sphi 0, %s84
    %s87 = sphi 0, %s86
    %s101 = sphi 0, %s87
    %s105 = sphi 0, %s105
    %s107 = sphi 0, %s105
    %s108 = sphi 0, %s107
    %s122 = sphi 0, %s108
    %s128 = sphi 0, %s130
    %s131 = sphi 0, %s128
    %s132 = sphi 0, %s131
    %s148 = sphi 0, %s132
  $region4: #{densenet_forward.20} parent=0 // loop_header_branch
    %15 = sbr.rel (%p13) target = $region8
  $region5: #{densenet_forward.20} parent=0 // loop_body
    %s17 = ssub.s32 %s12, 1
    %s18 = ssub.s32 %s12, 2
    %s25 = sadd.s32 1, %s20
    %p26 = scmp.ge.s32.totalorder %s25, 1
    %s27 = scalar_select %p26, 0, %s25
    %s28 = sadd.s32 1, %s19
    %s29 = scalar_select %p26, %s28, %s19
    %p30 = scmp.ge.s32.totalorder %s29, 2
    %s31 = scalar_select %p30, 0, %s29
    %s32 = ssub.s32 %s19, %s31
    %p33 = scmp.eq.s32.totalorder %s32, 0
    %s35 = sadd.s32 %s34, 1
    %s36 = scalar_select %p33, %s34, %s35
    %p39 = pneg %p33
    %p40 = scmp.eq.s32.totalorder %s12, 1
    %p41 = por %p39, %p40
    %p42 = scmp.ne.s32.totalorder %s34, %s37
    %p43 = scmp.eq.s32.totalorder %s12, 0
    %p44 = por %p42, %p43
    %p45 = scmp.ne.s32.totalorder %s34, %s37
    %p46 = scmp.eq.s32.totalorder %s17, 1
    %p47 = por %p45, %p46
    %p48 = scmp.ne.s32.totalorder %s37, %s38
    %p49 = scmp.eq.s32.totalorder %s17, 0
    %p50 = por %p48, %p49
    %p51 = scmp.ne.s32.totalorder %s37, %s38
    %p52 = scmp.eq.s32.totalorder %s18, 1
    %p53 = por %p51, %p52
    %p55 = scmp.ne.s32.totalorder %s38, %s54
    %p56 = scmp.eq.s32.totalorder %s18, 0
    %p57 = por %p55, %p56
    %s58 = ssub.s32 %s20, %s27
    %p59 = scmp.eq.s32.totalorder %s58, 0
    %s61 = sadd.s32 %s60, 1
    %s62 = scalar_select %p59, %s60, %s61
    %p65 = pneg %p59
    %p66 = scmp.eq.s32.totalorder %s12, 1
    %p67 = por %p65, %p66
    %p68 = scmp.ne.s32.totalorder %s60, %s63
    %p69 = scmp.eq.s32.totalorder %s12, 0
    %p70 = por %p68, %p69
    %p71 = scmp.ne.s32.totalorder %s60, %s63
    %p72 = scmp.eq.s32.totalorder %s17, 1
    %p73 = por %p71, %p72
    %p74 = scmp.ne.s32.totalorder %s63, %s64
    %p75 = scmp.eq.s32.totalorder %s17, 0
    %p76 = por %p74, %p75
    %p77 = scmp.ne.s32.totalorder %s63, %s64
    %p78 = scmp.eq.s32.totalorder %s18, 1
    %p79 = por %p77, %p78
    %p81 = scmp.ne.s32.totalorder %s64, %s80
    %p82 = scmp.eq.s32.totalorder %s18, 0
    %p83 = por %p81, %p82
    %s85 = sadd.s32 %s84, 1
    %p88 = scmp.eq.s32.totalorder %s12, 1
    %p89 = scmp.ne.s32.totalorder %s84, %s86
    %p90 = scmp.eq.s32.totalorder %s12, 0
    %p91 = por %p89, %p90
    %p92 = scmp.ne.s32.totalorder %s84, %s86
    %p93 = scmp.eq.s32.totalorder %s17, 1
    %p94 = por %p92, %p93
    %p95 = scmp.ne.s32.totalorder %s86, %s87
    %p96 = scmp.eq.s32.totalorder %s17, 0
    %p97 = por %p95, %p96
    %p98 = scmp.ne.s32.totalorder %s86, %s87
    %p99 = scmp.eq.s32.totalorder %s18, 1
    %p100 = por %p98, %p99
    %p102 = scmp.ne.s32.totalorder %s87, %s101
    %p103 = scmp.eq.s32.totalorder %s18, 0
    %p104 = por %p102, %p103
    %s106 = sadd.s32 %s105, 1
    %p109 = scmp.eq.s32.totalorder %s12, 1
    %p110 = scmp.ne.s32.totalorder %s105, %s107
    %p111 = scmp.eq.s32.totalorder %s12, 0
    %p112 = por %p110, %p111
    %p113 = scmp.ne.s32.totalorder %s105, %s107
    %p114 = scmp.eq.s32.totalorder %s17, 1
    %p115 = por %p113, %p114
    %p116 = scmp.ne.s32.totalorder %s107, %s108
    %p117 = scmp.eq.s32.totalorder %s17, 0
    %p118 = por %p116, %p117
    %p119 = scmp.ne.s32.totalorder %s107, %s108
    %p120 = scmp.eq.s32.totalorder %s18, 1
    %p121 = por %p119, %p120
    %p123 = scmp.ne.s32.totalorder %s108, %s122
    %p124 = scmp.eq.s32.totalorder %s18, 0
    %p125 = por %p123, %p124
    %s126 = ssub.s32 %s19, %s31
    %p127 = scmp.eq.s32.totalorder %s126, 0
    %s129 = sadd.s32 %s128, 1
    %s130 = scalar_select %p127, %s128, %s129
    %p133 = pneg %p127
    %p134 = scmp.eq.s32.totalorder %s12, 1
    %p135 = por %p133, %p134
    %p136 = scmp.ne.s32.totalorder %s128, %s131
    %p137 = scmp.eq.s32.totalorder %s12, 0
    %p138 = por %p136, %p137
    %p139 = scmp.ne.s32.totalorder %s128, %s131
    %p140 = scmp.eq.s32.totalorder %s17, 1
    %p141 = por %p139, %p140
    %p142 = scmp.ne.s32.totalorder %s131, %s132
    %p143 = scmp.eq.s32.totalorder %s17, 0
    %p144 = por %p142, %p143
    %p145 = scmp.ne.s32.totalorder %s131, %s132
    %p146 = scmp.eq.s32.totalorder %s18, 1
    %p147 = por %p145, %p146
    %p149 = scmp.ne.s32.totalorder %s132, %s148
    %p150 = scmp.eq.s32.totalorder %s18, 0
    %p151 = por %p149, %p150
    %p152 = scmp.le.s32.totalorder 1, %s12
    %p153 = scmp.lt.s32.totalorder %s12, 3
    %p154 = pnand %p152, %p153
    %p155 = pneg %p154
    // Predicated region
    $region9: #{densenet_forward.20} parent=5 // pred_check
      _
    $region10: #{densenet_forward.20} parent=5 // pred_check_branch
      %157 = sbr.rel (%p154) target = $region12
    $region11: #{densenet_forward.20} parent=5 // pred_region
      %s158 = ssub.s32 %s12, 1
      // Predicated region
      $region13: #{densenet_forward.20} parent=11 // pred_check
        %p159 = pneg %p76
      $region14: #{densenet_forward.20} parent=11 // pred_check_branch
        %161 = sbr.rel (%p159) target = $region16
      $region15: #{densenet_forward.20} parent=11 // pred_region
        %p162 = scmp.lt.s32.totalorder %s22, 0
        %s163 = scalar_select %p162, %s22, 0
        %s164 = smul.addr %s163, 2
        %s165 = scalar_lea.vmem %s2, %s164
      $region16: #{densenet_forward.20} parent=11 // pred_fallthru
        _
      // Predicated region
      $region17: #{densenet_forward.20} parent=11 // pred_check
        %p166 = pneg %p97
      $region18: #{densenet_forward.20} parent=11 // pred_check_branch
        %168 = sbr.rel (%p166) target = $region20
      $region19: #{densenet_forward.20} parent=11 // pred_region
        _
      $region20: #{densenet_forward.20} parent=11 // pred_fallthru
        _
      // Predicated region
      $region21: #{densenet_forward.20} parent=11 // pred_check
        %p169 = pneg %p118
      $region22: #{densenet_forward.20} parent=11 // pred_check_branch
        %171 = sbr.rel (%p169) target = $region24
      $region23: #{densenet_forward.20} parent=11 // pred_region
        _
      $region24: #{densenet_forward.20} parent=11 // pred_fallthru
        _
    $region12: #{densenet_forward.20} parent=5 // pred_fallthru
      _
    %p172 = scmp.lt.s32.totalorder %s12, 2
    // Predicated region
    $region25: #{densenet_forward.20} parent=5 // pred_check
      %p173 = pneg %p172
    $region26: #{densenet_forward.20} parent=5 // pred_check_branch
      %175 = sbr.rel (%p173) target = $region28
    $region27: #{densenet_forward.20} parent=5 // pred_region
      // Predicated region
      $region29: #{densenet_forward.20} parent=27 // pred_check
        %p176 = pneg %p44
      $region30: #{densenet_forward.20} parent=27 // pred_check_branch
        %178 = sbr.rel (%p176) target = $region32
      $region31: #{densenet_forward.20} parent=27 // pred_region
        %p179 = scmp.lt.s32.totalorder %s19, 1
        %s180 = scalar_select %p179, %s19, 1
        %s181 = smul.addr %s180, 8
        %s182 = scalar_lea.vmem %s1, %s181
      $region32: #{densenet_forward.20} parent=27 // pred_fallthru
        _
    $region28: #{densenet_forward.20} parent=5 // pred_fallthru
      _
    %p183 = scmp.le.s32.totalorder 1, %s12
    %p184 = scmp.lt.s32.totalorder %s12, 3
    %p185 = pnand %p183, %p184
    %p186 = pneg %p185
    // Predicated region
    $region33: #{densenet_forward.20} parent=5 // pred_check
      _
    $region34: #{densenet_forward.20} parent=5 // pred_check_branch
      %188 = sbr.rel (%p185) target = $region36
    $region35: #{densenet_forward.20} parent=5 // pred_region
      %s189 = ssub.s32 %s12, 1
      %p190 = scmp.lt.s32.totalorder %s21, 1
      %s191 = scalar_select %p190, %s21, 1
      %s192 = smul.addr %s191, 8
      %s193 = scalar_lea.vmem %s1, %s192
      %p194 = pneg %p50
      %p195 = pneg %p47
      %p196 = scmp.lt.s32.totalorder %s22, 0
      %s197 = scalar_select %p196, %s22, 0
      %s198 = smul.addr %s197, 2
      %s199 = scalar_lea.vmem %s2, %s198
      %p200 = pneg %p76
      %p201 = pneg %p73
      %p202 = pneg %p97
      %p203 = pneg %p94
      %p204 = pneg %p118
      %p205 = pneg %p115
      %p206 = pneg %p144
      %p207 = pneg %p141
      %p208 = scmp.lt.s32.totalorder %s21, 1
      %s209 = scalar_select %p208, %s21, 1
      %s210 = smul.addr %s209, 8
      %s211 = scalar_lea.vmem %s5, %s210
      %p212 = scmp.lt.s32.totalorder %s21, 1
      %s213 = scalar_select %p212, %s21, 1
      %s214 = smul.addr %s213, 8
      %s215 = scalar_lea.vmem %s1, %s214
      %p216 = scmp.lt.s32.totalorder %s22, 0
      %s217 = scalar_select %p216, %s22, 0
      %s218 = smul.addr %s217, 2
      %s219 = scalar_lea.vmem %s2, %s218
      %p220 = scmp.lt.s32.totalorder %s21, 1
      %s221 = scalar_select %p220, %s21, 1
      %s222 = smul.addr %s221, 8
      %s223 = scalar_lea.vmem %s5, %s222
      %p225 = scmp.eq.s32.totalorder %s22, 0
      // Predicated region
      $region37: #{densenet_forward.20} parent=35 // pred_check
        %p226 = pneg %p225
      $region38: #{densenet_forward.20} parent=35 // pred_check_branch
        %228 = sbr.rel (%p226) target = $region40
      $region39: #{densenet_forward.20} parent=35 // pred_region
        %229 = vst [vmem:[#allocation2] sm:$0xff] 0.0
      $region40: #{densenet_forward.20} parent=35 // pred_fallthru
        _
      %s230 = sld [smem:[#allocation4 + %s22]]
      %s231 = scalar_lea.vmem %s215, %s230
      %v232 = vld [vmem:[%s231] sm:$0xff]
      %v233 = vld [vmem:[#allocation2] sm:$0xff]
      %v234 = vpack.c.bf16 %v232, %v232
      %v235 = vld [vmem:[%s219] sm:$0x3]
      %vm236 = vcmask 31744
      %v238 = vsel %vm236, %v234, 0
      %vm240 = vcmask 1041408
      %v242 = vsel %vm240, %v235, 0
      %244 = vmatprep.subr.bf16.mxu0 0
      %245 = vmatpush1.bf16.msra.mxu0 %v242
      %246 = vmatprep.subr.bf16.mxu0 0
      %247 = vmatpush1.bf16.msra.mxu0 0
      %248 = vmatprep.subr.bf16.mxu0 0
      %249 = vmatpush1.bf16.msra.mxu0 0
      %250 = vmatprep.subr.bf16.mxu0 0
      %251 = vmatpush1.bf16.msra.mxu0 0
      %252 = vmatprep.subr.bf16.mxu0 0
      %253 = vmatpush1.bf16.msra.mxu0 0
      %254 = vmatprep.subr.bf16.mxu0 0
      %255 = vmatpush1.bf16.msra.mxu0 0
      %256 = vmatprep.subr.bf16.mxu0 0
      %257 = vmatpush1.bf16.msra.mxu0 0
      %258 = vmatprep.subr.bf16.mxu0 0
      %259 = vmatpush1.bf16.msra.mxu0 0
      %260 = vmatprep.subr.bf16.mxu0 0
      %261 = vmatpush1.bf16.msra.mxu0 0
      %262 = vmatprep.subr.bf16.mxu0 0
      %263 = vmatpush1.bf16.msra.mxu0 0
      %264 = vmatprep.subr.bf16.mxu0 0
      %265 = vmatpush1.bf16.msra.mxu0 0
      %266 = vmatprep.subr.bf16.mxu0 0
      %267 = vmatpush1.bf16.msra.mxu0 0
      %268 = vmatprep.subr.bf16.mxu0 0
      %269 = vmatpush1.bf16.msra.mxu0 0
      %270 = vmatprep.subr.bf16.mxu0 0
      %271 = vmatpush1.bf16.msra.mxu0 0
      %272 = vmatprep.subr.bf16.mxu0 0
      %273 = vmatpush1.bf16.msra.mxu0 0
      %274 = vmatprep.subr.bf16.mxu0 0
      %275 = vmatpush1.bf16.msra.mxu0 0
      %276 = vmatprep.mubr.bf16.mxu0 0
      %277 = vmatmul.mubr.bf16.gmra.mrb[0].mxu0 %v238
      %v278 = vpop.f32.mrb[0].mxu0
      %v279 = vadd.f32 0.0, %v278
      %v280 = vpop.f32.mrb[0].mxu0
      %v281 = vpop.f32.mrb[0].mxu0
      %v282 = vpop.f32.mrb[0].mxu0
      %283 = vdwg.mxu0
      %v284 = vadd.f32 %v233, %v279
      %285 = vst [vmem:[#allocation2] sm:$0xff] %v284
      // Predicated region
      $region41: #{densenet_forward.20} parent=35 // pred_check
        %p286 = pneg %p225
      $region42: #{densenet_forward.20} parent=35 // pred_check_branch
        %288 = sbr.rel (%p286) target = $region44
      $region43: #{densenet_forward.20} parent=35 // pred_region
        %v289 = vld [vmem:[#allocation2] sm:$0xff]
        %v290 = vld [vmem:[%s3] sm:$0x1]
        %v292 = vlaneseq
        %v293 = vshrl.u32 %v292, 7
        %v294 = vsub.s32 0, %v293
        %v295 = vrot.slane %v290, %v294
        %v297 = vmul.f32 %v289, %v295
        %v298 = vld [vmem:[%s4] sm:$0x1]
        %v300 = vlaneseq
        %v301 = vshrl.u32 %v300, 7
        %v302 = vsub.s32 0, %v301
        %v303 = vrot.slane %v298, %v302
        %v305 = vadd.f32 %v297, %v303
        %v306 = vmax.f32 %v305, 0.0
        %307 = vst [vmem:[%s223] sm:$0xff] %v306
      $region44: #{densenet_forward.20} parent=35 // pred_fallthru
        _
      %p308 = scmp.lt.s32.totalorder %s21, 1
      %s309 = scalar_select %p308, %s21, 1
      %s310 = smul.addr %s309, 8
      %s311 = scalar_lea.vmem %s5, %s310
      // Predicated region
      $region45: #{densenet_forward.20} parent=35 // pred_check
        %p312 = pneg %p141
      $region46: #{densenet_forward.20} parent=35 // pred_check_branch
        %314 = sbr.rel (%p312) target = $region48
      $region47: #{densenet_forward.20} parent=35 // pred_region
        _
      $region48: #{densenet_forward.20} parent=35 // pred_fallthru
        _
    $region36: #{densenet_forward.20} parent=5 // pred_fallthru
      _
    %p315 = scmp.le.s32.totalorder 2, %s12
    // Predicated region
    $region49: #{densenet_forward.20} parent=5 // pred_check
      %p316 = pneg %p315
    $region50: #{densenet_forward.20} parent=5 // pred_check_branch
      %318 = sbr.rel (%p316) target = $region52
    $region51: #{densenet_forward.20} parent=5 // pred_region
      %s319 = ssub.s32 %s12, 2
      // Predicated region
      $region53: #{densenet_forward.20} parent=51 // pred_check
        %p320 = pneg %p147
      $region54: #{densenet_forward.20} parent=51 // pred_check_branch
        %322 = sbr.rel (%p320) target = $region56
      $region55: #{densenet_forward.20} parent=51 // pred_region
        %p323 = scmp.lt.s32.totalorder %s23, 1
        %s324 = scalar_select %p323, %s23, 1
        %s325 = smul.addr %s324, 8
        %s326 = scalar_lea.vmem %s5, %s325
      $region56: #{densenet_forward.20} parent=51 // pred_fallthru
        _
    $region52: #{densenet_forward.20} parent=5 // pred_fallthru
      _
  $region6: #{densenet_forward.20} parent=0 // loop_footer
    %s16 = sadd.s32 1, %s12
  $region7: #{densenet_forward.20} parent=0 // loop_footer_branch
    %11 = sbr.rel target = $region3
  $region8: #{densenet_forward.20} parent=0 // loop_exit
    _

// kernel: densenet_forward.22
$region0: #{densenet_forward.22}
  #allocation0 [shape = 'u32[]', space=smem, size = 0x4, offset = 0x4, fixed_abs, tag = 'smem constant byte address 0x4 - core index']
  #allocation1 [shape = 'u32[144,128]{1,0:T(1,128)}', space=vmem, size = 0x12000, scoped, tag = 'internal scratch']
  #allocation2 [shape = 'f32[8,128]{1,0:T(8,128)}', space=vmem, size = 0x1000, scoped, tag = 'scratch operand']
  #allocation3 [shape = 's32[1]{0}', space=sflag, size = 0x4, scoped, tag = 'scoped memory for densenet_forward.22']
  #allocation4 [shape = 's32[1]{0:T(128)S(6)}', space=smem, size = 0x200, scoped, tag = 'prefetched SMEM operand 0']
  %s0 = inlined_call_operand.<no memory space> [shape: s32[1], index: 0, kind: input, shape index: {}]
  %s1 = inlined_call_operand.vmem [shape: f32[2,8,12], index: 1, kind: input, shape index: {}]
  %s2 = inlined_call_operand.vmem [shape: bf16[1,12,128], index: 2, kind: input, shape index: {}]
  %s3 = inlined_call_operand.vmem [shape: f32[1,128], index: 3, kind: input, shape index: {}]
  %s4 = inlined_call_operand.vmem [shape: f32[1,128], index: 4, kind: input, shape index: {}]
  %s5 = inlined_call_operand.vmem [shape: f32[2,8,128], index: 5, kind: output, shape index: {}]
  %s6 = sld [smem:[#allocation0]]
  $region57: #{densenet_forward.22} parent=0
    _
  %s8 = ssub.s32 1, %s6
  %s9 = scalar_select 0, %s8, %s6
  %10 = sst [smem:[#allocation4]] %s0
  loop: start=0, step=1, limit=4
  $region2: #{densenet_forward.22} parent=0 // loop_pre_header
    _
  $region3: #{densenet_forward.22} parent=0 // loop_header
    %s12 = sphi 0, %s16
    %p13 = scmp.ge.s32.totalorder %s12, 4
    %s19 = sphi 0, %s31
    %s20 = sphi 0, %s27
    %s21 = sphi 0, %s19
    %s22 = sphi 0, %s20
    %s23 = sphi 0, %s21
    %s24 = sphi 0, %s22
    %s34 = sphi 0, %s36
    %s37 = sphi 0, %s34
    %s38 = sphi 0, %s37
    %s54 = sphi 0, %s38
    %s60 = sphi 0, %s62
    %s63 = sphi 0, %s60
    %s64 = sphi 0, %s63
    %s80 = sphi 0, %s64
    %s84 = sphi 0, %s84
    %s86 = sphi 0, %s84
    %s87 = sphi 0, %s86
    %s101 = sphi 0, %s87
    %s105 = sphi 0, %s105
    %s107 = sphi 0, %s105
    %s108 = sphi 0, %s107
    %s122 = sphi 0, %s108
    %s128 = sphi 0, %s130
    %s131 = sphi 0, %s128
    %s132 = sphi 0, %s131
    %s148 = sphi 0, %s132
  $region4: #{densenet_forward.22} parent=0 // loop_header_branch
    %15 = sbr.rel (%p13) target = $region8
  $region5: #{densenet_forward.22} parent=0 // loop_body
    %s17 = ssub.s32 %s12, 1
    %s18 = ssub.s32 %s12, 2
    %s25 = sadd.s32 1, %s20
    %p26 = scmp.ge.s32.totalorder %s25, 1
    %s27 = scalar_select %p26, 0, %s25
    %s28 = sadd.s32 1, %s19
    %s29 = scalar_select %p26, %s28, %s19
    %p30 = scmp.ge.s32.totalorder %s29, 2
    %s31 = scalar_select %p30, 0, %s29
    %s32 = ssub.s32 %s19, %s31
    %p33 = scmp.eq.s32.totalorder %s32, 0
    %s35 = sadd.s32 %s34, 1
    %s36 = scalar_select %p33, %s34, %s35
    %p39 = pneg %p33
    %p40 = scmp.eq.s32.totalorder %s12, 1
    %p41 = por %p39, %p40
    %p42 = scmp.ne.s32.totalorder %s34, %s37
    %p43 = scmp.eq.s32.totalorder %s12, 0
    %p44 = por %p42, %p43
    %p45 = scmp.ne.s32.totalorder %s34, %s37
    %p46 = scmp.eq.s32.totalorder %s17, 1
    %p47 = por %p45, %p46
    %p48 = scmp.ne.s32.totalorder %s37, %s38
    %p49 = scmp.eq.s32.totalorder %s17, 0
    %p50 = por %p48, %p49
    %p51 = scmp.ne.s32.totalorder %s37, %s38
    %p52 = scmp.eq.s32.totalorder %s18, 1
    %p53 = por %p51, %p52
    %p55 = scmp.ne.s32.totalorder %s38, %s54
    %p56 = scmp.eq.s32.totalorder %s18, 0
    %p57 = por %p55, %p56
    %s58 = ssub.s32 %s20, %s27
    %p59 = scmp.eq.s32.totalorder %s58, 0
    %s61 = sadd.s32 %s60, 1
    %s62 = scalar_select %p59, %s60, %s61
    %p65 = pneg %p59
    %p66 = scmp.eq.s32.totalorder %s12, 1
    %p67 = por %p65, %p66
    %p68 = scmp.ne.s32.totalorder %s60, %s63
    %p69 = scmp.eq.s32.totalorder %s12, 0
    %p70 = por %p68, %p69
    %p71 = scmp.ne.s32.totalorder %s60, %s63
    %p72 = scmp.eq.s32.totalorder %s17, 1
    %p73 = por %p71, %p72
    %p74 = scmp.ne.s32.totalorder %s63, %s64
    %p75 = scmp.eq.s32.totalorder %s17, 0
    %p76 = por %p74, %p75
    %p77 = scmp.ne.s32.totalorder %s63, %s64
    %p78 = scmp.eq.s32.totalorder %s18, 1
    %p79 = por %p77, %p78
    %p81 = scmp.ne.s32.totalorder %s64, %s80
    %p82 = scmp.eq.s32.totalorder %s18, 0
    %p83 = por %p81, %p82
    %s85 = sadd.s32 %s84, 1
    %p88 = scmp.eq.s32.totalorder %s12, 1
    %p89 = scmp.ne.s32.totalorder %s84, %s86
    %p90 = scmp.eq.s32.totalorder %s12, 0
    %p91 = por %p89, %p90
    %p92 = scmp.ne.s32.totalorder %s84, %s86
    %p93 = scmp.eq.s32.totalorder %s17, 1
    %p94 = por %p92, %p93
    %p95 = scmp.ne.s32.totalorder %s86, %s87
    %p96 = scmp.eq.s32.totalorder %s17, 0
    %p97 = por %p95, %p96
    %p98 = scmp.ne.s32.totalorder %s86, %s87
    %p99 = scmp.eq.s32.totalorder %s18, 1
    %p100 = por %p98, %p99
    %p102 = scmp.ne.s32.totalorder %s87, %s101
    %p103 = scmp.eq.s32.totalorder %s18, 0
    %p104 = por %p102, %p103
    %s106 = sadd.s32 %s105, 1
    %p109 = scmp.eq.s32.totalorder %s12, 1
    %p110 = scmp.ne.s32.totalorder %s105, %s107
    %p111 = scmp.eq.s32.totalorder %s12, 0
    %p112 = por %p110, %p111
    %p113 = scmp.ne.s32.totalorder %s105, %s107
    %p114 = scmp.eq.s32.totalorder %s17, 1
    %p115 = por %p113, %p114
    %p116 = scmp.ne.s32.totalorder %s107, %s108
    %p117 = scmp.eq.s32.totalorder %s17, 0
    %p118 = por %p116, %p117
    %p119 = scmp.ne.s32.totalorder %s107, %s108
    %p120 = scmp.eq.s32.totalorder %s18, 1
    %p121 = por %p119, %p120
    %p123 = scmp.ne.s32.totalorder %s108, %s122
    %p124 = scmp.eq.s32.totalorder %s18, 0
    %p125 = por %p123, %p124
    %s126 = ssub.s32 %s19, %s31
    %p127 = scmp.eq.s32.totalorder %s126, 0
    %s129 = sadd.s32 %s128, 1
    %s130 = scalar_select %p127, %s128, %s129
    %p133 = pneg %p127
    %p134 = scmp.eq.s32.totalorder %s12, 1
    %p135 = por %p133, %p134
    %p136 = scmp.ne.s32.totalorder %s128, %s131
    %p137 = scmp.eq.s32.totalorder %s12, 0
    %p138 = por %p136, %p137
    %p139 = scmp.ne.s32.totalorder %s128, %s131
    %p140 = scmp.eq.s32.totalorder %s17, 1
    %p141 = por %p139, %p140
    %p142 = scmp.ne.s32.totalorder %s131, %s132
    %p143 = scmp.eq.s32.totalorder %s17, 0
    %p144 = por %p142, %p143
    %p145 = scmp.ne.s32.totalorder %s131, %s132
    %p146 = scmp.eq.s32.totalorder %s18, 1
    %p147 = por %p145, %p146
    %p149 = scmp.ne.s32.totalorder %s132, %s148
    %p150 = scmp.eq.s32.totalorder %s18, 0
    %p151 = por %p149, %p150
    %p152 = scmp.le.s32.totalorder 1, %s12
    %p153 = scmp.lt.s32.totalorder %s12, 3
    %p154 = pnand %p152, %p153
    %p155 = pneg %p154
    // Predicated region
    $region9: #{densenet_forward.22} parent=5 // pred_check
      _
    $region10: #{densenet_forward.22} parent=5 // pred_check_branch
      %157 = sbr.rel (%p154) target = $region12
    $region11: #{densenet_forward.22} parent=5 // pred_region
      %s158 = ssub.s32 %s12, 1
      // Predicated region
      $region13: #{densenet_forward.22} parent=11 // pred_check
        %p159 = pneg %p76
      $region14: #{densenet_forward.22} parent=11 // pred_check_branch
        %161 = sbr.rel (%p159) target = $region16
      $region15: #{densenet_forward.22} parent=11 // pred_region
        %p162 = scmp.lt.s32.totalorder %s22, 0
        %s163 = scalar_select %p162, %s22, 0
        %s164 = smul.addr %s163, 2
        %s165 = smul.addr %s164, 4
        %s166 = scalar_lea.vmem %s2, %s165
      $region16: #{densenet_forward.22} parent=11 // pred_fallthru
        _
      // Predicated region
      $region17: #{densenet_forward.22} parent=11 // pred_check
        %p167 = pneg %p97
      $region18: #{densenet_forward.22} parent=11 // pred_check_branch
        %169 = sbr.rel (%p167) target = $region20
      $region19: #{densenet_forward.22} parent=11 // pred_region
        _
      $region20: #{densenet_forward.22} parent=11 // pred_fallthru
        _
      // Predicated region
      $region21: #{densenet_forward.22} parent=11 // pred_check
        %p170 = pneg %p118
      $region22: #{densenet_forward.22} parent=11 // pred_check_branch
        %172 = sbr.rel (%p170) target = $region24
      $region23: #{densenet_forward.22} parent=11 // pred_region
        _
      $region24: #{densenet_forward.22} parent=11 // pred_fallthru
        _
    $region12: #{densenet_forward.22} parent=5 // pred_fallthru
      _
    %p173 = scmp.lt.s32.totalorder %s12, 2
    // Predicated region
    $region25: #{densenet_forward.22} parent=5 // pred_check
      %p174 = pneg %p173
    $region26: #{densenet_forward.22} parent=5 // pred_check_branch
      %176 = sbr.rel (%p174) target = $region28
    $region27: #{densenet_forward.22} parent=5 // pred_region
      // Predicated region
      $region29: #{densenet_forward.22} parent=27 // pred_check
        %p177 = pneg %p44
      $region30: #{densenet_forward.22} parent=27 // pred_check_branch
        %179 = sbr.rel (%p177) target = $region32
      $region31: #{densenet_forward.22} parent=27 // pred_region
        %p180 = scmp.lt.s32.totalorder %s19, 1
        %s181 = scalar_select %p180, %s19, 1
        %s182 = smul.addr %s181, 8
        %s183 = scalar_lea.vmem %s1, %s182
      $region32: #{densenet_forward.22} parent=27 // pred_fallthru
        _
    $region28: #{densenet_forward.22} parent=5 // pred_fallthru
      _
    %p184 = scmp.le.s32.totalorder 1, %s12
    %p185 = scmp.lt.s32.totalorder %s12, 3
    %p186 = pnand %p184, %p185
    %p187 = pneg %p186
    // Predicated region
    $region33: #{densenet_forward.22} parent=5 // pred_check
      _
    $region34: #{densenet_forward.22} parent=5 // pred_check_branch
      %189 = sbr.rel (%p186) target = $region36
    $region35: #{densenet_forward.22} parent=5 // pred_region
      %s190 = ssub.s32 %s12, 1
      %p191 = scmp.lt.s32.totalorder %s21, 1
      %s192 = scalar_select %p191, %s21, 1
      %s193 = smul.addr %s192, 8
      %s194 = scalar_lea.vmem %s1, %s193
      %p195 = pneg %p50
      %p196 = pneg %p47
      %p197 = scmp.lt.s32.totalorder %s22, 0
      %s198 = scalar_select %p197, %s22, 0
      %s199 = smul.addr %s198, 2
      %s200 = smul.addr %s199, 4
      %s201 = scalar_lea.vmem %s2, %s200
      %p202 = pneg %p76
      %p203 = pneg %p73
      %p204 = pneg %p97
      %p205 = pneg %p94
      %p206 = pneg %p118
      %p207 = pneg %p115
      %p208 = pneg %p144
      %p209 = pneg %p141
      %p210 = scmp.lt.s32.totalorder %s21, 1
      %s211 = scalar_select %p210, %s21, 1
      %s212 = smul.addr %s211, 8
      %s213 = scalar_lea.vmem %s5, %s212
      %p214 = scmp.lt.s32.totalorder %s21, 1
      %s215 = scalar_select %p214, %s21, 1
      %s216 = smul.addr %s215, 8
      %s217 = scalar_lea.vmem %s1, %s216
      %p218 = scmp.lt.s32.totalorder %s22, 0
      %s219 = scalar_select %p218, %s22, 0
      %s220 = smul.addr %s219, 2
      %s221 = smul.addr %s220, 4
      %s222 = scalar_lea.vmem %s2, %s221
      %p223 = scmp.lt.s32.totalorder %s21, 1
      %s224 = scalar_select %p223, %s21, 1
      %s225 = smul.addr %s224, 8
      %s226 = scalar_lea.vmem %s5, %s225
      %p228 = scmp.eq.s32.totalorder %s22, 0
      // Predicated region
      $region37: #{densenet_forward.22} parent=35 // pred_check
        %p229 = pneg %p228
      $region38: #{densenet_forward.22} parent=35 // pred_check_branch
        %231 = sbr.rel (%p229) target = $region40
      $region39: #{densenet_forward.22} parent=35 // pred_region
        %232 = vst [vmem:[#allocation2] sm:$0xff] 0.0
      $region40: #{densenet_forward.22} parent=35 // pred_fallthru
        _
      %s233 = sld [smem:[#allocation4 + %s22]]
      %s234 = scalar_lea.vmem %s217, %s233
      %v235 = vld [vmem:[%s234] sm:$0xff]
      %v236 = vld [vmem:[#allocation2] sm:$0xff]
      %v237 = vpack.c.bf16 %v235, %v235
      %v238 = vld [vmem:[%s222] sm:$0xf]
      %v239 = vld [vmem:[%s222 + $0x4] sm:$0x3]
      %v242 = vunpack.c.l.b16 %v238
      %v243 = vunpack.c.l.b16 %v239
      %v244 = vpack.c.b16 %v243, %v242
      %vm245 = vcmask 97280
      %v247 = vsel %vm245, %v237, 0
      %vm249 = vcmask 1045504
      %v251 = vsel %vm249, %v244, 0
      %253 = vmatprep.subr.bf16.mxu0 0
      %254 = vmatpush1.bf16.msra.mxu0 %v251
      %255 = vmatprep.subr.bf16.mxu0 0
      %256 = vmatpush1.bf16.msra.mxu0 0
      %257 = vmatprep.subr.bf16.mxu0 0
      %258 = vmatpush1.bf16.msra.mxu0 0
      %259 = vmatprep.subr.bf16.mxu0 0
      %260 = vmatpush1.bf16.msra.mxu0 0
      %261 = vmatprep.subr.bf16.mxu0 0
      %262 = vmatpush1.bf16.msra.mxu0 0
      %263 = vmatprep.subr.bf16.mxu0 0
      %264 = vmatpush1.bf16.msra.mxu0 0
      %265 = vmatprep.subr.bf16.mxu0 0
      %266 = vmatpush1.bf16.msra.mxu0 0
      %267 = vmatprep.subr.bf16.mxu0 0
      %268 = vmatpush1.bf16.msra.mxu0 0
      %269 = vmatprep.subr.bf16.mxu0 0
      %270 = vmatpush1.bf16.msra.mxu0 0
      %271 = vmatprep.subr.bf16.mxu0 0
      %272 = vmatpush1.bf16.msra.mxu0 0
      %273 = vmatprep.subr.bf16.mxu0 0
      %274 = vmatpush1.bf16.msra.mxu0 0
      %275 = vmatprep.subr.bf16.mxu0 0
      %276 = vmatpush1.bf16.msra.mxu0 0
      %277 = vmatprep.subr.bf16.mxu0 0
      %278 = vmatpush1.bf16.msra.mxu0 0
      %279 = vmatprep.subr.bf16.mxu0 0
      %280 = vmatpush1.bf16.msra.mxu0 0
      %281 = vmatprep.subr.bf16.mxu0 0
      %282 = vmatpush1.bf16.msra.mxu0 0
      %283 = vmatprep.subr.bf16.mxu0 0
      %284 = vmatpush1.bf16.msra.mxu0 0
      %285 = vmatprep.mubr.bf16.mxu0 0
      %286 = vmatmul.mubr.bf16.gmra.mrb[0].mxu0 %v247
      %v287 = vpop.f32.mrb[0].mxu0
      %v288 = vadd.f32 0.0, %v287
      %v289 = vpop.f32.mrb[0].mxu0
      %v290 = vpop.f32.mrb[0].mxu0
      %v291 = vpop.f32.mrb[0].mxu0
      %292 = vdwg.mxu0
      %v293 = vadd.f32 %v236, %v288
      %294 = vst [vmem:[#allocation2] sm:$0xff] %v293
      // Predicated region
      $region41: #{densenet_forward.22} parent=35 // pred_check
        %p295 = pneg %p228
      $region42: #{densenet_forward.22} parent=35 // pred_check_branch
        %297 = sbr.rel (%p295) target = $region44
      $region43: #{densenet_forward.22} parent=35 // pred_region
        %v298 = vld [vmem:[#allocation2] sm:$0xff]
        %v299 = vld [vmem:[%s3] sm:$0x1]
        %v301 = vlaneseq
        %v302 = vshrl.u32 %v301, 7
        %v303 = vsub.s32 0, %v302
        %v304 = vrot.slane %v299, %v303
        %v306 = vmul.f32 %v298, %v304
        %v307 = vld [vmem:[%s4] sm:$0x1]
        %v309 = vlaneseq
        %v310 = vshrl.u32 %v309, 7
        %v311 = vsub.s32 0, %v310
        %v312 = vrot.slane %v307, %v311
        %v314 = vadd.f32 %v306, %v312
        %v315 = vmax.f32 %v314, 0.0
        %316 = vst [vmem:[%s226] sm:$0xff] %v315
      $region44: #{densenet_forward.22} parent=35 // pred_fallthru
        _
      %p317 = scmp.lt.s32.totalorder %s21, 1
      %s318 = scalar_select %p317, %s21, 1
      %s319 = smul.addr %s318, 8
      %s320 = scalar_lea.vmem %s5, %s319
      // Predicated region
      $region45: #{densenet_forward.22} parent=35 // pred_check
        %p321 = pneg %p141
      $region46: #{densenet_forward.22} parent=35 // pred_check_branch
        %323 = sbr.rel (%p321) target = $region48
      $region47: #{densenet_forward.22} parent=35 // pred_region
        _
      $region48: #{densenet_forward.22} parent=35 // pred_fallthru
        _
    $region36: #{densenet_forward.22} parent=5 // pred_fallthru
      _
    %p324 = scmp.le.s32.totalorder 2, %s12
    // Predicated region
    $region49: #{densenet_forward.22} parent=5 // pred_check
      %p325 = pneg %p324
    $region50: #{densenet_forward.22} parent=5 // pred_check_branch
      %327 = sbr.rel (%p325) target = $region52
    $region51: #{densenet_forward.22} parent=5 // pred_region
      %s328 = ssub.s32 %s12, 2
      // Predicated region
      $region53: #{densenet_forward.22} parent=51 // pred_check
        %p329 = pneg %p147
      $region54: #{densenet_forward.22} parent=51 // pred_check_branch
        %331 = sbr.rel (%p329) target = $region56
      $region55: #{densenet_forward.22} parent=51 // pred_region
        %p332 = scmp.lt.s32.totalorder %s23, 1
        %s333 = scalar_select %p332, %s23, 1
        %s334 = smul.addr %s333, 8
        %s335 = scalar_lea.vmem %s5, %s334
      $region56: #{densenet_forward.22} parent=51 // pred_fallthru
        _
    $region52: #{densenet_forward.22} parent=5 // pred_fallthru
      _
  $region6: #{densenet_forward.22} parent=0 // loop_footer
    %s16 = sadd.s32 1, %s12
  $region7: #{densenet_forward.22} parent=0 // loop_footer_branch
    %11 = sbr.rel target = $region3
  $region8: #{densenet_forward.22} parent=0 // loop_exit
    _

// kernel: densenet_forward.21
$region0: #{densenet_forward.21}
  #allocation0 [shape = 'u32[]', space=smem, size = 0x4, offset = 0x4, fixed_abs, tag = 'smem constant byte address 0x4 - core index']
  #allocation1 [shape = 'u32[144,128]{1,0:T(1,128)}', space=vmem, size = 0x12000, scoped, tag = 'internal scratch']
  #allocation2 [shape = 'f32[32,128]{1,0:T(8,128)}', space=vmem, size = 0x4000, scoped, tag = 'scratch operand']
  #allocation3 [shape = 's32[1]{0}', space=sflag, size = 0x4, scoped, tag = 'scoped memory for densenet_forward.21']
  #allocation4 [shape = 'u8[512]{0}', space=smem, size = 0x200, scoped, tag = 'prefetched SMEM operand 0']
  %s0 = inlined_call_operand.vmem [shape: s32[27], index: 0, kind: input, shape index: {}]
  %s1 = inlined_call_operand.vmem [shape: f32[2,74,32], index: 1, kind: input, shape index: {}]
  %s2 = inlined_call_operand.vmem [shape: bf16[27,32,128], index: 2, kind: input, shape index: {}]
  %s3 = inlined_call_operand.vmem [shape: f32[1,128], index: 3, kind: input, shape index: {}]
  %s4 = inlined_call_operand.vmem [shape: f32[1,128], index: 4, kind: input, shape index: {}]
  %s5 = inlined_call_operand.vmem [shape: f32[2,32,128], index: 5, kind: output, shape index: {}]
  %s6 = sld [smem:[#allocation0]]
  $region57: #{densenet_forward.21} parent=0
    _
  %s8 = ssub.s32 1, %s6
  %s9 = scalar_select 0, %s8, %s6
  %s10 = sshll.u32 %s0, 4
  %s11 = int_to_ptr.vmem [resolvable:$true] %s10
  %13 = dma.vmem_to_smem %s11, 16, [#allocation4], [#allocation3]
  %14 = dma.done [#allocation3], 16
  %15 = sfence
  loop: start=0, step=1, limit=56
  $region2: #{densenet_forward.21} parent=0 // loop_pre_header
    _
  $region3: #{densenet_forward.21} parent=0 // loop_header
    %s17 = sphi 0, %s21
    %p18 = scmp.ge.s32.totalorder %s17, 56
    %s24 = sphi 0, %s36
    %s25 = sphi 0, %s32
    %s26 = sphi 0, %s24
    %s27 = sphi 0, %s25
    %s28 = sphi 0, %s26
    %s29 = sphi 0, %s27
    %s39 = sphi 0, %s41
    %s42 = sphi 0, %s39
    %s43 = sphi 0, %s42
    %s59 = sphi 0, %s43
    %s65 = sphi 0, %s67
    %s68 = sphi 0, %s65
    %s69 = sphi 0, %s68
    %s85 = sphi 0, %s69
    %s89 = sphi 0, %s89
    %s91 = sphi 0, %s89
    %s92 = sphi 0, %s91
    %s106 = sphi 0, %s92
    %s110 = sphi 0, %s110
    %s112 = sphi 0, %s110
    %s113 = sphi 0, %s112
    %s127 = sphi 0, %s113
    %s133 = sphi 0, %s135
    %s136 = sphi 0, %s133
    %s137 = sphi 0, %s136
    %s153 = sphi 0, %s137
  $region4: #{densenet_forward.21} parent=0 // loop_header_branch
    %20 = sbr.rel (%p18) target = $region8
  $region5: #{densenet_forward.21} parent=0 // loop_body
    %s22 = ssub.s32 %s17, 1
    %s23 = ssub.s32 %s17, 2
    %s30 = sadd.s32 1, %s25
    %p31 = scmp.ge.s32.totalorder %s30, 27
    %s32 = scalar_select %p31, 0, %s30
    %s33 = sadd.s32 1, %s24
    %s34 = scalar_select %p31, %s33, %s24
    %p35 = scmp.ge.s32.totalorder %s34, 2
    %s36 = scalar_select %p35, 0, %s34
    %s37 = ssub.s32 %s24, %s36
    %p38 = scmp.eq.s32.totalorder %s37, 0
    %s40 = sadd.s32 %s39, 1
    %s41 = scalar_select %p38, %s39, %s40
    %p44 = pneg %p38
    %p45 = scmp.eq.s32.totalorder %s17, 53
    %p46 = por %p44, %p45
    %p47 = scmp.ne.s32.totalorder %s39, %s42
    %p48 = scmp.eq.s32.totalorder %s17, 0
    %p49 = por %p47, %p48
    %p50 = scmp.ne.s32.totalorder %s39, %s42
    %p51 = scmp.eq.s32.totalorder %s22, 53
    %p52 = por %p50, %p51
    %p53 = scmp.ne.s32.totalorder %s42, %s43
    %p54 = scmp.eq.s32.totalorder %s22, 0
    %p55 = por %p53, %p54
    %p56 = scmp.ne.s32.totalorder %s42, %s43
    %p57 = scmp.eq.s32.totalorder %s23, 53
    %p58 = por %p56, %p57
    %p60 = scmp.ne.s32.totalorder %s43, %s59
    %p61 = scmp.eq.s32.totalorder %s23, 0
    %p62 = por %p60, %p61
    %s63 = ssub.s32 %s25, %s32
    %p64 = scmp.eq.s32.totalorder %s63, 0
    %s66 = sadd.s32 %s65, 1
    %s67 = scalar_select %p64, %s65, %s66
    %p70 = pneg %p64
    %p71 = scmp.eq.s32.totalorder %s17, 53
    %p72 = por %p70, %p71
    %p73 = scmp.ne.s32.totalorder %s65, %s68
    %p74 = scmp.eq.s32.totalorder %s17, 0
    %p75 = por %p73, %p74
    %p76 = scmp.ne.s32.totalorder %s65, %s68
    %p77 = scmp.eq.s32.totalorder %s22, 53
    %p78 = por %p76, %p77
    %p79 = scmp.ne.s32.totalorder %s68, %s69
    %p80 = scmp.eq.s32.totalorder %s22, 0
    %p81 = por %p79, %p80
    %p82 = scmp.ne.s32.totalorder %s68, %s69
    %p83 = scmp.eq.s32.totalorder %s23, 53
    %p84 = por %p82, %p83
    %p86 = scmp.ne.s32.totalorder %s69, %s85
    %p87 = scmp.eq.s32.totalorder %s23, 0
    %p88 = por %p86, %p87
    %s90 = sadd.s32 %s89, 1
    %p93 = scmp.eq.s32.totalorder %s17, 53
    %p94 = scmp.ne.s32.totalorder %s89, %s91
    %p95 = scmp.eq.s32.totalorder %s17, 0
    %p96 = por %p94, %p95
    %p97 = scmp.ne.s32.totalorder %s89, %s91
    %p98 = scmp.eq.s32.totalorder %s22, 53
    %p99 = por %p97, %p98
    %p100 = scmp.ne.s32.totalorder %s91, %s92
    %p101 = scmp.eq.s32.totalorder %s22, 0
    %p102 = por %p100, %p101
    %p103 = scmp.ne.s32.totalorder %s91, %s92
    %p104 = scmp.eq.s32.totalorder %s23, 53
    %p105 = por %p103, %p104
    %p107 = scmp.ne.s32.totalorder %s92, %s106
    %p108 = scmp.eq.s32.totalorder %s23, 0
    %p109 = por %p107, %p108
    %s111 = sadd.s32 %s110, 1
    %p114 = scmp.eq.s32.totalorder %s17, 53
    %p115 = scmp.ne.s32.totalorder %s110, %s112
    %p116 = scmp.eq.s32.totalorder %s17, 0
    %p117 = por %p115, %p116
    %p118 = scmp.ne.s32.totalorder %s110, %s112
    %p119 = scmp.eq.s32.totalorder %s22, 53
    %p120 = por %p118, %p119
    %p121 = scmp.ne.s32.totalorder %s112, %s113
    %p122 = scmp.eq.s32.totalorder %s22, 0
    %p123 = por %p121, %p122
    %p124 = scmp.ne.s32.totalorder %s112, %s113
    %p125 = scmp.eq.s32.totalorder %s23, 53
    %p126 = por %p124, %p125
    %p128 = scmp.ne.s32.totalorder %s113, %s127
    %p129 = scmp.eq.s32.totalorder %s23, 0
    %p130 = por %p128, %p129
    %s131 = ssub.s32 %s24, %s36
    %p132 = scmp.eq.s32.totalorder %s131, 0
    %s134 = sadd.s32 %s133, 1
    %s135 = scalar_select %p132, %s133, %s134
    %p138 = pneg %p132
    %p139 = scmp.eq.s32.totalorder %s17, 53
    %p140 = por %p138, %p139
    %p141 = scmp.ne.s32.totalorder %s133, %s136
    %p142 = scmp.eq.s32.totalorder %s17, 0
    %p143 = por %p141, %p142
    %p144 = scmp.ne.s32.totalorder %s133, %s136
    %p145 = scmp.eq.s32.totalorder %s22, 53
    %p146 = por %p144, %p145
    %p147 = scmp.ne.s32.totalorder %s136, %s137
    %p148 = scmp.eq.s32.totalorder %s22, 0
    %p149 = por %p147, %p148
    %p150 = scmp.ne.s32.totalorder %s136, %s137
    %p151 = scmp.eq.s32.totalorder %s23, 53
    %p152 = por %p150, %p151
    %p154 = scmp.ne.s32.totalorder %s137, %s153
    %p155 = scmp.eq.s32.totalorder %s23, 0
    %p156 = por %p154, %p155
    %p157 = scmp.le.s32.totalorder 1, %s17
    %p158 = scmp.lt.s32.totalorder %s17, 55
    %p159 = pnand %p157, %p158
    %p160 = pneg %p159
    // Predicated region
    $region9: #{densenet_forward.21} parent=5 // pred_check
      _
    $region10: #{densenet_forward.21} parent=5 // pred_check_branch
      %162 = sbr.rel (%p159) target = $region12
    $region11: #{densenet_forward.21} parent=5 // pred_region
      %s163 = ssub.s32 %s17, 1
      // Predicated region
      $region13: #{densenet_forward.21} parent=11 // pred_check
        %p164 = pneg %p102
      $region14: #{densenet_forward.21} parent=11 // pred_check_branch
        %166 = sbr.rel (%p164) target = $region16
      $region15: #{densenet_forward.21} parent=11 // pred_region
        _
      $region16: #{densenet_forward.21} parent=11 // pred_fallthru
        _
      // Predicated region
      $region17: #{densenet_forward.21} parent=11 // pred_check
        %p167 = pneg %p123
      $region18: #{densenet_forward.21} parent=11 // pred_check_branch
        %169 = sbr.rel (%p167) target = $region20
      $region19: #{densenet_forward.21} parent=11 // pred_region
        _
      $region20: #{densenet_forward.21} parent=11 // pred_fallthru
        _
    $region12: #{densenet_forward.21} parent=5 // pred_fallthru
      _
    %p170 = scmp.lt.s32.totalorder %s17, 54
    // Predicated region
    $region21: #{densenet_forward.21} parent=5 // pred_check
      %p171 = pneg %p170
    $region22: #{densenet_forward.21} parent=5 // pred_check_branch
      %173 = sbr.rel (%p171) target = $region24
    $region23: #{densenet_forward.21} parent=5 // pred_region
      // Predicated region
      $region25: #{densenet_forward.21} parent=23 // pred_check
        %p174 = pneg %p49
      $region26: #{densenet_forward.21} parent=23 // pred_check_branch
        %176 = sbr.rel (%p174) target = $region28
      $region27: #{densenet_forward.21} parent=23 // pred_region
        %p177 = scmp.lt.s32.totalorder %s24, 1
        %s178 = scalar_select %p177, %s24, 1
        %s179 = smul.addr %s178, 10
        %s180 = smul.addr %s179, 8
        %s181 = scalar_lea.vmem %s1, %s180
      $region28: #{densenet_forward.21} parent=23 // pred_fallthru
        _
      // Predicated region
      $region29: #{densenet_forward.21} parent=23 // pred_check
        %p182 = pneg %p75
      $region30: #{densenet_forward.21} parent=23 // pred_check_branch
        %184 = sbr.rel (%p182) target = $region32
      $region31: #{densenet_forward.21} parent=23 // pred_region
        %p185 = scmp.lt.s32.totalorder %s25, 26
        %s186 = scalar_select %p185, %s25, 26
        %s187 = smul.addr %s186, 4
        %s188 = smul.addr %s187, 4
        %s189 = scalar_lea.vmem %s2, %s188
      $region32: #{densenet_forward.21} parent=23 // pred_fallthru
        _
    $region24: #{densenet_forward.21} parent=5 // pred_fallthru
      _
    %p190 = scmp.le.s32.totalorder 1, %s17
    %p191 = scmp.lt.s32.totalorder %s17, 55
    %p192 = pnand %p190, %p191
    %p193 = pneg %p192
    // Predicated region
    $region33: #{densenet_forward.21} parent=5 // pred_check
      _
    $region34: #{densenet_forward.21} parent=5 // pred_check_branch
      %195 = sbr.rel (%p192) target = $region36
    $region35: #{densenet_forward.21} parent=5 // pred_region
      %s196 = ssub.s32 %s17, 1
      %p197 = scmp.lt.s32.totalorder %s26, 1
      %s198 = scalar_select %p197, %s26, 1
      %s199 = smul.addr %s198, 10
      %s200 = smul.addr %s199, 8
      %s201 = scalar_lea.vmem %s1, %s200
      %p202 = pneg %p55
      %p203 = pneg %p52
      %p204 = scmp.lt.s32.totalorder %s27, 26
      %s205 = scalar_select %p204, %s27, 26
      %s206 = smul.addr %s205, 4
      %s207 = smul.addr %s206, 4
      %s208 = scalar_lea.vmem %s2, %s207
      %p209 = pneg %p81
      %p210 = pneg %p78
      %p211 = pneg %p102
      %p212 = pneg %p99
      %p213 = pneg %p123
      %p214 = pneg %p120
      %p215 = pneg %p149
      %p216 = pneg %p146
      %p217 = scmp.lt.s32.totalorder %s26, 1
      %s218 = scalar_select %p217, %s26, 1
      %s219 = smul.addr %s218, 4
      %s220 = smul.addr %s219, 8
      %s221 = scalar_lea.vmem %s5, %s220
      %p222 = scmp.lt.s32.totalorder %s26, 1
      %s223 = scalar_select %p222, %s26, 1
      %s224 = smul.addr %s223, 10
      %s225 = smul.addr %s224, 8
      %s226 = scalar_lea.vmem %s1, %s225
      %p227 = scmp.lt.s32.totalorder %s27, 26
      %s228 = scalar_select %p227, %s27, 26
      %s229 = smul.addr %s228, 4
      %s230 = smul.addr %s229, 4
      %s231 = scalar_lea.vmem %s2, %s230
      %p232 = scmp.lt.s32.totalorder %s26, 1
      %s233 = scalar_select %p232, %s26, 1
      %s234 = smul.addr %s233, 4
      %s235 = smul.addr %s234, 8
      %s236 = scalar_lea.vmem %s5, %s235
      %p238 = scmp.eq.s32.totalorder %s27, 0
      // Predicated region
      $region37: #{densenet_forward.21} parent=35 // pred_check
        %p239 = pneg %p238
      $region38: #{densenet_forward.21} parent=35 // pred_check_branch
        %241 = sbr.rel (%p239) target = $region40
      $region39: #{densenet_forward.21} parent=35 // pred_region
        %242 = vst [vmem:[#allocation2] sm:$0xff] 0.0
        %243 = vst [vmem:[#allocation2 + $0x8] sm:$0xff] 0.0
        %244 = vst [vmem:[#allocation2 + $0x10] sm:$0xff] 0.0
        %245 = vst [vmem:[#allocation2 + $0x18] sm:$0xff] 0.0
      $region40: #{densenet_forward.21} parent=35 // pred_fallthru
        _
      %s246 = sld [smem:[#allocation4 + %s27]]
      %s247 = scalar_lea.vmem %s226, %s246
      %v248 = vld [vmem:[%s247] sm:$0xff]
      %v249 = vld [vmem:[%s247 + $0x8] sm:$0xff]
      %v250 = vld [vmem:[%s247 + $0x10] sm:$0xff]
      %v251 = vld [vmem:[%s247 + $0x18] sm:$0xff]
      %v252 = vld [vmem:[#allocation2] sm:$0xff]
      %v253 = vld [vmem:[#allocation2 + $0x8] sm:$0xff]
      %v254 = vld [vmem:[#allocation2 + $0x10] sm:$0xff]
      %v255 = vld [vmem:[#allocation2 + $0x18] sm:$0xff]
      %v256 = vpack.c.bf16 %v249, %v248
      %v257 = vpack.c.bf16 %v251, %v250
      %v258 = vld [vmem:[%s231] sm:$0xf]
      %v259 = vld [vmem:[%s231 + $0x4] sm:$0xf]
      %v260 = vld [vmem:[%s231 + $0x8] sm:$0xf]
      %v261 = vld [vmem:[%s231 + $0xc] sm:$0xf]
      %v266 = vunpack.c.l.b16 %v258
      %v267 = vunpack.c.l.b16 %v259
      %v268 = vunpack.c.l.b16 %v260
      %v269 = vunpack.c.l.b16 %v261
      %v270 = vpack.c.b16 %v267, %v266
      %v271 = vpack.c.b16 %v269, %v268
      %vm274 = vcmask 261120
      %v276 = vsel %vm274, %v256, 0
      %v279 = vsel %vm274, %v257, 0
      %281 = vmatprep.subr.bf16.mxu0 0
      %282 = vmatpush1.bf16.msra.mxu0 %v270
      %283 = vmatprep.subr.bf16.mxu0 0
      %284 = vmatpush1.bf16.msra.mxu0 %v271
      %285 = vmatprep.subr.bf16.mxu0 0
      %286 = vmatpush1.bf16.msra.mxu0 0
      %287 = vmatprep.subr.bf16.mxu0 0
      %288 = vmatpush1.bf16.msra.mxu0 0
      %289 = vmatprep.subr.bf16.mxu0 0
      %290 = vmatpush1.bf16.msra.mxu0 0
      %291 = vmatprep.subr.bf16.mxu0 0
      %292 = vmatpush1.bf16.msra.mxu0 0
      %293 = vmatprep.subr.bf16.mxu0 0
      %294 = vmatpush1.bf16.msra.mxu0 0
      %295 = vmatprep.subr.bf16.mxu0 0
      %296 = vmatpush1.bf16.msra.mxu0 0
      %297 = vmatprep.subr.bf16.mxu0 0
      %298 = vmatpush1.bf16.msra.mxu0 0
      %299 = vmatprep.subr.bf16.mxu0 0
      %300 = vmatpush1.bf16.msra.mxu0 0
      %301 = vmatprep.subr.bf16.mxu0 0
      %302 = vmatpush1.bf16.msra.mxu0 0
      %303 = vmatprep.subr.bf16.mxu0 0
      %304 = vmatpush1.bf16.msra.mxu0 0
      %305 = vmatprep.subr.bf16.mxu0 0
      %306 = vmatpush1.bf16.msra.mxu0 0
      %307 = vmatprep.subr.bf16.mxu0 0
      %308 = vmatpush1.bf16.msra.mxu0 0
      %309 = vmatprep.subr.bf16.mxu0 0
      %310 = vmatpush1.bf16.msra.mxu0 0
      %311 = vmatprep.subr.bf16.mxu0 0
      %312 = vmatpush1.bf16.msra.mxu0 0
      %313 = vmatprep.mubr.bf16.mxu0 0
      %314 = vmatmul.mubr.bf16.gmra.mrb[0].mxu0 %v276
      %v315 = vpop.f32.mrb[0].mxu0
      %v316 = vadd.f32 0.0, %v315
      %v317 = vpop.f32.mrb[0].mxu0
      %v318 = vpop.f32.mrb[0].mxu0
      %v319 = vadd.f32 0.0, %v318
      %v320 = vpop.f32.mrb[0].mxu0
      %321 = vmatprep.mubr.bf16.mxu0 0
      %322 = vmatmul.mubr.bf16.gmra.mrb[0].mxu0 %v279
      %v323 = vpop.f32.mrb[0].mxu0
      %v324 = vadd.f32 0.0, %v323
      %v325 = vpop.f32.mrb[0].mxu0
      %v326 = vpop.f32.mrb[0].mxu0
      %v327 = vadd.f32 0.0, %v326
      %v328 = vpop.f32.mrb[0].mxu0
      %329 = vdwg.mxu0
      %v330 = vadd.f32 %v252, %v316
      %v331 = vadd.f32 %v253, %v319
      %v332 = vadd.f32 %v254, %v324
      %v333 = vadd.f32 %v255, %v327
      %334 = vst [vmem:[#allocation2] sm:$0xff] %v330
      %335 = vst [vmem:[#allocation2 + $0x8] sm:$0xff] %v331
      %336 = vst [vmem:[#allocation2 + $0x10] sm:$0xff] %v332
      %337 = vst [vmem:[#allocation2 + $0x18] sm:$0xff] %v333
      %p338 = scmp.eq.s32.totalorder %s27, 26
      // Predicated region
      $region41: #{densenet_forward.21} parent=35 // pred_check
        %p339 = pneg %p338
      $region42: #{densenet_forward.21} parent=35 // pred_check_branch
        %341 = sbr.rel (%p339) target = $region44
      $region43: #{densenet_forward.21} parent=35 // pred_region
        %v342 = vld [vmem:[#allocation2] sm:$0xff]
        %v343 = vld [vmem:[#allocation2 + $0x8] sm:$0xff]
        %v344 = vld [vmem:[#allocation2 + $0x10] sm:$0xff]
        %v345 = vld [vmem:[#allocation2 + $0x18] sm:$0xff]
        %v346 = vld [vmem:[%s3] sm:$0x1]
        %v348 = vlaneseq
        %v349 = vshrl.u32 %v348, 7
        %v350 = vsub.s32 0, %v349
        %v351 = vrot.slane %v346, %v350
        %v353 = vmul.f32 %v342, %v351
        %v354 = vmul.f32 %v343, %v351
        %v355 = vmul.f32 %v344, %v351
        %v356 = vmul.f32 %v345, %v351
        %v357 = vld [vmem:[%s4] sm:$0x1]
        %v359 = vlaneseq
        %v360 = vshrl.u32 %v359, 7
        %v361 = vsub.s32 0, %v360
        %v362 = vrot.slane %v357, %v361
        %v364 = vadd.f32 %v353, %v362
        %v365 = vadd.f32 %v354, %v362
        %v366 = vadd.f32 %v355, %v362
        %v367 = vadd.f32 %v356, %v362
        %v368 = vmax.f32 %v364, 0.0
        %v369 = vmax.f32 %v365, 0.0
        %v370 = vmax.f32 %v366, 0.0
        %v371 = vmax.f32 %v367, 0.0
        %372 = vst [vmem:[%s236] sm:$0xff] %v368
        %373 = vst [vmem:[%s236 + $0x8] sm:$0xff] %v369
        %374 = vst [vmem:[%s236 + $0x10] sm:$0xff] %v370
        %375 = vst [vmem:[%s236 + $0x18] sm:$0xff] %v371
      $region44: #{densenet_forward.21} parent=35 // pred_fallthru
        _
      %p376 = scmp.lt.s32.totalorder %s26, 1
      %s377 = scalar_select %p376, %s26, 1
      %s378 = smul.addr %s377, 4
      %s379 = smul.addr %s378, 8
      %s380 = scalar_lea.vmem %s5, %s379
      // Predicated region
      $region45: #{densenet_forward.21} parent=35 // pred_check
        %p381 = pneg %p146
      $region46: #{densenet_forward.21} parent=35 // pred_check_branch
        %383 = sbr.rel (%p381) target = $region48
      $region47: #{densenet_forward.21} parent=35 // pred_region
        _
      $region48: #{densenet_forward.21} parent=35 // pred_fallthru
        _
    $region36: #{densenet_forward.21} parent=5 // pred_fallthru
      _
    %p384 = scmp.le.s32.totalorder 2, %s17
    // Predicated region
    $region49: #{densenet_forward.21} parent=5 // pred_check
      %p385 = pneg %p384
    $region50: #{densenet_forward.21} parent=5 // pred_check_branch
      %387 = sbr.rel (%p385) target = $region52
    $region51: #{densenet_forward.21} parent=5 // pred_region
      %s388 = ssub.s32 %s17, 2
      // Predicated region
      $region53: #{densenet_forward.21} parent=51 // pred_check
        %p389 = pneg %p152
      $region54: #{densenet_forward.21} parent=51 // pred_check_branch
        %391 = sbr.rel (%p389) target = $region56
      $region55: #{densenet_forward.21} parent=51 // pred_region
        %p392 = scmp.lt.s32.totalorder %s28, 1
        %s393 = scalar_select %p392, %s28, 1
        %s394 = smul.addr %s393, 4
        %s395 = smul.addr %s394, 8
        %s396 = scalar_lea.vmem %s5, %s395
      $region56: #{densenet_forward.21} parent=51 // pred_fallthru
        _
    $region52: #{densenet_forward.21} parent=5 // pred_fallthru
      _
  $region6: #{densenet_forward.21} parent=0 // loop_footer
    %s21 = sadd.s32 1, %s17
  $region7: #{densenet_forward.21} parent=0 // loop_footer_branch
    %16 = sbr.rel target = $region3
  $region8: #{densenet_forward.21} parent=0 // loop_exit
    _

</llo_original>
